<compile_context>
chip_gen: v7x
topology: tpu7x:2x2x1
jax: 0.10.0
libtpu: 0.0.40
codegen_flags: <defaults>
</compile_context>

<pallas_src>
import numpy as np
import jax
import jax.numpy as jnp
from jax import lax
from jax.experimental import pallas as pl
from jax.experimental.pallas import tpu as pltpu


def _round_up(x, m):
    return (x + m - 1) // m * m


# ----------------------------------------------------------------------------
# Pallas kernel: one-hot gate-table gather + fused fwd/bwd unrolled recurrence.
# ----------------------------------------------------------------------------
def _bilstm_kernel(words_ref, len_ref, table_ref, whh_ref, out_ref):
    # words_ref:[T, Bt, 1] int32   len_ref:[Bt, 1] int32
    # table_ref:[Vp, 8*Hp] f32     (per-char input gates: fwd 4Hp | bwd 4Hp, bias folded)
    # whh_ref:[2*Hp, 8*Hp] bf16    (block-diagonal: h_f->fwd gates, h_b->bwd gates)
    # out_ref:[Bt, 2*Hp] f32
    T, Bt, _ = words_ref.shape
    Vp = table_ref.shape[0]
    Hp = table_ref.shape[1] // 8
    G = 4 * Hp

    # --- Hoisted per-token input-gate gather for ALL timesteps + both
    #     directions: one-hot(token) @ table on the MXU (exact values kept via
    #     HIGHEST; this single matmul is off the serial chain).
    tok = words_ref[...]                                           # [T, Bt, 1]
    vio = lax.broadcasted_iota(jnp.int32, (T, Bt, Vp), 2)
    onehot = (vio == tok).astype(jnp.float32)                      # [T, Bt, Vp]
    gx = jnp.dot(onehot.reshape(T * Bt, Vp), table_ref[...],
                 precision=lax.Precision.HIGHEST,
                 preferred_element_type=jnp.float32)               # [T*Bt, 8*Hp]

    # --- Per-timestep validity masks, hoisted, kept narrow ([T, Bt, 1]).
    lengths = len_ref[...]                                         # [Bt, 1]
    tio = lax.broadcasted_iota(jnp.int32, (T, Bt, 1), 0)
    valid = tio < lengths[None, :, :]                              # [T, Bt, 1]

    whh = whh_ref[...]                                             # [2*Hp, 8*Hp] bf16

    def activate(gates, c):
        i = jax.nn.sigmoid(gates[:, 0 * Hp:1 * Hp])
        f = jax.nn.sigmoid(gates[:, 1 * Hp:2 * Hp])
        g = jnp.tanh(gates[:, 2 * Hp:3 * Hp])
        o = jax.nn.sigmoid(gates[:, 3 * Hp:4 * Hp])
        c_new = f * c + i * g
        h_new = o * jnp.tanh(c_new)
        return h_new, c_new

    zeros = jnp.zeros((Bt, Hp), jnp.float32)
    h_f, c_f, h_b, c_b = zeros, zeros, zeros, zeros

    # --- Fully unrolled recurrence: one fused MXU matmul per timestep drives
    #     BOTH directions; every slice below is static and (8,128)-aligned.
    for t in range(T):
        tb = T - 1 - t
        h_cat = jnp.concatenate([h_f, h_b], axis=1).astype(jnp.bfloat16)
        gh = jnp.dot(h_cat, whh,
                     preferred_element_type=jnp.float32)           # [Bt, 8*Hp]
        # fwd consumes timestep t, bwd consumes timestep T-1-t
        gates_f = gx[t * Bt:(t + 1) * Bt, 0:G] + gh[:, 0:G]
        gates_b = gx[tb * Bt:(tb + 1) * Bt, G:2 * G] + gh[:, G:2 * G]

        h_fn, c_fn = activate(gates_f, c_f)
        h_bn, c_bn = activate(gates_b, c_b)

        vf = valid[t]
        vb = valid[tb]
        h_f = jnp.where(vf, h_fn, h_f)
        c_f = jnp.where(vf, c_fn, c_f)
        h_b = jnp.where(vb, h_bn, h_b)
        c_b = jnp.where(vb, c_bn, c_b)

    # Lane-dense, 128-aligned unmasked stores (no concat copy).
    out_ref[:, 0:Hp] = h_f
    out_ref[:, Hp:2 * Hp] = h_b


# ----------------------------------------------------------------------------
# Parameter construction (mirrors nn.Embedding + nn.LSTM shapes)
# ----------------------------------------------------------------------------
def init_char_rnn_params(key, n_chars, chars_embedding, hidden_dim):
    E, H = chars_embedding, hidden_dim
    ks = jax.random.split(key, 9)
    k = 1.0 / np.sqrt(H)

    emb = jax.random.normal(ks[0], (n_chars, E), jnp.float32)
    emb = emb.at[0].set(0.0)                      # padding_idx=0

    def u(kk, shape):
        return jax.random.uniform(kk, shape, jnp.float32, minval=-k, maxval=k)

    return dict(
        embedding=emb,
        wih_f=u(ks[1], (E, 4 * H)), whh_f=u(ks[2], (H, 4 * H)),
        b_f=(u(ks[3], (1, 4 * H)) + u(ks[4], (1, 4 * H))),
        wih_b=u(ks[5], (E, 4 * H)), whh_b=u(ks[6], (H, 4 * H)),
        b_b=(u(ks[7], (1, 4 * H)) + u(ks[8], (1, 4 * H))),
    )


# ----------------------------------------------------------------------------
# One-time repack into the kernel layout:
#   * per-character gate table  table[c] = [emb[c]@W_ih_f + b_f | emb[c]@W_ih_b + b_b]
#     with each gate block padded from H to Hp=round_up(H,128), rows padded to Vp.
#   * block-diagonal recurrent weights [2*Hp, 8*Hp] in bf16.
# Padded gate lanes get zero weights/bias -> padded hidden lanes stay exactly 0.
# ----------------------------------------------------------------------------
def pack_char_rnn_params(params):
    H = params["whh_f"].shape[0]
    V = params["embedding"].shape[0]
    Hp = _round_up(H, 128)
    Vp = _round_up(V, 128)

    def pad_gate_cols(w):                              # [..., 4H] -> [..., 4Hp]
        out = jnp.zeros(w.shape[:-1] + (4 * Hp,), jnp.float32)
        for k in range(4):
            out = out.at[..., k * Hp:k * Hp + H].set(w[..., k * H:(k + 1) * H])
        return out

    emb = params["embedding"].astype(jnp.float32)
    gx_f = pad_gate_cols(emb @ params["wih_f"] + params["b_f"])     # [V, 4*Hp]
    gx_b = pad_gate_cols(emb @ params["wih_b"] + params["b_b"])
    table = jnp.zeros((Vp, 8 * Hp), jnp.float32)
    table = table.at[:V, 0:4 * Hp].set(gx_f)
    table = table.at[:V, 4 * Hp:8 * Hp].set(gx_b)

    whh_f = pad_gate_cols(params["whh_f"])                          # [H, 4*Hp]
    whh_b = pad_gate_cols(params["whh_b"])
    whh = jnp.zeros((2 * Hp, 8 * Hp), jnp.float32)
    whh = whh.at[0:H, 0:4 * Hp].set(whh_f)                          # h_f -> fwd gates
    whh = whh.at[Hp:Hp + H, 4 * Hp:8 * Hp].set(whh_b)               # h_b -> bwd gates
    whh = whh.astype(jnp.bfloat16)

    return dict(gate_table=table, whh=whh, hidden_dim=H, hidden_pad=Hp)


# ----------------------------------------------------------------------------
# Wrapper: pad batch, time-major tokens, one pallas_call.
# ----------------------------------------------------------------------------
def char_rnn_forward(packed, words):
    B, T = words.shape
    H = packed["hidden_dim"]
    Hp = packed["hidden_pad"]
    Vp = packed["gate_table"].shape[0]

    # Small batches: one sublane-aligned tile.  Large batches: 128-row tiles and
    # a multi-tile "parallel" grid (v7x uses both TensorCores).
    if B <= 128:
        B_tile = max(_round_up(B, 8), 8)
        B_pad = B_tile
    else:
        B_tile = 128
        B_pad = _round_up(B, 128)

    lengths_vec = (words != 0).astype(jnp.int32).sum(axis=1)            # [B]
    lengths = jnp.zeros((B_pad, 1), jnp.int32).at[:B, 0].set(lengths_vec)

    # Time-major token ids only — no embedding materialization in HBM.
    words_tm = jnp.zeros((T, B_pad, 1), jnp.int32).at[:, :B, 0].set(words.T)

    grid = (B_pad // B_tile,)
    out = pl.pallas_call(
        _bilstm_kernel,
        out_shape=jax.ShapeDtypeStruct((B_pad, 2 * Hp), jnp.float32),
        grid_spec=pltpu.PrefetchScalarGridSpec(
            num_scalar_prefetch=0,
            grid=grid,
            in_specs=[
                pl.BlockSpec((T, B_tile, 1), lambda b: (0, b, 0)),    # token ids
                pl.BlockSpec((B_tile, 1), lambda b: (b, 0)),          # lengths
                pl.BlockSpec((Vp, 8 * Hp), lambda b: (0, 0)),         # gate table
                pl.BlockSpec((2 * Hp, 8 * Hp), lambda b: (0, 0)),     # block-diag W_hh
            ],
            out_specs=pl.BlockSpec((B_tile, 2 * Hp), lambda b: (b, 0)),
        ),
        compiler_params=pltpu.CompilerParams(
            dimension_semantics=("parallel",),
            vmem_limit_bytes=32 * 1024 * 1024,   # fits every generation (v7x: 64 MiB phys)
        ),
    )(words_tm, lengths, packed["gate_table"], packed["whh"])

    # Strip batch/hidden padding; concat(h_fwd, h_bwd) per original row.
    return jnp.concatenate([out[:B, :H], out[:B, Hp:Hp + H]], axis=-1)


# ----------------------------------------------------------------------------
# Pure-numpy reference (packed-sequence semantics: only valid tokens processed)
# ----------------------------------------------------------------------------
def _reference(params, words):
    emb = np.asarray(params["embedding"])
    wih_f, whh_f, b_f = map(np.asarray, (params["wih_f"], params["whh_f"], params["b_f"]))
    wih_b, whh_b, b_b = map(np.asarray, (params["wih_b"], params["whh_b"], params["b_b"]))
    words = np.asarray(words)
    B, T = words.shape
    H = whh_f.shape[0]

    def cell(x, h, c, wih, whh, b):
        g = x @ wih + h @ whh + b.reshape(-1)
        i = 1 / (1 + np.exp(-g[0 * H:1 * H]))
        f = 1 / (1 + np.exp(-g[1 * H:2 * H]))
        gg = np.tanh(g[2 * H:3 * H])
        o = 1 / (1 + np.exp(-g[3 * H:4 * H]))
        c = f * c + i * gg
        h = o * np.tanh(c)
        return h, c

    out = np.zeros((B, 2 * H), np.float32)
    for bi in range(B):
        L = int((words[bi] != 0).sum())
        xs = emb[words[bi, :L]]
        h, c = np.zeros(H), np.zeros(H)
        for t in range(L):
            h, c = cell(xs[t], h, c, wih_f, whh_f, b_f)
        out[bi, :H] = h
        h, c = np.zeros(H), np.zeros(H)
        for t in reversed(range(L)):
            h, c = cell(xs[t], h, c, wih_b, whh_b, b_b)
        out[bi, H:] = h
    return out


if __name__ == "__main__":
    N_CHARS, CHARS_EMBEDDING, HIDDEN_DIM = 16, 8, 32
    B, T = 4, 8

    key = jax.random.PRNGKey(0)
    params = init_char_rnn_params(key, N_CHARS, CHARS_EMBEDDING, HIDDEN_DIM)
    packed = pack_char_rnn_params(params)

    # deterministic padded char-index batch (trailing zeros = padding, all lengths >= 1)
    words = jnp.array([
        [3, 5, 7, 2, 9, 1, 4, 6],    # length 8
        [2, 8, 4, 1, 0, 0, 0, 0],    # length 4
        [5, 3, 0, 0, 0, 0, 0, 0],    # length 2
        [7, 1, 9, 11, 6, 0, 0, 0],   # length 5
    ], dtype=jnp.int32)

    out = char_rnn_forward(packed, words)
    out = jax.block_until_ready(out)

    ref = _reference(params, words)
    # Recurrent matmul runs in bf16 (with f32 accumulation/state math), so the
    # tolerance is loosened vs the previous all-f32-HIGHEST version.
    np.testing.assert_allclose(np.asarray(out), ref, rtol=2e-2, atol=2e-2)

    print("KERNEL_OK")
</pallas_src>

<mosaic_0001>
module attributes {stable_mosaic.version = 11 : i64} {
  func.func @_bilstm_kernel(%arg0: i32, %arg1: memref<8x8x1xi32, #tpu.memory_space<vmem>>, %arg2: memref<8x1xi32, #tpu.memory_space<vmem>>, %arg3: memref<128x1024xf32, #tpu.memory_space<vmem>>, %arg4: memref<256x1024xbf16, #tpu.memory_space<vmem>>, %arg5: memref<8x256xf32, #tpu.memory_space<vmem>>) attributes {dimension_semantics = [#tpu.dimension_semantics<parallel>], iteration_bounds = array<i64: 1>, scalar_prefetch = 0 : i64, scratch_operands = 0 : i64, tpu.core_type = #tpu.core_type<tc>, window_params = [{transform_indices = @transform_0, window_bounds = array<i64: 8, 8, 1>}, {transform_indices = @transform_1, window_bounds = array<i64: 8, 1>}, {pipeline_mode = #tpu.pipeline_mode<synchronous>, transform_indices = @transform_2, window_bounds = array<i64: 128, 1024>}, {pipeline_mode = #tpu.pipeline_mode<synchronous>, transform_indices = @transform_3, window_bounds = array<i64: 256, 1024>}, {transform_indices = @transform_4, window_bounds = array<i64: 8, 256>}]} {
    %c0 = arith.constant 0 : index
    %c0_0 = arith.constant 0 : index
    %c0_1 = arith.constant 0 : index
    %0 = vector.load %arg1[%c0, %c0_0, %c0_1] : memref<8x8x1xi32, #tpu.memory_space<vmem>>, vector<8x8x1xi32>
    %1 = tpu.iota {dimensions = array<i32: 2>} : vector<8x8x128xi32>
    %2 = vector.broadcast %0 : vector<8x8x1xi32> to vector<8x8x128xi32>
    %3 = arith.cmpi eq, %1, %2 : vector<8x8x128xi32>
    %4 = arith.extui %3 : vector<8x8x128xi1> to vector<8x8x128xi32>
    %5 = arith.sitofp %4 : vector<8x8x128xi32> to vector<8x8x128xf32>
    %6 = vector.shape_cast %5 : vector<8x8x128xf32> to vector<64x128xf32>
    %c0_2 = arith.constant 0 : index
    %c0_3 = arith.constant 0 : index
    %7 = vector.load %arg3[%c0_2, %c0_3] : memref<128x1024xf32, #tpu.memory_space<vmem>>, vector<128x1024xf32>
    %cst = arith.constant dense<0.000000e+00> : vector<64x1024xf32>
    %8 = tpu.matmul %6, %7, %cst {dimension_numbers = #tpu.dot_dimension_numbers<[1], [0], [0], [1], [0, 0, 1, 1], [], []>, precision = #tpu.contract_precision<fp32>} : vector<64x128xf32>, vector<128x1024xf32>, vector<64x1024xf32> -> vector<64x1024xf32>
    %c0_4 = arith.constant 0 : index
    %c0_5 = arith.constant 0 : index
    %9 = vector.load %arg2[%c0_4, %c0_5] : memref<8x1xi32, #tpu.memory_space<vmem>>, vector<8x1xi32>
    %10 = tpu.iota {dimensions = array<i32: 0>} : vector<8x8x1xi32>
    %11 = vector.shape_cast %9 : vector<8x1xi32> to vector<1x8x1xi32>
    %12 = vector.broadcast %11 : vector<1x8x1xi32> to vector<8x8x1xi32>
    %13 = arith.cmpi slt, %10, %12 : vector<8x8x1xi32>
    %c0_6 = arith.constant 0 : index
    %c0_7 = arith.constant 0 : index
    %14 = vector.load %arg4[%c0_6, %c0_7] : memref<256x1024xbf16, #tpu.memory_space<vmem>>, vector<256x1024xbf16>
    %cst_8 = arith.constant 0.000000e+00 : f32
    %15 = vector.broadcast %cst_8 : f32 to vector<8x128xf32>
    %16 = tpu.concatenate %15, %15 in 1 : vector<8x128xf32>, vector<8x128xf32> -> vector<8x256xf32>
    %17 = arith.truncf %16 : vector<8x256xf32> to vector<8x256xbf16>
    %cst_9 = arith.constant dense<0.000000e+00> : vector<8x1024xf32>
    %18 = tpu.matmul %17, %14, %cst_9 {dimension_numbers = #tpu.dot_dimension_numbers<[1], [0], [0], [1], [0, 0, 1, 1], [], []>} : vector<8x256xbf16>, vector<256x1024xbf16>, vector<8x1024xf32> -> vector<8x1024xf32>
    %19 = vector.extract_strided_slice %8 {offsets = [0, 0], sizes = [8, 512], strides = [1, 1]} : vector<64x1024xf32> to vector<8x512xf32>
    %20 = vector.extract_strided_slice %18 {offsets = [0, 0], sizes = [8, 512], strides = [1, 1]} : vector<8x1024xf32> to vector<8x512xf32>
    %21 = arith.addf %19, %20 : vector<8x512xf32>
    %22 = vector.extract_strided_slice %8 {offsets = [56, 512], sizes = [8, 512], strides = [1, 1]} : vector<64x1024xf32> to vector<8x512xf32>
    %23 = vector.extract_strided_slice %18 {offsets = [0, 512], sizes = [8, 512], strides = [1, 1]} : vector<8x1024xf32> to vector<8x512xf32>
    %24 = arith.addf %22, %23 : vector<8x512xf32>
    %25 = vector.extract_strided_slice %21 {offsets = [0, 0], sizes = [8, 128], strides = [1, 1]} : vector<8x512xf32> to vector<8x128xf32>
    %26 = arith.negf %25 : vector<8x128xf32>
    %27 = math.exp %26 : vector<8x128xf32>
    %cst_10 = arith.constant 1.000000e+00 : f32
    %28 = vector.broadcast %cst_10 : f32 to vector<8x128xf32>
    %29 = arith.addf %28, %27 : vector<8x128xf32>
    %30 = arith.divf %28, %29 : vector<8x128xf32>
    %31 = vector.extract_strided_slice %21 {offsets = [0, 128], sizes = [8, 128], strides = [1, 1]} : vector<8x512xf32> to vector<8x128xf32>
    %32 = arith.negf %31 : vector<8x128xf32>
    %33 = math.exp %32 : vector<8x128xf32>
    %cst_11 = arith.constant 1.000000e+00 : f32
    %34 = vector.broadcast %cst_11 : f32 to vector<8x128xf32>
    %35 = arith.addf %34, %33 : vector<8x128xf32>
    %36 = arith.divf %34, %35 : vector<8x128xf32>
    %37 = vector.extract_strided_slice %21 {offsets = [0, 256], sizes = [8, 128], strides = [1, 1]} : vector<8x512xf32> to vector<8x128xf32>
    %38 = math.tanh %37 : vector<8x128xf32>
    %39 = vector.extract_strided_slice %21 {offsets = [0, 384], sizes = [8, 128], strides = [1, 1]} : vector<8x512xf32> to vector<8x128xf32>
    %40 = arith.negf %39 : vector<8x128xf32>
    %41 = math.exp %40 : vector<8x128xf32>
    %cst_12 = arith.constant 1.000000e+00 : f32
    %42 = vector.broadcast %cst_12 : f32 to vector<8x128xf32>
    %43 = arith.addf %42, %41 : vector<8x128xf32>
    %44 = arith.divf %42, %43 : vector<8x128xf32>
    %45 = arith.mulf %36, %15 : vector<8x128xf32>
    %46 = arith.mulf %30, %38 : vector<8x128xf32>
    %47 = arith.addf %45, %46 : vector<8x128xf32>
    %48 = math.tanh %47 : vector<8x128xf32>
    %49 = arith.mulf %44, %48 : vector<8x128xf32>
    %50 = vector.extract_strided_slice %24 {offsets = [0, 0], sizes = [8, 128], strides = [1, 1]} : vector<8x512xf32> to vector<8x128xf32>
    %51 = arith.negf %50 : vector<8x128xf32>
    %52 = math.exp %51 : vector<8x128xf32>
    %cst_13 = arith.constant 1.000000e+00 : f32
    %53 = vector.broadcast %cst_13 : f32 to vector<8x128xf32>
    %54 = arith.addf %53, %52 : vector<8x128xf32>
    %55 = arith.divf %53, %54 : vector<8x128xf32>
    %56 = vector.extract_strided_slice %24 {offsets = [0, 128], sizes = [8, 128], strides = [1, 1]} : vector<8x512xf32> to vector<8x128xf32>
    %57 = arith.negf %56 : vector<8x128xf32>
    %58 = math.exp %57 : vector<8x128xf32>
    %cst_14 = arith.constant 1.000000e+00 : f32
    %59 = vector.broadcast %cst_14 : f32 to vector<8x128xf32>
    %60 = arith.addf %59, %58 : vector<8x128xf32>
    %61 = arith.divf %59, %60 : vector<8x128xf32>
    %62 = vector.extract_strided_slice %24 {offsets = [0, 256], sizes = [8, 128], strides = [1, 1]} : vector<8x512xf32> to vector<8x128xf32>
    %63 = math.tanh %62 : vector<8x128xf32>
    %64 = vector.extract_strided_slice %24 {offsets = [0, 384], sizes = [8, 128], strides = [1, 1]} : vector<8x512xf32> to vector<8x128xf32>
    %65 = arith.negf %64 : vector<8x128xf32>
    %66 = math.exp %65 : vector<8x128xf32>
    %cst_15 = arith.constant 1.000000e+00 : f32
    %67 = vector.broadcast %cst_15 : f32 to vector<8x128xf32>
    %68 = arith.addf %67, %66 : vector<8x128xf32>
    %69 = arith.divf %67, %68 : vector<8x128xf32>
    %70 = arith.mulf %61, %15 : vector<8x128xf32>
    %71 = arith.mulf %55, %63 : vector<8x128xf32>
    %72 = arith.addf %70, %71 : vector<8x128xf32>
    %73 = math.tanh %72 : vector<8x128xf32>
    %74 = arith.mulf %69, %73 : vector<8x128xf32>
    %75 = vector.extract_strided_slice %13 {offsets = [0, 0, 0], sizes = [1, 8, 1], strides = [1, 1, 1]} : vector<8x8x1xi1> to vector<1x8x1xi1>
    %76 = vector.shape_cast %75 : vector<1x8x1xi1> to vector<8x1xi1>
    %77 = vector.extract_strided_slice %13 {offsets = [7, 0, 0], sizes = [1, 8, 1], strides = [1, 1, 1]} : vector<8x8x1xi1> to vector<1x8x1xi1>
    %78 = vector.shape_cast %77 : vector<1x8x1xi1> to vector<8x1xi1>
    %79 = vector.shape_cast %76 : vector<8x1xi1> to vector<8x1xi1>
    %80 = vector.broadcast %79 : vector<8x1xi1> to vector<8x128xi1>
    %81 = arith.select %80, %49, %15 : vector<8x128xi1>, vector<8x128xf32>
    %82 = vector.shape_cast %76 : vector<8x1xi1> to vector<8x1xi1>
    %83 = vector.broadcast %82 : vector<8x1xi1> to vector<8x128xi1>
    %84 = arith.select %83, %47, %15 : vector<8x128xi1>, vector<8x128xf32>
    %85 = vector.shape_cast %78 : vector<8x1xi1> to vector<8x1xi1>
    %86 = vector.broadcast %85 : vector<8x1xi1> to vector<8x128xi1>
    %87 = arith.select %86, %74, %15 : vector<8x128xi1>, vector<8x128xf32>
    %88 = vector.shape_cast %78 : vector<8x1xi1> to vector<8x1xi1>
    %89 = vector.broadcast %88 : vector<8x1xi1> to vector<8x128xi1>
    %90 = arith.select %89, %72, %15 : vector<8x128xi1>, vector<8x128xf32>
    %91 = tpu.concatenate %81, %87 in 1 : vector<8x128xf32>, vector<8x128xf32> -> vector<8x256xf32>
    %92 = arith.truncf %91 : vector<8x256xf32> to vector<8x256xbf16>
    %cst_16 = arith.constant dense<0.000000e+00> : vector<8x1024xf32>
    %93 = tpu.matmul %92, %14, %cst_16 {dimension_numbers = #tpu.dot_dimension_numbers<[1], [0], [0], [1], [0, 0, 1, 1], [], []>} : vector<8x256xbf16>, vector<256x1024xbf16>, vector<8x1024xf32> -> vector<8x1024xf32>
    %94 = vector.extract_strided_slice %8 {offsets = [8, 0], sizes = [8, 512], strides = [1, 1]} : vector<64x1024xf32> to vector<8x512xf32>
    %95 = vector.extract_strided_slice %93 {offsets = [0, 0], sizes = [8, 512], strides = [1, 1]} : vector<8x1024xf32> to vector<8x512xf32>
    %96 = arith.addf %94, %95 : vector<8x512xf32>
    %97 = vector.extract_strided_slice %8 {offsets = [48, 512], sizes = [8, 512], strides = [1, 1]} : vector<64x1024xf32> to vector<8x512xf32>
    %98 = vector.extract_strided_slice %93 {offsets = [0, 512], sizes = [8, 512], strides = [1, 1]} : vector<8x1024xf32> to vector<8x512xf32>
    %99 = arith.addf %97, %98 : vector<8x512xf32>
    %100 = vector.extract_strided_slice %96 {offsets = [0, 0], sizes = [8, 128], strides = [1, 1]} : vector<8x512xf32> to vector<8x128xf32>
    %101 = arith.negf %100 : vector<8x128xf32>
    %102 = math.exp %101 : vector<8x128xf32>
    %cst_17 = arith.constant 1.000000e+00 : f32
    %103 = vector.broadcast %cst_17 : f32 to vector<8x128xf32>
    %104 = arith.addf %103, %102 : vector<8x128xf32>
    %105 = arith.divf %103, %104 : vector<8x128xf32>
    %106 = vector.extract_strided_slice %96 {offsets = [0, 128], sizes = [8, 128], strides = [1, 1]} : vector<8x512xf32> to vector<8x128xf32>
    %107 = arith.negf %106 : vector<8x128xf32>
    %108 = math.exp %107 : vector<8x128xf32>
    %cst_18 = arith.constant 1.000000e+00 : f32
    %109 = vector.broadcast %cst_18 : f32 to vector<8x128xf32>
    %110 = arith.addf %109, %108 : vector<8x128xf32>
    %111 = arith.divf %109, %110 : vector<8x128xf32>
    %112 = vector.extract_strided_slice %96 {offsets = [0, 256], sizes = [8, 128], strides = [1, 1]} : vector<8x512xf32> to vector<8x128xf32>
    %113 = math.tanh %112 : vector<8x128xf32>
    %114 = vector.extract_strided_slice %96 {offsets = [0, 384], sizes = [8, 128], strides = [1, 1]} : vector<8x512xf32> to vector<8x128xf32>
    %115 = arith.negf %114 : vector<8x128xf32>
    %116 = math.exp %115 : vector<8x128xf32>
    %cst_19 = arith.constant 1.000000e+00 : f32
    %117 = vector.broadcast %cst_19 : f32 to vector<8x128xf32>
    %118 = arith.addf %117, %116 : vector<8x128xf32>
    %119 = arith.divf %117, %118 : vector<8x128xf32>
    %120 = arith.mulf %111, %84 : vector<8x128xf32>
    %121 = arith.mulf %105, %113 : vector<8x128xf32>
    %122 = arith.addf %120, %121 : vector<8x128xf32>
    %123 = math.tanh %122 : vector<8x128xf32>
    %124 = arith.mulf %119, %123 : vector<8x128xf32>
    %125 = vector.extract_strided_slice %99 {offsets = [0, 0], sizes = [8, 128], strides = [1, 1]} : vector<8x512xf32> to vector<8x128xf32>
    %126 = arith.negf %125 : vector<8x128xf32>
    %127 = math.exp %126 : vector<8x128xf32>
    %cst_20 = arith.constant 1.000000e+00 : f32
    %128 = vector.broadcast %cst_20 : f32 to vector<8x128xf32>
    %129 = arith.addf %128, %127 : vector<8x128xf32>
    %130 = arith.divf %128, %129 : vector<8x128xf32>
    %131 = vector.extract_strided_slice %99 {offsets = [0, 128], sizes = [8, 128], strides = [1, 1]} : vector<8x512xf32> to vector<8x128xf32>
    %132 = arith.negf %131 : vector<8x128xf32>
    %133 = math.exp %132 : vector<8x128xf32>
    %cst_21 = arith.constant 1.000000e+00 : f32
    %134 = vector.broadcast %cst_21 : f32 to vector<8x128xf32>
    %135 = arith.addf %134, %133 : vector<8x128xf32>
    %136 = arith.divf %134, %135 : vector<8x128xf32>
    %137 = vector.extract_strided_slice %99 {offsets = [0, 256], sizes = [8, 128], strides = [1, 1]} : vector<8x512xf32> to vector<8x128xf32>
    %138 = math.tanh %137 : vector<8x128xf32>
    %139 = vector.extract_strided_slice %99 {offsets = [0, 384], sizes = [8, 128], strides = [1, 1]} : vector<8x512xf32> to vector<8x128xf32>
    %140 = arith.negf %139 : vector<8x128xf32>
    %141 = math.exp %140 : vector<8x128xf32>
    %cst_22 = arith.constant 1.000000e+00 : f32
    %142 = vector.broadcast %cst_22 : f32 to vector<8x128xf32>
    %143 = arith.addf %142, %141 : vector<8x128xf32>
    %144 = arith.divf %142, %143 : vector<8x128xf32>
    %145 = arith.mulf %136, %90 : vector<8x128xf32>
    %146 = arith.mulf %130, %138 : vector<8x128xf32>
    %147 = arith.addf %145, %146 : vector<8x128xf32>
    %148 = math.tanh %147 : vector<8x128xf32>
    %149 = arith.mulf %144, %148 : vector<8x128xf32>
    %150 = vector.extract_strided_slice %13 {offsets = [1, 0, 0], sizes = [1, 8, 1], strides = [1, 1, 1]} : vector<8x8x1xi1> to vector<1x8x1xi1>
    %151 = vector.shape_cast %150 : vector<1x8x1xi1> to vector<8x1xi1>
    %152 = vector.extract_strided_slice %13 {offsets = [6, 0, 0], sizes = [1, 8, 1], strides = [1, 1, 1]} : vector<8x8x1xi1> to vector<1x8x1xi1>
    %153 = vector.shape_cast %152 : vector<1x8x1xi1> to vector<8x1xi1>
    %154 = vector.shape_cast %151 : vector<8x1xi1> to vector<8x1xi1>
    %155 = vector.broadcast %154 : vector<8x1xi1> to vector<8x128xi1>
    %156 = arith.select %155, %124, %81 : vector<8x128xi1>, vector<8x128xf32>
    %157 = vector.shape_cast %151 : vector<8x1xi1> to vector<8x1xi1>
    %158 = vector.broadcast %157 : vector<8x1xi1> to vector<8x128xi1>
    %159 = arith.select %158, %122, %84 : vector<8x128xi1>, vector<8x128xf32>
    %160 = vector.shape_cast %153 : vector<8x1xi1> to vector<8x1xi1>
    %161 = vector.broadcast %160 : vector<8x1xi1> to vector<8x128xi1>
    %162 = arith.select %161, %149, %87 : vector<8x128xi1>, vector<8x128xf32>
    %163 = vector.shape_cast %153 : vector<8x1xi1> to vector<8x1xi1>
    %164 = vector.broadcast %163 : vector<8x1xi1> to vector<8x128xi1>
    %165 = arith.select %164, %147, %90 : vector<8x128xi1>, vector<8x128xf32>
    %166 = tpu.concatenate %156, %162 in 1 : vector<8x128xf32>, vector<8x128xf32> -> vector<8x256xf32>
    %167 = arith.truncf %166 : vector<8x256xf32> to vector<8x256xbf16>
    %cst_23 = arith.constant dense<0.000000e+00> : vector<8x1024xf32>
    %168 = tpu.matmul %167, %14, %cst_23 {dimension_numbers = #tpu.dot_dimension_numbers<[1], [0], [0], [1], [0, 0, 1, 1], [], []>} : vector<8x256xbf16>, vector<256x1024xbf16>, vector<8x1024xf32> -> vector<8x1024xf32>
    %169 = vector.extract_strided_slice %8 {offsets = [16, 0], sizes = [8, 512], strides = [1, 1]} : vector<64x1024xf32> to vector<8x512xf32>
    %170 = vector.extract_strided_slice %168 {offsets = [0, 0], sizes = [8, 512], strides = [1, 1]} : vector<8x1024xf32> to vector<8x512xf32>
    %171 = arith.addf %169, %170 : vector<8x512xf32>
    %172 = vector.extract_strided_slice %8 {offsets = [40, 512], sizes = [8, 512], strides = [1, 1]} : vector<64x1024xf32> to vector<8x512xf32>
    %173 = vector.extract_strided_slice %168 {offsets = [0, 512], sizes = [8, 512], strides = [1, 1]} : vector<8x1024xf32> to vector<8x512xf32>
    %174 = arith.addf %172, %173 : vector<8x512xf32>
    %175 = vector.extract_strided_slice %171 {offsets = [0, 0], sizes = [8, 128], strides = [1, 1]} : vector<8x512xf32> to vector<8x128xf32>
    %176 = arith.negf %175 : vector<8x128xf32>
    %177 = math.exp %176 : vector<8x128xf32>
    %cst_24 = arith.constant 1.000000e+00 : f32
    %178 = vector.broadcast %cst_24 : f32 to vector<8x128xf32>
    %179 = arith.addf %178, %177 : vector<8x128xf32>
    %180 = arith.divf %178, %179 : vector<8x128xf32>
    %181 = vector.extract_strided_slice %171 {offsets = [0, 128], sizes = [8, 128], strides = [1, 1]} : vector<8x512xf32> to vector<8x128xf32>
    %182 = arith.negf %181 : vector<8x128xf32>
    %183 = math.exp %182 : vector<8x128xf32>
    %cst_25 = arith.constant 1.000000e+00 : f32
    %184 = vector.broadcast %cst_25 : f32 to vector<8x128xf32>
    %185 = arith.addf %184, %183 : vector<8x128xf32>
    %186 = arith.divf %184, %185 : vector<8x128xf32>
    %187 = vector.extract_strided_slice %171 {offsets = [0, 256], sizes = [8, 128], strides = [1, 1]} : vector<8x512xf32> to vector<8x128xf32>
    %188 = math.tanh %187 : vector<8x128xf32>
    %189 = vector.extract_strided_slice %171 {offsets = [0, 384], sizes = [8, 128], strides = [1, 1]} : vector<8x512xf32> to vector<8x128xf32>
    %190 = arith.negf %189 : vector<8x128xf32>
    %191 = math.exp %190 : vector<8x128xf32>
    %cst_26 = arith.constant 1.000000e+00 : f32
    %192 = vector.broadcast %cst_26 : f32 to vector<8x128xf32>
    %193 = arith.addf %192, %191 : vector<8x128xf32>
    %194 = arith.divf %192, %193 : vector<8x128xf32>
    %195 = arith.mulf %186, %159 : vector<8x128xf32>
    %196 = arith.mulf %180, %188 : vector<8x128xf32>
    %197 = arith.addf %195, %196 : vector<8x128xf32>
    %198 = math.tanh %197 : vector<8x128xf32>
    %199 = arith.mulf %194, %198 : vector<8x128xf32>
    %200 = vector.extract_strided_slice %174 {offsets = [0, 0], sizes = [8, 128], strides = [1, 1]} : vector<8x512xf32> to vector<8x128xf32>
    %201 = arith.negf %200 : vector<8x128xf32>
    %202 = math.exp %201 : vector<8x128xf32>
    %cst_27 = arith.constant 1.000000e+00 : f32
    %203 = vector.broadcast %cst_27 : f32 to vector<8x128xf32>
    %204 = arith.addf %203, %202 : vector<8x128xf32>
    %205 = arith.divf %203, %204 : vector<8x128xf32>
    %206 = vector.extract_strided_slice %174 {offsets = [0, 128], sizes = [8, 128], strides = [1, 1]} : vector<8x512xf32> to vector<8x128xf32>
    %207 = arith.negf %206 : vector<8x128xf32>
    %208 = math.exp %207 : vector<8x128xf32>
    %cst_28 = arith.constant 1.000000e+00 : f32
    %209 = vector.broadcast %cst_28 : f32 to vector<8x128xf32>
    %210 = arith.addf %209, %208 : vector<8x128xf32>
    %211 = arith.divf %209, %210 : vector<8x128xf32>
    %212 = vector.extract_strided_slice %174 {offsets = [0, 256], sizes = [8, 128], strides = [1, 1]} : vector<8x512xf32> to vector<8x128xf32>
    %213 = math.tanh %212 : vector<8x128xf32>
    %214 = vector.extract_strided_slice %174 {offsets = [0, 384], sizes = [8, 128], strides = [1, 1]} : vector<8x512xf32> to vector<8x128xf32>
    %215 = arith.negf %214 : vector<8x128xf32>
    %216 = math.exp %215 : vector<8x128xf32>
    %cst_29 = arith.constant 1.000000e+00 : f32
    %217 = vector.broadcast %cst_29 : f32 to vector<8x128xf32>
    %218 = arith.addf %217, %216 : vector<8x128xf32>
    %219 = arith.divf %217, %218 : vector<8x128xf32>
    %220 = arith.mulf %211, %165 : vector<8x128xf32>
    %221 = arith.mulf %205, %213 : vector<8x128xf32>
    %222 = arith.addf %220, %221 : vector<8x128xf32>
    %223 = math.tanh %222 : vector<8x128xf32>
    %224 = arith.mulf %219, %223 : vector<8x128xf32>
    %225 = vector.extract_strided_slice %13 {offsets = [2, 0, 0], sizes = [1, 8, 1], strides = [1, 1, 1]} : vector<8x8x1xi1> to vector<1x8x1xi1>
    %226 = vector.shape_cast %225 : vector<1x8x1xi1> to vector<8x1xi1>
    %227 = vector.extract_strided_slice %13 {offsets = [5, 0, 0], sizes = [1, 8, 1], strides = [1, 1, 1]} : vector<8x8x1xi1> to vector<1x8x1xi1>
    %228 = vector.shape_cast %227 : vector<1x8x1xi1> to vector<8x1xi1>
    %229 = vector.shape_cast %226 : vector<8x1xi1> to vector<8x1xi1>
    %230 = vector.broadcast %229 : vector<8x1xi1> to vector<8x128xi1>
    %231 = arith.select %230, %199, %156 : vector<8x128xi1>, vector<8x128xf32>
    %232 = vector.shape_cast %226 : vector<8x1xi1> to vector<8x1xi1>
    %233 = vector.broadcast %232 : vector<8x1xi1> to vector<8x128xi1>
    %234 = arith.select %233, %197, %159 : vector<8x128xi1>, vector<8x128xf32>
    %235 = vector.shape_cast %228 : vector<8x1xi1> to vector<8x1xi1>
    %236 = vector.broadcast %235 : vector<8x1xi1> to vector<8x128xi1>
    %237 = arith.select %236, %224, %162 : vector<8x128xi1>, vector<8x128xf32>
    %238 = vector.shape_cast %228 : vector<8x1xi1> to vector<8x1xi1>
    %239 = vector.broadcast %238 : vector<8x1xi1> to vector<8x128xi1>
    %240 = arith.select %239, %222, %165 : vector<8x128xi1>, vector<8x128xf32>
    %241 = tpu.concatenate %231, %237 in 1 : vector<8x128xf32>, vector<8x128xf32> -> vector<8x256xf32>
    %242 = arith.truncf %241 : vector<8x256xf32> to vector<8x256xbf16>
    %cst_30 = arith.constant dense<0.000000e+00> : vector<8x1024xf32>
    %243 = tpu.matmul %242, %14, %cst_30 {dimension_numbers = #tpu.dot_dimension_numbers<[1], [0], [0], [1], [0, 0, 1, 1], [], []>} : vector<8x256xbf16>, vector<256x1024xbf16>, vector<8x1024xf32> -> vector<8x1024xf32>
    %244 = vector.extract_strided_slice %8 {offsets = [24, 0], sizes = [8, 512], strides = [1, 1]} : vector<64x1024xf32> to vector<8x512xf32>
    %245 = vector.extract_strided_slice %243 {offsets = [0, 0], sizes = [8, 512], strides = [1, 1]} : vector<8x1024xf32> to vector<8x512xf32>
    %246 = arith.addf %244, %245 : vector<8x512xf32>
    %247 = vector.extract_strided_slice %8 {offsets = [32, 512], sizes = [8, 512], strides = [1, 1]} : vector<64x1024xf32> to vector<8x512xf32>
    %248 = vector.extract_strided_slice %243 {offsets = [0, 512], sizes = [8, 512], strides = [1, 1]} : vector<8x1024xf32> to vector<8x512xf32>
    %249 = arith.addf %247, %248 : vector<8x512xf32>
    %250 = vector.extract_strided_slice %246 {offsets = [0, 0], sizes = [8, 128], strides = [1, 1]} : vector<8x512xf32> to vector<8x128xf32>
    %251 = arith.negf %250 : vector<8x128xf32>
    %252 = math.exp %251 : vector<8x128xf32>
    %cst_31 = arith.constant 1.000000e+00 : f32
    %253 = vector.broadcast %cst_31 : f32 to vector<8x128xf32>
    %254 = arith.addf %253, %252 : vector<8x128xf32>
    %255 = arith.divf %253, %254 : vector<8x128xf32>
    %256 = vector.extract_strided_slice %246 {offsets = [0, 128], sizes = [8, 128], strides = [1, 1]} : vector<8x512xf32> to vector<8x128xf32>
    %257 = arith.negf %256 : vector<8x128xf32>
    %258 = math.exp %257 : vector<8x128xf32>
    %cst_32 = arith.constant 1.000000e+00 : f32
    %259 = vector.broadcast %cst_32 : f32 to vector<8x128xf32>
    %260 = arith.addf %259, %258 : vector<8x128xf32>
    %261 = arith.divf %259, %260 : vector<8x128xf32>
    %262 = vector.extract_strided_slice %246 {offsets = [0, 256], sizes = [8, 128], strides = [1, 1]} : vector<8x512xf32> to vector<8x128xf32>
    %263 = math.tanh %262 : vector<8x128xf32>
    %264 = vector.extract_strided_slice %246 {offsets = [0, 384], sizes = [8, 128], strides = [1, 1]} : vector<8x512xf32> to vector<8x128xf32>
    %265 = arith.negf %264 : vector<8x128xf32>
    %266 = math.exp %265 : vector<8x128xf32>
    %cst_33 = arith.constant 1.000000e+00 : f32
    %267 = vector.broadcast %cst_33 : f32 to vector<8x128xf32>
    %268 = arith.addf %267, %266 : vector<8x128xf32>
    %269 = arith.divf %267, %268 : vector<8x128xf32>
    %270 = arith.mulf %261, %234 : vector<8x128xf32>
    %271 = arith.mulf %255, %263 : vector<8x128xf32>
    %272 = arith.addf %270, %271 : vector<8x128xf32>
    %273 = math.tanh %272 : vector<8x128xf32>
    %274 = arith.mulf %269, %273 : vector<8x128xf32>
    %275 = vector.extract_strided_slice %249 {offsets = [0, 0], sizes = [8, 128], strides = [1, 1]} : vector<8x512xf32> to vector<8x128xf32>
    %276 = arith.negf %275 : vector<8x128xf32>
    %277 = math.exp %276 : vector<8x128xf32>
    %cst_34 = arith.constant 1.000000e+00 : f32
    %278 = vector.broadcast %cst_34 : f32 to vector<8x128xf32>
    %279 = arith.addf %278, %277 : vector<8x128xf32>
    %280 = arith.divf %278, %279 : vector<8x128xf32>
    %281 = vector.extract_strided_slice %249 {offsets = [0, 128], sizes = [8, 128], strides = [1, 1]} : vector<8x512xf32> to vector<8x128xf32>
    %282 = arith.negf %281 : vector<8x128xf32>
    %283 = math.exp %282 : vector<8x128xf32>
    %cst_35 = arith.constant 1.000000e+00 : f32
    %284 = vector.broadcast %cst_35 : f32 to vector<8x128xf32>
    %285 = arith.addf %284, %283 : vector<8x128xf32>
    %286 = arith.divf %284, %285 : vector<8x128xf32>
    %287 = vector.extract_strided_slice %249 {offsets = [0, 256], sizes = [8, 128], strides = [1, 1]} : vector<8x512xf32> to vector<8x128xf32>
    %288 = math.tanh %287 : vector<8x128xf32>
    %289 = vector.extract_strided_slice %249 {offsets = [0, 384], sizes = [8, 128], strides = [1, 1]} : vector<8x512xf32> to vector<8x128xf32>
    %290 = arith.negf %289 : vector<8x128xf32>
    %291 = math.exp %290 : vector<8x128xf32>
    %cst_36 = arith.constant 1.000000e+00 : f32
    %292 = vector.broadcast %cst_36 : f32 to vector<8x128xf32>
    %293 = arith.addf %292, %291 : vector<8x128xf32>
    %294 = arith.divf %292, %293 : vector<8x128xf32>
    %295 = arith.mulf %286, %240 : vector<8x128xf32>
    %296 = arith.mulf %280, %288 : vector<8x128xf32>
    %297 = arith.addf %295, %296 : vector<8x128xf32>
    %298 = math.tanh %297 : vector<8x128xf32>
    %299 = arith.mulf %294, %298 : vector<8x128xf32>
    %300 = vector.extract_strided_slice %13 {offsets = [3, 0, 0], sizes = [1, 8, 1], strides = [1, 1, 1]} : vector<8x8x1xi1> to vector<1x8x1xi1>
    %301 = vector.shape_cast %300 : vector<1x8x1xi1> to vector<8x1xi1>
    %302 = vector.extract_strided_slice %13 {offsets = [4, 0, 0], sizes = [1, 8, 1], strides = [1, 1, 1]} : vector<8x8x1xi1> to vector<1x8x1xi1>
    %303 = vector.shape_cast %302 : vector<1x8x1xi1> to vector<8x1xi1>
    %304 = vector.shape_cast %301 : vector<8x1xi1> to vector<8x1xi1>
    %305 = vector.broadcast %304 : vector<8x1xi1> to vector<8x128xi1>
    %306 = arith.select %305, %274, %231 : vector<8x128xi1>, vector<8x128xf32>
    %307 = vector.shape_cast %301 : vector<8x1xi1> to vector<8x1xi1>
    %308 = vector.broadcast %307 : vector<8x1xi1> to vector<8x128xi1>
    %309 = arith.select %308, %272, %234 : vector<8x128xi1>, vector<8x128xf32>
    %310 = vector.shape_cast %303 : vector<8x1xi1> to vector<8x1xi1>
    %311 = vector.broadcast %310 : vector<8x1xi1> to vector<8x128xi1>
    %312 = arith.select %311, %299, %237 : vector<8x128xi1>, vector<8x128xf32>
    %313 = vector.shape_cast %303 : vector<8x1xi1> to vector<8x1xi1>
    %314 = vector.broadcast %313 : vector<8x1xi1> to vector<8x128xi1>
    %315 = arith.select %314, %297, %240 : vector<8x128xi1>, vector<8x128xf32>
    %316 = tpu.concatenate %306, %312 in 1 : vector<8x128xf32>, vector<8x128xf32> -> vector<8x256xf32>
    %317 = arith.truncf %316 : vector<8x256xf32> to vector<8x256xbf16>
    %cst_37 = arith.constant dense<0.000000e+00> : vector<8x1024xf32>
    %318 = tpu.matmul %317, %14, %cst_37 {dimension_numbers = #tpu.dot_dimension_numbers<[1], [0], [0], [1], [0, 0, 1, 1], [], []>} : vector<8x256xbf16>, vector<256x1024xbf16>, vector<8x1024xf32> -> vector<8x1024xf32>
    %319 = vector.extract_strided_slice %8 {offsets = [32, 0], sizes = [8, 512], strides = [1, 1]} : vector<64x1024xf32> to vector<8x512xf32>
    %320 = vector.extract_strided_slice %318 {offsets = [0, 0], sizes = [8, 512], strides = [1, 1]} : vector<8x1024xf32> to vector<8x512xf32>
    %321 = arith.addf %319, %320 : vector<8x512xf32>
    %322 = vector.extract_strided_slice %8 {offsets = [24, 512], sizes = [8, 512], strides = [1, 1]} : vector<64x1024xf32> to vector<8x512xf32>
    %323 = vector.extract_strided_slice %318 {offsets = [0, 512], sizes = [8, 512], strides = [1, 1]} : vector<8x1024xf32> to vector<8x512xf32>
    %324 = arith.addf %322, %323 : vector<8x512xf32>
    %325 = vector.extract_strided_slice %321 {offsets = [0, 0], sizes = [8, 128], strides = [1, 1]} : vector<8x512xf32> to vector<8x128xf32>
    %326 = arith.negf %325 : vector<8x128xf32>
    %327 = math.exp %326 : vector<8x128xf32>
    %cst_38 = arith.constant 1.000000e+00 : f32
    %328 = vector.broadcast %cst_38 : f32 to vector<8x128xf32>
    %329 = arith.addf %328, %327 : vector<8x128xf32>
    %330 = arith.divf %328, %329 : vector<8x128xf32>
    %331 = vector.extract_strided_slice %321 {offsets = [0, 128], sizes = [8, 128], strides = [1, 1]} : vector<8x512xf32> to vector<8x128xf32>
    %332 = arith.negf %331 : vector<8x128xf32>
    %333 = math.exp %332 : vector<8x128xf32>
    %cst_39 = arith.constant 1.000000e+00 : f32
    %334 = vector.broadcast %cst_39 : f32 to vector<8x128xf32>
    %335 = arith.addf %334, %333 : vector<8x128xf32>
    %336 = arith.divf %334, %335 : vector<8x128xf32>
    %337 = vector.extract_strided_slice %321 {offsets = [0, 256], sizes = [8, 128], strides = [1, 1]} : vector<8x512xf32> to vector<8x128xf32>
    %338 = math.tanh %337 : vector<8x128xf32>
    %339 = vector.extract_strided_slice %321 {offsets = [0, 384], sizes = [8, 128], strides = [1, 1]} : vector<8x512xf32> to vector<8x128xf32>
    %340 = arith.negf %339 : vector<8x128xf32>
    %341 = math.exp %340 : vector<8x128xf32>
    %cst_40 = arith.constant 1.000000e+00 : f32
    %342 = vector.broadcast %cst_40 : f32 to vector<8x128xf32>
    %343 = arith.addf %342, %341 : vector<8x128xf32>
    %344 = arith.divf %342, %343 : vector<8x128xf32>
    %345 = arith.mulf %336, %309 : vector<8x128xf32>
    %346 = arith.mulf %330, %338 : vector<8x128xf32>
    %347 = arith.addf %345, %346 : vector<8x128xf32>
    %348 = math.tanh %347 : vector<8x128xf32>
    %349 = arith.mulf %344, %348 : vector<8x128xf32>
    %350 = vector.extract_strided_slice %324 {offsets = [0, 0], sizes = [8, 128], strides = [1, 1]} : vector<8x512xf32> to vector<8x128xf32>
    %351 = arith.negf %350 : vector<8x128xf32>
    %352 = math.exp %351 : vector<8x128xf32>
    %cst_41 = arith.constant 1.000000e+00 : f32
    %353 = vector.broadcast %cst_41 : f32 to vector<8x128xf32>
    %354 = arith.addf %353, %352 : vector<8x128xf32>
    %355 = arith.divf %353, %354 : vector<8x128xf32>
    %356 = vector.extract_strided_slice %324 {offsets = [0, 128], sizes = [8, 128], strides = [1, 1]} : vector<8x512xf32> to vector<8x128xf32>
    %357 = arith.negf %356 : vector<8x128xf32>
    %358 = math.exp %357 : vector<8x128xf32>
    %cst_42 = arith.constant 1.000000e+00 : f32
    %359 = vector.broadcast %cst_42 : f32 to vector<8x128xf32>
    %360 = arith.addf %359, %358 : vector<8x128xf32>
    %361 = arith.divf %359, %360 : vector<8x128xf32>
    %362 = vector.extract_strided_slice %324 {offsets = [0, 256], sizes = [8, 128], strides = [1, 1]} : vector<8x512xf32> to vector<8x128xf32>
    %363 = math.tanh %362 : vector<8x128xf32>
    %364 = vector.extract_strided_slice %324 {offsets = [0, 384], sizes = [8, 128], strides = [1, 1]} : vector<8x512xf32> to vector<8x128xf32>
    %365 = arith.negf %364 : vector<8x128xf32>
    %366 = math.exp %365 : vector<8x128xf32>
    %cst_43 = arith.constant 1.000000e+00 : f32
    %367 = vector.broadcast %cst_43 : f32 to vector<8x128xf32>
    %368 = arith.addf %367, %366 : vector<8x128xf32>
    %369 = arith.divf %367, %368 : vector<8x128xf32>
    %370 = arith.mulf %361, %315 : vector<8x128xf32>
    %371 = arith.mulf %355, %363 : vector<8x128xf32>
    %372 = arith.addf %370, %371 : vector<8x128xf32>
    %373 = math.tanh %372 : vector<8x128xf32>
    %374 = arith.mulf %369, %373 : vector<8x128xf32>
    %375 = vector.extract_strided_slice %13 {offsets = [4, 0, 0], sizes = [1, 8, 1], strides = [1, 1, 1]} : vector<8x8x1xi1> to vector<1x8x1xi1>
    %376 = vector.shape_cast %375 : vector<1x8x1xi1> to vector<8x1xi1>
    %377 = vector.extract_strided_slice %13 {offsets = [3, 0, 0], sizes = [1, 8, 1], strides = [1, 1, 1]} : vector<8x8x1xi1> to vector<1x8x1xi1>
    %378 = vector.shape_cast %377 : vector<1x8x1xi1> to vector<8x1xi1>
    %379 = vector.shape_cast %376 : vector<8x1xi1> to vector<8x1xi1>
    %380 = vector.broadcast %379 : vector<8x1xi1> to vector<8x128xi1>
    %381 = arith.select %380, %349, %306 : vector<8x128xi1>, vector<8x128xf32>
    %382 = vector.shape_cast %376 : vector<8x1xi1> to vector<8x1xi1>
    %383 = vector.broadcast %382 : vector<8x1xi1> to vector<8x128xi1>
    %384 = arith.select %383, %347, %309 : vector<8x128xi1>, vector<8x128xf32>
    %385 = vector.shape_cast %378 : vector<8x1xi1> to vector<8x1xi1>
    %386 = vector.broadcast %385 : vector<8x1xi1> to vector<8x128xi1>
    %387 = arith.select %386, %374, %312 : vector<8x128xi1>, vector<8x128xf32>
    %388 = vector.shape_cast %378 : vector<8x1xi1> to vector<8x1xi1>
    %389 = vector.broadcast %388 : vector<8x1xi1> to vector<8x128xi1>
    %390 = arith.select %389, %372, %315 : vector<8x128xi1>, vector<8x128xf32>
    %391 = tpu.concatenate %381, %387 in 1 : vector<8x128xf32>, vector<8x128xf32> -> vector<8x256xf32>
    %392 = arith.truncf %391 : vector<8x256xf32> to vector<8x256xbf16>
    %cst_44 = arith.constant dense<0.000000e+00> : vector<8x1024xf32>
    %393 = tpu.matmul %392, %14, %cst_44 {dimension_numbers = #tpu.dot_dimension_numbers<[1], [0], [0], [1], [0, 0, 1, 1], [], []>} : vector<8x256xbf16>, vector<256x1024xbf16>, vector<8x1024xf32> -> vector<8x1024xf32>
    %394 = vector.extract_strided_slice %8 {offsets = [40, 0], sizes = [8, 512], strides = [1, 1]} : vector<64x1024xf32> to vector<8x512xf32>
    %395 = vector.extract_strided_slice %393 {offsets = [0, 0], sizes = [8, 512], strides = [1, 1]} : vector<8x1024xf32> to vector<8x512xf32>
    %396 = arith.addf %394, %395 : vector<8x512xf32>
    %397 = vector.extract_strided_slice %8 {offsets = [16, 512], sizes = [8, 512], strides = [1, 1]} : vector<64x1024xf32> to vector<8x512xf32>
    %398 = vector.extract_strided_slice %393 {offsets = [0, 512], sizes = [8, 512], strides = [1, 1]} : vector<8x1024xf32> to vector<8x512xf32>
    %399 = arith.addf %397, %398 : vector<8x512xf32>
    %400 = vector.extract_strided_slice %396 {offsets = [0, 0], sizes = [8, 128], strides = [1, 1]} : vector<8x512xf32> to vector<8x128xf32>
    %401 = arith.negf %400 : vector<8x128xf32>
    %402 = math.exp %401 : vector<8x128xf32>
    %cst_45 = arith.constant 1.000000e+00 : f32
    %403 = vector.broadcast %cst_45 : f32 to vector<8x128xf32>
    %404 = arith.addf %403, %402 : vector<8x128xf32>
    %405 = arith.divf %403, %404 : vector<8x128xf32>
    %406 = vector.extract_strided_slice %396 {offsets = [0, 128], sizes = [8, 128], strides = [1, 1]} : vector<8x512xf32> to vector<8x128xf32>
    %407 = arith.negf %406 : vector<8x128xf32>
    %408 = math.exp %407 : vector<8x128xf32>
    %cst_46 = arith.constant 1.000000e+00 : f32
    %409 = vector.broadcast %cst_46 : f32 to vector<8x128xf32>
    %410 = arith.addf %409, %408 : vector<8x128xf32>
    %411 = arith.divf %409, %410 : vector<8x128xf32>
    %412 = vector.extract_strided_slice %396 {offsets = [0, 256], sizes = [8, 128], strides = [1, 1]} : vector<8x512xf32> to vector<8x128xf32>
    %413 = math.tanh %412 : vector<8x128xf32>
    %414 = vector.extract_strided_slice %396 {offsets = [0, 384], sizes = [8, 128], strides = [1, 1]} : vector<8x512xf32> to vector<8x128xf32>
    %415 = arith.negf %414 : vector<8x128xf32>
    %416 = math.exp %415 : vector<8x128xf32>
    %cst_47 = arith.constant 1.000000e+00 : f32
    %417 = vector.broadcast %cst_47 : f32 to vector<8x128xf32>
    %418 = arith.addf %417, %416 : vector<8x128xf32>
    %419 = arith.divf %417, %418 : vector<8x128xf32>
    %420 = arith.mulf %411, %384 : vector<8x128xf32>
    %421 = arith.mulf %405, %413 : vector<8x128xf32>
    %422 = arith.addf %420, %421 : vector<8x128xf32>
    %423 = math.tanh %422 : vector<8x128xf32>
    %424 = arith.mulf %419, %423 : vector<8x128xf32>
    %425 = vector.extract_strided_slice %399 {offsets = [0, 0], sizes = [8, 128], strides = [1, 1]} : vector<8x512xf32> to vector<8x128xf32>
    %426 = arith.negf %425 : vector<8x128xf32>
    %427 = math.exp %426 : vector<8x128xf32>
    %cst_48 = arith.constant 1.000000e+00 : f32
    %428 = vector.broadcast %cst_48 : f32 to vector<8x128xf32>
    %429 = arith.addf %428, %427 : vector<8x128xf32>
    %430 = arith.divf %428, %429 : vector<8x128xf32>
    %431 = vector.extract_strided_slice %399 {offsets = [0, 128], sizes = [8, 128], strides = [1, 1]} : vector<8x512xf32> to vector<8x128xf32>
    %432 = arith.negf %431 : vector<8x128xf32>
    %433 = math.exp %432 : vector<8x128xf32>
    %cst_49 = arith.constant 1.000000e+00 : f32
    %434 = vector.broadcast %cst_49 : f32 to vector<8x128xf32>
    %435 = arith.addf %434, %433 : vector<8x128xf32>
    %436 = arith.divf %434, %435 : vector<8x128xf32>
    %437 = vector.extract_strided_slice %399 {offsets = [0, 256], sizes = [8, 128], strides = [1, 1]} : vector<8x512xf32> to vector<8x128xf32>
    %438 = math.tanh %437 : vector<8x128xf32>
    %439 = vector.extract_strided_slice %399 {offsets = [0, 384], sizes = [8, 128], strides = [1, 1]} : vector<8x512xf32> to vector<8x128xf32>
    %440 = arith.negf %439 : vector<8x128xf32>
    %441 = math.exp %440 : vector<8x128xf32>
    %cst_50 = arith.constant 1.000000e+00 : f32
    %442 = vector.broadcast %cst_50 : f32 to vector<8x128xf32>
    %443 = arith.addf %442, %441 : vector<8x128xf32>
    %444 = arith.divf %442, %443 : vector<8x128xf32>
    %445 = arith.mulf %436, %390 : vector<8x128xf32>
    %446 = arith.mulf %430, %438 : vector<8x128xf32>
    %447 = arith.addf %445, %446 : vector<8x128xf32>
    %448 = math.tanh %447 : vector<8x128xf32>
    %449 = arith.mulf %444, %448 : vector<8x128xf32>
    %450 = vector.extract_strided_slice %13 {offsets = [5, 0, 0], sizes = [1, 8, 1], strides = [1, 1, 1]} : vector<8x8x1xi1> to vector<1x8x1xi1>
    %451 = vector.shape_cast %450 : vector<1x8x1xi1> to vector<8x1xi1>
    %452 = vector.extract_strided_slice %13 {offsets = [2, 0, 0], sizes = [1, 8, 1], strides = [1, 1, 1]} : vector<8x8x1xi1> to vector<1x8x1xi1>
    %453 = vector.shape_cast %452 : vector<1x8x1xi1> to vector<8x1xi1>
    %454 = vector.shape_cast %451 : vector<8x1xi1> to vector<8x1xi1>
    %455 = vector.broadcast %454 : vector<8x1xi1> to vector<8x128xi1>
    %456 = arith.select %455, %424, %381 : vector<8x128xi1>, vector<8x128xf32>
    %457 = vector.shape_cast %451 : vector<8x1xi1> to vector<8x1xi1>
    %458 = vector.broadcast %457 : vector<8x1xi1> to vector<8x128xi1>
    %459 = arith.select %458, %422, %384 : vector<8x128xi1>, vector<8x128xf32>
    %460 = vector.shape_cast %453 : vector<8x1xi1> to vector<8x1xi1>
    %461 = vector.broadcast %460 : vector<8x1xi1> to vector<8x128xi1>
    %462 = arith.select %461, %449, %387 : vector<8x128xi1>, vector<8x128xf32>
    %463 = vector.shape_cast %453 : vector<8x1xi1> to vector<8x1xi1>
    %464 = vector.broadcast %463 : vector<8x1xi1> to vector<8x128xi1>
    %465 = arith.select %464, %447, %390 : vector<8x128xi1>, vector<8x128xf32>
    %466 = tpu.concatenate %456, %462 in 1 : vector<8x128xf32>, vector<8x128xf32> -> vector<8x256xf32>
    %467 = arith.truncf %466 : vector<8x256xf32> to vector<8x256xbf16>
    %cst_51 = arith.constant dense<0.000000e+00> : vector<8x1024xf32>
    %468 = tpu.matmul %467, %14, %cst_51 {dimension_numbers = #tpu.dot_dimension_numbers<[1], [0], [0], [1], [0, 0, 1, 1], [], []>} : vector<8x256xbf16>, vector<256x1024xbf16>, vector<8x1024xf32> -> vector<8x1024xf32>
    %469 = vector.extract_strided_slice %8 {offsets = [48, 0], sizes = [8, 512], strides = [1, 1]} : vector<64x1024xf32> to vector<8x512xf32>
    %470 = vector.extract_strided_slice %468 {offsets = [0, 0], sizes = [8, 512], strides = [1, 1]} : vector<8x1024xf32> to vector<8x512xf32>
    %471 = arith.addf %469, %470 : vector<8x512xf32>
    %472 = vector.extract_strided_slice %8 {offsets = [8, 512], sizes = [8, 512], strides = [1, 1]} : vector<64x1024xf32> to vector<8x512xf32>
    %473 = vector.extract_strided_slice %468 {offsets = [0, 512], sizes = [8, 512], strides = [1, 1]} : vector<8x1024xf32> to vector<8x512xf32>
    %474 = arith.addf %472, %473 : vector<8x512xf32>
    %475 = vector.extract_strided_slice %471 {offsets = [0, 0], sizes = [8, 128], strides = [1, 1]} : vector<8x512xf32> to vector<8x128xf32>
    %476 = arith.negf %475 : vector<8x128xf32>
    %477 = math.exp %476 : vector<8x128xf32>
    %cst_52 = arith.constant 1.000000e+00 : f32
    %478 = vector.broadcast %cst_52 : f32 to vector<8x128xf32>
    %479 = arith.addf %478, %477 : vector<8x128xf32>
    %480 = arith.divf %478, %479 : vector<8x128xf32>
    %481 = vector.extract_strided_slice %471 {offsets = [0, 128], sizes = [8, 128], strides = [1, 1]} : vector<8x512xf32> to vector<8x128xf32>
    %482 = arith.negf %481 : vector<8x128xf32>
    %483 = math.exp %482 : vector<8x128xf32>
    %cst_53 = arith.constant 1.000000e+00 : f32
    %484 = vector.broadcast %cst_53 : f32 to vector<8x128xf32>
    %485 = arith.addf %484, %483 : vector<8x128xf32>
    %486 = arith.divf %484, %485 : vector<8x128xf32>
    %487 = vector.extract_strided_slice %471 {offsets = [0, 256], sizes = [8, 128], strides = [1, 1]} : vector<8x512xf32> to vector<8x128xf32>
    %488 = math.tanh %487 : vector<8x128xf32>
    %489 = vector.extract_strided_slice %471 {offsets = [0, 384], sizes = [8, 128], strides = [1, 1]} : vector<8x512xf32> to vector<8x128xf32>
    %490 = arith.negf %489 : vector<8x128xf32>
    %491 = math.exp %490 : vector<8x128xf32>
    %cst_54 = arith.constant 1.000000e+00 : f32
    %492 = vector.broadcast %cst_54 : f32 to vector<8x128xf32>
    %493 = arith.addf %492, %491 : vector<8x128xf32>
    %494 = arith.divf %492, %493 : vector<8x128xf32>
    %495 = arith.mulf %486, %459 : vector<8x128xf32>
    %496 = arith.mulf %480, %488 : vector<8x128xf32>
    %497 = arith.addf %495, %496 : vector<8x128xf32>
    %498 = math.tanh %497 : vector<8x128xf32>
    %499 = arith.mulf %494, %498 : vector<8x128xf32>
    %500 = vector.extract_strided_slice %474 {offsets = [0, 0], sizes = [8, 128], strides = [1, 1]} : vector<8x512xf32> to vector<8x128xf32>
    %501 = arith.negf %500 : vector<8x128xf32>
    %502 = math.exp %501 : vector<8x128xf32>
    %cst_55 = arith.constant 1.000000e+00 : f32
    %503 = vector.broadcast %cst_55 : f32 to vector<8x128xf32>
    %504 = arith.addf %503, %502 : vector<8x128xf32>
    %505 = arith.divf %503, %504 : vector<8x128xf32>
    %506 = vector.extract_strided_slice %474 {offsets = [0, 128], sizes = [8, 128], strides = [1, 1]} : vector<8x512xf32> to vector<8x128xf32>
    %507 = arith.negf %506 : vector<8x128xf32>
    %508 = math.exp %507 : vector<8x128xf32>
    %cst_56 = arith.constant 1.000000e+00 : f32
    %509 = vector.broadcast %cst_56 : f32 to vector<8x128xf32>
    %510 = arith.addf %509, %508 : vector<8x128xf32>
    %511 = arith.divf %509, %510 : vector<8x128xf32>
    %512 = vector.extract_strided_slice %474 {offsets = [0, 256], sizes = [8, 128], strides = [1, 1]} : vector<8x512xf32> to vector<8x128xf32>
    %513 = math.tanh %512 : vector<8x128xf32>
    %514 = vector.extract_strided_slice %474 {offsets = [0, 384], sizes = [8, 128], strides = [1, 1]} : vector<8x512xf32> to vector<8x128xf32>
    %515 = arith.negf %514 : vector<8x128xf32>
    %516 = math.exp %515 : vector<8x128xf32>
    %cst_57 = arith.constant 1.000000e+00 : f32
    %517 = vector.broadcast %cst_57 : f32 to vector<8x128xf32>
    %518 = arith.addf %517, %516 : vector<8x128xf32>
    %519 = arith.divf %517, %518 : vector<8x128xf32>
    %520 = arith.mulf %511, %465 : vector<8x128xf32>
    %521 = arith.mulf %505, %513 : vector<8x128xf32>
    %522 = arith.addf %520, %521 : vector<8x128xf32>
    %523 = math.tanh %522 : vector<8x128xf32>
    %524 = arith.mulf %519, %523 : vector<8x128xf32>
    %525 = vector.extract_strided_slice %13 {offsets = [6, 0, 0], sizes = [1, 8, 1], strides = [1, 1, 1]} : vector<8x8x1xi1> to vector<1x8x1xi1>
    %526 = vector.shape_cast %525 : vector<1x8x1xi1> to vector<8x1xi1>
    %527 = vector.extract_strided_slice %13 {offsets = [1, 0, 0], sizes = [1, 8, 1], strides = [1, 1, 1]} : vector<8x8x1xi1> to vector<1x8x1xi1>
    %528 = vector.shape_cast %527 : vector<1x8x1xi1> to vector<8x1xi1>
    %529 = vector.shape_cast %526 : vector<8x1xi1> to vector<8x1xi1>
    %530 = vector.broadcast %529 : vector<8x1xi1> to vector<8x128xi1>
    %531 = arith.select %530, %499, %456 : vector<8x128xi1>, vector<8x128xf32>
    %532 = vector.shape_cast %526 : vector<8x1xi1> to vector<8x1xi1>
    %533 = vector.broadcast %532 : vector<8x1xi1> to vector<8x128xi1>
    %534 = arith.select %533, %497, %459 : vector<8x128xi1>, vector<8x128xf32>
    %535 = vector.shape_cast %528 : vector<8x1xi1> to vector<8x1xi1>
    %536 = vector.broadcast %535 : vector<8x1xi1> to vector<8x128xi1>
    %537 = arith.select %536, %524, %462 : vector<8x128xi1>, vector<8x128xf32>
    %538 = vector.shape_cast %528 : vector<8x1xi1> to vector<8x1xi1>
    %539 = vector.broadcast %538 : vector<8x1xi1> to vector<8x128xi1>
    %540 = arith.select %539, %522, %465 : vector<8x128xi1>, vector<8x128xf32>
    %541 = tpu.concatenate %531, %537 in 1 : vector<8x128xf32>, vector<8x128xf32> -> vector<8x256xf32>
    %542 = arith.truncf %541 : vector<8x256xf32> to vector<8x256xbf16>
    %cst_58 = arith.constant dense<0.000000e+00> : vector<8x1024xf32>
    %543 = tpu.matmul %542, %14, %cst_58 {dimension_numbers = #tpu.dot_dimension_numbers<[1], [0], [0], [1], [0, 0, 1, 1], [], []>} : vector<8x256xbf16>, vector<256x1024xbf16>, vector<8x1024xf32> -> vector<8x1024xf32>
    %544 = vector.extract_strided_slice %8 {offsets = [56, 0], sizes = [8, 512], strides = [1, 1]} : vector<64x1024xf32> to vector<8x512xf32>
    %545 = vector.extract_strided_slice %543 {offsets = [0, 0], sizes = [8, 512], strides = [1, 1]} : vector<8x1024xf32> to vector<8x512xf32>
    %546 = arith.addf %544, %545 : vector<8x512xf32>
    %547 = vector.extract_strided_slice %8 {offsets = [0, 512], sizes = [8, 512], strides = [1, 1]} : vector<64x1024xf32> to vector<8x512xf32>
    %548 = vector.extract_strided_slice %543 {offsets = [0, 512], sizes = [8, 512], strides = [1, 1]} : vector<8x1024xf32> to vector<8x512xf32>
    %549 = arith.addf %547, %548 : vector<8x512xf32>
    %550 = vector.extract_strided_slice %546 {offsets = [0, 0], sizes = [8, 128], strides = [1, 1]} : vector<8x512xf32> to vector<8x128xf32>
    %551 = arith.negf %550 : vector<8x128xf32>
    %552 = math.exp %551 : vector<8x128xf32>
    %cst_59 = arith.constant 1.000000e+00 : f32
    %553 = vector.broadcast %cst_59 : f32 to vector<8x128xf32>
    %554 = arith.addf %553, %552 : vector<8x128xf32>
    %555 = arith.divf %553, %554 : vector<8x128xf32>
    %556 = vector.extract_strided_slice %546 {offsets = [0, 128], sizes = [8, 128], strides = [1, 1]} : vector<8x512xf32> to vector<8x128xf32>
    %557 = arith.negf %556 : vector<8x128xf32>
    %558 = math.exp %557 : vector<8x128xf32>
    %cst_60 = arith.constant 1.000000e+00 : f32
    %559 = vector.broadcast %cst_60 : f32 to vector<8x128xf32>
    %560 = arith.addf %559, %558 : vector<8x128xf32>
    %561 = arith.divf %559, %560 : vector<8x128xf32>
    %562 = vector.extract_strided_slice %546 {offsets = [0, 256], sizes = [8, 128], strides = [1, 1]} : vector<8x512xf32> to vector<8x128xf32>
    %563 = math.tanh %562 : vector<8x128xf32>
    %564 = vector.extract_strided_slice %546 {offsets = [0, 384], sizes = [8, 128], strides = [1, 1]} : vector<8x512xf32> to vector<8x128xf32>
    %565 = arith.negf %564 : vector<8x128xf32>
    %566 = math.exp %565 : vector<8x128xf32>
    %cst_61 = arith.constant 1.000000e+00 : f32
    %567 = vector.broadcast %cst_61 : f32 to vector<8x128xf32>
    %568 = arith.addf %567, %566 : vector<8x128xf32>
    %569 = arith.divf %567, %568 : vector<8x128xf32>
    %570 = arith.mulf %561, %534 : vector<8x128xf32>
    %571 = arith.mulf %555, %563 : vector<8x128xf32>
    %572 = arith.addf %570, %571 : vector<8x128xf32>
    %573 = math.tanh %572 : vector<8x128xf32>
    %574 = arith.mulf %569, %573 : vector<8x128xf32>
    %575 = vector.extract_strided_slice %549 {offsets = [0, 0], sizes = [8, 128], strides = [1, 1]} : vector<8x512xf32> to vector<8x128xf32>
    %576 = arith.negf %575 : vector<8x128xf32>
    %577 = math.exp %576 : vector<8x128xf32>
    %cst_62 = arith.constant 1.000000e+00 : f32
    %578 = vector.broadcast %cst_62 : f32 to vector<8x128xf32>
    %579 = arith.addf %578, %577 : vector<8x128xf32>
    %580 = arith.divf %578, %579 : vector<8x128xf32>
    %581 = vector.extract_strided_slice %549 {offsets = [0, 128], sizes = [8, 128], strides = [1, 1]} : vector<8x512xf32> to vector<8x128xf32>
    %582 = arith.negf %581 : vector<8x128xf32>
    %583 = math.exp %582 : vector<8x128xf32>
    %cst_63 = arith.constant 1.000000e+00 : f32
    %584 = vector.broadcast %cst_63 : f32 to vector<8x128xf32>
    %585 = arith.addf %584, %583 : vector<8x128xf32>
    %586 = arith.divf %584, %585 : vector<8x128xf32>
    %587 = vector.extract_strided_slice %549 {offsets = [0, 256], sizes = [8, 128], strides = [1, 1]} : vector<8x512xf32> to vector<8x128xf32>
    %588 = math.tanh %587 : vector<8x128xf32>
    %589 = vector.extract_strided_slice %549 {offsets = [0, 384], sizes = [8, 128], strides = [1, 1]} : vector<8x512xf32> to vector<8x128xf32>
    %590 = arith.negf %589 : vector<8x128xf32>
    %591 = math.exp %590 : vector<8x128xf32>
    %cst_64 = arith.constant 1.000000e+00 : f32
    %592 = vector.broadcast %cst_64 : f32 to vector<8x128xf32>
    %593 = arith.addf %592, %591 : vector<8x128xf32>
    %594 = arith.divf %592, %593 : vector<8x128xf32>
    %595 = arith.mulf %586, %540 : vector<8x128xf32>
    %596 = arith.mulf %580, %588 : vector<8x128xf32>
    %597 = arith.addf %595, %596 : vector<8x128xf32>
    %598 = math.tanh %597 : vector<8x128xf32>
    %599 = arith.mulf %594, %598 : vector<8x128xf32>
    %600 = vector.extract_strided_slice %13 {offsets = [7, 0, 0], sizes = [1, 8, 1], strides = [1, 1, 1]} : vector<8x8x1xi1> to vector<1x8x1xi1>
    %601 = vector.shape_cast %600 : vector<1x8x1xi1> to vector<8x1xi1>
    %602 = vector.extract_strided_slice %13 {offsets = [0, 0, 0], sizes = [1, 8, 1], strides = [1, 1, 1]} : vector<8x8x1xi1> to vector<1x8x1xi1>
    %603 = vector.shape_cast %602 : vector<1x8x1xi1> to vector<8x1xi1>
    %604 = vector.shape_cast %601 : vector<8x1xi1> to vector<8x1xi1>
    %605 = vector.broadcast %604 : vector<8x1xi1> to vector<8x128xi1>
    %606 = arith.select %605, %574, %531 : vector<8x128xi1>, vector<8x128xf32>
    %607 = vector.shape_cast %603 : vector<8x1xi1> to vector<8x1xi1>
    %608 = vector.broadcast %607 : vector<8x1xi1> to vector<8x128xi1>
    %609 = arith.select %608, %599, %537 : vector<8x128xi1>, vector<8x128xf32>
    %c0_65 = arith.constant 0 : index
    %c0_66 = arith.constant 0 : index
    %610 = vector.load %arg5[%c0_65, %c0_66] : memref<8x256xf32, #tpu.memory_space<vmem>>, vector<8x128xf32>
    tpu.vector_store %arg5[%c0_65, %c0_66], %606 {strides = array<i32>} : memref<8x256xf32, #tpu.memory_space<vmem>>, vector<8x128xf32>,
    %c0_67 = arith.constant 0 : index
    %c128 = arith.constant 128 : index
    %611 = vector.load %arg5[%c0_67, %c128] : memref<8x256xf32, #tpu.memory_space<vmem>>, vector<8x128xf32>
    tpu.vector_store %arg5[%c0_67, %c128], %609 {strides = array<i32>} : memref<8x256xf32, #tpu.memory_space<vmem>>, vector<8x128xf32>,
    return
  }
  func.func @transform_0(%arg0: i32) -> (i32, i32, i32) {
    %c0_i32 = arith.constant 0 : i32
    %c0_i32_0 = arith.constant 0 : i32
    %c0_i32_1 = arith.constant 0 : i32
    return %c0_i32, %arg0, %c0_i32_0 : i32, i32, i32
  }
  func.func @transform_1(%arg0: i32) -> (i32, i32) {
    %c0_i32 = arith.constant 0 : i32
    %c0_i32_0 = arith.constant 0 : i32
    return %arg0, %c0_i32 : i32, i32
  }
  func.func @transform_2(%arg0: i32) -> (i32, i32) {
    %c0_i32 = arith.constant 0 : i32
    %c0_i32_0 = arith.constant 0 : i32
    %c0_i32_1 = arith.constant 0 : i32
    return %c0_i32, %c0_i32_0 : i32, i32
  }
  func.func @transform_3(%arg0: i32) -> (i32, i32) {
    %c0_i32 = arith.constant 0 : i32
    %c0_i32_0 = arith.constant 0 : i32
    %c0_i32_1 = arith.constant 0 : i32
    return %c0_i32, %c0_i32_0 : i32, i32
  }
  func.func @transform_4(%arg0: i32) -> (i32, i32) {
    %c0_i32 = arith.constant 0 : i32
    %c0_i32_0 = arith.constant 0 : i32
    return %arg0, %c0_i32 : i32, i32
  }
}

</mosaic_0001>

<llo_original>
// kernel: tpu_custom_call.1
$region0: #{tpu_custom_call.1}
  #allocation0 [shape = 'u32[]', space=smem, size = 0x4, offset = 0x4, fixed_abs, tag = 'smem constant byte address 0x4 - core index']
  #allocation1 [shape = 'u32[144,128]{1,0:T(1,128)}', space=vmem, size = 0x12000, scoped, tag = 'internal scratch']
  %s0 = inlined_call_operand.vmem [shape: s32[8,8,1], index: 0, kind: input, shape index: {}]
  %s1 = inlined_call_operand.vmem [shape: s32[8,1], index: 1, kind: input, shape index: {}]
  %s2 = inlined_call_operand.hbm [shape: f32[128,1024], index: 2, kind: input, shape index: {}]
  %s3 = inlined_call_operand.hbm [shape: bf16[256,1024], index: 3, kind: input, shape index: {}]
  %s4 = inlined_call_operand.hbm [shape: f32[8,256], index: 4, kind: output, shape index: {}]
  %s5 = sld [smem:[#allocation0]]
  $region34: #{tpu_custom_call.1} parent=0
    _
  %s7 = ssub.s32 1, %s5
  %s8 = scalar_select 0, %s7, %s5
  $region1: #{tpu_custom_call.1} parent=0
    #allocation2 [shape = 'u8[524288]{0}', space=vmem, size = 0x80000, scoped, tag = 'input window, operand 2, single buffered']
    #allocation3 [shape = 's32[1]{0}', space=sflag, size = 0x4, scoped, tag = 'scoped memory for tpu_custom_call.1']
    #allocation4 [shape = 's32[1]{0}', space=sflag, size = 0x4, scoped, tag = 'scoped memory for tpu_custom_call.1']
    #allocation5 [shape = 'u8[524288]{0}', space=vmem, size = 0x80000, scoped, tag = 'input window, operand 3, single buffered']
    #allocation6 [shape = 's32[1]{0}', space=sflag, size = 0x4, scoped, tag = 'scoped memory for tpu_custom_call.1']
    #allocation7 [shape = 'u8[8192]{0}', space=vmem, size = 0x2000, scoped, tag = 'output window, operand 0, single buffered']
    %9 = vsyncpa [#allocation3], 0
    %10 = vsyncpa [#allocation6], 0
    %11 = vsyncpa [#allocation4], 0
    // Predicated region
    $region2: #{tpu_custom_call.1} parent=1 // pred_check
      _
    $region3: #{tpu_custom_call.1} parent=1 // pred_check_branch
      %13 = sbr.rel (0) target = $region5
    $region4: #{tpu_custom_call.1} parent=1 // pred_region
      _
    $region5: #{tpu_custom_call.1} parent=1 // pred_fallthru
      _
    // Predicated region
    $region6: #{tpu_custom_call.1} parent=1 // pred_check
      _
    $region7: #{tpu_custom_call.1} parent=1 // pred_check_branch
      %15 = sbr.rel (0) target = $region9
    $region8: #{tpu_custom_call.1} parent=1 // pred_region
      _
    $region9: #{tpu_custom_call.1} parent=1 // pred_fallthru
      _
    // Predicated region
    $region10: #{tpu_custom_call.1} parent=1 // pred_check
      _
    $region11: #{tpu_custom_call.1} parent=1 // pred_check_branch
      %17 = sbr.rel (0) target = $region13
    $region12: #{tpu_custom_call.1} parent=1 // pred_region
      %s19 = ssub.s32 16384, 16384
      %20 = vsyncadd [#allocation3], %s19
      %s21 = sshll.u32 [#allocation2], 4
      %s22 = int_to_ptr.vmem [resolvable:$true] %s21
      %27 = dma.hbm_to_vmem [thread:$0]  %s2, 16384, %s22, [#allocation3], 1024, 1024, 64
    $region13: #{tpu_custom_call.1} parent=1 // pred_fallthru
      _
    // Predicated region
    $region14: #{tpu_custom_call.1} parent=1 // pred_check
      _
    $region15: #{tpu_custom_call.1} parent=1 // pred_check_branch
      %29 = sbr.rel (0) target = $region17
    $region16: #{tpu_custom_call.1} parent=1 // pred_region
      %s31 = ssub.s32 16384, 16384
      %32 = vsyncadd [#allocation6], %s31
      %s33 = sshll.u32 [#allocation5], 4
      %s34 = int_to_ptr.vmem [resolvable:$true] %s33
      %39 = dma.hbm_to_vmem [thread:$0]  %s3, 16384, %s34, [#allocation6], 512, 512, 32
    $region17: #{tpu_custom_call.1} parent=1 // pred_fallthru
      _
    // Predicated region
    $region18: #{tpu_custom_call.1} parent=1 // pred_check
      _
    $region19: #{tpu_custom_call.1} parent=1 // pred_check_branch
      %41 = sbr.rel (0) target = $region21
    $region20: #{tpu_custom_call.1} parent=1 // pred_region
      %42 = dma.done [#allocation3], 16384
    $region21: #{tpu_custom_call.1} parent=1 // pred_fallthru
      _
    // Predicated region
    $region22: #{tpu_custom_call.1} parent=1 // pred_check
      _
    $region23: #{tpu_custom_call.1} parent=1 // pred_check_branch
      %44 = sbr.rel (0) target = $region25
    $region24: #{tpu_custom_call.1} parent=1 // pred_region
      %45 = dma.done [#allocation6], 16384
    $region25: #{tpu_custom_call.1} parent=1 // pred_fallthru
      _
    %v46 = vld [vmem:[%s0] sm:$0xff]
    %v47 = vld [vmem:[%s0 + $0x8] sm:$0xff]
    %v48 = vld [vmem:[%s0 + $0x10] sm:$0xff]
    %v49 = vld [vmem:[%s0 + $0x18] sm:$0xff]
    %v50 = vld [vmem:[%s0 + $0x20] sm:$0xff]
    %v51 = vld [vmem:[%s0 + $0x28] sm:$0xff]
    %v52 = vld [vmem:[%s0 + $0x30] sm:$0xff]
    %v53 = vld [vmem:[%s0 + $0x38] sm:$0xff]
    %v54 = vlaneseq
    %v55 = vand.u32 %v54, 127
    %56 = vset.pattern.permute.xlu0 0
    %57 = vperm.xlu0 %56, %v46
    %v58 = vpop.permute.xlu0 %57
    %59 = vset.pattern.permute.xlu0 0
    %60 = vperm.xlu0 %59, %v47
    %v61 = vpop.permute.xlu0 %60
    %62 = vset.pattern.permute.xlu0 0
    %63 = vperm.xlu0 %62, %v48
    %v64 = vpop.permute.xlu0 %63
    %65 = vset.pattern.permute.xlu0 0
    %66 = vperm.xlu0 %65, %v49
    %v67 = vpop.permute.xlu0 %66
    %68 = vset.pattern.permute.xlu0 0
    %69 = vperm.xlu0 %68, %v50
    %v70 = vpop.permute.xlu0 %69
    %71 = vset.pattern.permute.xlu0 0
    %72 = vperm.xlu0 %71, %v51
    %v73 = vpop.permute.xlu0 %72
    %74 = vset.pattern.permute.xlu0 0
    %75 = vperm.xlu0 %74, %v52
    %v76 = vpop.permute.xlu0 %75
    %77 = vset.pattern.permute.xlu0 0
    %78 = vperm.xlu0 %77, %v53
    %v79 = vpop.permute.xlu0 %78
    %vm80 = vcmp.eq.s32.totalorder %v55, %v58
    %vm81 = vcmp.eq.s32.totalorder %v55, %v61
    %vm82 = vcmp.eq.s32.totalorder %v55, %v64
    %vm83 = vcmp.eq.s32.totalorder %v55, %v67
    %vm84 = vcmp.eq.s32.totalorder %v55, %v70
    %vm85 = vcmp.eq.s32.totalorder %v55, %v73
    %vm86 = vcmp.eq.s32.totalorder %v55, %v76
    %vm87 = vcmp.eq.s32.totalorder %v55, %v79
    %v88 = vsel %vm80, 1, 0
    %v89 = vsel %vm81, 1, 0
    %v90 = vsel %vm82, 1, 0
    %v91 = vsel %vm83, 1, 0
    %v92 = vsel %vm84, 1, 0
    %v93 = vsel %vm85, 1, 0
    %v94 = vsel %vm86, 1, 0
    %v95 = vsel %vm87, 1, 0
    %v96 = vcvt.s32.f32 %v88
    %v97 = vcvt.s32.f32 %v89
    %v98 = vcvt.s32.f32 %v90
    %v99 = vcvt.s32.f32 %v91
    %v100 = vcvt.s32.f32 %v92
    %v101 = vcvt.s32.f32 %v93
    %v102 = vcvt.s32.f32 %v94
    %v103 = vcvt.s32.f32 %v95
    %v104 = vld [vmem:[#allocation2] sm:$0xff]
    %v105 = vld [vmem:[#allocation2 + $0x8] sm:$0xff]
    %v106 = vld [vmem:[#allocation2 + $0x10] sm:$0xff]
    %v107 = vld [vmem:[#allocation2 + $0x18] sm:$0xff]
    %v108 = vld [vmem:[#allocation2 + $0x20] sm:$0xff]
    %v109 = vld [vmem:[#allocation2 + $0x28] sm:$0xff]
    %v110 = vld [vmem:[#allocation2 + $0x30] sm:$0xff]
    %v111 = vld [vmem:[#allocation2 + $0x38] sm:$0xff]
    %v112 = vld [vmem:[#allocation2 + $0x40] sm:$0xff]
    %v113 = vld [vmem:[#allocation2 + $0x48] sm:$0xff]
    %v114 = vld [vmem:[#allocation2 + $0x50] sm:$0xff]
    %v115 = vld [vmem:[#allocation2 + $0x58] sm:$0xff]
    %v116 = vld [vmem:[#allocation2 + $0x60] sm:$0xff]
    %v117 = vld [vmem:[#allocation2 + $0x68] sm:$0xff]
    %v118 = vld [vmem:[#allocation2 + $0x70] sm:$0xff]
    %v119 = vld [vmem:[#allocation2 + $0x78] sm:$0xff]
    %v120 = vld [vmem:[#allocation2 + $0x80] sm:$0xff]
    %v121 = vld [vmem:[#allocation2 + $0x88] sm:$0xff]
    %v122 = vld [vmem:[#allocation2 + $0x90] sm:$0xff]
    %v123 = vld [vmem:[#allocation2 + $0x98] sm:$0xff]
    %v124 = vld [vmem:[#allocation2 + $0xa0] sm:$0xff]
    %v125 = vld [vmem:[#allocation2 + $0xa8] sm:$0xff]
    %v126 = vld [vmem:[#allocation2 + $0xb0] sm:$0xff]
    %v127 = vld [vmem:[#allocation2 + $0xb8] sm:$0xff]
    %v128 = vld [vmem:[#allocation2 + $0xc0] sm:$0xff]
    %v129 = vld [vmem:[#allocation2 + $0xc8] sm:$0xff]
    %v130 = vld [vmem:[#allocation2 + $0xd0] sm:$0xff]
    %v131 = vld [vmem:[#allocation2 + $0xd8] sm:$0xff]
    %v132 = vld [vmem:[#allocation2 + $0xe0] sm:$0xff]
    %v133 = vld [vmem:[#allocation2 + $0xe8] sm:$0xff]
    %v134 = vld [vmem:[#allocation2 + $0xf0] sm:$0xff]
    %v135 = vld [vmem:[#allocation2 + $0xf8] sm:$0xff]
    %v136 = vld [vmem:[#allocation2 + $0x100] sm:$0xff]
    %v137 = vld [vmem:[#allocation2 + $0x108] sm:$0xff]
    %v138 = vld [vmem:[#allocation2 + $0x110] sm:$0xff]
    %v139 = vld [vmem:[#allocation2 + $0x118] sm:$0xff]
    %v140 = vld [vmem:[#allocation2 + $0x120] sm:$0xff]
    %v141 = vld [vmem:[#allocation2 + $0x128] sm:$0xff]
    %v142 = vld [vmem:[#allocation2 + $0x130] sm:$0xff]
    %v143 = vld [vmem:[#allocation2 + $0x138] sm:$0xff]
    %v144 = vld [vmem:[#allocation2 + $0x140] sm:$0xff]
    %v145 = vld [vmem:[#allocation2 + $0x148] sm:$0xff]
    %v146 = vld [vmem:[#allocation2 + $0x150] sm:$0xff]
    %v147 = vld [vmem:[#allocation2 + $0x158] sm:$0xff]
    %v148 = vld [vmem:[#allocation2 + $0x160] sm:$0xff]
    %v149 = vld [vmem:[#allocation2 + $0x168] sm:$0xff]
    %v150 = vld [vmem:[#allocation2 + $0x170] sm:$0xff]
    %v151 = vld [vmem:[#allocation2 + $0x178] sm:$0xff]
    %v152 = vld [vmem:[#allocation2 + $0x180] sm:$0xff]
    %v153 = vld [vmem:[#allocation2 + $0x188] sm:$0xff]
    %v154 = vld [vmem:[#allocation2 + $0x190] sm:$0xff]
    %v155 = vld [vmem:[#allocation2 + $0x198] sm:$0xff]
    %v156 = vld [vmem:[#allocation2 + $0x1a0] sm:$0xff]
    %v157 = vld [vmem:[#allocation2 + $0x1a8] sm:$0xff]
    %v158 = vld [vmem:[#allocation2 + $0x1b0] sm:$0xff]
    %v159 = vld [vmem:[#allocation2 + $0x1b8] sm:$0xff]
    %v160 = vld [vmem:[#allocation2 + $0x1c0] sm:$0xff]
    %v161 = vld [vmem:[#allocation2 + $0x1c8] sm:$0xff]
    %v162 = vld [vmem:[#allocation2 + $0x1d0] sm:$0xff]
    %v163 = vld [vmem:[#allocation2 + $0x1d8] sm:$0xff]
    %v164 = vld [vmem:[#allocation2 + $0x1e0] sm:$0xff]
    %v165 = vld [vmem:[#allocation2 + $0x1e8] sm:$0xff]
    %v166 = vld [vmem:[#allocation2 + $0x1f0] sm:$0xff]
    %v167 = vld [vmem:[#allocation2 + $0x1f8] sm:$0xff]
    %v168 = vld [vmem:[#allocation2 + $0x200] sm:$0xff]
    %v169 = vld [vmem:[#allocation2 + $0x208] sm:$0xff]
    %v170 = vld [vmem:[#allocation2 + $0x210] sm:$0xff]
    %v171 = vld [vmem:[#allocation2 + $0x218] sm:$0xff]
    %v172 = vld [vmem:[#allocation2 + $0x220] sm:$0xff]
    %v173 = vld [vmem:[#allocation2 + $0x228] sm:$0xff]
    %v174 = vld [vmem:[#allocation2 + $0x230] sm:$0xff]
    %v175 = vld [vmem:[#allocation2 + $0x238] sm:$0xff]
    %v176 = vld [vmem:[#allocation2 + $0x240] sm:$0xff]
    %v177 = vld [vmem:[#allocation2 + $0x248] sm:$0xff]
    %v178 = vld [vmem:[#allocation2 + $0x250] sm:$0xff]
    %v179 = vld [vmem:[#allocation2 + $0x258] sm:$0xff]
    %v180 = vld [vmem:[#allocation2 + $0x260] sm:$0xff]
    %v181 = vld [vmem:[#allocation2 + $0x268] sm:$0xff]
    %v182 = vld [vmem:[#allocation2 + $0x270] sm:$0xff]
    %v183 = vld [vmem:[#allocation2 + $0x278] sm:$0xff]
    %v184 = vld [vmem:[#allocation2 + $0x280] sm:$0xff]
    %v185 = vld [vmem:[#allocation2 + $0x288] sm:$0xff]
    %v186 = vld [vmem:[#allocation2 + $0x290] sm:$0xff]
    %v187 = vld [vmem:[#allocation2 + $0x298] sm:$0xff]
    %v188 = vld [vmem:[#allocation2 + $0x2a0] sm:$0xff]
    %v189 = vld [vmem:[#allocation2 + $0x2a8] sm:$0xff]
    %v190 = vld [vmem:[#allocation2 + $0x2b0] sm:$0xff]
    %v191 = vld [vmem:[#allocation2 + $0x2b8] sm:$0xff]
    %v192 = vld [vmem:[#allocation2 + $0x2c0] sm:$0xff]
    %v193 = vld [vmem:[#allocation2 + $0x2c8] sm:$0xff]
    %v194 = vld [vmem:[#allocation2 + $0x2d0] sm:$0xff]
    %v195 = vld [vmem:[#allocation2 + $0x2d8] sm:$0xff]
    %v196 = vld [vmem:[#allocation2 + $0x2e0] sm:$0xff]
    %v197 = vld [vmem:[#allocation2 + $0x2e8] sm:$0xff]
    %v198 = vld [vmem:[#allocation2 + $0x2f0] sm:$0xff]
    %v199 = vld [vmem:[#allocation2 + $0x2f8] sm:$0xff]
    %v200 = vld [vmem:[#allocation2 + $0x300] sm:$0xff]
    %v201 = vld [vmem:[#allocation2 + $0x308] sm:$0xff]
    %v202 = vld [vmem:[#allocation2 + $0x310] sm:$0xff]
    %v203 = vld [vmem:[#allocation2 + $0x318] sm:$0xff]
    %v204 = vld [vmem:[#allocation2 + $0x320] sm:$0xff]
    %v205 = vld [vmem:[#allocation2 + $0x328] sm:$0xff]
    %v206 = vld [vmem:[#allocation2 + $0x330] sm:$0xff]
    %v207 = vld [vmem:[#allocation2 + $0x338] sm:$0xff]
    %v208 = vld [vmem:[#allocation2 + $0x340] sm:$0xff]
    %v209 = vld [vmem:[#allocation2 + $0x348] sm:$0xff]
    %v210 = vld [vmem:[#allocation2 + $0x350] sm:$0xff]
    %v211 = vld [vmem:[#allocation2 + $0x358] sm:$0xff]
    %v212 = vld [vmem:[#allocation2 + $0x360] sm:$0xff]
    %v213 = vld [vmem:[#allocation2 + $0x368] sm:$0xff]
    %v214 = vld [vmem:[#allocation2 + $0x370] sm:$0xff]
    %v215 = vld [vmem:[#allocation2 + $0x378] sm:$0xff]
    %v216 = vld [vmem:[#allocation2 + $0x380] sm:$0xff]
    %v217 = vld [vmem:[#allocation2 + $0x388] sm:$0xff]
    %v218 = vld [vmem:[#allocation2 + $0x390] sm:$0xff]
    %v219 = vld [vmem:[#allocation2 + $0x398] sm:$0xff]
    %v220 = vld [vmem:[#allocation2 + $0x3a0] sm:$0xff]
    %v221 = vld [vmem:[#allocation2 + $0x3a8] sm:$0xff]
    %v222 = vld [vmem:[#allocation2 + $0x3b0] sm:$0xff]
    %v223 = vld [vmem:[#allocation2 + $0x3b8] sm:$0xff]
    %v224 = vld [vmem:[#allocation2 + $0x3c0] sm:$0xff]
    %v225 = vld [vmem:[#allocation2 + $0x3c8] sm:$0xff]
    %v226 = vld [vmem:[#allocation2 + $0x3d0] sm:$0xff]
    %v227 = vld [vmem:[#allocation2 + $0x3d8] sm:$0xff]
    %v228 = vld [vmem:[#allocation2 + $0x3e0] sm:$0xff]
    %v229 = vld [vmem:[#allocation2 + $0x3e8] sm:$0xff]
    %v230 = vld [vmem:[#allocation2 + $0x3f0] sm:$0xff]
    %v231 = vld [vmem:[#allocation2 + $0x3f8] sm:$0xff]
    %v232 = vand.u32 %v105, 4294901760
    %233 = vmatprep.subr.mxu0 %v232
    %v234 = vand.u32 %v104, 4294901760
    %235 = vmatpush1.msra.mxu0 %v234
    %v236 = vand.u32 %v113, 4294901760
    %237 = vmatprep.subr.mxu0 %v236
    %v238 = vand.u32 %v112, 4294901760
    %239 = vmatpush1.msra.mxu0 %v238
    %v240 = vand.u32 %v121, 4294901760
    %241 = vmatprep.subr.mxu0 %v240
    %v242 = vand.u32 %v120, 4294901760
    %243 = vmatpush1.msra.mxu0 %v242
    %v244 = vand.u32 %v129, 4294901760
    %245 = vmatprep.subr.mxu0 %v244
    %v246 = vand.u32 %v128, 4294901760
    %247 = vmatpush1.msra.mxu0 %v246
    %v248 = vand.u32 %v137, 4294901760
    %249 = vmatprep.subr.mxu0 %v248
    %v250 = vand.u32 %v136, 4294901760
    %251 = vmatpush1.msra.mxu0 %v250
    %v252 = vand.u32 %v145, 4294901760
    %253 = vmatprep.subr.mxu0 %v252
    %v254 = vand.u32 %v144, 4294901760
    %255 = vmatpush1.msra.mxu0 %v254
    %v256 = vand.u32 %v153, 4294901760
    %257 = vmatprep.subr.mxu0 %v256
    %v258 = vand.u32 %v152, 4294901760
    %259 = vmatpush1.msra.mxu0 %v258
    %v260 = vand.u32 %v161, 4294901760
    %261 = vmatprep.subr.mxu0 %v260
    %v262 = vand.u32 %v160, 4294901760
    %263 = vmatpush1.msra.mxu0 %v262
    %v264 = vand.u32 %v169, 4294901760
    %265 = vmatprep.subr.mxu0 %v264
    %v266 = vand.u32 %v168, 4294901760
    %267 = vmatpush1.msra.mxu0 %v266
    %v268 = vand.u32 %v177, 4294901760
    %269 = vmatprep.subr.mxu0 %v268
    %v270 = vand.u32 %v176, 4294901760
    %271 = vmatpush1.msra.mxu0 %v270
    %v272 = vand.u32 %v185, 4294901760
    %273 = vmatprep.subr.mxu0 %v272
    %v274 = vand.u32 %v184, 4294901760
    %275 = vmatpush1.msra.mxu0 %v274
    %v276 = vand.u32 %v193, 4294901760
    %277 = vmatprep.subr.mxu0 %v276
    %v278 = vand.u32 %v192, 4294901760
    %279 = vmatpush1.msra.mxu0 %v278
    %v280 = vand.u32 %v201, 4294901760
    %281 = vmatprep.subr.mxu0 %v280
    %v282 = vand.u32 %v200, 4294901760
    %283 = vmatpush1.msra.mxu0 %v282
    %v284 = vand.u32 %v209, 4294901760
    %285 = vmatprep.subr.mxu0 %v284
    %v286 = vand.u32 %v208, 4294901760
    %287 = vmatpush1.msra.mxu0 %v286
    %v288 = vand.u32 %v217, 4294901760
    %289 = vmatprep.subr.mxu0 %v288
    %v290 = vand.u32 %v216, 4294901760
    %291 = vmatpush1.msra.mxu0 %v290
    %v292 = vand.u32 %v225, 4294901760
    %293 = vmatprep.subr.mxu0 %v292
    %v294 = vand.u32 %v224, 4294901760
    %295 = vmatpush1.msra.mxu0 %v294
    %296 = vmatprep.subr.mxu0 0.0
    %297 = vmatpush1.msra.mxu0 0.0
    %298 = vmatprep.subr.mxu0 0.0
    %299 = vmatpush1.msra.mxu0 0.0
    %300 = vmatprep.subr.mxu0 0.0
    %301 = vmatpush1.msra.mxu0 0.0
    %302 = vmatprep.subr.mxu0 0.0
    %303 = vmatpush1.msra.mxu0 0.0
    %304 = vmatprep.subr.mxu0 0.0
    %305 = vmatpush1.msra.mxu0 0.0
    %306 = vmatprep.subr.mxu0 0.0
    %307 = vmatpush1.msra.mxu0 0.0
    %308 = vmatprep.subr.mxu0 0.0
    %309 = vmatpush1.msra.mxu0 0.0
    %310 = vmatprep.subr.mxu0 0.0
    %311 = vmatpush1.msra.mxu0 0.0
    %312 = vmatprep.subr.mxu0 0.0
    %313 = vmatpush1.msra.mxu0 0.0
    %314 = vmatprep.subr.mxu0 0.0
    %315 = vmatpush1.msra.mxu0 0.0
    %316 = vmatprep.subr.mxu0 0.0
    %317 = vmatpush1.msra.mxu0 0.0
    %318 = vmatprep.subr.mxu0 0.0
    %319 = vmatpush1.msra.mxu0 0.0
    %320 = vmatprep.subr.mxu0 0.0
    %321 = vmatpush1.msra.mxu0 0.0
    %322 = vmatprep.subr.mxu0 0.0
    %323 = vmatpush1.msra.mxu0 0.0
    %324 = vmatprep.subr.mxu0 0.0
    %325 = vmatpush1.msra.mxu0 0.0
    %326 = vmatprep.subr.mxu0 0.0
    %327 = vmatpush1.msra.mxu0 0.0
    %328 = vmatprep.mubr.f32.mxu0 0.0
    %v329 = vand.u32 %v96, 4294901760
    %v330 = vsub.f32 %v96, %v329
    %v331 = vand.u32 %v330, 4294901760
    %v332 = vsub.f32 %v330, %v331
    %v333 = vand.u32 %v332, 4294901760
    %334 = vmatmul.mubr.f32.gmra.mrb[0].mxu0 %v333
    %v335 = vpop.f32.mrb[0].mxu0
    %v336 = vadd.f32 0.0, %v335
    %v337 = vpop.f32.mrb[0].mxu0
    %v338 = vadd.f32 0.0, %v337
    %339 = vmatprep.mubr.f32.mxu0 0.0
    %v340 = vand.u32 %v97, 4294901760
    %v341 = vsub.f32 %v97, %v340
    %v342 = vand.u32 %v341, 4294901760
    %v343 = vsub.f32 %v341, %v342
    %v344 = vand.u32 %v343, 4294901760
    %345 = vmatmul.mubr.f32.gmra.mrb[0].mxu0 %v344
    %v346 = vpop.f32.mrb[0].mxu0
    %v347 = vadd.f32 0.0, %v346
    %v348 = vpop.f32.mrb[0].mxu0
    %v349 = vadd.f32 0.0, %v348
    %350 = vmatprep.mubr.f32.mxu0 0.0
    %v351 = vand.u32 %v98, 4294901760
    %v352 = vsub.f32 %v98, %v351
    %v353 = vand.u32 %v352, 4294901760
    %v354 = vsub.f32 %v352, %v353
    %v355 = vand.u32 %v354, 4294901760
    %356 = vmatmul.mubr.f32.gmra.mrb[0].mxu0 %v355
    %v357 = vpop.f32.mrb[0].mxu0
    %v358 = vadd.f32 0.0, %v357
    %v359 = vpop.f32.mrb[0].mxu0
    %v360 = vadd.f32 0.0, %v359
    %361 = vmatprep.mubr.f32.mxu0 0.0
    %v362 = vand.u32 %v99, 4294901760
    %v363 = vsub.f32 %v99, %v362
    %v364 = vand.u32 %v363, 4294901760
    %v365 = vsub.f32 %v363, %v364
    %v366 = vand.u32 %v365, 4294901760
    %367 = vmatmul.mubr.f32.gmra.mrb[0].mxu0 %v366
    %v368 = vpop.f32.mrb[0].mxu0
    %v369 = vadd.f32 0.0, %v368
    %v370 = vpop.f32.mrb[0].mxu0
    %v371 = vadd.f32 0.0, %v370
    %372 = vmatprep.mubr.f32.mxu0 0.0
    %v373 = vand.u32 %v100, 4294901760
    %v374 = vsub.f32 %v100, %v373
    %v375 = vand.u32 %v374, 4294901760
    %v376 = vsub.f32 %v374, %v375
    %v377 = vand.u32 %v376, 4294901760
    %378 = vmatmul.mubr.f32.gmra.mrb[0].mxu0 %v377
    %v379 = vpop.f32.mrb[0].mxu0
    %v380 = vadd.f32 0.0, %v379
    %v381 = vpop.f32.mrb[0].mxu0
    %v382 = vadd.f32 0.0, %v381
    %383 = vmatprep.mubr.f32.mxu0 0.0
    %v384 = vand.u32 %v101, 4294901760
    %v385 = vsub.f32 %v101, %v384
    %v386 = vand.u32 %v385, 4294901760
    %v387 = vsub.f32 %v385, %v386
    %v388 = vand.u32 %v387, 4294901760
    %389 = vmatmul.mubr.f32.gmra.mrb[0].mxu0 %v388
    %v390 = vpop.f32.mrb[0].mxu0
    %v391 = vadd.f32 0.0, %v390
    %v392 = vpop.f32.mrb[0].mxu0
    %v393 = vadd.f32 0.0, %v392
    %394 = vmatprep.mubr.f32.mxu0 0.0
    %v395 = vand.u32 %v102, 4294901760
    %v396 = vsub.f32 %v102, %v395
    %v397 = vand.u32 %v396, 4294901760
    %v398 = vsub.f32 %v396, %v397
    %v399 = vand.u32 %v398, 4294901760
    %400 = vmatmul.mubr.f32.gmra.mrb[0].mxu0 %v399
    %v401 = vpop.f32.mrb[0].mxu0
    %v402 = vadd.f32 0.0, %v401
    %v403 = vpop.f32.mrb[0].mxu0
    %v404 = vadd.f32 0.0, %v403
    %405 = vmatprep.mubr.f32.mxu0 0.0
    %v406 = vand.u32 %v103, 4294901760
    %v407 = vsub.f32 %v103, %v406
    %v408 = vand.u32 %v407, 4294901760
    %v409 = vsub.f32 %v407, %v408
    %v410 = vand.u32 %v409, 4294901760
    %411 = vmatmul.mubr.f32.gmra.mrb[0].mxu0 %v410
    %v412 = vpop.f32.mrb[0].mxu0
    %v413 = vadd.f32 0.0, %v412
    %v414 = vpop.f32.mrb[0].mxu0
    %v415 = vadd.f32 0.0, %v414
    %416 = vdwg.mxu0
    %v417 = vand.u32 %v105, 4294901760
    %v418 = vsub.f32 %v105, %v417
    %v419 = vand.u32 %v418, 4294901760
    %v420 = vsub.f32 %v418, %v419
    %v421 = vand.u32 %v420, 4294901760
    %422 = vmatprep.subr.mxu0 %v421
    %v423 = vand.u32 %v104, 4294901760
    %v424 = vsub.f32 %v104, %v423
    %v425 = vand.u32 %v424, 4294901760
    %v426 = vsub.f32 %v424, %v425
    %v427 = vand.u32 %v426, 4294901760
    %428 = vmatpush1.msra.mxu0 %v427
    %v429 = vand.u32 %v113, 4294901760
    %v430 = vsub.f32 %v113, %v429
    %v431 = vand.u32 %v430, 4294901760
    %v432 = vsub.f32 %v430, %v431
    %v433 = vand.u32 %v432, 4294901760
    %434 = vmatprep.subr.mxu0 %v433
    %v435 = vand.u32 %v112, 4294901760
    %v436 = vsub.f32 %v112, %v435
    %v437 = vand.u32 %v436, 4294901760
    %v438 = vsub.f32 %v436, %v437
    %v439 = vand.u32 %v438, 4294901760
    %440 = vmatpush1.msra.mxu0 %v439
    %v441 = vand.u32 %v121, 4294901760
    %v442 = vsub.f32 %v121, %v441
    %v443 = vand.u32 %v442, 4294901760
    %v444 = vsub.f32 %v442, %v443
    %v445 = vand.u32 %v444, 4294901760
    %446 = vmatprep.subr.mxu0 %v445
    %v447 = vand.u32 %v120, 4294901760
    %v448 = vsub.f32 %v120, %v447
    %v449 = vand.u32 %v448, 4294901760
    %v450 = vsub.f32 %v448, %v449
    %v451 = vand.u32 %v450, 4294901760
    %452 = vmatpush1.msra.mxu0 %v451
    %v453 = vand.u32 %v129, 4294901760
    %v454 = vsub.f32 %v129, %v453
    %v455 = vand.u32 %v454, 4294901760
    %v456 = vsub.f32 %v454, %v455
    %v457 = vand.u32 %v456, 4294901760
    %458 = vmatprep.subr.mxu0 %v457
    %v459 = vand.u32 %v128, 4294901760
    %v460 = vsub.f32 %v128, %v459
    %v461 = vand.u32 %v460, 4294901760
    %v462 = vsub.f32 %v460, %v461
    %v463 = vand.u32 %v462, 4294901760
    %464 = vmatpush1.msra.mxu0 %v463
    %v465 = vand.u32 %v137, 4294901760
    %v466 = vsub.f32 %v137, %v465
    %v467 = vand.u32 %v466, 4294901760
    %v468 = vsub.f32 %v466, %v467
    %v469 = vand.u32 %v468, 4294901760
    %470 = vmatprep.subr.mxu0 %v469
    %v471 = vand.u32 %v136, 4294901760
    %v472 = vsub.f32 %v136, %v471
    %v473 = vand.u32 %v472, 4294901760
    %v474 = vsub.f32 %v472, %v473
    %v475 = vand.u32 %v474, 4294901760
    %476 = vmatpush1.msra.mxu0 %v475
    %v477 = vand.u32 %v145, 4294901760
    %v478 = vsub.f32 %v145, %v477
    %v479 = vand.u32 %v478, 4294901760
    %v480 = vsub.f32 %v478, %v479
    %v481 = vand.u32 %v480, 4294901760
    %482 = vmatprep.subr.mxu0 %v481
    %v483 = vand.u32 %v144, 4294901760
    %v484 = vsub.f32 %v144, %v483
    %v485 = vand.u32 %v484, 4294901760
    %v486 = vsub.f32 %v484, %v485
    %v487 = vand.u32 %v486, 4294901760
    %488 = vmatpush1.msra.mxu0 %v487
    %v489 = vand.u32 %v153, 4294901760
    %v490 = vsub.f32 %v153, %v489
    %v491 = vand.u32 %v490, 4294901760
    %v492 = vsub.f32 %v490, %v491
    %v493 = vand.u32 %v492, 4294901760
    %494 = vmatprep.subr.mxu0 %v493
    %v495 = vand.u32 %v152, 4294901760
    %v496 = vsub.f32 %v152, %v495
    %v497 = vand.u32 %v496, 4294901760
    %v498 = vsub.f32 %v496, %v497
    %v499 = vand.u32 %v498, 4294901760
    %500 = vmatpush1.msra.mxu0 %v499
    %v501 = vand.u32 %v161, 4294901760
    %v502 = vsub.f32 %v161, %v501
    %v503 = vand.u32 %v502, 4294901760
    %v504 = vsub.f32 %v502, %v503
    %v505 = vand.u32 %v504, 4294901760
    %506 = vmatprep.subr.mxu0 %v505
    %v507 = vand.u32 %v160, 4294901760
    %v508 = vsub.f32 %v160, %v507
    %v509 = vand.u32 %v508, 4294901760
    %v510 = vsub.f32 %v508, %v509
    %v511 = vand.u32 %v510, 4294901760
    %512 = vmatpush1.msra.mxu0 %v511
    %v513 = vand.u32 %v169, 4294901760
    %v514 = vsub.f32 %v169, %v513
    %v515 = vand.u32 %v514, 4294901760
    %v516 = vsub.f32 %v514, %v515
    %v517 = vand.u32 %v516, 4294901760
    %518 = vmatprep.subr.mxu0 %v517
    %v519 = vand.u32 %v168, 4294901760
    %v520 = vsub.f32 %v168, %v519
    %v521 = vand.u32 %v520, 4294901760
    %v522 = vsub.f32 %v520, %v521
    %v523 = vand.u32 %v522, 4294901760
    %524 = vmatpush1.msra.mxu0 %v523
    %v525 = vand.u32 %v177, 4294901760
    %v526 = vsub.f32 %v177, %v525
    %v527 = vand.u32 %v526, 4294901760
    %v528 = vsub.f32 %v526, %v527
    %v529 = vand.u32 %v528, 4294901760
    %530 = vmatprep.subr.mxu0 %v529
    %v531 = vand.u32 %v176, 4294901760
    %v532 = vsub.f32 %v176, %v531
    %v533 = vand.u32 %v532, 4294901760
    %v534 = vsub.f32 %v532, %v533
    %v535 = vand.u32 %v534, 4294901760
    %536 = vmatpush1.msra.mxu0 %v535
    %v537 = vand.u32 %v185, 4294901760
    %v538 = vsub.f32 %v185, %v537
    %v539 = vand.u32 %v538, 4294901760
    %v540 = vsub.f32 %v538, %v539
    %v541 = vand.u32 %v540, 4294901760
    %542 = vmatprep.subr.mxu0 %v541
    %v543 = vand.u32 %v184, 4294901760
    %v544 = vsub.f32 %v184, %v543
    %v545 = vand.u32 %v544, 4294901760
    %v546 = vsub.f32 %v544, %v545
    %v547 = vand.u32 %v546, 4294901760
    %548 = vmatpush1.msra.mxu0 %v547
    %v549 = vand.u32 %v193, 4294901760
    %v550 = vsub.f32 %v193, %v549
    %v551 = vand.u32 %v550, 4294901760
    %v552 = vsub.f32 %v550, %v551
    %v553 = vand.u32 %v552, 4294901760
    %554 = vmatprep.subr.mxu0 %v553
    %v555 = vand.u32 %v192, 4294901760
    %v556 = vsub.f32 %v192, %v555
    %v557 = vand.u32 %v556, 4294901760
    %v558 = vsub.f32 %v556, %v557
    %v559 = vand.u32 %v558, 4294901760
    %560 = vmatpush1.msra.mxu0 %v559
    %v561 = vand.u32 %v201, 4294901760
    %v562 = vsub.f32 %v201, %v561
    %v563 = vand.u32 %v562, 4294901760
    %v564 = vsub.f32 %v562, %v563
    %v565 = vand.u32 %v564, 4294901760
    %566 = vmatprep.subr.mxu0 %v565
    %v567 = vand.u32 %v200, 4294901760
    %v568 = vsub.f32 %v200, %v567
    %v569 = vand.u32 %v568, 4294901760
    %v570 = vsub.f32 %v568, %v569
    %v571 = vand.u32 %v570, 4294901760
    %572 = vmatpush1.msra.mxu0 %v571
    %v573 = vand.u32 %v209, 4294901760
    %v574 = vsub.f32 %v209, %v573
    %v575 = vand.u32 %v574, 4294901760
    %v576 = vsub.f32 %v574, %v575
    %v577 = vand.u32 %v576, 4294901760
    %578 = vmatprep.subr.mxu0 %v577
    %v579 = vand.u32 %v208, 4294901760
    %v580 = vsub.f32 %v208, %v579
    %v581 = vand.u32 %v580, 4294901760
    %v582 = vsub.f32 %v580, %v581
    %v583 = vand.u32 %v582, 4294901760
    %584 = vmatpush1.msra.mxu0 %v583
    %v585 = vand.u32 %v217, 4294901760
    %v586 = vsub.f32 %v217, %v585
    %v587 = vand.u32 %v586, 4294901760
    %v588 = vsub.f32 %v586, %v587
    %v589 = vand.u32 %v588, 4294901760
    %590 = vmatprep.subr.mxu0 %v589
    %v591 = vand.u32 %v216, 4294901760
    %v592 = vsub.f32 %v216, %v591
    %v593 = vand.u32 %v592, 4294901760
    %v594 = vsub.f32 %v592, %v593
    %v595 = vand.u32 %v594, 4294901760
    %596 = vmatpush1.msra.mxu0 %v595
    %v597 = vand.u32 %v225, 4294901760
    %v598 = vsub.f32 %v225, %v597
    %v599 = vand.u32 %v598, 4294901760
    %v600 = vsub.f32 %v598, %v599
    %v601 = vand.u32 %v600, 4294901760
    %602 = vmatprep.subr.mxu0 %v601
    %v603 = vand.u32 %v224, 4294901760
    %v604 = vsub.f32 %v224, %v603
    %v605 = vand.u32 %v604, 4294901760
    %v606 = vsub.f32 %v604, %v605
    %v607 = vand.u32 %v606, 4294901760
    %608 = vmatpush1.msra.mxu0 %v607
    %609 = vmatprep.subr.mxu0 0.0
    %610 = vmatpush1.msra.mxu0 0.0
    %611 = vmatprep.subr.mxu0 0.0
    %612 = vmatpush1.msra.mxu0 0.0
    %613 = vmatprep.subr.mxu0 0.0
    %614 = vmatpush1.msra.mxu0 0.0
    %615 = vmatprep.subr.mxu0 0.0
    %616 = vmatpush1.msra.mxu0 0.0
    %617 = vmatprep.subr.mxu0 0.0
    %618 = vmatpush1.msra.mxu0 0.0
    %619 = vmatprep.subr.mxu0 0.0
    %620 = vmatpush1.msra.mxu0 0.0
    %621 = vmatprep.subr.mxu0 0.0
    %622 = vmatpush1.msra.mxu0 0.0
    %623 = vmatprep.subr.mxu0 0.0
    %624 = vmatpush1.msra.mxu0 0.0
    %625 = vmatprep.subr.mxu0 0.0
    %626 = vmatpush1.msra.mxu0 0.0
    %627 = vmatprep.subr.mxu0 0.0
    %628 = vmatpush1.msra.mxu0 0.0
    %629 = vmatprep.subr.mxu0 0.0
    %630 = vmatpush1.msra.mxu0 0.0
    %631 = vmatprep.subr.mxu0 0.0
    %632 = vmatpush1.msra.mxu0 0.0
    %633 = vmatprep.subr.mxu0 0.0
    %634 = vmatpush1.msra.mxu0 0.0
    %635 = vmatprep.subr.mxu0 0.0
    %636 = vmatpush1.msra.mxu0 0.0
    %637 = vmatprep.subr.mxu0 0.0
    %638 = vmatpush1.msra.mxu0 0.0
    %639 = vmatprep.subr.mxu0 0.0
    %640 = vmatpush1.msra.mxu0 0.0
    %641 = vmatprep.mubr.f32.mxu0 0.0
    %v642 = vand.u32 %v96, 4294901760
    %643 = vmatmul.mubr.f32.gmra.mrb[0].mxu0 %v642
    %v644 = vpop.f32.mrb[0].mxu0
    %v645 = vadd.f32 %v336, %v644
    %v646 = vpop.f32.mrb[0].mxu0
    %v647 = vadd.f32 %v338, %v646
    %648 = vmatprep.mubr.f32.mxu0 0.0
    %v649 = vand.u32 %v97, 4294901760
    %650 = vmatmul.mubr.f32.gmra.mrb[0].mxu0 %v649
    %v651 = vpop.f32.mrb[0].mxu0
    %v652 = vadd.f32 %v347, %v651
    %v653 = vpop.f32.mrb[0].mxu0
    %v654 = vadd.f32 %v349, %v653
    %655 = vmatprep.mubr.f32.mxu0 0.0
    %v656 = vand.u32 %v98, 4294901760
    %657 = vmatmul.mubr.f32.gmra.mrb[0].mxu0 %v656
    %v658 = vpop.f32.mrb[0].mxu0
    %v659 = vadd.f32 %v358, %v658
    %v660 = vpop.f32.mrb[0].mxu0
    %v661 = vadd.f32 %v360, %v660
    %662 = vmatprep.mubr.f32.mxu0 0.0
    %v663 = vand.u32 %v99, 4294901760
    %664 = vmatmul.mubr.f32.gmra.mrb[0].mxu0 %v663
    %v665 = vpop.f32.mrb[0].mxu0
    %v666 = vadd.f32 %v369, %v665
    %v667 = vpop.f32.mrb[0].mxu0
    %v668 = vadd.f32 %v371, %v667
    %669 = vmatprep.mubr.f32.mxu0 0.0
    %v670 = vand.u32 %v100, 4294901760
    %671 = vmatmul.mubr.f32.gmra.mrb[0].mxu0 %v670
    %v672 = vpop.f32.mrb[0].mxu0
    %v673 = vadd.f32 %v380, %v672
    %v674 = vpop.f32.mrb[0].mxu0
    %v675 = vadd.f32 %v382, %v674
    %676 = vmatprep.mubr.f32.mxu0 0.0
    %v677 = vand.u32 %v101, 4294901760
    %678 = vmatmul.mubr.f32.gmra.mrb[0].mxu0 %v677
    %v679 = vpop.f32.mrb[0].mxu0
    %v680 = vadd.f32 %v391, %v679
    %v681 = vpop.f32.mrb[0].mxu0
    %v682 = vadd.f32 %v393, %v681
    %683 = vmatprep.mubr.f32.mxu0 0.0
    %v684 = vand.u32 %v102, 4294901760
    %685 = vmatmul.mubr.f32.gmra.mrb[0].mxu0 %v684
    %v686 = vpop.f32.mrb[0].mxu0
    %v687 = vadd.f32 %v402, %v686
    %v688 = vpop.f32.mrb[0].mxu0
    %v689 = vadd.f32 %v404, %v688
    %690 = vmatprep.mubr.f32.mxu0 0.0
    %v691 = vand.u32 %v103, 4294901760
    %692 = vmatmul.mubr.f32.gmra.mrb[0].mxu0 %v691
    %v693 = vpop.f32.mrb[0].mxu0
    %v694 = vadd.f32 %v413, %v693
    %v695 = vpop.f32.mrb[0].mxu0
    %v696 = vadd.f32 %v415, %v695
    %697 = vdwg.mxu0
    %v698 = vand.u32 %v105, 4294901760
    %v699 = vsub.f32 %v105, %v698
    %700 = vmatprep.subr.mxu0 %v699
    %v701 = vand.u32 %v104, 4294901760
    %v702 = vsub.f32 %v104, %v701
    %703 = vmatpush1.msra.mxu0 %v702
    %v704 = vand.u32 %v113, 4294901760
    %v705 = vsub.f32 %v113, %v704
    %706 = vmatprep.subr.mxu0 %v705
    %v707 = vand.u32 %v112, 4294901760
    %v708 = vsub.f32 %v112, %v707
    %709 = vmatpush1.msra.mxu0 %v708
    %v710 = vand.u32 %v121, 4294901760
    %v711 = vsub.f32 %v121, %v710
    %712 = vmatprep.subr.mxu0 %v711
    %v713 = vand.u32 %v120, 4294901760
    %v714 = vsub.f32 %v120, %v713
    %715 = vmatpush1.msra.mxu0 %v714
    %v716 = vand.u32 %v129, 4294901760
    %v717 = vsub.f32 %v129, %v716
    %718 = vmatprep.subr.mxu0 %v717
    %v719 = vand.u32 %v128, 4294901760
    %v720 = vsub.f32 %v128, %v719
    %721 = vmatpush1.msra.mxu0 %v720
    %v722 = vand.u32 %v137, 4294901760
    %v723 = vsub.f32 %v137, %v722
    %724 = vmatprep.subr.mxu0 %v723
    %v725 = vand.u32 %v136, 4294901760
    %v726 = vsub.f32 %v136, %v725
    %727 = vmatpush1.msra.mxu0 %v726
    %v728 = vand.u32 %v145, 4294901760
    %v729 = vsub.f32 %v145, %v728
    %730 = vmatprep.subr.mxu0 %v729
    %v731 = vand.u32 %v144, 4294901760
    %v732 = vsub.f32 %v144, %v731
    %733 = vmatpush1.msra.mxu0 %v732
    %v734 = vand.u32 %v153, 4294901760
    %v735 = vsub.f32 %v153, %v734
    %736 = vmatprep.subr.mxu0 %v735
    %v737 = vand.u32 %v152, 4294901760
    %v738 = vsub.f32 %v152, %v737
    %739 = vmatpush1.msra.mxu0 %v738
    %v740 = vand.u32 %v161, 4294901760
    %v741 = vsub.f32 %v161, %v740
    %742 = vmatprep.subr.mxu0 %v741
    %v743 = vand.u32 %v160, 4294901760
    %v744 = vsub.f32 %v160, %v743
    %745 = vmatpush1.msra.mxu0 %v744
    %v746 = vand.u32 %v169, 4294901760
    %v747 = vsub.f32 %v169, %v746
    %748 = vmatprep.subr.mxu0 %v747
    %v749 = vand.u32 %v168, 4294901760
    %v750 = vsub.f32 %v168, %v749
    %751 = vmatpush1.msra.mxu0 %v750
    %v752 = vand.u32 %v177, 4294901760
    %v753 = vsub.f32 %v177, %v752
    %754 = vmatprep.subr.mxu0 %v753
    %v755 = vand.u32 %v176, 4294901760
    %v756 = vsub.f32 %v176, %v755
    %757 = vmatpush1.msra.mxu0 %v756
    %v758 = vand.u32 %v185, 4294901760
    %v759 = vsub.f32 %v185, %v758
    %760 = vmatprep.subr.mxu0 %v759
    %v761 = vand.u32 %v184, 4294901760
    %v762 = vsub.f32 %v184, %v761
    %763 = vmatpush1.msra.mxu0 %v762
    %v764 = vand.u32 %v193, 4294901760
    %v765 = vsub.f32 %v193, %v764
    %766 = vmatprep.subr.mxu0 %v765
    %v767 = vand.u32 %v192, 4294901760
    %v768 = vsub.f32 %v192, %v767
    %769 = vmatpush1.msra.mxu0 %v768
    %v770 = vand.u32 %v201, 4294901760
    %v771 = vsub.f32 %v201, %v770
    %772 = vmatprep.subr.mxu0 %v771
    %v773 = vand.u32 %v200, 4294901760
    %v774 = vsub.f32 %v200, %v773
    %775 = vmatpush1.msra.mxu0 %v774
    %v776 = vand.u32 %v209, 4294901760
    %v777 = vsub.f32 %v209, %v776
    %778 = vmatprep.subr.mxu0 %v777
    %v779 = vand.u32 %v208, 4294901760
    %v780 = vsub.f32 %v208, %v779
    %781 = vmatpush1.msra.mxu0 %v780
    %v782 = vand.u32 %v217, 4294901760
    %v783 = vsub.f32 %v217, %v782
    %784 = vmatprep.subr.mxu0 %v783
    %v785 = vand.u32 %v216, 4294901760
    %v786 = vsub.f32 %v216, %v785
    %787 = vmatpush1.msra.mxu0 %v786
    %v788 = vand.u32 %v225, 4294901760
    %v789 = vsub.f32 %v225, %v788
    %790 = vmatprep.subr.mxu0 %v789
    %v791 = vand.u32 %v224, 4294901760
    %v792 = vsub.f32 %v224, %v791
    %793 = vmatpush1.msra.mxu0 %v792
    %794 = vmatprep.subr.mxu0 0.0
    %795 = vmatpush1.msra.mxu0 0.0
    %796 = vmatprep.subr.mxu0 0.0
    %797 = vmatpush1.msra.mxu0 0.0
    %798 = vmatprep.subr.mxu0 0.0
    %799 = vmatpush1.msra.mxu0 0.0
    %800 = vmatprep.subr.mxu0 0.0
    %801 = vmatpush1.msra.mxu0 0.0
    %802 = vmatprep.subr.mxu0 0.0
    %803 = vmatpush1.msra.mxu0 0.0
    %804 = vmatprep.subr.mxu0 0.0
    %805 = vmatpush1.msra.mxu0 0.0
    %806 = vmatprep.subr.mxu0 0.0
    %807 = vmatpush1.msra.mxu0 0.0
    %808 = vmatprep.subr.mxu0 0.0
    %809 = vmatpush1.msra.mxu0 0.0
    %810 = vmatprep.subr.mxu0 0.0
    %811 = vmatpush1.msra.mxu0 0.0
    %812 = vmatprep.subr.mxu0 0.0
    %813 = vmatpush1.msra.mxu0 0.0
    %814 = vmatprep.subr.mxu0 0.0
    %815 = vmatpush1.msra.mxu0 0.0
    %816 = vmatprep.subr.mxu0 0.0
    %817 = vmatpush1.msra.mxu0 0.0
    %818 = vmatprep.subr.mxu0 0.0
    %819 = vmatpush1.msra.mxu0 0.0
    %820 = vmatprep.subr.mxu0 0.0
    %821 = vmatpush1.msra.mxu0 0.0
    %822 = vmatprep.subr.mxu0 0.0
    %823 = vmatpush1.msra.mxu0 0.0
    %824 = vmatprep.subr.mxu0 0.0
    %825 = vmatpush1.msra.mxu0 0.0
    %826 = vmatprep.mubr.f32.mxu0 0.0
    %v827 = vand.u32 %v96, 4294901760
    %v828 = vsub.f32 %v96, %v827
    %829 = vmatmul.mubr.f32.gmra.mrb[0].mxu0 %v828
    %v830 = vpop.f32.mrb[0].mxu0
    %v831 = vadd.f32 %v645, %v830
    %v832 = vpop.f32.mrb[0].mxu0
    %v833 = vadd.f32 %v647, %v832
    %834 = vmatprep.mubr.f32.mxu0 0.0
    %v835 = vand.u32 %v97, 4294901760
    %v836 = vsub.f32 %v97, %v835
    %837 = vmatmul.mubr.f32.gmra.mrb[0].mxu0 %v836
    %v838 = vpop.f32.mrb[0].mxu0
    %v839 = vadd.f32 %v652, %v838
    %v840 = vpop.f32.mrb[0].mxu0
    %v841 = vadd.f32 %v654, %v840
    %842 = vmatprep.mubr.f32.mxu0 0.0
    %v843 = vand.u32 %v98, 4294901760
    %v844 = vsub.f32 %v98, %v843
    %845 = vmatmul.mubr.f32.gmra.mrb[0].mxu0 %v844
    %v846 = vpop.f32.mrb[0].mxu0
    %v847 = vadd.f32 %v659, %v846
    %v848 = vpop.f32.mrb[0].mxu0
    %v849 = vadd.f32 %v661, %v848
    %850 = vmatprep.mubr.f32.mxu0 0.0
    %v851 = vand.u32 %v99, 4294901760
    %v852 = vsub.f32 %v99, %v851
    %853 = vmatmul.mubr.f32.gmra.mrb[0].mxu0 %v852
    %v854 = vpop.f32.mrb[0].mxu0
    %v855 = vadd.f32 %v666, %v854
    %v856 = vpop.f32.mrb[0].mxu0
    %v857 = vadd.f32 %v668, %v856
    %858 = vmatprep.mubr.f32.mxu0 0.0
    %v859 = vand.u32 %v100, 4294901760
    %v860 = vsub.f32 %v100, %v859
    %861 = vmatmul.mubr.f32.gmra.mrb[0].mxu0 %v860
    %v862 = vpop.f32.mrb[0].mxu0
    %v863 = vadd.f32 %v673, %v862
    %v864 = vpop.f32.mrb[0].mxu0
    %v865 = vadd.f32 %v675, %v864
    %866 = vmatprep.mubr.f32.mxu0 0.0
    %v867 = vand.u32 %v101, 4294901760
    %v868 = vsub.f32 %v101, %v867
    %869 = vmatmul.mubr.f32.gmra.mrb[0].mxu0 %v868
    %v870 = vpop.f32.mrb[0].mxu0
    %v871 = vadd.f32 %v680, %v870
    %v872 = vpop.f32.mrb[0].mxu0
    %v873 = vadd.f32 %v682, %v872
    %874 = vmatprep.mubr.f32.mxu0 0.0
    %v875 = vand.u32 %v102, 4294901760
    %v876 = vsub.f32 %v102, %v875
    %877 = vmatmul.mubr.f32.gmra.mrb[0].mxu0 %v876
    %v878 = vpop.f32.mrb[0].mxu0
    %v879 = vadd.f32 %v687, %v878
    %v880 = vpop.f32.mrb[0].mxu0
    %v881 = vadd.f32 %v689, %v880
    %882 = vmatprep.mubr.f32.mxu0 0.0
    %v883 = vand.u32 %v103, 4294901760
    %v884 = vsub.f32 %v103, %v883
    %885 = vmatmul.mubr.f32.gmra.mrb[0].mxu0 %v884
    %v886 = vpop.f32.mrb[0].mxu0
    %v887 = vadd.f32 %v694, %v886
    %v888 = vpop.f32.mrb[0].mxu0
    %v889 = vadd.f32 %v696, %v888
    %890 = vdwg.mxu0
    %v891 = vand.u32 %v105, 4294901760
    %892 = vmatprep.subr.mxu0 %v891
    %v893 = vand.u32 %v104, 4294901760
    %894 = vmatpush1.msra.mxu0 %v893
    %v895 = vand.u32 %v113, 4294901760
    %896 = vmatprep.subr.mxu0 %v895
    %v897 = vand.u32 %v112, 4294901760
    %898 = vmatpush1.msra.mxu0 %v897
    %v899 = vand.u32 %v121, 4294901760
    %900 = vmatprep.subr.mxu0 %v899
    %v901 = vand.u32 %v120, 4294901760
    %902 = vmatpush1.msra.mxu0 %v901
    %v903 = vand.u32 %v129, 4294901760
    %904 = vmatprep.subr.mxu0 %v903
    %v905 = vand.u32 %v128, 4294901760
    %906 = vmatpush1.msra.mxu0 %v905
    %v907 = vand.u32 %v137, 4294901760
    %908 = vmatprep.subr.mxu0 %v907
    %v909 = vand.u32 %v136, 4294901760
    %910 = vmatpush1.msra.mxu0 %v909
    %v911 = vand.u32 %v145, 4294901760
    %912 = vmatprep.subr.mxu0 %v911
    %v913 = vand.u32 %v144, 4294901760
    %914 = vmatpush1.msra.mxu0 %v913
    %v915 = vand.u32 %v153, 4294901760
    %916 = vmatprep.subr.mxu0 %v915
    %v917 = vand.u32 %v152, 4294901760
    %918 = vmatpush1.msra.mxu0 %v917
    %v919 = vand.u32 %v161, 4294901760
    %920 = vmatprep.subr.mxu0 %v919
    %v921 = vand.u32 %v160, 4294901760
    %922 = vmatpush1.msra.mxu0 %v921
    %v923 = vand.u32 %v169, 4294901760
    %924 = vmatprep.subr.mxu0 %v923
    %v925 = vand.u32 %v168, 4294901760
    %926 = vmatpush1.msra.mxu0 %v925
    %v927 = vand.u32 %v177, 4294901760
    %928 = vmatprep.subr.mxu0 %v927
    %v929 = vand.u32 %v176, 4294901760
    %930 = vmatpush1.msra.mxu0 %v929
    %v931 = vand.u32 %v185, 4294901760
    %932 = vmatprep.subr.mxu0 %v931
    %v933 = vand.u32 %v184, 4294901760
    %934 = vmatpush1.msra.mxu0 %v933
    %v935 = vand.u32 %v193, 4294901760
    %936 = vmatprep.subr.mxu0 %v935
    %v937 = vand.u32 %v192, 4294901760
    %938 = vmatpush1.msra.mxu0 %v937
    %v939 = vand.u32 %v201, 4294901760
    %940 = vmatprep.subr.mxu0 %v939
    %v941 = vand.u32 %v200, 4294901760
    %942 = vmatpush1.msra.mxu0 %v941
    %v943 = vand.u32 %v209, 4294901760
    %944 = vmatprep.subr.mxu0 %v943
    %v945 = vand.u32 %v208, 4294901760
    %946 = vmatpush1.msra.mxu0 %v945
    %v947 = vand.u32 %v217, 4294901760
    %948 = vmatprep.subr.mxu0 %v947
    %v949 = vand.u32 %v216, 4294901760
    %950 = vmatpush1.msra.mxu0 %v949
    %v951 = vand.u32 %v225, 4294901760
    %952 = vmatprep.subr.mxu0 %v951
    %v953 = vand.u32 %v224, 4294901760
    %954 = vmatpush1.msra.mxu0 %v953
    %955 = vmatprep.subr.mxu0 0.0
    %956 = vmatpush1.msra.mxu0 0.0
    %957 = vmatprep.subr.mxu0 0.0
    %958 = vmatpush1.msra.mxu0 0.0
    %959 = vmatprep.subr.mxu0 0.0
    %960 = vmatpush1.msra.mxu0 0.0
    %961 = vmatprep.subr.mxu0 0.0
    %962 = vmatpush1.msra.mxu0 0.0
    %963 = vmatprep.subr.mxu0 0.0
    %964 = vmatpush1.msra.mxu0 0.0
    %965 = vmatprep.subr.mxu0 0.0
    %966 = vmatpush1.msra.mxu0 0.0
    %967 = vmatprep.subr.mxu0 0.0
    %968 = vmatpush1.msra.mxu0 0.0
    %969 = vmatprep.subr.mxu0 0.0
    %970 = vmatpush1.msra.mxu0 0.0
    %971 = vmatprep.subr.mxu0 0.0
    %972 = vmatpush1.msra.mxu0 0.0
    %973 = vmatprep.subr.mxu0 0.0
    %974 = vmatpush1.msra.mxu0 0.0
    %975 = vmatprep.subr.mxu0 0.0
    %976 = vmatpush1.msra.mxu0 0.0
    %977 = vmatprep.subr.mxu0 0.0
    %978 = vmatpush1.msra.mxu0 0.0
    %979 = vmatprep.subr.mxu0 0.0
    %980 = vmatpush1.msra.mxu0 0.0
    %981 = vmatprep.subr.mxu0 0.0
    %982 = vmatpush1.msra.mxu0 0.0
    %983 = vmatprep.subr.mxu0 0.0
    %984 = vmatpush1.msra.mxu0 0.0
    %985 = vmatprep.subr.mxu0 0.0
    %986 = vmatpush1.msra.mxu0 0.0
    %987 = vmatprep.mubr.f32.mxu0 0.0
    %v988 = vand.u32 %v96, 4294901760
    %v989 = vsub.f32 %v96, %v988
    %v990 = vand.u32 %v989, 4294901760
    %991 = vmatmul.mubr.f32.gmra.mrb[0].mxu0 %v990
    %v992 = vpop.f32.mrb[0].mxu0
    %v993 = vadd.f32 %v831, %v992
    %v994 = vpop.f32.mrb[0].mxu0
    %v995 = vadd.f32 %v833, %v994
    %996 = vmatprep.mubr.f32.mxu0 0.0
    %v997 = vand.u32 %v97, 4294901760
    %v998 = vsub.f32 %v97, %v997
    %v999 = vand.u32 %v998, 4294901760
    %1000 = vmatmul.mubr.f32.gmra.mrb[0].mxu0 %v999
    %v1001 = vpop.f32.mrb[0].mxu0
    %v1002 = vadd.f32 %v839, %v1001
    %v1003 = vpop.f32.mrb[0].mxu0
    %v1004 = vadd.f32 %v841, %v1003
    %1005 = vmatprep.mubr.f32.mxu0 0.0
    %v1006 = vand.u32 %v98, 4294901760
    %v1007 = vsub.f32 %v98, %v1006
    %v1008 = vand.u32 %v1007, 4294901760
    %1009 = vmatmul.mubr.f32.gmra.mrb[0].mxu0 %v1008
    %v1010 = vpop.f32.mrb[0].mxu0
    %v1011 = vadd.f32 %v847, %v1010
    %v1012 = vpop.f32.mrb[0].mxu0
    %v1013 = vadd.f32 %v849, %v1012
    %1014 = vmatprep.mubr.f32.mxu0 0.0
    %v1015 = vand.u32 %v99, 4294901760
    %v1016 = vsub.f32 %v99, %v1015
    %v1017 = vand.u32 %v1016, 4294901760
    %1018 = vmatmul.mubr.f32.gmra.mrb[0].mxu0 %v1017
    %v1019 = vpop.f32.mrb[0].mxu0
    %v1020 = vadd.f32 %v855, %v1019
    %v1021 = vpop.f32.mrb[0].mxu0
    %v1022 = vadd.f32 %v857, %v1021
    %1023 = vmatprep.mubr.f32.mxu0 0.0
    %v1024 = vand.u32 %v100, 4294901760
    %v1025 = vsub.f32 %v100, %v1024
    %v1026 = vand.u32 %v1025, 4294901760
    %1027 = vmatmul.mubr.f32.gmra.mrb[0].mxu0 %v1026
    %v1028 = vpop.f32.mrb[0].mxu0
    %v1029 = vadd.f32 %v863, %v1028
    %v1030 = vpop.f32.mrb[0].mxu0
    %v1031 = vadd.f32 %v865, %v1030
    %1032 = vmatprep.mubr.f32.mxu0 0.0
    %v1033 = vand.u32 %v101, 4294901760
    %v1034 = vsub.f32 %v101, %v1033
    %v1035 = vand.u32 %v1034, 4294901760
    %1036 = vmatmul.mubr.f32.gmra.mrb[0].mxu0 %v1035
    %v1037 = vpop.f32.mrb[0].mxu0
    %v1038 = vadd.f32 %v871, %v1037
    %v1039 = vpop.f32.mrb[0].mxu0
    %v1040 = vadd.f32 %v873, %v1039
    %1041 = vmatprep.mubr.f32.mxu0 0.0
    %v1042 = vand.u32 %v102, 4294901760
    %v1043 = vsub.f32 %v102, %v1042
    %v1044 = vand.u32 %v1043, 4294901760
    %1045 = vmatmul.mubr.f32.gmra.mrb[0].mxu0 %v1044
    %v1046 = vpop.f32.mrb[0].mxu0
    %v1047 = vadd.f32 %v879, %v1046
    %v1048 = vpop.f32.mrb[0].mxu0
    %v1049 = vadd.f32 %v881, %v1048
    %1050 = vmatprep.mubr.f32.mxu0 0.0
    %v1051 = vand.u32 %v103, 4294901760
    %v1052 = vsub.f32 %v103, %v1051
    %v1053 = vand.u32 %v1052, 4294901760
    %1054 = vmatmul.mubr.f32.gmra.mrb[0].mxu0 %v1053
    %v1055 = vpop.f32.mrb[0].mxu0
    %v1056 = vadd.f32 %v887, %v1055
    %v1057 = vpop.f32.mrb[0].mxu0
    %v1058 = vadd.f32 %v889, %v1057
    %1059 = vdwg.mxu0
    %v1060 = vand.u32 %v105, 4294901760
    %v1061 = vsub.f32 %v105, %v1060
    %v1062 = vand.u32 %v1061, 4294901760
    %1063 = vmatprep.subr.mxu0 %v1062
    %v1064 = vand.u32 %v104, 4294901760
    %v1065 = vsub.f32 %v104, %v1064
    %v1066 = vand.u32 %v1065, 4294901760
    %1067 = vmatpush1.msra.mxu0 %v1066
    %v1068 = vand.u32 %v113, 4294901760
    %v1069 = vsub.f32 %v113, %v1068
    %v1070 = vand.u32 %v1069, 4294901760
    %1071 = vmatprep.subr.mxu0 %v1070
    %v1072 = vand.u32 %v112, 4294901760
    %v1073 = vsub.f32 %v112, %v1072
    %v1074 = vand.u32 %v1073, 4294901760
    %1075 = vmatpush1.msra.mxu0 %v1074
    %v1076 = vand.u32 %v121, 4294901760
    %v1077 = vsub.f32 %v121, %v1076
    %v1078 = vand.u32 %v1077, 4294901760
    %1079 = vmatprep.subr.mxu0 %v1078
    %v1080 = vand.u32 %v120, 4294901760
    %v1081 = vsub.f32 %v120, %v1080
    %v1082 = vand.u32 %v1081, 4294901760
    %1083 = vmatpush1.msra.mxu0 %v1082
    %v1084 = vand.u32 %v129, 4294901760
    %v1085 = vsub.f32 %v129, %v1084
    %v1086 = vand.u32 %v1085, 4294901760
    %1087 = vmatprep.subr.mxu0 %v1086
    %v1088 = vand.u32 %v128, 4294901760
    %v1089 = vsub.f32 %v128, %v1088
    %v1090 = vand.u32 %v1089, 4294901760
    %1091 = vmatpush1.msra.mxu0 %v1090
    %v1092 = vand.u32 %v137, 4294901760
    %v1093 = vsub.f32 %v137, %v1092
    %v1094 = vand.u32 %v1093, 4294901760
    %1095 = vmatprep.subr.mxu0 %v1094
    %v1096 = vand.u32 %v136, 4294901760
    %v1097 = vsub.f32 %v136, %v1096
    %v1098 = vand.u32 %v1097, 4294901760
    %1099 = vmatpush1.msra.mxu0 %v1098
    %v1100 = vand.u32 %v145, 4294901760
    %v1101 = vsub.f32 %v145, %v1100
    %v1102 = vand.u32 %v1101, 4294901760
    %1103 = vmatprep.subr.mxu0 %v1102
    %v1104 = vand.u32 %v144, 4294901760
    %v1105 = vsub.f32 %v144, %v1104
    %v1106 = vand.u32 %v1105, 4294901760
    %1107 = vmatpush1.msra.mxu0 %v1106
    %v1108 = vand.u32 %v153, 4294901760
    %v1109 = vsub.f32 %v153, %v1108
    %v1110 = vand.u32 %v1109, 4294901760
    %1111 = vmatprep.subr.mxu0 %v1110
    %v1112 = vand.u32 %v152, 4294901760
    %v1113 = vsub.f32 %v152, %v1112
    %v1114 = vand.u32 %v1113, 4294901760
    %1115 = vmatpush1.msra.mxu0 %v1114
    %v1116 = vand.u32 %v161, 4294901760
    %v1117 = vsub.f32 %v161, %v1116
    %v1118 = vand.u32 %v1117, 4294901760
    %1119 = vmatprep.subr.mxu0 %v1118
    %v1120 = vand.u32 %v160, 4294901760
    %v1121 = vsub.f32 %v160, %v1120
    %v1122 = vand.u32 %v1121, 4294901760
    %1123 = vmatpush1.msra.mxu0 %v1122
    %v1124 = vand.u32 %v169, 4294901760
    %v1125 = vsub.f32 %v169, %v1124
    %v1126 = vand.u32 %v1125, 4294901760
    %1127 = vmatprep.subr.mxu0 %v1126
    %v1128 = vand.u32 %v168, 4294901760
    %v1129 = vsub.f32 %v168, %v1128
    %v1130 = vand.u32 %v1129, 4294901760
    %1131 = vmatpush1.msra.mxu0 %v1130
    %v1132 = vand.u32 %v177, 4294901760
    %v1133 = vsub.f32 %v177, %v1132
    %v1134 = vand.u32 %v1133, 4294901760
    %1135 = vmatprep.subr.mxu0 %v1134
    %v1136 = vand.u32 %v176, 4294901760
    %v1137 = vsub.f32 %v176, %v1136
    %v1138 = vand.u32 %v1137, 4294901760
    %1139 = vmatpush1.msra.mxu0 %v1138
    %v1140 = vand.u32 %v185, 4294901760
    %v1141 = vsub.f32 %v185, %v1140
    %v1142 = vand.u32 %v1141, 4294901760
    %1143 = vmatprep.subr.mxu0 %v1142
    %v1144 = vand.u32 %v184, 4294901760
    %v1145 = vsub.f32 %v184, %v1144
    %v1146 = vand.u32 %v1145, 4294901760
    %1147 = vmatpush1.msra.mxu0 %v1146
    %v1148 = vand.u32 %v193, 4294901760
    %v1149 = vsub.f32 %v193, %v1148
    %v1150 = vand.u32 %v1149, 4294901760
    %1151 = vmatprep.subr.mxu0 %v1150
    %v1152 = vand.u32 %v192, 4294901760
    %v1153 = vsub.f32 %v192, %v1152
    %v1154 = vand.u32 %v1153, 4294901760
    %1155 = vmatpush1.msra.mxu0 %v1154
    %v1156 = vand.u32 %v201, 4294901760
    %v1157 = vsub.f32 %v201, %v1156
    %v1158 = vand.u32 %v1157, 4294901760
    %1159 = vmatprep.subr.mxu0 %v1158
    %v1160 = vand.u32 %v200, 4294901760
    %v1161 = vsub.f32 %v200, %v1160
    %v1162 = vand.u32 %v1161, 4294901760
    %1163 = vmatpush1.msra.mxu0 %v1162
    %v1164 = vand.u32 %v209, 4294901760
    %v1165 = vsub.f32 %v209, %v1164
    %v1166 = vand.u32 %v1165, 4294901760
    %1167 = vmatprep.subr.mxu0 %v1166
    %v1168 = vand.u32 %v208, 4294901760
    %v1169 = vsub.f32 %v208, %v1168
    %v1170 = vand.u32 %v1169, 4294901760
    %1171 = vmatpush1.msra.mxu0 %v1170
    %v1172 = vand.u32 %v217, 4294901760
    %v1173 = vsub.f32 %v217, %v1172
    %v1174 = vand.u32 %v1173, 4294901760
    %1175 = vmatprep.subr.mxu0 %v1174
    %v1176 = vand.u32 %v216, 4294901760
    %v1177 = vsub.f32 %v216, %v1176
    %v1178 = vand.u32 %v1177, 4294901760
    %1179 = vmatpush1.msra.mxu0 %v1178
    %v1180 = vand.u32 %v225, 4294901760
    %v1181 = vsub.f32 %v225, %v1180
    %v1182 = vand.u32 %v1181, 4294901760
    %1183 = vmatprep.subr.mxu0 %v1182
    %v1184 = vand.u32 %v224, 4294901760
    %v1185 = vsub.f32 %v224, %v1184
    %v1186 = vand.u32 %v1185, 4294901760
    %1187 = vmatpush1.msra.mxu0 %v1186
    %1188 = vmatprep.subr.mxu0 0.0
    %1189 = vmatpush1.msra.mxu0 0.0
    %1190 = vmatprep.subr.mxu0 0.0
    %1191 = vmatpush1.msra.mxu0 0.0
    %1192 = vmatprep.subr.mxu0 0.0
    %1193 = vmatpush1.msra.mxu0 0.0
    %1194 = vmatprep.subr.mxu0 0.0
    %1195 = vmatpush1.msra.mxu0 0.0
    %1196 = vmatprep.subr.mxu0 0.0
    %1197 = vmatpush1.msra.mxu0 0.0
    %1198 = vmatprep.subr.mxu0 0.0
    %1199 = vmatpush1.msra.mxu0 0.0
    %1200 = vmatprep.subr.mxu0 0.0
    %1201 = vmatpush1.msra.mxu0 0.0
    %1202 = vmatprep.subr.mxu0 0.0
    %1203 = vmatpush1.msra.mxu0 0.0
    %1204 = vmatprep.subr.mxu0 0.0
    %1205 = vmatpush1.msra.mxu0 0.0
    %1206 = vmatprep.subr.mxu0 0.0
    %1207 = vmatpush1.msra.mxu0 0.0
    %1208 = vmatprep.subr.mxu0 0.0
    %1209 = vmatpush1.msra.mxu0 0.0
    %1210 = vmatprep.subr.mxu0 0.0
    %1211 = vmatpush1.msra.mxu0 0.0
    %1212 = vmatprep.subr.mxu0 0.0
    %1213 = vmatpush1.msra.mxu0 0.0
    %1214 = vmatprep.subr.mxu0 0.0
    %1215 = vmatpush1.msra.mxu0 0.0
    %1216 = vmatprep.subr.mxu0 0.0
    %1217 = vmatpush1.msra.mxu0 0.0
    %1218 = vmatprep.subr.mxu0 0.0
    %1219 = vmatpush1.msra.mxu0 0.0
    %1220 = vmatprep.mubr.f32.mxu0 0.0
    %v1221 = vand.u32 %v96, 4294901760
    %1222 = vmatmul.mubr.f32.gmra.mrb[0].mxu0 %v1221
    %v1223 = vpop.f32.mrb[0].mxu0
    %v1224 = vadd.f32 %v993, %v1223
    %v1225 = vpop.f32.mrb[0].mxu0
    %v1226 = vadd.f32 %v995, %v1225
    %1227 = vmatprep.mubr.f32.mxu0 0.0
    %v1228 = vand.u32 %v97, 4294901760
    %1229 = vmatmul.mubr.f32.gmra.mrb[0].mxu0 %v1228
    %v1230 = vpop.f32.mrb[0].mxu0
    %v1231 = vadd.f32 %v1002, %v1230
    %v1232 = vpop.f32.mrb[0].mxu0
    %v1233 = vadd.f32 %v1004, %v1232
    %1234 = vmatprep.mubr.f32.mxu0 0.0
    %v1235 = vand.u32 %v98, 4294901760
    %1236 = vmatmul.mubr.f32.gmra.mrb[0].mxu0 %v1235
    %v1237 = vpop.f32.mrb[0].mxu0
    %v1238 = vadd.f32 %v1011, %v1237
    %v1239 = vpop.f32.mrb[0].mxu0
    %v1240 = vadd.f32 %v1013, %v1239
    %1241 = vmatprep.mubr.f32.mxu0 0.0
    %v1242 = vand.u32 %v99, 4294901760
    %1243 = vmatmul.mubr.f32.gmra.mrb[0].mxu0 %v1242
    %v1244 = vpop.f32.mrb[0].mxu0
    %v1245 = vadd.f32 %v1020, %v1244
    %v1246 = vpop.f32.mrb[0].mxu0
    %v1247 = vadd.f32 %v1022, %v1246
    %1248 = vmatprep.mubr.f32.mxu0 0.0
    %v1249 = vand.u32 %v100, 4294901760
    %1250 = vmatmul.mubr.f32.gmra.mrb[0].mxu0 %v1249
    %v1251 = vpop.f32.mrb[0].mxu0
    %v1252 = vadd.f32 %v1029, %v1251
    %v1253 = vpop.f32.mrb[0].mxu0
    %v1254 = vadd.f32 %v1031, %v1253
    %1255 = vmatprep.mubr.f32.mxu0 0.0
    %v1256 = vand.u32 %v101, 4294901760
    %1257 = vmatmul.mubr.f32.gmra.mrb[0].mxu0 %v1256
    %v1258 = vpop.f32.mrb[0].mxu0
    %v1259 = vadd.f32 %v1038, %v1258
    %v1260 = vpop.f32.mrb[0].mxu0
    %v1261 = vadd.f32 %v1040, %v1260
    %1262 = vmatprep.mubr.f32.mxu0 0.0
    %v1263 = vand.u32 %v102, 4294901760
    %1264 = vmatmul.mubr.f32.gmra.mrb[0].mxu0 %v1263
    %v1265 = vpop.f32.mrb[0].mxu0
    %v1266 = vadd.f32 %v1047, %v1265
    %v1267 = vpop.f32.mrb[0].mxu0
    %v1268 = vadd.f32 %v1049, %v1267
    %1269 = vmatprep.mubr.f32.mxu0 0.0
    %v1270 = vand.u32 %v103, 4294901760
    %1271 = vmatmul.mubr.f32.gmra.mrb[0].mxu0 %v1270
    %v1272 = vpop.f32.mrb[0].mxu0
    %v1273 = vadd.f32 %v1056, %v1272
    %v1274 = vpop.f32.mrb[0].mxu0
    %v1275 = vadd.f32 %v1058, %v1274
    %1276 = vdwg.mxu0
    %v1277 = vand.u32 %v105, 4294901760
    %1278 = vmatprep.subr.mxu0 %v1277
    %v1279 = vand.u32 %v104, 4294901760
    %1280 = vmatpush1.msra.mxu0 %v1279
    %v1281 = vand.u32 %v113, 4294901760
    %1282 = vmatprep.subr.mxu0 %v1281
    %v1283 = vand.u32 %v112, 4294901760
    %1284 = vmatpush1.msra.mxu0 %v1283
    %v1285 = vand.u32 %v121, 4294901760
    %1286 = vmatprep.subr.mxu0 %v1285
    %v1287 = vand.u32 %v120, 4294901760
    %1288 = vmatpush1.msra.mxu0 %v1287
    %v1289 = vand.u32 %v129, 4294901760
    %1290 = vmatprep.subr.mxu0 %v1289
    %v1291 = vand.u32 %v128, 4294901760
    %1292 = vmatpush1.msra.mxu0 %v1291
    %v1293 = vand.u32 %v137, 4294901760
    %1294 = vmatprep.subr.mxu0 %v1293
    %v1295 = vand.u32 %v136, 4294901760
    %1296 = vmatpush1.msra.mxu0 %v1295
    %v1297 = vand.u32 %v145, 4294901760
    %1298 = vmatprep.subr.mxu0 %v1297
    %v1299 = vand.u32 %v144, 4294901760
    %1300 = vmatpush1.msra.mxu0 %v1299
    %v1301 = vand.u32 %v153, 4294901760
    %1302 = vmatprep.subr.mxu0 %v1301
    %v1303 = vand.u32 %v152, 4294901760
    %1304 = vmatpush1.msra.mxu0 %v1303
    %v1305 = vand.u32 %v161, 4294901760
    %1306 = vmatprep.subr.mxu0 %v1305
    %v1307 = vand.u32 %v160, 4294901760
    %1308 = vmatpush1.msra.mxu0 %v1307
    %v1309 = vand.u32 %v169, 4294901760
    %1310 = vmatprep.subr.mxu0 %v1309
    %v1311 = vand.u32 %v168, 4294901760
    %1312 = vmatpush1.msra.mxu0 %v1311
    %v1313 = vand.u32 %v177, 4294901760
    %1314 = vmatprep.subr.mxu0 %v1313
    %v1315 = vand.u32 %v176, 4294901760
    %1316 = vmatpush1.msra.mxu0 %v1315
    %v1317 = vand.u32 %v185, 4294901760
    %1318 = vmatprep.subr.mxu0 %v1317
    %v1319 = vand.u32 %v184, 4294901760
    %1320 = vmatpush1.msra.mxu0 %v1319
    %v1321 = vand.u32 %v193, 4294901760
    %1322 = vmatprep.subr.mxu0 %v1321
    %v1323 = vand.u32 %v192, 4294901760
    %1324 = vmatpush1.msra.mxu0 %v1323
    %v1325 = vand.u32 %v201, 4294901760
    %1326 = vmatprep.subr.mxu0 %v1325
    %v1327 = vand.u32 %v200, 4294901760
    %1328 = vmatpush1.msra.mxu0 %v1327
    %v1329 = vand.u32 %v209, 4294901760
    %1330 = vmatprep.subr.mxu0 %v1329
    %v1331 = vand.u32 %v208, 4294901760
    %1332 = vmatpush1.msra.mxu0 %v1331
    %v1333 = vand.u32 %v217, 4294901760
    %1334 = vmatprep.subr.mxu0 %v1333
    %v1335 = vand.u32 %v216, 4294901760
    %1336 = vmatpush1.msra.mxu0 %v1335
    %v1337 = vand.u32 %v225, 4294901760
    %1338 = vmatprep.subr.mxu0 %v1337
    %v1339 = vand.u32 %v224, 4294901760
    %1340 = vmatpush1.msra.mxu0 %v1339
    %1341 = vmatprep.subr.mxu0 0.0
    %1342 = vmatpush1.msra.mxu0 0.0
    %1343 = vmatprep.subr.mxu0 0.0
    %1344 = vmatpush1.msra.mxu0 0.0
    %1345 = vmatprep.subr.mxu0 0.0
    %1346 = vmatpush1.msra.mxu0 0.0
    %1347 = vmatprep.subr.mxu0 0.0
    %1348 = vmatpush1.msra.mxu0 0.0
    %1349 = vmatprep.subr.mxu0 0.0
    %1350 = vmatpush1.msra.mxu0 0.0
    %1351 = vmatprep.subr.mxu0 0.0
    %1352 = vmatpush1.msra.mxu0 0.0
    %1353 = vmatprep.subr.mxu0 0.0
    %1354 = vmatpush1.msra.mxu0 0.0
    %1355 = vmatprep.subr.mxu0 0.0
    %1356 = vmatpush1.msra.mxu0 0.0
    %1357 = vmatprep.subr.mxu0 0.0
    %1358 = vmatpush1.msra.mxu0 0.0
    %1359 = vmatprep.subr.mxu0 0.0
    %1360 = vmatpush1.msra.mxu0 0.0
    %1361 = vmatprep.subr.mxu0 0.0
    %1362 = vmatpush1.msra.mxu0 0.0
    %1363 = vmatprep.subr.mxu0 0.0
    %1364 = vmatpush1.msra.mxu0 0.0
    %1365 = vmatprep.subr.mxu0 0.0
    %1366 = vmatpush1.msra.mxu0 0.0
    %1367 = vmatprep.subr.mxu0 0.0
    %1368 = vmatpush1.msra.mxu0 0.0
    %1369 = vmatprep.subr.mxu0 0.0
    %1370 = vmatpush1.msra.mxu0 0.0
    %1371 = vmatprep.subr.mxu0 0.0
    %1372 = vmatpush1.msra.mxu0 0.0
    %1373 = vmatprep.mubr.f32.mxu0 0.0
    %v1374 = vand.u32 %v96, 4294901760
    %1375 = vmatmul.mubr.f32.gmra.mrb[0].mxu0 %v1374
    %v1376 = vpop.f32.mrb[0].mxu0
    %v1377 = vadd.f32 %v1224, %v1376
    %v1378 = vpop.f32.mrb[0].mxu0
    %v1379 = vadd.f32 %v1226, %v1378
    %1380 = vmatprep.mubr.f32.mxu0 0.0
    %v1381 = vand.u32 %v97, 4294901760
    %1382 = vmatmul.mubr.f32.gmra.mrb[0].mxu0 %v1381
    %v1383 = vpop.f32.mrb[0].mxu0
    %v1384 = vadd.f32 %v1231, %v1383
    %v1385 = vpop.f32.mrb[0].mxu0
    %v1386 = vadd.f32 %v1233, %v1385
    %1387 = vmatprep.mubr.f32.mxu0 0.0
    %v1388 = vand.u32 %v98, 4294901760
    %1389 = vmatmul.mubr.f32.gmra.mrb[0].mxu0 %v1388
    %v1390 = vpop.f32.mrb[0].mxu0
    %v1391 = vadd.f32 %v1238, %v1390
    %v1392 = vpop.f32.mrb[0].mxu0
    %v1393 = vadd.f32 %v1240, %v1392
    %1394 = vmatprep.mubr.f32.mxu0 0.0
    %v1395 = vand.u32 %v99, 4294901760
    %1396 = vmatmul.mubr.f32.gmra.mrb[0].mxu0 %v1395
    %v1397 = vpop.f32.mrb[0].mxu0
    %v1398 = vadd.f32 %v1245, %v1397
    %v1399 = vpop.f32.mrb[0].mxu0
    %v1400 = vadd.f32 %v1247, %v1399
    %1401 = vmatprep.mubr.f32.mxu0 0.0
    %v1402 = vand.u32 %v100, 4294901760
    %1403 = vmatmul.mubr.f32.gmra.mrb[0].mxu0 %v1402
    %v1404 = vpop.f32.mrb[0].mxu0
    %v1405 = vadd.f32 %v1252, %v1404
    %v1406 = vpop.f32.mrb[0].mxu0
    %v1407 = vadd.f32 %v1254, %v1406
    %1408 = vmatprep.mubr.f32.mxu0 0.0
    %v1409 = vand.u32 %v101, 4294901760
    %1410 = vmatmul.mubr.f32.gmra.mrb[0].mxu0 %v1409
    %v1411 = vpop.f32.mrb[0].mxu0
    %v1412 = vadd.f32 %v1259, %v1411
    %v1413 = vpop.f32.mrb[0].mxu0
    %v1414 = vadd.f32 %v1261, %v1413
    %1415 = vmatprep.mubr.f32.mxu0 0.0
    %v1416 = vand.u32 %v102, 4294901760
    %1417 = vmatmul.mubr.f32.gmra.mrb[0].mxu0 %v1416
    %v1418 = vpop.f32.mrb[0].mxu0
    %v1419 = vadd.f32 %v1266, %v1418
    %v1420 = vpop.f32.mrb[0].mxu0
    %v1421 = vadd.f32 %v1268, %v1420
    %1422 = vmatprep.mubr.f32.mxu0 0.0
    %v1423 = vand.u32 %v103, 4294901760
    %1424 = vmatmul.mubr.f32.gmra.mrb[0].mxu0 %v1423
    %v1425 = vpop.f32.mrb[0].mxu0
    %v1426 = vadd.f32 %v1273, %v1425
    %v1427 = vpop.f32.mrb[0].mxu0
    %v1428 = vadd.f32 %v1275, %v1427
    %1429 = vdwg.mxu0
    %v1430 = vand.u32 %v107, 4294901760
    %1431 = vmatprep.subr.mxu0 %v1430
    %v1432 = vand.u32 %v106, 4294901760
    %1433 = vmatpush1.msra.mxu0 %v1432
    %v1434 = vand.u32 %v115, 4294901760
    %1435 = vmatprep.subr.mxu0 %v1434
    %v1436 = vand.u32 %v114, 4294901760
    %1437 = vmatpush1.msra.mxu0 %v1436
    %v1438 = vand.u32 %v123, 4294901760
    %1439 = vmatprep.subr.mxu0 %v1438
    %v1440 = vand.u32 %v122, 4294901760
    %1441 = vmatpush1.msra.mxu0 %v1440
    %v1442 = vand.u32 %v131, 4294901760
    %1443 = vmatprep.subr.mxu0 %v1442
    %v1444 = vand.u32 %v130, 4294901760
    %1445 = vmatpush1.msra.mxu0 %v1444
    %v1446 = vand.u32 %v139, 4294901760
    %1447 = vmatprep.subr.mxu0 %v1446
    %v1448 = vand.u32 %v138, 4294901760
    %1449 = vmatpush1.msra.mxu0 %v1448
    %v1450 = vand.u32 %v147, 4294901760
    %1451 = vmatprep.subr.mxu0 %v1450
    %v1452 = vand.u32 %v146, 4294901760
    %1453 = vmatpush1.msra.mxu0 %v1452
    %v1454 = vand.u32 %v155, 4294901760
    %1455 = vmatprep.subr.mxu0 %v1454
    %v1456 = vand.u32 %v154, 4294901760
    %1457 = vmatpush1.msra.mxu0 %v1456
    %v1458 = vand.u32 %v163, 4294901760
    %1459 = vmatprep.subr.mxu0 %v1458
    %v1460 = vand.u32 %v162, 4294901760
    %1461 = vmatpush1.msra.mxu0 %v1460
    %v1462 = vand.u32 %v171, 4294901760
    %1463 = vmatprep.subr.mxu0 %v1462
    %v1464 = vand.u32 %v170, 4294901760
    %1465 = vmatpush1.msra.mxu0 %v1464
    %v1466 = vand.u32 %v179, 4294901760
    %1467 = vmatprep.subr.mxu0 %v1466
    %v1468 = vand.u32 %v178, 4294901760
    %1469 = vmatpush1.msra.mxu0 %v1468
    %v1470 = vand.u32 %v187, 4294901760
    %1471 = vmatprep.subr.mxu0 %v1470
    %v1472 = vand.u32 %v186, 4294901760
    %1473 = vmatpush1.msra.mxu0 %v1472
    %v1474 = vand.u32 %v195, 4294901760
    %1475 = vmatprep.subr.mxu0 %v1474
    %v1476 = vand.u32 %v194, 4294901760
    %1477 = vmatpush1.msra.mxu0 %v1476
    %v1478 = vand.u32 %v203, 4294901760
    %1479 = vmatprep.subr.mxu0 %v1478
    %v1480 = vand.u32 %v202, 4294901760
    %1481 = vmatpush1.msra.mxu0 %v1480
    %v1482 = vand.u32 %v211, 4294901760
    %1483 = vmatprep.subr.mxu0 %v1482
    %v1484 = vand.u32 %v210, 4294901760
    %1485 = vmatpush1.msra.mxu0 %v1484
    %v1486 = vand.u32 %v219, 4294901760
    %1487 = vmatprep.subr.mxu0 %v1486
    %v1488 = vand.u32 %v218, 4294901760
    %1489 = vmatpush1.msra.mxu0 %v1488
    %v1490 = vand.u32 %v227, 4294901760
    %1491 = vmatprep.subr.mxu0 %v1490
    %v1492 = vand.u32 %v226, 4294901760
    %1493 = vmatpush1.msra.mxu0 %v1492
    %1494 = vmatprep.subr.mxu0 0.0
    %1495 = vmatpush1.msra.mxu0 0.0
    %1496 = vmatprep.subr.mxu0 0.0
    %1497 = vmatpush1.msra.mxu0 0.0
    %1498 = vmatprep.subr.mxu0 0.0
    %1499 = vmatpush1.msra.mxu0 0.0
    %1500 = vmatprep.subr.mxu0 0.0
    %1501 = vmatpush1.msra.mxu0 0.0
    %1502 = vmatprep.subr.mxu0 0.0
    %1503 = vmatpush1.msra.mxu0 0.0
    %1504 = vmatprep.subr.mxu0 0.0
    %1505 = vmatpush1.msra.mxu0 0.0
    %1506 = vmatprep.subr.mxu0 0.0
    %1507 = vmatpush1.msra.mxu0 0.0
    %1508 = vmatprep.subr.mxu0 0.0
    %1509 = vmatpush1.msra.mxu0 0.0
    %1510 = vmatprep.subr.mxu0 0.0
    %1511 = vmatpush1.msra.mxu0 0.0
    %1512 = vmatprep.subr.mxu0 0.0
    %1513 = vmatpush1.msra.mxu0 0.0
    %1514 = vmatprep.subr.mxu0 0.0
    %1515 = vmatpush1.msra.mxu0 0.0
    %1516 = vmatprep.subr.mxu0 0.0
    %1517 = vmatpush1.msra.mxu0 0.0
    %1518 = vmatprep.subr.mxu0 0.0
    %1519 = vmatpush1.msra.mxu0 0.0
    %1520 = vmatprep.subr.mxu0 0.0
    %1521 = vmatpush1.msra.mxu0 0.0
    %1522 = vmatprep.subr.mxu0 0.0
    %1523 = vmatpush1.msra.mxu0 0.0
    %1524 = vmatprep.subr.mxu0 0.0
    %1525 = vmatpush1.msra.mxu0 0.0
    %1526 = vmatprep.mubr.f32.mxu0 0.0
    %v1527 = vand.u32 %v96, 4294901760
    %v1528 = vsub.f32 %v96, %v1527
    %v1529 = vand.u32 %v1528, 4294901760
    %v1530 = vsub.f32 %v1528, %v1529
    %v1531 = vand.u32 %v1530, 4294901760
    %1532 = vmatmul.mubr.f32.gmra.mrb[0].mxu0 %v1531
    %v1533 = vpop.f32.mrb[0].mxu0
    %v1534 = vadd.f32 0.0, %v1533
    %v1535 = vpop.f32.mrb[0].mxu0
    %v1536 = vadd.f32 0.0, %v1535
    %1537 = vmatprep.mubr.f32.mxu0 0.0
    %v1538 = vand.u32 %v97, 4294901760
    %v1539 = vsub.f32 %v97, %v1538
    %v1540 = vand.u32 %v1539, 4294901760
    %v1541 = vsub.f32 %v1539, %v1540
    %v1542 = vand.u32 %v1541, 4294901760
    %1543 = vmatmul.mubr.f32.gmra.mrb[0].mxu0 %v1542
    %v1544 = vpop.f32.mrb[0].mxu0
    %v1545 = vadd.f32 0.0, %v1544
    %v1546 = vpop.f32.mrb[0].mxu0
    %v1547 = vadd.f32 0.0, %v1546
    %1548 = vmatprep.mubr.f32.mxu0 0.0
    %v1549 = vand.u32 %v98, 4294901760
    %v1550 = vsub.f32 %v98, %v1549
    %v1551 = vand.u32 %v1550, 4294901760
    %v1552 = vsub.f32 %v1550, %v1551
    %v1553 = vand.u32 %v1552, 4294901760
    %1554 = vmatmul.mubr.f32.gmra.mrb[0].mxu0 %v1553
    %v1555 = vpop.f32.mrb[0].mxu0
    %v1556 = vadd.f32 0.0, %v1555
    %v1557 = vpop.f32.mrb[0].mxu0
    %v1558 = vadd.f32 0.0, %v1557
    %1559 = vmatprep.mubr.f32.mxu0 0.0
    %v1560 = vand.u32 %v99, 4294901760
    %v1561 = vsub.f32 %v99, %v1560
    %v1562 = vand.u32 %v1561, 4294901760
    %v1563 = vsub.f32 %v1561, %v1562
    %v1564 = vand.u32 %v1563, 4294901760
    %1565 = vmatmul.mubr.f32.gmra.mrb[0].mxu0 %v1564
    %v1566 = vpop.f32.mrb[0].mxu0
    %v1567 = vadd.f32 0.0, %v1566
    %v1568 = vpop.f32.mrb[0].mxu0
    %v1569 = vadd.f32 0.0, %v1568
    %1570 = vmatprep.mubr.f32.mxu0 0.0
    %v1571 = vand.u32 %v100, 4294901760
    %v1572 = vsub.f32 %v100, %v1571
    %v1573 = vand.u32 %v1572, 4294901760
    %v1574 = vsub.f32 %v1572, %v1573
    %v1575 = vand.u32 %v1574, 4294901760
    %1576 = vmatmul.mubr.f32.gmra.mrb[0].mxu0 %v1575
    %v1577 = vpop.f32.mrb[0].mxu0
    %v1578 = vadd.f32 0.0, %v1577
    %v1579 = vpop.f32.mrb[0].mxu0
    %v1580 = vadd.f32 0.0, %v1579
    %1581 = vmatprep.mubr.f32.mxu0 0.0
    %v1582 = vand.u32 %v101, 4294901760
    %v1583 = vsub.f32 %v101, %v1582
    %v1584 = vand.u32 %v1583, 4294901760
    %v1585 = vsub.f32 %v1583, %v1584
    %v1586 = vand.u32 %v1585, 4294901760
    %1587 = vmatmul.mubr.f32.gmra.mrb[0].mxu0 %v1586
    %v1588 = vpop.f32.mrb[0].mxu0
    %v1589 = vadd.f32 0.0, %v1588
    %v1590 = vpop.f32.mrb[0].mxu0
    %v1591 = vadd.f32 0.0, %v1590
    %1592 = vmatprep.mubr.f32.mxu0 0.0
    %v1593 = vand.u32 %v102, 4294901760
    %v1594 = vsub.f32 %v102, %v1593
    %v1595 = vand.u32 %v1594, 4294901760
    %v1596 = vsub.f32 %v1594, %v1595
    %v1597 = vand.u32 %v1596, 4294901760
    %1598 = vmatmul.mubr.f32.gmra.mrb[0].mxu0 %v1597
    %v1599 = vpop.f32.mrb[0].mxu0
    %v1600 = vadd.f32 0.0, %v1599
    %v1601 = vpop.f32.mrb[0].mxu0
    %v1602 = vadd.f32 0.0, %v1601
    %1603 = vmatprep.mubr.f32.mxu0 0.0
    %v1604 = vand.u32 %v103, 4294901760
    %v1605 = vsub.f32 %v103, %v1604
    %v1606 = vand.u32 %v1605, 4294901760
    %v1607 = vsub.f32 %v1605, %v1606
    %v1608 = vand.u32 %v1607, 4294901760
    %1609 = vmatmul.mubr.f32.gmra.mrb[0].mxu0 %v1608
    %v1610 = vpop.f32.mrb[0].mxu0
    %v1611 = vadd.f32 0.0, %v1610
    %v1612 = vpop.f32.mrb[0].mxu0
    %v1613 = vadd.f32 0.0, %v1612
    %1614 = vdwg.mxu0
    %v1615 = vand.u32 %v107, 4294901760
    %v1616 = vsub.f32 %v107, %v1615
    %v1617 = vand.u32 %v1616, 4294901760
    %v1618 = vsub.f32 %v1616, %v1617
    %v1619 = vand.u32 %v1618, 4294901760
    %1620 = vmatprep.subr.mxu0 %v1619
    %v1621 = vand.u32 %v106, 4294901760
    %v1622 = vsub.f32 %v106, %v1621
    %v1623 = vand.u32 %v1622, 4294901760
    %v1624 = vsub.f32 %v1622, %v1623
    %v1625 = vand.u32 %v1624, 4294901760
    %1626 = vmatpush1.msra.mxu0 %v1625
    %v1627 = vand.u32 %v115, 4294901760
    %v1628 = vsub.f32 %v115, %v1627
    %v1629 = vand.u32 %v1628, 4294901760
    %v1630 = vsub.f32 %v1628, %v1629
    %v1631 = vand.u32 %v1630, 4294901760
    %1632 = vmatprep.subr.mxu0 %v1631
    %v1633 = vand.u32 %v114, 4294901760
    %v1634 = vsub.f32 %v114, %v1633
    %v1635 = vand.u32 %v1634, 4294901760
    %v1636 = vsub.f32 %v1634, %v1635
    %v1637 = vand.u32 %v1636, 4294901760
    %1638 = vmatpush1.msra.mxu0 %v1637
    %v1639 = vand.u32 %v123, 4294901760
    %v1640 = vsub.f32 %v123, %v1639
    %v1641 = vand.u32 %v1640, 4294901760
    %v1642 = vsub.f32 %v1640, %v1641
    %v1643 = vand.u32 %v1642, 4294901760
    %1644 = vmatprep.subr.mxu0 %v1643
    %v1645 = vand.u32 %v122, 4294901760
    %v1646 = vsub.f32 %v122, %v1645
    %v1647 = vand.u32 %v1646, 4294901760
    %v1648 = vsub.f32 %v1646, %v1647
    %v1649 = vand.u32 %v1648, 4294901760
    %1650 = vmatpush1.msra.mxu0 %v1649
    %v1651 = vand.u32 %v131, 4294901760
    %v1652 = vsub.f32 %v131, %v1651
    %v1653 = vand.u32 %v1652, 4294901760
    %v1654 = vsub.f32 %v1652, %v1653
    %v1655 = vand.u32 %v1654, 4294901760
    %1656 = vmatprep.subr.mxu0 %v1655
    %v1657 = vand.u32 %v130, 4294901760
    %v1658 = vsub.f32 %v130, %v1657
    %v1659 = vand.u32 %v1658, 4294901760
    %v1660 = vsub.f32 %v1658, %v1659
    %v1661 = vand.u32 %v1660, 4294901760
    %1662 = vmatpush1.msra.mxu0 %v1661
    %v1663 = vand.u32 %v139, 4294901760
    %v1664 = vsub.f32 %v139, %v1663
    %v1665 = vand.u32 %v1664, 4294901760
    %v1666 = vsub.f32 %v1664, %v1665
    %v1667 = vand.u32 %v1666, 4294901760
    %1668 = vmatprep.subr.mxu0 %v1667
    %v1669 = vand.u32 %v138, 4294901760
    %v1670 = vsub.f32 %v138, %v1669
    %v1671 = vand.u32 %v1670, 4294901760
    %v1672 = vsub.f32 %v1670, %v1671
    %v1673 = vand.u32 %v1672, 4294901760
    %1674 = vmatpush1.msra.mxu0 %v1673
    %v1675 = vand.u32 %v147, 4294901760
    %v1676 = vsub.f32 %v147, %v1675
    %v1677 = vand.u32 %v1676, 4294901760
    %v1678 = vsub.f32 %v1676, %v1677
    %v1679 = vand.u32 %v1678, 4294901760
    %1680 = vmatprep.subr.mxu0 %v1679
    %v1681 = vand.u32 %v146, 4294901760
    %v1682 = vsub.f32 %v146, %v1681
    %v1683 = vand.u32 %v1682, 4294901760
    %v1684 = vsub.f32 %v1682, %v1683
    %v1685 = vand.u32 %v1684, 4294901760
    %1686 = vmatpush1.msra.mxu0 %v1685
    %v1687 = vand.u32 %v155, 4294901760
    %v1688 = vsub.f32 %v155, %v1687
    %v1689 = vand.u32 %v1688, 4294901760
    %v1690 = vsub.f32 %v1688, %v1689
    %v1691 = vand.u32 %v1690, 4294901760
    %1692 = vmatprep.subr.mxu0 %v1691
    %v1693 = vand.u32 %v154, 4294901760
    %v1694 = vsub.f32 %v154, %v1693
    %v1695 = vand.u32 %v1694, 4294901760
    %v1696 = vsub.f32 %v1694, %v1695
    %v1697 = vand.u32 %v1696, 4294901760
    %1698 = vmatpush1.msra.mxu0 %v1697
    %v1699 = vand.u32 %v163, 4294901760
    %v1700 = vsub.f32 %v163, %v1699
    %v1701 = vand.u32 %v1700, 4294901760
    %v1702 = vsub.f32 %v1700, %v1701
    %v1703 = vand.u32 %v1702, 4294901760
    %1704 = vmatprep.subr.mxu0 %v1703
    %v1705 = vand.u32 %v162, 4294901760
    %v1706 = vsub.f32 %v162, %v1705
    %v1707 = vand.u32 %v1706, 4294901760
    %v1708 = vsub.f32 %v1706, %v1707
    %v1709 = vand.u32 %v1708, 4294901760
    %1710 = vmatpush1.msra.mxu0 %v1709
    %v1711 = vand.u32 %v171, 4294901760
    %v1712 = vsub.f32 %v171, %v1711
    %v1713 = vand.u32 %v1712, 4294901760
    %v1714 = vsub.f32 %v1712, %v1713
    %v1715 = vand.u32 %v1714, 4294901760
    %1716 = vmatprep.subr.mxu0 %v1715
    %v1717 = vand.u32 %v170, 4294901760
    %v1718 = vsub.f32 %v170, %v1717
    %v1719 = vand.u32 %v1718, 4294901760
    %v1720 = vsub.f32 %v1718, %v1719
    %v1721 = vand.u32 %v1720, 4294901760
    %1722 = vmatpush1.msra.mxu0 %v1721
    %v1723 = vand.u32 %v179, 4294901760
    %v1724 = vsub.f32 %v179, %v1723
    %v1725 = vand.u32 %v1724, 4294901760
    %v1726 = vsub.f32 %v1724, %v1725
    %v1727 = vand.u32 %v1726, 4294901760
    %1728 = vmatprep.subr.mxu0 %v1727
    %v1729 = vand.u32 %v178, 4294901760
    %v1730 = vsub.f32 %v178, %v1729
    %v1731 = vand.u32 %v1730, 4294901760
    %v1732 = vsub.f32 %v1730, %v1731
    %v1733 = vand.u32 %v1732, 4294901760
    %1734 = vmatpush1.msra.mxu0 %v1733
    %v1735 = vand.u32 %v187, 4294901760
    %v1736 = vsub.f32 %v187, %v1735
    %v1737 = vand.u32 %v1736, 4294901760
    %v1738 = vsub.f32 %v1736, %v1737
    %v1739 = vand.u32 %v1738, 4294901760
    %1740 = vmatprep.subr.mxu0 %v1739
    %v1741 = vand.u32 %v186, 4294901760
    %v1742 = vsub.f32 %v186, %v1741
    %v1743 = vand.u32 %v1742, 4294901760
    %v1744 = vsub.f32 %v1742, %v1743
    %v1745 = vand.u32 %v1744, 4294901760
    %1746 = vmatpush1.msra.mxu0 %v1745
    %v1747 = vand.u32 %v195, 4294901760
    %v1748 = vsub.f32 %v195, %v1747
    %v1749 = vand.u32 %v1748, 4294901760
    %v1750 = vsub.f32 %v1748, %v1749
    %v1751 = vand.u32 %v1750, 4294901760
    %1752 = vmatprep.subr.mxu0 %v1751
    %v1753 = vand.u32 %v194, 4294901760
    %v1754 = vsub.f32 %v194, %v1753
    %v1755 = vand.u32 %v1754, 4294901760
    %v1756 = vsub.f32 %v1754, %v1755
    %v1757 = vand.u32 %v1756, 4294901760
    %1758 = vmatpush1.msra.mxu0 %v1757
    %v1759 = vand.u32 %v203, 4294901760
    %v1760 = vsub.f32 %v203, %v1759
    %v1761 = vand.u32 %v1760, 4294901760
    %v1762 = vsub.f32 %v1760, %v1761
    %v1763 = vand.u32 %v1762, 4294901760
    %1764 = vmatprep.subr.mxu0 %v1763
    %v1765 = vand.u32 %v202, 4294901760
    %v1766 = vsub.f32 %v202, %v1765
    %v1767 = vand.u32 %v1766, 4294901760
    %v1768 = vsub.f32 %v1766, %v1767
    %v1769 = vand.u32 %v1768, 4294901760
    %1770 = vmatpush1.msra.mxu0 %v1769
    %v1771 = vand.u32 %v211, 4294901760
    %v1772 = vsub.f32 %v211, %v1771
    %v1773 = vand.u32 %v1772, 4294901760
    %v1774 = vsub.f32 %v1772, %v1773
    %v1775 = vand.u32 %v1774, 4294901760
    %1776 = vmatprep.subr.mxu0 %v1775
    %v1777 = vand.u32 %v210, 4294901760
    %v1778 = vsub.f32 %v210, %v1777
    %v1779 = vand.u32 %v1778, 4294901760
    %v1780 = vsub.f32 %v1778, %v1779
    %v1781 = vand.u32 %v1780, 4294901760
    %1782 = vmatpush1.msra.mxu0 %v1781
    %v1783 = vand.u32 %v219, 4294901760
    %v1784 = vsub.f32 %v219, %v1783
    %v1785 = vand.u32 %v1784, 4294901760
    %v1786 = vsub.f32 %v1784, %v1785
    %v1787 = vand.u32 %v1786, 4294901760
    %1788 = vmatprep.subr.mxu0 %v1787
    %v1789 = vand.u32 %v218, 4294901760
    %v1790 = vsub.f32 %v218, %v1789
    %v1791 = vand.u32 %v1790, 4294901760
    %v1792 = vsub.f32 %v1790, %v1791
    %v1793 = vand.u32 %v1792, 4294901760
    %1794 = vmatpush1.msra.mxu0 %v1793
    %v1795 = vand.u32 %v227, 4294901760
    %v1796 = vsub.f32 %v227, %v1795
    %v1797 = vand.u32 %v1796, 4294901760
    %v1798 = vsub.f32 %v1796, %v1797
    %v1799 = vand.u32 %v1798, 4294901760
    %1800 = vmatprep.subr.mxu0 %v1799
    %v1801 = vand.u32 %v226, 4294901760
    %v1802 = vsub.f32 %v226, %v1801
    %v1803 = vand.u32 %v1802, 4294901760
    %v1804 = vsub.f32 %v1802, %v1803
    %v1805 = vand.u32 %v1804, 4294901760
    %1806 = vmatpush1.msra.mxu0 %v1805
    %1807 = vmatprep.subr.mxu0 0.0
    %1808 = vmatpush1.msra.mxu0 0.0
    %1809 = vmatprep.subr.mxu0 0.0
    %1810 = vmatpush1.msra.mxu0 0.0
    %1811 = vmatprep.subr.mxu0 0.0
    %1812 = vmatpush1.msra.mxu0 0.0
    %1813 = vmatprep.subr.mxu0 0.0
    %1814 = vmatpush1.msra.mxu0 0.0
    %1815 = vmatprep.subr.mxu0 0.0
    %1816 = vmatpush1.msra.mxu0 0.0
    %1817 = vmatprep.subr.mxu0 0.0
    %1818 = vmatpush1.msra.mxu0 0.0
    %1819 = vmatprep.subr.mxu0 0.0
    %1820 = vmatpush1.msra.mxu0 0.0
    %1821 = vmatprep.subr.mxu0 0.0
    %1822 = vmatpush1.msra.mxu0 0.0
    %1823 = vmatprep.subr.mxu0 0.0
    %1824 = vmatpush1.msra.mxu0 0.0
    %1825 = vmatprep.subr.mxu0 0.0
    %1826 = vmatpush1.msra.mxu0 0.0
    %1827 = vmatprep.subr.mxu0 0.0
    %1828 = vmatpush1.msra.mxu0 0.0
    %1829 = vmatprep.subr.mxu0 0.0
    %1830 = vmatpush1.msra.mxu0 0.0
    %1831 = vmatprep.subr.mxu0 0.0
    %1832 = vmatpush1.msra.mxu0 0.0
    %1833 = vmatprep.subr.mxu0 0.0
    %1834 = vmatpush1.msra.mxu0 0.0
    %1835 = vmatprep.subr.mxu0 0.0
    %1836 = vmatpush1.msra.mxu0 0.0
    %1837 = vmatprep.subr.mxu0 0.0
    %1838 = vmatpush1.msra.mxu0 0.0
    %1839 = vmatprep.mubr.f32.mxu0 0.0
    %v1840 = vand.u32 %v96, 4294901760
    %1841 = vmatmul.mubr.f32.gmra.mrb[0].mxu0 %v1840
    %v1842 = vpop.f32.mrb[0].mxu0
    %v1843 = vadd.f32 %v1534, %v1842
    %v1844 = vpop.f32.mrb[0].mxu0
    %v1845 = vadd.f32 %v1536, %v1844
    %1846 = vmatprep.mubr.f32.mxu0 0.0
    %v1847 = vand.u32 %v97, 4294901760
    %1848 = vmatmul.mubr.f32.gmra.mrb[0].mxu0 %v1847
    %v1849 = vpop.f32.mrb[0].mxu0
    %v1850 = vadd.f32 %v1545, %v1849
    %v1851 = vpop.f32.mrb[0].mxu0
    %v1852 = vadd.f32 %v1547, %v1851
    %1853 = vmatprep.mubr.f32.mxu0 0.0
    %v1854 = vand.u32 %v98, 4294901760
    %1855 = vmatmul.mubr.f32.gmra.mrb[0].mxu0 %v1854
    %v1856 = vpop.f32.mrb[0].mxu0
    %v1857 = vadd.f32 %v1556, %v1856
    %v1858 = vpop.f32.mrb[0].mxu0
    %v1859 = vadd.f32 %v1558, %v1858
    %1860 = vmatprep.mubr.f32.mxu0 0.0
    %v1861 = vand.u32 %v99, 4294901760
    %1862 = vmatmul.mubr.f32.gmra.mrb[0].mxu0 %v1861
    %v1863 = vpop.f32.mrb[0].mxu0
    %v1864 = vadd.f32 %v1567, %v1863
    %v1865 = vpop.f32.mrb[0].mxu0
    %v1866 = vadd.f32 %v1569, %v1865
    %1867 = vmatprep.mubr.f32.mxu0 0.0
    %v1868 = vand.u32 %v100, 4294901760
    %1869 = vmatmul.mubr.f32.gmra.mrb[0].mxu0 %v1868
    %v1870 = vpop.f32.mrb[0].mxu0
    %v1871 = vadd.f32 %v1578, %v1870
    %v1872 = vpop.f32.mrb[0].mxu0
    %v1873 = vadd.f32 %v1580, %v1872
    %1874 = vmatprep.mubr.f32.mxu0 0.0
    %v1875 = vand.u32 %v101, 4294901760
    %1876 = vmatmul.mubr.f32.gmra.mrb[0].mxu0 %v1875
    %v1877 = vpop.f32.mrb[0].mxu0
    %v1878 = vadd.f32 %v1589, %v1877
    %v1879 = vpop.f32.mrb[0].mxu0
    %v1880 = vadd.f32 %v1591, %v1879
    %1881 = vmatprep.mubr.f32.mxu0 0.0
    %v1882 = vand.u32 %v102, 4294901760
    %1883 = vmatmul.mubr.f32.gmra.mrb[0].mxu0 %v1882
    %v1884 = vpop.f32.mrb[0].mxu0
    %v1885 = vadd.f32 %v1600, %v1884
    %v1886 = vpop.f32.mrb[0].mxu0
    %v1887 = vadd.f32 %v1602, %v1886
    %1888 = vmatprep.mubr.f32.mxu0 0.0
    %v1889 = vand.u32 %v103, 4294901760
    %1890 = vmatmul.mubr.f32.gmra.mrb[0].mxu0 %v1889
    %v1891 = vpop.f32.mrb[0].mxu0
    %v1892 = vadd.f32 %v1611, %v1891
    %v1893 = vpop.f32.mrb[0].mxu0
    %v1894 = vadd.f32 %v1613, %v1893
    %1895 = vdwg.mxu0
    %v1896 = vand.u32 %v107, 4294901760
    %v1897 = vsub.f32 %v107, %v1896
    %1898 = vmatprep.subr.mxu0 %v1897
    %v1899 = vand.u32 %v106, 4294901760
    %v1900 = vsub.f32 %v106, %v1899
    %1901 = vmatpush1.msra.mxu0 %v1900
    %v1902 = vand.u32 %v115, 4294901760
    %v1903 = vsub.f32 %v115, %v1902
    %1904 = vmatprep.subr.mxu0 %v1903
    %v1905 = vand.u32 %v114, 4294901760
    %v1906 = vsub.f32 %v114, %v1905
    %1907 = vmatpush1.msra.mxu0 %v1906
    %v1908 = vand.u32 %v123, 4294901760
    %v1909 = vsub.f32 %v123, %v1908
    %1910 = vmatprep.subr.mxu0 %v1909
    %v1911 = vand.u32 %v122, 4294901760
    %v1912 = vsub.f32 %v122, %v1911
    %1913 = vmatpush1.msra.mxu0 %v1912
    %v1914 = vand.u32 %v131, 4294901760
    %v1915 = vsub.f32 %v131, %v1914
    %1916 = vmatprep.subr.mxu0 %v1915
    %v1917 = vand.u32 %v130, 4294901760
    %v1918 = vsub.f32 %v130, %v1917
    %1919 = vmatpush1.msra.mxu0 %v1918
    %v1920 = vand.u32 %v139, 4294901760
    %v1921 = vsub.f32 %v139, %v1920
    %1922 = vmatprep.subr.mxu0 %v1921
    %v1923 = vand.u32 %v138, 4294901760
    %v1924 = vsub.f32 %v138, %v1923
    %1925 = vmatpush1.msra.mxu0 %v1924
    %v1926 = vand.u32 %v147, 4294901760
    %v1927 = vsub.f32 %v147, %v1926
    %1928 = vmatprep.subr.mxu0 %v1927
    %v1929 = vand.u32 %v146, 4294901760
    %v1930 = vsub.f32 %v146, %v1929
    %1931 = vmatpush1.msra.mxu0 %v1930
    %v1932 = vand.u32 %v155, 4294901760
    %v1933 = vsub.f32 %v155, %v1932
    %1934 = vmatprep.subr.mxu0 %v1933
    %v1935 = vand.u32 %v154, 4294901760
    %v1936 = vsub.f32 %v154, %v1935
    %1937 = vmatpush1.msra.mxu0 %v1936
    %v1938 = vand.u32 %v163, 4294901760
    %v1939 = vsub.f32 %v163, %v1938
    %1940 = vmatprep.subr.mxu0 %v1939
    %v1941 = vand.u32 %v162, 4294901760
    %v1942 = vsub.f32 %v162, %v1941
    %1943 = vmatpush1.msra.mxu0 %v1942
    %v1944 = vand.u32 %v171, 4294901760
    %v1945 = vsub.f32 %v171, %v1944
    %1946 = vmatprep.subr.mxu0 %v1945
    %v1947 = vand.u32 %v170, 4294901760
    %v1948 = vsub.f32 %v170, %v1947
    %1949 = vmatpush1.msra.mxu0 %v1948
    %v1950 = vand.u32 %v179, 4294901760
    %v1951 = vsub.f32 %v179, %v1950
    %1952 = vmatprep.subr.mxu0 %v1951
    %v1953 = vand.u32 %v178, 4294901760
    %v1954 = vsub.f32 %v178, %v1953
    %1955 = vmatpush1.msra.mxu0 %v1954
    %v1956 = vand.u32 %v187, 4294901760
    %v1957 = vsub.f32 %v187, %v1956
    %1958 = vmatprep.subr.mxu0 %v1957
    %v1959 = vand.u32 %v186, 4294901760
    %v1960 = vsub.f32 %v186, %v1959
    %1961 = vmatpush1.msra.mxu0 %v1960
    %v1962 = vand.u32 %v195, 4294901760
    %v1963 = vsub.f32 %v195, %v1962
    %1964 = vmatprep.subr.mxu0 %v1963
    %v1965 = vand.u32 %v194, 4294901760
    %v1966 = vsub.f32 %v194, %v1965
    %1967 = vmatpush1.msra.mxu0 %v1966
    %v1968 = vand.u32 %v203, 4294901760
    %v1969 = vsub.f32 %v203, %v1968
    %1970 = vmatprep.subr.mxu0 %v1969
    %v1971 = vand.u32 %v202, 4294901760
    %v1972 = vsub.f32 %v202, %v1971
    %1973 = vmatpush1.msra.mxu0 %v1972
    %v1974 = vand.u32 %v211, 4294901760
    %v1975 = vsub.f32 %v211, %v1974
    %1976 = vmatprep.subr.mxu0 %v1975
    %v1977 = vand.u32 %v210, 4294901760
    %v1978 = vsub.f32 %v210, %v1977
    %1979 = vmatpush1.msra.mxu0 %v1978
    %v1980 = vand.u32 %v219, 4294901760
    %v1981 = vsub.f32 %v219, %v1980
    %1982 = vmatprep.subr.mxu0 %v1981
    %v1983 = vand.u32 %v218, 4294901760
    %v1984 = vsub.f32 %v218, %v1983
    %1985 = vmatpush1.msra.mxu0 %v1984
    %v1986 = vand.u32 %v227, 4294901760
    %v1987 = vsub.f32 %v227, %v1986
    %1988 = vmatprep.subr.mxu0 %v1987
    %v1989 = vand.u32 %v226, 4294901760
    %v1990 = vsub.f32 %v226, %v1989
    %1991 = vmatpush1.msra.mxu0 %v1990
    %1992 = vmatprep.subr.mxu0 0.0
    %1993 = vmatpush1.msra.mxu0 0.0
    %1994 = vmatprep.subr.mxu0 0.0
    %1995 = vmatpush1.msra.mxu0 0.0
    %1996 = vmatprep.subr.mxu0 0.0
    %1997 = vmatpush1.msra.mxu0 0.0
    %1998 = vmatprep.subr.mxu0 0.0
    %1999 = vmatpush1.msra.mxu0 0.0
    %2000 = vmatprep.subr.mxu0 0.0
    %2001 = vmatpush1.msra.mxu0 0.0
    %2002 = vmatprep.subr.mxu0 0.0
    %2003 = vmatpush1.msra.mxu0 0.0
    %2004 = vmatprep.subr.mxu0 0.0
    %2005 = vmatpush1.msra.mxu0 0.0
    %2006 = vmatprep.subr.mxu0 0.0
    %2007 = vmatpush1.msra.mxu0 0.0
    %2008 = vmatprep.subr.mxu0 0.0
    %2009 = vmatpush1.msra.mxu0 0.0
    %2010 = vmatprep.subr.mxu0 0.0
    %2011 = vmatpush1.msra.mxu0 0.0
    %2012 = vmatprep.subr.mxu0 0.0
    %2013 = vmatpush1.msra.mxu0 0.0
    %2014 = vmatprep.subr.mxu0 0.0
    %2015 = vmatpush1.msra.mxu0 0.0
    %2016 = vmatprep.subr.mxu0 0.0
    %2017 = vmatpush1.msra.mxu0 0.0
    %2018 = vmatprep.subr.mxu0 0.0
    %2019 = vmatpush1.msra.mxu0 0.0
    %2020 = vmatprep.subr.mxu0 0.0
    %2021 = vmatpush1.msra.mxu0 0.0
    %2022 = vmatprep.subr.mxu0 0.0
    %2023 = vmatpush1.msra.mxu0 0.0
    %2024 = vmatprep.mubr.f32.mxu0 0.0
    %v2025 = vand.u32 %v96, 4294901760
    %v2026 = vsub.f32 %v96, %v2025
    %2027 = vmatmul.mubr.f32.gmra.mrb[0].mxu0 %v2026
    %v2028 = vpop.f32.mrb[0].mxu0
    %v2029 = vadd.f32 %v1843, %v2028
    %v2030 = vpop.f32.mrb[0].mxu0
    %v2031 = vadd.f32 %v1845, %v2030
    %2032 = vmatprep.mubr.f32.mxu0 0.0
    %v2033 = vand.u32 %v97, 4294901760
    %v2034 = vsub.f32 %v97, %v2033
    %2035 = vmatmul.mubr.f32.gmra.mrb[0].mxu0 %v2034
    %v2036 = vpop.f32.mrb[0].mxu0
    %v2037 = vadd.f32 %v1850, %v2036
    %v2038 = vpop.f32.mrb[0].mxu0
    %v2039 = vadd.f32 %v1852, %v2038
    %2040 = vmatprep.mubr.f32.mxu0 0.0
    %v2041 = vand.u32 %v98, 4294901760
    %v2042 = vsub.f32 %v98, %v2041
    %2043 = vmatmul.mubr.f32.gmra.mrb[0].mxu0 %v2042
    %v2044 = vpop.f32.mrb[0].mxu0
    %v2045 = vadd.f32 %v1857, %v2044
    %v2046 = vpop.f32.mrb[0].mxu0
    %v2047 = vadd.f32 %v1859, %v2046
    %2048 = vmatprep.mubr.f32.mxu0 0.0
    %v2049 = vand.u32 %v99, 4294901760
    %v2050 = vsub.f32 %v99, %v2049
    %2051 = vmatmul.mubr.f32.gmra.mrb[0].mxu0 %v2050
    %v2052 = vpop.f32.mrb[0].mxu0
    %v2053 = vadd.f32 %v1864, %v2052
    %v2054 = vpop.f32.mrb[0].mxu0
    %v2055 = vadd.f32 %v1866, %v2054
    %2056 = vmatprep.mubr.f32.mxu0 0.0
    %v2057 = vand.u32 %v100, 4294901760
    %v2058 = vsub.f32 %v100, %v2057
    %2059 = vmatmul.mubr.f32.gmra.mrb[0].mxu0 %v2058
    %v2060 = vpop.f32.mrb[0].mxu0
    %v2061 = vadd.f32 %v1871, %v2060
    %v2062 = vpop.f32.mrb[0].mxu0
    %v2063 = vadd.f32 %v1873, %v2062
    %2064 = vmatprep.mubr.f32.mxu0 0.0
    %v2065 = vand.u32 %v101, 4294901760
    %v2066 = vsub.f32 %v101, %v2065
    %2067 = vmatmul.mubr.f32.gmra.mrb[0].mxu0 %v2066
    %v2068 = vpop.f32.mrb[0].mxu0
    %v2069 = vadd.f32 %v1878, %v2068
    %v2070 = vpop.f32.mrb[0].mxu0
    %v2071 = vadd.f32 %v1880, %v2070
    %2072 = vmatprep.mubr.f32.mxu0 0.0
    %v2073 = vand.u32 %v102, 4294901760
    %v2074 = vsub.f32 %v102, %v2073
    %2075 = vmatmul.mubr.f32.gmra.mrb[0].mxu0 %v2074
    %v2076 = vpop.f32.mrb[0].mxu0
    %v2077 = vadd.f32 %v1885, %v2076
    %v2078 = vpop.f32.mrb[0].mxu0
    %v2079 = vadd.f32 %v1887, %v2078
    %2080 = vmatprep.mubr.f32.mxu0 0.0
    %v2081 = vand.u32 %v103, 4294901760
    %v2082 = vsub.f32 %v103, %v2081
    %2083 = vmatmul.mubr.f32.gmra.mrb[0].mxu0 %v2082
    %v2084 = vpop.f32.mrb[0].mxu0
    %v2085 = vadd.f32 %v1892, %v2084
    %v2086 = vpop.f32.mrb[0].mxu0
    %v2087 = vadd.f32 %v1894, %v2086
    %2088 = vdwg.mxu0
    %v2089 = vand.u32 %v107, 4294901760
    %2090 = vmatprep.subr.mxu0 %v2089
    %v2091 = vand.u32 %v106, 4294901760
    %2092 = vmatpush1.msra.mxu0 %v2091
    %v2093 = vand.u32 %v115, 4294901760
    %2094 = vmatprep.subr.mxu0 %v2093
    %v2095 = vand.u32 %v114, 4294901760
    %2096 = vmatpush1.msra.mxu0 %v2095
    %v2097 = vand.u32 %v123, 4294901760
    %2098 = vmatprep.subr.mxu0 %v2097
    %v2099 = vand.u32 %v122, 4294901760
    %2100 = vmatpush1.msra.mxu0 %v2099
    %v2101 = vand.u32 %v131, 4294901760
    %2102 = vmatprep.subr.mxu0 %v2101
    %v2103 = vand.u32 %v130, 4294901760
    %2104 = vmatpush1.msra.mxu0 %v2103
    %v2105 = vand.u32 %v139, 4294901760
    %2106 = vmatprep.subr.mxu0 %v2105
    %v2107 = vand.u32 %v138, 4294901760
    %2108 = vmatpush1.msra.mxu0 %v2107
    %v2109 = vand.u32 %v147, 4294901760
    %2110 = vmatprep.subr.mxu0 %v2109
    %v2111 = vand.u32 %v146, 4294901760
    %2112 = vmatpush1.msra.mxu0 %v2111
    %v2113 = vand.u32 %v155, 4294901760
    %2114 = vmatprep.subr.mxu0 %v2113
    %v2115 = vand.u32 %v154, 4294901760
    %2116 = vmatpush1.msra.mxu0 %v2115
    %v2117 = vand.u32 %v163, 4294901760
    %2118 = vmatprep.subr.mxu0 %v2117
    %v2119 = vand.u32 %v162, 4294901760
    %2120 = vmatpush1.msra.mxu0 %v2119
    %v2121 = vand.u32 %v171, 4294901760
    %2122 = vmatprep.subr.mxu0 %v2121
    %v2123 = vand.u32 %v170, 4294901760
    %2124 = vmatpush1.msra.mxu0 %v2123
    %v2125 = vand.u32 %v179, 4294901760
    %2126 = vmatprep.subr.mxu0 %v2125
    %v2127 = vand.u32 %v178, 4294901760
    %2128 = vmatpush1.msra.mxu0 %v2127
    %v2129 = vand.u32 %v187, 4294901760
    %2130 = vmatprep.subr.mxu0 %v2129
    %v2131 = vand.u32 %v186, 4294901760
    %2132 = vmatpush1.msra.mxu0 %v2131
    %v2133 = vand.u32 %v195, 4294901760
    %2134 = vmatprep.subr.mxu0 %v2133
    %v2135 = vand.u32 %v194, 4294901760
    %2136 = vmatpush1.msra.mxu0 %v2135
    %v2137 = vand.u32 %v203, 4294901760
    %2138 = vmatprep.subr.mxu0 %v2137
    %v2139 = vand.u32 %v202, 4294901760
    %2140 = vmatpush1.msra.mxu0 %v2139
    %v2141 = vand.u32 %v211, 4294901760
    %2142 = vmatprep.subr.mxu0 %v2141
    %v2143 = vand.u32 %v210, 4294901760
    %2144 = vmatpush1.msra.mxu0 %v2143
    %v2145 = vand.u32 %v219, 4294901760
    %2146 = vmatprep.subr.mxu0 %v2145
    %v2147 = vand.u32 %v218, 4294901760
    %2148 = vmatpush1.msra.mxu0 %v2147
    %v2149 = vand.u32 %v227, 4294901760
    %2150 = vmatprep.subr.mxu0 %v2149
    %v2151 = vand.u32 %v226, 4294901760
    %2152 = vmatpush1.msra.mxu0 %v2151
    %2153 = vmatprep.subr.mxu0 0.0
    %2154 = vmatpush1.msra.mxu0 0.0
    %2155 = vmatprep.subr.mxu0 0.0
    %2156 = vmatpush1.msra.mxu0 0.0
    %2157 = vmatprep.subr.mxu0 0.0
    %2158 = vmatpush1.msra.mxu0 0.0
    %2159 = vmatprep.subr.mxu0 0.0
    %2160 = vmatpush1.msra.mxu0 0.0
    %2161 = vmatprep.subr.mxu0 0.0
    %2162 = vmatpush1.msra.mxu0 0.0
    %2163 = vmatprep.subr.mxu0 0.0
    %2164 = vmatpush1.msra.mxu0 0.0
    %2165 = vmatprep.subr.mxu0 0.0
    %2166 = vmatpush1.msra.mxu0 0.0
    %2167 = vmatprep.subr.mxu0 0.0
    %2168 = vmatpush1.msra.mxu0 0.0
    %2169 = vmatprep.subr.mxu0 0.0
    %2170 = vmatpush1.msra.mxu0 0.0
    %2171 = vmatprep.subr.mxu0 0.0
    %2172 = vmatpush1.msra.mxu0 0.0
    %2173 = vmatprep.subr.mxu0 0.0
    %2174 = vmatpush1.msra.mxu0 0.0
    %2175 = vmatprep.subr.mxu0 0.0
    %2176 = vmatpush1.msra.mxu0 0.0
    %2177 = vmatprep.subr.mxu0 0.0
    %2178 = vmatpush1.msra.mxu0 0.0
    %2179 = vmatprep.subr.mxu0 0.0
    %2180 = vmatpush1.msra.mxu0 0.0
    %2181 = vmatprep.subr.mxu0 0.0
    %2182 = vmatpush1.msra.mxu0 0.0
    %2183 = vmatprep.subr.mxu0 0.0
    %2184 = vmatpush1.msra.mxu0 0.0
    %2185 = vmatprep.mubr.f32.mxu0 0.0
    %v2186 = vand.u32 %v96, 4294901760
    %v2187 = vsub.f32 %v96, %v2186
    %v2188 = vand.u32 %v2187, 4294901760
    %2189 = vmatmul.mubr.f32.gmra.mrb[0].mxu0 %v2188
    %v2190 = vpop.f32.mrb[0].mxu0
    %v2191 = vadd.f32 %v2029, %v2190
    %v2192 = vpop.f32.mrb[0].mxu0
    %v2193 = vadd.f32 %v2031, %v2192
    %2194 = vmatprep.mubr.f32.mxu0 0.0
    %v2195 = vand.u32 %v97, 4294901760
    %v2196 = vsub.f32 %v97, %v2195
    %v2197 = vand.u32 %v2196, 4294901760
    %2198 = vmatmul.mubr.f32.gmra.mrb[0].mxu0 %v2197
    %v2199 = vpop.f32.mrb[0].mxu0
    %v2200 = vadd.f32 %v2037, %v2199
    %v2201 = vpop.f32.mrb[0].mxu0
    %v2202 = vadd.f32 %v2039, %v2201
    %2203 = vmatprep.mubr.f32.mxu0 0.0
    %v2204 = vand.u32 %v98, 4294901760
    %v2205 = vsub.f32 %v98, %v2204
    %v2206 = vand.u32 %v2205, 4294901760
    %2207 = vmatmul.mubr.f32.gmra.mrb[0].mxu0 %v2206
    %v2208 = vpop.f32.mrb[0].mxu0
    %v2209 = vadd.f32 %v2045, %v2208
    %v2210 = vpop.f32.mrb[0].mxu0
    %v2211 = vadd.f32 %v2047, %v2210
    %2212 = vmatprep.mubr.f32.mxu0 0.0
    %v2213 = vand.u32 %v99, 4294901760
    %v2214 = vsub.f32 %v99, %v2213
    %v2215 = vand.u32 %v2214, 4294901760
    %2216 = vmatmul.mubr.f32.gmra.mrb[0].mxu0 %v2215
    %v2217 = vpop.f32.mrb[0].mxu0
    %v2218 = vadd.f32 %v2053, %v2217
    %v2219 = vpop.f32.mrb[0].mxu0
    %v2220 = vadd.f32 %v2055, %v2219
    %2221 = vmatprep.mubr.f32.mxu0 0.0
    %v2222 = vand.u32 %v100, 4294901760
    %v2223 = vsub.f32 %v100, %v2222
    %v2224 = vand.u32 %v2223, 4294901760
    %2225 = vmatmul.mubr.f32.gmra.mrb[0].mxu0 %v2224
    %v2226 = vpop.f32.mrb[0].mxu0
    %v2227 = vadd.f32 %v2061, %v2226
    %v2228 = vpop.f32.mrb[0].mxu0
    %v2229 = vadd.f32 %v2063, %v2228
    %2230 = vmatprep.mubr.f32.mxu0 0.0
    %v2231 = vand.u32 %v101, 4294901760
    %v2232 = vsub.f32 %v101, %v2231
    %v2233 = vand.u32 %v2232, 4294901760
    %2234 = vmatmul.mubr.f32.gmra.mrb[0].mxu0 %v2233
    %v2235 = vpop.f32.mrb[0].mxu0
    %v2236 = vadd.f32 %v2069, %v2235
    %v2237 = vpop.f32.mrb[0].mxu0
    %v2238 = vadd.f32 %v2071, %v2237
    %2239 = vmatprep.mubr.f32.mxu0 0.0
    %v2240 = vand.u32 %v102, 4294901760
    %v2241 = vsub.f32 %v102, %v2240
    %v2242 = vand.u32 %v2241, 4294901760
    %2243 = vmatmul.mubr.f32.gmra.mrb[0].mxu0 %v2242
    %v2244 = vpop.f32.mrb[0].mxu0
    %v2245 = vadd.f32 %v2077, %v2244
    %v2246 = vpop.f32.mrb[0].mxu0
    %v2247 = vadd.f32 %v2079, %v2246
    %2248 = vmatprep.mubr.f32.mxu0 0.0
    %v2249 = vand.u32 %v103, 4294901760
    %v2250 = vsub.f32 %v103, %v2249
    %v2251 = vand.u32 %v2250, 4294901760
    %2252 = vmatmul.mubr.f32.gmra.mrb[0].mxu0 %v2251
    %v2253 = vpop.f32.mrb[0].mxu0
    %v2254 = vadd.f32 %v2085, %v2253
    %v2255 = vpop.f32.mrb[0].mxu0
    %v2256 = vadd.f32 %v2087, %v2255
    %2257 = vdwg.mxu0
    %v2258 = vand.u32 %v107, 4294901760
    %v2259 = vsub.f32 %v107, %v2258
    %v2260 = vand.u32 %v2259, 4294901760
    %2261 = vmatprep.subr.mxu0 %v2260
    %v2262 = vand.u32 %v106, 4294901760
    %v2263 = vsub.f32 %v106, %v2262
    %v2264 = vand.u32 %v2263, 4294901760
    %2265 = vmatpush1.msra.mxu0 %v2264
    %v2266 = vand.u32 %v115, 4294901760
    %v2267 = vsub.f32 %v115, %v2266
    %v2268 = vand.u32 %v2267, 4294901760
    %2269 = vmatprep.subr.mxu0 %v2268
    %v2270 = vand.u32 %v114, 4294901760
    %v2271 = vsub.f32 %v114, %v2270
    %v2272 = vand.u32 %v2271, 4294901760
    %2273 = vmatpush1.msra.mxu0 %v2272
    %v2274 = vand.u32 %v123, 4294901760
    %v2275 = vsub.f32 %v123, %v2274
    %v2276 = vand.u32 %v2275, 4294901760
    %2277 = vmatprep.subr.mxu0 %v2276
    %v2278 = vand.u32 %v122, 4294901760
    %v2279 = vsub.f32 %v122, %v2278
    %v2280 = vand.u32 %v2279, 4294901760
    %2281 = vmatpush1.msra.mxu0 %v2280
    %v2282 = vand.u32 %v131, 4294901760
    %v2283 = vsub.f32 %v131, %v2282
    %v2284 = vand.u32 %v2283, 4294901760
    %2285 = vmatprep.subr.mxu0 %v2284
    %v2286 = vand.u32 %v130, 4294901760
    %v2287 = vsub.f32 %v130, %v2286
    %v2288 = vand.u32 %v2287, 4294901760
    %2289 = vmatpush1.msra.mxu0 %v2288
    %v2290 = vand.u32 %v139, 4294901760
    %v2291 = vsub.f32 %v139, %v2290
    %v2292 = vand.u32 %v2291, 4294901760
    %2293 = vmatprep.subr.mxu0 %v2292
    %v2294 = vand.u32 %v138, 4294901760
    %v2295 = vsub.f32 %v138, %v2294
    %v2296 = vand.u32 %v2295, 4294901760
    %2297 = vmatpush1.msra.mxu0 %v2296
    %v2298 = vand.u32 %v147, 4294901760
    %v2299 = vsub.f32 %v147, %v2298
    %v2300 = vand.u32 %v2299, 4294901760
    %2301 = vmatprep.subr.mxu0 %v2300
    %v2302 = vand.u32 %v146, 4294901760
    %v2303 = vsub.f32 %v146, %v2302
    %v2304 = vand.u32 %v2303, 4294901760
    %2305 = vmatpush1.msra.mxu0 %v2304
    %v2306 = vand.u32 %v155, 4294901760
    %v2307 = vsub.f32 %v155, %v2306
    %v2308 = vand.u32 %v2307, 4294901760
    %2309 = vmatprep.subr.mxu0 %v2308
    %v2310 = vand.u32 %v154, 4294901760
    %v2311 = vsub.f32 %v154, %v2310
    %v2312 = vand.u32 %v2311, 4294901760
    %2313 = vmatpush1.msra.mxu0 %v2312
    %v2314 = vand.u32 %v163, 4294901760
    %v2315 = vsub.f32 %v163, %v2314
    %v2316 = vand.u32 %v2315, 4294901760
    %2317 = vmatprep.subr.mxu0 %v2316
    %v2318 = vand.u32 %v162, 4294901760
    %v2319 = vsub.f32 %v162, %v2318
    %v2320 = vand.u32 %v2319, 4294901760
    %2321 = vmatpush1.msra.mxu0 %v2320
    %v2322 = vand.u32 %v171, 4294901760
    %v2323 = vsub.f32 %v171, %v2322
    %v2324 = vand.u32 %v2323, 4294901760
    %2325 = vmatprep.subr.mxu0 %v2324
    %v2326 = vand.u32 %v170, 4294901760
    %v2327 = vsub.f32 %v170, %v2326
    %v2328 = vand.u32 %v2327, 4294901760
    %2329 = vmatpush1.msra.mxu0 %v2328
    %v2330 = vand.u32 %v179, 4294901760
    %v2331 = vsub.f32 %v179, %v2330
    %v2332 = vand.u32 %v2331, 4294901760
    %2333 = vmatprep.subr.mxu0 %v2332
    %v2334 = vand.u32 %v178, 4294901760
    %v2335 = vsub.f32 %v178, %v2334
    %v2336 = vand.u32 %v2335, 4294901760
    %2337 = vmatpush1.msra.mxu0 %v2336
    %v2338 = vand.u32 %v187, 4294901760
    %v2339 = vsub.f32 %v187, %v2338
    %v2340 = vand.u32 %v2339, 4294901760
    %2341 = vmatprep.subr.mxu0 %v2340
    %v2342 = vand.u32 %v186, 4294901760
    %v2343 = vsub.f32 %v186, %v2342
    %v2344 = vand.u32 %v2343, 4294901760
    %2345 = vmatpush1.msra.mxu0 %v2344
    %v2346 = vand.u32 %v195, 4294901760
    %v2347 = vsub.f32 %v195, %v2346
    %v2348 = vand.u32 %v2347, 4294901760
    %2349 = vmatprep.subr.mxu0 %v2348
    %v2350 = vand.u32 %v194, 4294901760
    %v2351 = vsub.f32 %v194, %v2350
    %v2352 = vand.u32 %v2351, 4294901760
    %2353 = vmatpush1.msra.mxu0 %v2352
    %v2354 = vand.u32 %v203, 4294901760
    %v2355 = vsub.f32 %v203, %v2354
    %v2356 = vand.u32 %v2355, 4294901760
    %2357 = vmatprep.subr.mxu0 %v2356
    %v2358 = vand.u32 %v202, 4294901760
    %v2359 = vsub.f32 %v202, %v2358
    %v2360 = vand.u32 %v2359, 4294901760
    %2361 = vmatpush1.msra.mxu0 %v2360
    %v2362 = vand.u32 %v211, 4294901760
    %v2363 = vsub.f32 %v211, %v2362
    %v2364 = vand.u32 %v2363, 4294901760
    %2365 = vmatprep.subr.mxu0 %v2364
    %v2366 = vand.u32 %v210, 4294901760
    %v2367 = vsub.f32 %v210, %v2366
    %v2368 = vand.u32 %v2367, 4294901760
    %2369 = vmatpush1.msra.mxu0 %v2368
    %v2370 = vand.u32 %v219, 4294901760
    %v2371 = vsub.f32 %v219, %v2370
    %v2372 = vand.u32 %v2371, 4294901760
    %2373 = vmatprep.subr.mxu0 %v2372
    %v2374 = vand.u32 %v218, 4294901760
    %v2375 = vsub.f32 %v218, %v2374
    %v2376 = vand.u32 %v2375, 4294901760
    %2377 = vmatpush1.msra.mxu0 %v2376
    %v2378 = vand.u32 %v227, 4294901760
    %v2379 = vsub.f32 %v227, %v2378
    %v2380 = vand.u32 %v2379, 4294901760
    %2381 = vmatprep.subr.mxu0 %v2380
    %v2382 = vand.u32 %v226, 4294901760
    %v2383 = vsub.f32 %v226, %v2382
    %v2384 = vand.u32 %v2383, 4294901760
    %2385 = vmatpush1.msra.mxu0 %v2384
    %2386 = vmatprep.subr.mxu0 0.0
    %2387 = vmatpush1.msra.mxu0 0.0
    %2388 = vmatprep.subr.mxu0 0.0
    %2389 = vmatpush1.msra.mxu0 0.0
    %2390 = vmatprep.subr.mxu0 0.0
    %2391 = vmatpush1.msra.mxu0 0.0
    %2392 = vmatprep.subr.mxu0 0.0
    %2393 = vmatpush1.msra.mxu0 0.0
    %2394 = vmatprep.subr.mxu0 0.0
    %2395 = vmatpush1.msra.mxu0 0.0
    %2396 = vmatprep.subr.mxu0 0.0
    %2397 = vmatpush1.msra.mxu0 0.0
    %2398 = vmatprep.subr.mxu0 0.0
    %2399 = vmatpush1.msra.mxu0 0.0
    %2400 = vmatprep.subr.mxu0 0.0
    %2401 = vmatpush1.msra.mxu0 0.0
    %2402 = vmatprep.subr.mxu0 0.0
    %2403 = vmatpush1.msra.mxu0 0.0
    %2404 = vmatprep.subr.mxu0 0.0
    %2405 = vmatpush1.msra.mxu0 0.0
    %2406 = vmatprep.subr.mxu0 0.0
    %2407 = vmatpush1.msra.mxu0 0.0
    %2408 = vmatprep.subr.mxu0 0.0
    %2409 = vmatpush1.msra.mxu0 0.0
    %2410 = vmatprep.subr.mxu0 0.0
    %2411 = vmatpush1.msra.mxu0 0.0
    %2412 = vmatprep.subr.mxu0 0.0
    %2413 = vmatpush1.msra.mxu0 0.0
    %2414 = vmatprep.subr.mxu0 0.0
    %2415 = vmatpush1.msra.mxu0 0.0
    %2416 = vmatprep.subr.mxu0 0.0
    %2417 = vmatpush1.msra.mxu0 0.0
    %2418 = vmatprep.mubr.f32.mxu0 0.0
    %v2419 = vand.u32 %v96, 4294901760
    %2420 = vmatmul.mubr.f32.gmra.mrb[0].mxu0 %v2419
    %v2421 = vpop.f32.mrb[0].mxu0
    %v2422 = vadd.f32 %v2191, %v2421
    %v2423 = vpop.f32.mrb[0].mxu0
    %v2424 = vadd.f32 %v2193, %v2423
    %2425 = vmatprep.mubr.f32.mxu0 0.0
    %v2426 = vand.u32 %v97, 4294901760
    %2427 = vmatmul.mubr.f32.gmra.mrb[0].mxu0 %v2426
    %v2428 = vpop.f32.mrb[0].mxu0
    %v2429 = vadd.f32 %v2200, %v2428
    %v2430 = vpop.f32.mrb[0].mxu0
    %v2431 = vadd.f32 %v2202, %v2430
    %2432 = vmatprep.mubr.f32.mxu0 0.0
    %v2433 = vand.u32 %v98, 4294901760
    %2434 = vmatmul.mubr.f32.gmra.mrb[0].mxu0 %v2433
    %v2435 = vpop.f32.mrb[0].mxu0
    %v2436 = vadd.f32 %v2209, %v2435
    %v2437 = vpop.f32.mrb[0].mxu0
    %v2438 = vadd.f32 %v2211, %v2437
    %2439 = vmatprep.mubr.f32.mxu0 0.0
    %v2440 = vand.u32 %v99, 4294901760
    %2441 = vmatmul.mubr.f32.gmra.mrb[0].mxu0 %v2440
    %v2442 = vpop.f32.mrb[0].mxu0
    %v2443 = vadd.f32 %v2218, %v2442
    %v2444 = vpop.f32.mrb[0].mxu0
    %v2445 = vadd.f32 %v2220, %v2444
    %2446 = vmatprep.mubr.f32.mxu0 0.0
    %v2447 = vand.u32 %v100, 4294901760
    %2448 = vmatmul.mubr.f32.gmra.mrb[0].mxu0 %v2447
    %v2449 = vpop.f32.mrb[0].mxu0
    %v2450 = vadd.f32 %v2227, %v2449
    %v2451 = vpop.f32.mrb[0].mxu0
    %v2452 = vadd.f32 %v2229, %v2451
    %2453 = vmatprep.mubr.f32.mxu0 0.0
    %v2454 = vand.u32 %v101, 4294901760
    %2455 = vmatmul.mubr.f32.gmra.mrb[0].mxu0 %v2454
    %v2456 = vpop.f32.mrb[0].mxu0
    %v2457 = vadd.f32 %v2236, %v2456
    %v2458 = vpop.f32.mrb[0].mxu0
    %v2459 = vadd.f32 %v2238, %v2458
    %2460 = vmatprep.mubr.f32.mxu0 0.0
    %v2461 = vand.u32 %v102, 4294901760
    %2462 = vmatmul.mubr.f32.gmra.mrb[0].mxu0 %v2461
    %v2463 = vpop.f32.mrb[0].mxu0
    %v2464 = vadd.f32 %v2245, %v2463
    %v2465 = vpop.f32.mrb[0].mxu0
    %v2466 = vadd.f32 %v2247, %v2465
    %2467 = vmatprep.mubr.f32.mxu0 0.0
    %v2468 = vand.u32 %v103, 4294901760
    %2469 = vmatmul.mubr.f32.gmra.mrb[0].mxu0 %v2468
    %v2470 = vpop.f32.mrb[0].mxu0
    %v2471 = vadd.f32 %v2254, %v2470
    %v2472 = vpop.f32.mrb[0].mxu0
    %v2473 = vadd.f32 %v2256, %v2472
    %2474 = vdwg.mxu0
    %v2475 = vand.u32 %v107, 4294901760
    %2476 = vmatprep.subr.mxu0 %v2475
    %v2477 = vand.u32 %v106, 4294901760
    %2478 = vmatpush1.msra.mxu0 %v2477
    %v2479 = vand.u32 %v115, 4294901760
    %2480 = vmatprep.subr.mxu0 %v2479
    %v2481 = vand.u32 %v114, 4294901760
    %2482 = vmatpush1.msra.mxu0 %v2481
    %v2483 = vand.u32 %v123, 4294901760
    %2484 = vmatprep.subr.mxu0 %v2483
    %v2485 = vand.u32 %v122, 4294901760
    %2486 = vmatpush1.msra.mxu0 %v2485
    %v2487 = vand.u32 %v131, 4294901760
    %2488 = vmatprep.subr.mxu0 %v2487
    %v2489 = vand.u32 %v130, 4294901760
    %2490 = vmatpush1.msra.mxu0 %v2489
    %v2491 = vand.u32 %v139, 4294901760
    %2492 = vmatprep.subr.mxu0 %v2491
    %v2493 = vand.u32 %v138, 4294901760
    %2494 = vmatpush1.msra.mxu0 %v2493
    %v2495 = vand.u32 %v147, 4294901760
    %2496 = vmatprep.subr.mxu0 %v2495
    %v2497 = vand.u32 %v146, 4294901760
    %2498 = vmatpush1.msra.mxu0 %v2497
    %v2499 = vand.u32 %v155, 4294901760
    %2500 = vmatprep.subr.mxu0 %v2499
    %v2501 = vand.u32 %v154, 4294901760
    %2502 = vmatpush1.msra.mxu0 %v2501
    %v2503 = vand.u32 %v163, 4294901760
    %2504 = vmatprep.subr.mxu0 %v2503
    %v2505 = vand.u32 %v162, 4294901760
    %2506 = vmatpush1.msra.mxu0 %v2505
    %v2507 = vand.u32 %v171, 4294901760
    %2508 = vmatprep.subr.mxu0 %v2507
    %v2509 = vand.u32 %v170, 4294901760
    %2510 = vmatpush1.msra.mxu0 %v2509
    %v2511 = vand.u32 %v179, 4294901760
    %2512 = vmatprep.subr.mxu0 %v2511
    %v2513 = vand.u32 %v178, 4294901760
    %2514 = vmatpush1.msra.mxu0 %v2513
    %v2515 = vand.u32 %v187, 4294901760
    %2516 = vmatprep.subr.mxu0 %v2515
    %v2517 = vand.u32 %v186, 4294901760
    %2518 = vmatpush1.msra.mxu0 %v2517
    %v2519 = vand.u32 %v195, 4294901760
    %2520 = vmatprep.subr.mxu0 %v2519
    %v2521 = vand.u32 %v194, 4294901760
    %2522 = vmatpush1.msra.mxu0 %v2521
    %v2523 = vand.u32 %v203, 4294901760
    %2524 = vmatprep.subr.mxu0 %v2523
    %v2525 = vand.u32 %v202, 4294901760
    %2526 = vmatpush1.msra.mxu0 %v2525
    %v2527 = vand.u32 %v211, 4294901760
    %2528 = vmatprep.subr.mxu0 %v2527
    %v2529 = vand.u32 %v210, 4294901760
    %2530 = vmatpush1.msra.mxu0 %v2529
    %v2531 = vand.u32 %v219, 4294901760
    %2532 = vmatprep.subr.mxu0 %v2531
    %v2533 = vand.u32 %v218, 4294901760
    %2534 = vmatpush1.msra.mxu0 %v2533
    %v2535 = vand.u32 %v227, 4294901760
    %2536 = vmatprep.subr.mxu0 %v2535
    %v2537 = vand.u32 %v226, 4294901760
    %2538 = vmatpush1.msra.mxu0 %v2537
    %2539 = vmatprep.subr.mxu0 0.0
    %2540 = vmatpush1.msra.mxu0 0.0
    %2541 = vmatprep.subr.mxu0 0.0
    %2542 = vmatpush1.msra.mxu0 0.0
    %2543 = vmatprep.subr.mxu0 0.0
    %2544 = vmatpush1.msra.mxu0 0.0
    %2545 = vmatprep.subr.mxu0 0.0
    %2546 = vmatpush1.msra.mxu0 0.0
    %2547 = vmatprep.subr.mxu0 0.0
    %2548 = vmatpush1.msra.mxu0 0.0
    %2549 = vmatprep.subr.mxu0 0.0
    %2550 = vmatpush1.msra.mxu0 0.0
    %2551 = vmatprep.subr.mxu0 0.0
    %2552 = vmatpush1.msra.mxu0 0.0
    %2553 = vmatprep.subr.mxu0 0.0
    %2554 = vmatpush1.msra.mxu0 0.0
    %2555 = vmatprep.subr.mxu0 0.0
    %2556 = vmatpush1.msra.mxu0 0.0
    %2557 = vmatprep.subr.mxu0 0.0
    %2558 = vmatpush1.msra.mxu0 0.0
    %2559 = vmatprep.subr.mxu0 0.0
    %2560 = vmatpush1.msra.mxu0 0.0
    %2561 = vmatprep.subr.mxu0 0.0
    %2562 = vmatpush1.msra.mxu0 0.0
    %2563 = vmatprep.subr.mxu0 0.0
    %2564 = vmatpush1.msra.mxu0 0.0
    %2565 = vmatprep.subr.mxu0 0.0
    %2566 = vmatpush1.msra.mxu0 0.0
    %2567 = vmatprep.subr.mxu0 0.0
    %2568 = vmatpush1.msra.mxu0 0.0
    %2569 = vmatprep.subr.mxu0 0.0
    %2570 = vmatpush1.msra.mxu0 0.0
    %2571 = vmatprep.mubr.f32.mxu0 0.0
    %v2572 = vand.u32 %v96, 4294901760
    %2573 = vmatmul.mubr.f32.gmra.mrb[0].mxu0 %v2572
    %v2574 = vpop.f32.mrb[0].mxu0
    %v2575 = vadd.f32 %v2422, %v2574
    %v2576 = vpop.f32.mrb[0].mxu0
    %v2577 = vadd.f32 %v2424, %v2576
    %2578 = vmatprep.mubr.f32.mxu0 0.0
    %v2579 = vand.u32 %v97, 4294901760
    %2580 = vmatmul.mubr.f32.gmra.mrb[0].mxu0 %v2579
    %v2581 = vpop.f32.mrb[0].mxu0
    %v2582 = vadd.f32 %v2429, %v2581
    %v2583 = vpop.f32.mrb[0].mxu0
    %v2584 = vadd.f32 %v2431, %v2583
    %2585 = vmatprep.mubr.f32.mxu0 0.0
    %v2586 = vand.u32 %v98, 4294901760
    %2587 = vmatmul.mubr.f32.gmra.mrb[0].mxu0 %v2586
    %v2588 = vpop.f32.mrb[0].mxu0
    %v2589 = vadd.f32 %v2436, %v2588
    %v2590 = vpop.f32.mrb[0].mxu0
    %v2591 = vadd.f32 %v2438, %v2590
    %2592 = vmatprep.mubr.f32.mxu0 0.0
    %v2593 = vand.u32 %v99, 4294901760
    %2594 = vmatmul.mubr.f32.gmra.mrb[0].mxu0 %v2593
    %v2595 = vpop.f32.mrb[0].mxu0
    %v2596 = vadd.f32 %v2443, %v2595
    %v2597 = vpop.f32.mrb[0].mxu0
    %v2598 = vadd.f32 %v2445, %v2597
    %2599 = vmatprep.mubr.f32.mxu0 0.0
    %v2600 = vand.u32 %v100, 4294901760
    %2601 = vmatmul.mubr.f32.gmra.mrb[0].mxu0 %v2600
    %v2602 = vpop.f32.mrb[0].mxu0
    %v2603 = vadd.f32 %v2450, %v2602
    %v2604 = vpop.f32.mrb[0].mxu0
    %v2605 = vadd.f32 %v2452, %v2604
    %2606 = vmatprep.mubr.f32.mxu0 0.0
    %v2607 = vand.u32 %v101, 4294901760
    %2608 = vmatmul.mubr.f32.gmra.mrb[0].mxu0 %v2607
    %v2609 = vpop.f32.mrb[0].mxu0
    %v2610 = vadd.f32 %v2457, %v2609
    %v2611 = vpop.f32.mrb[0].mxu0
    %v2612 = vadd.f32 %v2459, %v2611
    %2613 = vmatprep.mubr.f32.mxu0 0.0
    %v2614 = vand.u32 %v102, 4294901760
    %2615 = vmatmul.mubr.f32.gmra.mrb[0].mxu0 %v2614
    %v2616 = vpop.f32.mrb[0].mxu0
    %v2617 = vadd.f32 %v2464, %v2616
    %v2618 = vpop.f32.mrb[0].mxu0
    %v2619 = vadd.f32 %v2466, %v2618
    %2620 = vmatprep.mubr.f32.mxu0 0.0
    %v2621 = vand.u32 %v103, 4294901760
    %2622 = vmatmul.mubr.f32.gmra.mrb[0].mxu0 %v2621
    %v2623 = vpop.f32.mrb[0].mxu0
    %v2624 = vadd.f32 %v2471, %v2623
    %v2625 = vpop.f32.mrb[0].mxu0
    %v2626 = vadd.f32 %v2473, %v2625
    %2627 = vdwg.mxu0
    %v2628 = vand.u32 %v109, 4294901760
    %2629 = vmatprep.subr.mxu0 %v2628
    %v2630 = vand.u32 %v108, 4294901760
    %2631 = vmatpush1.msra.mxu0 %v2630
    %v2632 = vand.u32 %v117, 4294901760
    %2633 = vmatprep.subr.mxu0 %v2632
    %v2634 = vand.u32 %v116, 4294901760
    %2635 = vmatpush1.msra.mxu0 %v2634
    %v2636 = vand.u32 %v125, 4294901760
    %2637 = vmatprep.subr.mxu0 %v2636
    %v2638 = vand.u32 %v124, 4294901760
    %2639 = vmatpush1.msra.mxu0 %v2638
    %v2640 = vand.u32 %v133, 4294901760
    %2641 = vmatprep.subr.mxu0 %v2640
    %v2642 = vand.u32 %v132, 4294901760
    %2643 = vmatpush1.msra.mxu0 %v2642
    %v2644 = vand.u32 %v141, 4294901760
    %2645 = vmatprep.subr.mxu0 %v2644
    %v2646 = vand.u32 %v140, 4294901760
    %2647 = vmatpush1.msra.mxu0 %v2646
    %v2648 = vand.u32 %v149, 4294901760
    %2649 = vmatprep.subr.mxu0 %v2648
    %v2650 = vand.u32 %v148, 4294901760
    %2651 = vmatpush1.msra.mxu0 %v2650
    %v2652 = vand.u32 %v157, 4294901760
    %2653 = vmatprep.subr.mxu0 %v2652
    %v2654 = vand.u32 %v156, 4294901760
    %2655 = vmatpush1.msra.mxu0 %v2654
    %v2656 = vand.u32 %v165, 4294901760
    %2657 = vmatprep.subr.mxu0 %v2656
    %v2658 = vand.u32 %v164, 4294901760
    %2659 = vmatpush1.msra.mxu0 %v2658
    %v2660 = vand.u32 %v173, 4294901760
    %2661 = vmatprep.subr.mxu0 %v2660
    %v2662 = vand.u32 %v172, 4294901760
    %2663 = vmatpush1.msra.mxu0 %v2662
    %v2664 = vand.u32 %v181, 4294901760
    %2665 = vmatprep.subr.mxu0 %v2664
    %v2666 = vand.u32 %v180, 4294901760
    %2667 = vmatpush1.msra.mxu0 %v2666
    %v2668 = vand.u32 %v189, 4294901760
    %2669 = vmatprep.subr.mxu0 %v2668
    %v2670 = vand.u32 %v188, 4294901760
    %2671 = vmatpush1.msra.mxu0 %v2670
    %v2672 = vand.u32 %v197, 4294901760
    %2673 = vmatprep.subr.mxu0 %v2672
    %v2674 = vand.u32 %v196, 4294901760
    %2675 = vmatpush1.msra.mxu0 %v2674
    %v2676 = vand.u32 %v205, 4294901760
    %2677 = vmatprep.subr.mxu0 %v2676
    %v2678 = vand.u32 %v204, 4294901760
    %2679 = vmatpush1.msra.mxu0 %v2678
    %v2680 = vand.u32 %v213, 4294901760
    %2681 = vmatprep.subr.mxu0 %v2680
    %v2682 = vand.u32 %v212, 4294901760
    %2683 = vmatpush1.msra.mxu0 %v2682
    %v2684 = vand.u32 %v221, 4294901760
    %2685 = vmatprep.subr.mxu0 %v2684
    %v2686 = vand.u32 %v220, 4294901760
    %2687 = vmatpush1.msra.mxu0 %v2686
    %v2688 = vand.u32 %v229, 4294901760
    %2689 = vmatprep.subr.mxu0 %v2688
    %v2690 = vand.u32 %v228, 4294901760
    %2691 = vmatpush1.msra.mxu0 %v2690
    %2692 = vmatprep.subr.mxu0 0.0
    %2693 = vmatpush1.msra.mxu0 0.0
    %2694 = vmatprep.subr.mxu0 0.0
    %2695 = vmatpush1.msra.mxu0 0.0
    %2696 = vmatprep.subr.mxu0 0.0
    %2697 = vmatpush1.msra.mxu0 0.0
    %2698 = vmatprep.subr.mxu0 0.0
    %2699 = vmatpush1.msra.mxu0 0.0
    %2700 = vmatprep.subr.mxu0 0.0
    %2701 = vmatpush1.msra.mxu0 0.0
    %2702 = vmatprep.subr.mxu0 0.0
    %2703 = vmatpush1.msra.mxu0 0.0
    %2704 = vmatprep.subr.mxu0 0.0
    %2705 = vmatpush1.msra.mxu0 0.0
    %2706 = vmatprep.subr.mxu0 0.0
    %2707 = vmatpush1.msra.mxu0 0.0
    %2708 = vmatprep.subr.mxu0 0.0
    %2709 = vmatpush1.msra.mxu0 0.0
    %2710 = vmatprep.subr.mxu0 0.0
    %2711 = vmatpush1.msra.mxu0 0.0
    %2712 = vmatprep.subr.mxu0 0.0
    %2713 = vmatpush1.msra.mxu0 0.0
    %2714 = vmatprep.subr.mxu0 0.0
    %2715 = vmatpush1.msra.mxu0 0.0
    %2716 = vmatprep.subr.mxu0 0.0
    %2717 = vmatpush1.msra.mxu0 0.0
    %2718 = vmatprep.subr.mxu0 0.0
    %2719 = vmatpush1.msra.mxu0 0.0
    %2720 = vmatprep.subr.mxu0 0.0
    %2721 = vmatpush1.msra.mxu0 0.0
    %2722 = vmatprep.subr.mxu0 0.0
    %2723 = vmatpush1.msra.mxu0 0.0
    %2724 = vmatprep.mubr.f32.mxu0 0.0
    %v2725 = vand.u32 %v96, 4294901760
    %v2726 = vsub.f32 %v96, %v2725
    %v2727 = vand.u32 %v2726, 4294901760
    %v2728 = vsub.f32 %v2726, %v2727
    %v2729 = vand.u32 %v2728, 4294901760
    %2730 = vmatmul.mubr.f32.gmra.mrb[0].mxu0 %v2729
    %v2731 = vpop.f32.mrb[0].mxu0
    %v2732 = vadd.f32 0.0, %v2731
    %v2733 = vpop.f32.mrb[0].mxu0
    %v2734 = vadd.f32 0.0, %v2733
    %2735 = vmatprep.mubr.f32.mxu0 0.0
    %v2736 = vand.u32 %v97, 4294901760
    %v2737 = vsub.f32 %v97, %v2736
    %v2738 = vand.u32 %v2737, 4294901760
    %v2739 = vsub.f32 %v2737, %v2738
    %v2740 = vand.u32 %v2739, 4294901760
    %2741 = vmatmul.mubr.f32.gmra.mrb[0].mxu0 %v2740
    %v2742 = vpop.f32.mrb[0].mxu0
    %v2743 = vadd.f32 0.0, %v2742
    %v2744 = vpop.f32.mrb[0].mxu0
    %v2745 = vadd.f32 0.0, %v2744
    %2746 = vmatprep.mubr.f32.mxu0 0.0
    %v2747 = vand.u32 %v98, 4294901760
    %v2748 = vsub.f32 %v98, %v2747
    %v2749 = vand.u32 %v2748, 4294901760
    %v2750 = vsub.f32 %v2748, %v2749
    %v2751 = vand.u32 %v2750, 4294901760
    %2752 = vmatmul.mubr.f32.gmra.mrb[0].mxu0 %v2751
    %v2753 = vpop.f32.mrb[0].mxu0
    %v2754 = vadd.f32 0.0, %v2753
    %v2755 = vpop.f32.mrb[0].mxu0
    %v2756 = vadd.f32 0.0, %v2755
    %2757 = vmatprep.mubr.f32.mxu0 0.0
    %v2758 = vand.u32 %v99, 4294901760
    %v2759 = vsub.f32 %v99, %v2758
    %v2760 = vand.u32 %v2759, 4294901760
    %v2761 = vsub.f32 %v2759, %v2760
    %v2762 = vand.u32 %v2761, 4294901760
    %2763 = vmatmul.mubr.f32.gmra.mrb[0].mxu0 %v2762
    %v2764 = vpop.f32.mrb[0].mxu0
    %v2765 = vadd.f32 0.0, %v2764
    %v2766 = vpop.f32.mrb[0].mxu0
    %v2767 = vadd.f32 0.0, %v2766
    %2768 = vmatprep.mubr.f32.mxu0 0.0
    %v2769 = vand.u32 %v100, 4294901760
    %v2770 = vsub.f32 %v100, %v2769
    %v2771 = vand.u32 %v2770, 4294901760
    %v2772 = vsub.f32 %v2770, %v2771
    %v2773 = vand.u32 %v2772, 4294901760
    %2774 = vmatmul.mubr.f32.gmra.mrb[0].mxu0 %v2773
    %v2775 = vpop.f32.mrb[0].mxu0
    %v2776 = vadd.f32 0.0, %v2775
    %v2777 = vpop.f32.mrb[0].mxu0
    %v2778 = vadd.f32 0.0, %v2777
    %2779 = vmatprep.mubr.f32.mxu0 0.0
    %v2780 = vand.u32 %v101, 4294901760
    %v2781 = vsub.f32 %v101, %v2780
    %v2782 = vand.u32 %v2781, 4294901760
    %v2783 = vsub.f32 %v2781, %v2782
    %v2784 = vand.u32 %v2783, 4294901760
    %2785 = vmatmul.mubr.f32.gmra.mrb[0].mxu0 %v2784
    %v2786 = vpop.f32.mrb[0].mxu0
    %v2787 = vadd.f32 0.0, %v2786
    %v2788 = vpop.f32.mrb[0].mxu0
    %v2789 = vadd.f32 0.0, %v2788
    %2790 = vmatprep.mubr.f32.mxu0 0.0
    %v2791 = vand.u32 %v102, 4294901760
    %v2792 = vsub.f32 %v102, %v2791
    %v2793 = vand.u32 %v2792, 4294901760
    %v2794 = vsub.f32 %v2792, %v2793
    %v2795 = vand.u32 %v2794, 4294901760
    %2796 = vmatmul.mubr.f32.gmra.mrb[0].mxu0 %v2795
    %v2797 = vpop.f32.mrb[0].mxu0
    %v2798 = vadd.f32 0.0, %v2797
    %v2799 = vpop.f32.mrb[0].mxu0
    %v2800 = vadd.f32 0.0, %v2799
    %2801 = vmatprep.mubr.f32.mxu0 0.0
    %v2802 = vand.u32 %v103, 4294901760
    %v2803 = vsub.f32 %v103, %v2802
    %v2804 = vand.u32 %v2803, 4294901760
    %v2805 = vsub.f32 %v2803, %v2804
    %v2806 = vand.u32 %v2805, 4294901760
    %2807 = vmatmul.mubr.f32.gmra.mrb[0].mxu0 %v2806
    %v2808 = vpop.f32.mrb[0].mxu0
    %v2809 = vadd.f32 0.0, %v2808
    %v2810 = vpop.f32.mrb[0].mxu0
    %v2811 = vadd.f32 0.0, %v2810
    %2812 = vdwg.mxu0
    %v2813 = vand.u32 %v109, 4294901760
    %v2814 = vsub.f32 %v109, %v2813
    %v2815 = vand.u32 %v2814, 4294901760
    %v2816 = vsub.f32 %v2814, %v2815
    %v2817 = vand.u32 %v2816, 4294901760
    %2818 = vmatprep.subr.mxu0 %v2817
    %v2819 = vand.u32 %v108, 4294901760
    %v2820 = vsub.f32 %v108, %v2819
    %v2821 = vand.u32 %v2820, 4294901760
    %v2822 = vsub.f32 %v2820, %v2821
    %v2823 = vand.u32 %v2822, 4294901760
    %2824 = vmatpush1.msra.mxu0 %v2823
    %v2825 = vand.u32 %v117, 4294901760
    %v2826 = vsub.f32 %v117, %v2825
    %v2827 = vand.u32 %v2826, 4294901760
    %v2828 = vsub.f32 %v2826, %v2827
    %v2829 = vand.u32 %v2828, 4294901760
    %2830 = vmatprep.subr.mxu0 %v2829
    %v2831 = vand.u32 %v116, 4294901760
    %v2832 = vsub.f32 %v116, %v2831
    %v2833 = vand.u32 %v2832, 4294901760
    %v2834 = vsub.f32 %v2832, %v2833
    %v2835 = vand.u32 %v2834, 4294901760
    %2836 = vmatpush1.msra.mxu0 %v2835
    %v2837 = vand.u32 %v125, 4294901760
    %v2838 = vsub.f32 %v125, %v2837
    %v2839 = vand.u32 %v2838, 4294901760
    %v2840 = vsub.f32 %v2838, %v2839
    %v2841 = vand.u32 %v2840, 4294901760
    %2842 = vmatprep.subr.mxu0 %v2841
    %v2843 = vand.u32 %v124, 4294901760
    %v2844 = vsub.f32 %v124, %v2843
    %v2845 = vand.u32 %v2844, 4294901760
    %v2846 = vsub.f32 %v2844, %v2845
    %v2847 = vand.u32 %v2846, 4294901760
    %2848 = vmatpush1.msra.mxu0 %v2847
    %v2849 = vand.u32 %v133, 4294901760
    %v2850 = vsub.f32 %v133, %v2849
    %v2851 = vand.u32 %v2850, 4294901760
    %v2852 = vsub.f32 %v2850, %v2851
    %v2853 = vand.u32 %v2852, 4294901760
    %2854 = vmatprep.subr.mxu0 %v2853
    %v2855 = vand.u32 %v132, 4294901760
    %v2856 = vsub.f32 %v132, %v2855
    %v2857 = vand.u32 %v2856, 4294901760
    %v2858 = vsub.f32 %v2856, %v2857
    %v2859 = vand.u32 %v2858, 4294901760
    %2860 = vmatpush1.msra.mxu0 %v2859
    %v2861 = vand.u32 %v141, 4294901760
    %v2862 = vsub.f32 %v141, %v2861
    %v2863 = vand.u32 %v2862, 4294901760
    %v2864 = vsub.f32 %v2862, %v2863
    %v2865 = vand.u32 %v2864, 4294901760
    %2866 = vmatprep.subr.mxu0 %v2865
    %v2867 = vand.u32 %v140, 4294901760
    %v2868 = vsub.f32 %v140, %v2867
    %v2869 = vand.u32 %v2868, 4294901760
    %v2870 = vsub.f32 %v2868, %v2869
    %v2871 = vand.u32 %v2870, 4294901760
    %2872 = vmatpush1.msra.mxu0 %v2871
    %v2873 = vand.u32 %v149, 4294901760
    %v2874 = vsub.f32 %v149, %v2873
    %v2875 = vand.u32 %v2874, 4294901760
    %v2876 = vsub.f32 %v2874, %v2875
    %v2877 = vand.u32 %v2876, 4294901760
    %2878 = vmatprep.subr.mxu0 %v2877
    %v2879 = vand.u32 %v148, 4294901760
    %v2880 = vsub.f32 %v148, %v2879
    %v2881 = vand.u32 %v2880, 4294901760
    %v2882 = vsub.f32 %v2880, %v2881
    %v2883 = vand.u32 %v2882, 4294901760
    %2884 = vmatpush1.msra.mxu0 %v2883
    %v2885 = vand.u32 %v157, 4294901760
    %v2886 = vsub.f32 %v157, %v2885
    %v2887 = vand.u32 %v2886, 4294901760
    %v2888 = vsub.f32 %v2886, %v2887
    %v2889 = vand.u32 %v2888, 4294901760
    %2890 = vmatprep.subr.mxu0 %v2889
    %v2891 = vand.u32 %v156, 4294901760
    %v2892 = vsub.f32 %v156, %v2891
    %v2893 = vand.u32 %v2892, 4294901760
    %v2894 = vsub.f32 %v2892, %v2893
    %v2895 = vand.u32 %v2894, 4294901760
    %2896 = vmatpush1.msra.mxu0 %v2895
    %v2897 = vand.u32 %v165, 4294901760
    %v2898 = vsub.f32 %v165, %v2897
    %v2899 = vand.u32 %v2898, 4294901760
    %v2900 = vsub.f32 %v2898, %v2899
    %v2901 = vand.u32 %v2900, 4294901760
    %2902 = vmatprep.subr.mxu0 %v2901
    %v2903 = vand.u32 %v164, 4294901760
    %v2904 = vsub.f32 %v164, %v2903
    %v2905 = vand.u32 %v2904, 4294901760
    %v2906 = vsub.f32 %v2904, %v2905
    %v2907 = vand.u32 %v2906, 4294901760
    %2908 = vmatpush1.msra.mxu0 %v2907
    %v2909 = vand.u32 %v173, 4294901760
    %v2910 = vsub.f32 %v173, %v2909
    %v2911 = vand.u32 %v2910, 4294901760
    %v2912 = vsub.f32 %v2910, %v2911
    %v2913 = vand.u32 %v2912, 4294901760
    %2914 = vmatprep.subr.mxu0 %v2913
    %v2915 = vand.u32 %v172, 4294901760
    %v2916 = vsub.f32 %v172, %v2915
    %v2917 = vand.u32 %v2916, 4294901760
    %v2918 = vsub.f32 %v2916, %v2917
    %v2919 = vand.u32 %v2918, 4294901760
    %2920 = vmatpush1.msra.mxu0 %v2919
    %v2921 = vand.u32 %v181, 4294901760
    %v2922 = vsub.f32 %v181, %v2921
    %v2923 = vand.u32 %v2922, 4294901760
    %v2924 = vsub.f32 %v2922, %v2923
    %v2925 = vand.u32 %v2924, 4294901760
    %2926 = vmatprep.subr.mxu0 %v2925
    %v2927 = vand.u32 %v180, 4294901760
    %v2928 = vsub.f32 %v180, %v2927
    %v2929 = vand.u32 %v2928, 4294901760
    %v2930 = vsub.f32 %v2928, %v2929
    %v2931 = vand.u32 %v2930, 4294901760
    %2932 = vmatpush1.msra.mxu0 %v2931
    %v2933 = vand.u32 %v189, 4294901760
    %v2934 = vsub.f32 %v189, %v2933
    %v2935 = vand.u32 %v2934, 4294901760
    %v2936 = vsub.f32 %v2934, %v2935
    %v2937 = vand.u32 %v2936, 4294901760
    %2938 = vmatprep.subr.mxu0 %v2937
    %v2939 = vand.u32 %v188, 4294901760
    %v2940 = vsub.f32 %v188, %v2939
    %v2941 = vand.u32 %v2940, 4294901760
    %v2942 = vsub.f32 %v2940, %v2941
    %v2943 = vand.u32 %v2942, 4294901760
    %2944 = vmatpush1.msra.mxu0 %v2943
    %v2945 = vand.u32 %v197, 4294901760
    %v2946 = vsub.f32 %v197, %v2945
    %v2947 = vand.u32 %v2946, 4294901760
    %v2948 = vsub.f32 %v2946, %v2947
    %v2949 = vand.u32 %v2948, 4294901760
    %2950 = vmatprep.subr.mxu0 %v2949
    %v2951 = vand.u32 %v196, 4294901760
    %v2952 = vsub.f32 %v196, %v2951
    %v2953 = vand.u32 %v2952, 4294901760
    %v2954 = vsub.f32 %v2952, %v2953
    %v2955 = vand.u32 %v2954, 4294901760
    %2956 = vmatpush1.msra.mxu0 %v2955
    %v2957 = vand.u32 %v205, 4294901760
    %v2958 = vsub.f32 %v205, %v2957
    %v2959 = vand.u32 %v2958, 4294901760
    %v2960 = vsub.f32 %v2958, %v2959
    %v2961 = vand.u32 %v2960, 4294901760
    %2962 = vmatprep.subr.mxu0 %v2961
    %v2963 = vand.u32 %v204, 4294901760
    %v2964 = vsub.f32 %v204, %v2963
    %v2965 = vand.u32 %v2964, 4294901760
    %v2966 = vsub.f32 %v2964, %v2965
    %v2967 = vand.u32 %v2966, 4294901760
    %2968 = vmatpush1.msra.mxu0 %v2967
    %v2969 = vand.u32 %v213, 4294901760
    %v2970 = vsub.f32 %v213, %v2969
    %v2971 = vand.u32 %v2970, 4294901760
    %v2972 = vsub.f32 %v2970, %v2971
    %v2973 = vand.u32 %v2972, 4294901760
    %2974 = vmatprep.subr.mxu0 %v2973
    %v2975 = vand.u32 %v212, 4294901760
    %v2976 = vsub.f32 %v212, %v2975
    %v2977 = vand.u32 %v2976, 4294901760
    %v2978 = vsub.f32 %v2976, %v2977
    %v2979 = vand.u32 %v2978, 4294901760
    %2980 = vmatpush1.msra.mxu0 %v2979
    %v2981 = vand.u32 %v221, 4294901760
    %v2982 = vsub.f32 %v221, %v2981
    %v2983 = vand.u32 %v2982, 4294901760
    %v2984 = vsub.f32 %v2982, %v2983
    %v2985 = vand.u32 %v2984, 4294901760
    %2986 = vmatprep.subr.mxu0 %v2985
    %v2987 = vand.u32 %v220, 4294901760
    %v2988 = vsub.f32 %v220, %v2987
    %v2989 = vand.u32 %v2988, 4294901760
    %v2990 = vsub.f32 %v2988, %v2989
    %v2991 = vand.u32 %v2990, 4294901760
    %2992 = vmatpush1.msra.mxu0 %v2991
    %v2993 = vand.u32 %v229, 4294901760
    %v2994 = vsub.f32 %v229, %v2993
    %v2995 = vand.u32 %v2994, 4294901760
    %v2996 = vsub.f32 %v2994, %v2995
    %v2997 = vand.u32 %v2996, 4294901760
    %2998 = vmatprep.subr.mxu0 %v2997
    %v2999 = vand.u32 %v228, 4294901760
    %v3000 = vsub.f32 %v228, %v2999
    %v3001 = vand.u32 %v3000, 4294901760
    %v3002 = vsub.f32 %v3000, %v3001
    %v3003 = vand.u32 %v3002, 4294901760
    %3004 = vmatpush1.msra.mxu0 %v3003
    %3005 = vmatprep.subr.mxu0 0.0
    %3006 = vmatpush1.msra.mxu0 0.0
    %3007 = vmatprep.subr.mxu0 0.0
    %3008 = vmatpush1.msra.mxu0 0.0
    %3009 = vmatprep.subr.mxu0 0.0
    %3010 = vmatpush1.msra.mxu0 0.0
    %3011 = vmatprep.subr.mxu0 0.0
    %3012 = vmatpush1.msra.mxu0 0.0
    %3013 = vmatprep.subr.mxu0 0.0
    %3014 = vmatpush1.msra.mxu0 0.0
    %3015 = vmatprep.subr.mxu0 0.0
    %3016 = vmatpush1.msra.mxu0 0.0
    %3017 = vmatprep.subr.mxu0 0.0
    %3018 = vmatpush1.msra.mxu0 0.0
    %3019 = vmatprep.subr.mxu0 0.0
    %3020 = vmatpush1.msra.mxu0 0.0
    %3021 = vmatprep.subr.mxu0 0.0
    %3022 = vmatpush1.msra.mxu0 0.0
    %3023 = vmatprep.subr.mxu0 0.0
    %3024 = vmatpush1.msra.mxu0 0.0
    %3025 = vmatprep.subr.mxu0 0.0
    %3026 = vmatpush1.msra.mxu0 0.0
    %3027 = vmatprep.subr.mxu0 0.0
    %3028 = vmatpush1.msra.mxu0 0.0
    %3029 = vmatprep.subr.mxu0 0.0
    %3030 = vmatpush1.msra.mxu0 0.0
    %3031 = vmatprep.subr.mxu0 0.0
    %3032 = vmatpush1.msra.mxu0 0.0
    %3033 = vmatprep.subr.mxu0 0.0
    %3034 = vmatpush1.msra.mxu0 0.0
    %3035 = vmatprep.subr.mxu0 0.0
    %3036 = vmatpush1.msra.mxu0 0.0
    %3037 = vmatprep.mubr.f32.mxu0 0.0
    %v3038 = vand.u32 %v96, 4294901760
    %3039 = vmatmul.mubr.f32.gmra.mrb[0].mxu0 %v3038
    %v3040 = vpop.f32.mrb[0].mxu0
    %v3041 = vadd.f32 %v2732, %v3040
    %v3042 = vpop.f32.mrb[0].mxu0
    %v3043 = vadd.f32 %v2734, %v3042
    %3044 = vmatprep.mubr.f32.mxu0 0.0
    %v3045 = vand.u32 %v97, 4294901760
    %3046 = vmatmul.mubr.f32.gmra.mrb[0].mxu0 %v3045
    %v3047 = vpop.f32.mrb[0].mxu0
    %v3048 = vadd.f32 %v2743, %v3047
    %v3049 = vpop.f32.mrb[0].mxu0
    %v3050 = vadd.f32 %v2745, %v3049
    %3051 = vmatprep.mubr.f32.mxu0 0.0
    %v3052 = vand.u32 %v98, 4294901760
    %3053 = vmatmul.mubr.f32.gmra.mrb[0].mxu0 %v3052
    %v3054 = vpop.f32.mrb[0].mxu0
    %v3055 = vadd.f32 %v2754, %v3054
    %v3056 = vpop.f32.mrb[0].mxu0
    %v3057 = vadd.f32 %v2756, %v3056
    %3058 = vmatprep.mubr.f32.mxu0 0.0
    %v3059 = vand.u32 %v99, 4294901760
    %3060 = vmatmul.mubr.f32.gmra.mrb[0].mxu0 %v3059
    %v3061 = vpop.f32.mrb[0].mxu0
    %v3062 = vadd.f32 %v2765, %v3061
    %v3063 = vpop.f32.mrb[0].mxu0
    %v3064 = vadd.f32 %v2767, %v3063
    %3065 = vmatprep.mubr.f32.mxu0 0.0
    %v3066 = vand.u32 %v100, 4294901760
    %3067 = vmatmul.mubr.f32.gmra.mrb[0].mxu0 %v3066
    %v3068 = vpop.f32.mrb[0].mxu0
    %v3069 = vadd.f32 %v2776, %v3068
    %v3070 = vpop.f32.mrb[0].mxu0
    %v3071 = vadd.f32 %v2778, %v3070
    %3072 = vmatprep.mubr.f32.mxu0 0.0
    %v3073 = vand.u32 %v101, 4294901760
    %3074 = vmatmul.mubr.f32.gmra.mrb[0].mxu0 %v3073
    %v3075 = vpop.f32.mrb[0].mxu0
    %v3076 = vadd.f32 %v2787, %v3075
    %v3077 = vpop.f32.mrb[0].mxu0
    %v3078 = vadd.f32 %v2789, %v3077
    %3079 = vmatprep.mubr.f32.mxu0 0.0
    %v3080 = vand.u32 %v102, 4294901760
    %3081 = vmatmul.mubr.f32.gmra.mrb[0].mxu0 %v3080
    %v3082 = vpop.f32.mrb[0].mxu0
    %v3083 = vadd.f32 %v2798, %v3082
    %v3084 = vpop.f32.mrb[0].mxu0
    %v3085 = vadd.f32 %v2800, %v3084
    %3086 = vmatprep.mubr.f32.mxu0 0.0
    %v3087 = vand.u32 %v103, 4294901760
    %3088 = vmatmul.mubr.f32.gmra.mrb[0].mxu0 %v3087
    %v3089 = vpop.f32.mrb[0].mxu0
    %v3090 = vadd.f32 %v2809, %v3089
    %v3091 = vpop.f32.mrb[0].mxu0
    %v3092 = vadd.f32 %v2811, %v3091
    %3093 = vdwg.mxu0
    %v3094 = vand.u32 %v109, 4294901760
    %v3095 = vsub.f32 %v109, %v3094
    %3096 = vmatprep.subr.mxu0 %v3095
    %v3097 = vand.u32 %v108, 4294901760
    %v3098 = vsub.f32 %v108, %v3097
    %3099 = vmatpush1.msra.mxu0 %v3098
    %v3100 = vand.u32 %v117, 4294901760
    %v3101 = vsub.f32 %v117, %v3100
    %3102 = vmatprep.subr.mxu0 %v3101
    %v3103 = vand.u32 %v116, 4294901760
    %v3104 = vsub.f32 %v116, %v3103
    %3105 = vmatpush1.msra.mxu0 %v3104
    %v3106 = vand.u32 %v125, 4294901760
    %v3107 = vsub.f32 %v125, %v3106
    %3108 = vmatprep.subr.mxu0 %v3107
    %v3109 = vand.u32 %v124, 4294901760
    %v3110 = vsub.f32 %v124, %v3109
    %3111 = vmatpush1.msra.mxu0 %v3110
    %v3112 = vand.u32 %v133, 4294901760
    %v3113 = vsub.f32 %v133, %v3112
    %3114 = vmatprep.subr.mxu0 %v3113
    %v3115 = vand.u32 %v132, 4294901760
    %v3116 = vsub.f32 %v132, %v3115
    %3117 = vmatpush1.msra.mxu0 %v3116
    %v3118 = vand.u32 %v141, 4294901760
    %v3119 = vsub.f32 %v141, %v3118
    %3120 = vmatprep.subr.mxu0 %v3119
    %v3121 = vand.u32 %v140, 4294901760
    %v3122 = vsub.f32 %v140, %v3121
    %3123 = vmatpush1.msra.mxu0 %v3122
    %v3124 = vand.u32 %v149, 4294901760
    %v3125 = vsub.f32 %v149, %v3124
    %3126 = vmatprep.subr.mxu0 %v3125
    %v3127 = vand.u32 %v148, 4294901760
    %v3128 = vsub.f32 %v148, %v3127
    %3129 = vmatpush1.msra.mxu0 %v3128
    %v3130 = vand.u32 %v157, 4294901760
    %v3131 = vsub.f32 %v157, %v3130
    %3132 = vmatprep.subr.mxu0 %v3131
    %v3133 = vand.u32 %v156, 4294901760
    %v3134 = vsub.f32 %v156, %v3133
    %3135 = vmatpush1.msra.mxu0 %v3134
    %v3136 = vand.u32 %v165, 4294901760
    %v3137 = vsub.f32 %v165, %v3136
    %3138 = vmatprep.subr.mxu0 %v3137
    %v3139 = vand.u32 %v164, 4294901760
    %v3140 = vsub.f32 %v164, %v3139
    %3141 = vmatpush1.msra.mxu0 %v3140
    %v3142 = vand.u32 %v173, 4294901760
    %v3143 = vsub.f32 %v173, %v3142
    %3144 = vmatprep.subr.mxu0 %v3143
    %v3145 = vand.u32 %v172, 4294901760
    %v3146 = vsub.f32 %v172, %v3145
    %3147 = vmatpush1.msra.mxu0 %v3146
    %v3148 = vand.u32 %v181, 4294901760
    %v3149 = vsub.f32 %v181, %v3148
    %3150 = vmatprep.subr.mxu0 %v3149
    %v3151 = vand.u32 %v180, 4294901760
    %v3152 = vsub.f32 %v180, %v3151
    %3153 = vmatpush1.msra.mxu0 %v3152
    %v3154 = vand.u32 %v189, 4294901760
    %v3155 = vsub.f32 %v189, %v3154
    %3156 = vmatprep.subr.mxu0 %v3155
    %v3157 = vand.u32 %v188, 4294901760
    %v3158 = vsub.f32 %v188, %v3157
    %3159 = vmatpush1.msra.mxu0 %v3158
    %v3160 = vand.u32 %v197, 4294901760
    %v3161 = vsub.f32 %v197, %v3160
    %3162 = vmatprep.subr.mxu0 %v3161
    %v3163 = vand.u32 %v196, 4294901760
    %v3164 = vsub.f32 %v196, %v3163
    %3165 = vmatpush1.msra.mxu0 %v3164
    %v3166 = vand.u32 %v205, 4294901760
    %v3167 = vsub.f32 %v205, %v3166
    %3168 = vmatprep.subr.mxu0 %v3167
    %v3169 = vand.u32 %v204, 4294901760
    %v3170 = vsub.f32 %v204, %v3169
    %3171 = vmatpush1.msra.mxu0 %v3170
    %v3172 = vand.u32 %v213, 4294901760
    %v3173 = vsub.f32 %v213, %v3172
    %3174 = vmatprep.subr.mxu0 %v3173
    %v3175 = vand.u32 %v212, 4294901760
    %v3176 = vsub.f32 %v212, %v3175
    %3177 = vmatpush1.msra.mxu0 %v3176
    %v3178 = vand.u32 %v221, 4294901760
    %v3179 = vsub.f32 %v221, %v3178
    %3180 = vmatprep.subr.mxu0 %v3179
    %v3181 = vand.u32 %v220, 4294901760
    %v3182 = vsub.f32 %v220, %v3181
    %3183 = vmatpush1.msra.mxu0 %v3182
    %v3184 = vand.u32 %v229, 4294901760
    %v3185 = vsub.f32 %v229, %v3184
    %3186 = vmatprep.subr.mxu0 %v3185
    %v3187 = vand.u32 %v228, 4294901760
    %v3188 = vsub.f32 %v228, %v3187
    %3189 = vmatpush1.msra.mxu0 %v3188
    %3190 = vmatprep.subr.mxu0 0.0
    %3191 = vmatpush1.msra.mxu0 0.0
    %3192 = vmatprep.subr.mxu0 0.0
    %3193 = vmatpush1.msra.mxu0 0.0
    %3194 = vmatprep.subr.mxu0 0.0
    %3195 = vmatpush1.msra.mxu0 0.0
    %3196 = vmatprep.subr.mxu0 0.0
    %3197 = vmatpush1.msra.mxu0 0.0
    %3198 = vmatprep.subr.mxu0 0.0
    %3199 = vmatpush1.msra.mxu0 0.0
    %3200 = vmatprep.subr.mxu0 0.0
    %3201 = vmatpush1.msra.mxu0 0.0
    %3202 = vmatprep.subr.mxu0 0.0
    %3203 = vmatpush1.msra.mxu0 0.0
    %3204 = vmatprep.subr.mxu0 0.0
    %3205 = vmatpush1.msra.mxu0 0.0
    %3206 = vmatprep.subr.mxu0 0.0
    %3207 = vmatpush1.msra.mxu0 0.0
    %3208 = vmatprep.subr.mxu0 0.0
    %3209 = vmatpush1.msra.mxu0 0.0
    %3210 = vmatprep.subr.mxu0 0.0
    %3211 = vmatpush1.msra.mxu0 0.0
    %3212 = vmatprep.subr.mxu0 0.0
    %3213 = vmatpush1.msra.mxu0 0.0
    %3214 = vmatprep.subr.mxu0 0.0
    %3215 = vmatpush1.msra.mxu0 0.0
    %3216 = vmatprep.subr.mxu0 0.0
    %3217 = vmatpush1.msra.mxu0 0.0
    %3218 = vmatprep.subr.mxu0 0.0
    %3219 = vmatpush1.msra.mxu0 0.0
    %3220 = vmatprep.subr.mxu0 0.0
    %3221 = vmatpush1.msra.mxu0 0.0
    %3222 = vmatprep.mubr.f32.mxu0 0.0
    %v3223 = vand.u32 %v96, 4294901760
    %v3224 = vsub.f32 %v96, %v3223
    %3225 = vmatmul.mubr.f32.gmra.mrb[0].mxu0 %v3224
    %v3226 = vpop.f32.mrb[0].mxu0
    %v3227 = vadd.f32 %v3041, %v3226
    %v3228 = vpop.f32.mrb[0].mxu0
    %v3229 = vadd.f32 %v3043, %v3228
    %3230 = vmatprep.mubr.f32.mxu0 0.0
    %v3231 = vand.u32 %v97, 4294901760
    %v3232 = vsub.f32 %v97, %v3231
    %3233 = vmatmul.mubr.f32.gmra.mrb[0].mxu0 %v3232
    %v3234 = vpop.f32.mrb[0].mxu0
    %v3235 = vadd.f32 %v3048, %v3234
    %v3236 = vpop.f32.mrb[0].mxu0
    %v3237 = vadd.f32 %v3050, %v3236
    %3238 = vmatprep.mubr.f32.mxu0 0.0
    %v3239 = vand.u32 %v98, 4294901760
    %v3240 = vsub.f32 %v98, %v3239
    %3241 = vmatmul.mubr.f32.gmra.mrb[0].mxu0 %v3240
    %v3242 = vpop.f32.mrb[0].mxu0
    %v3243 = vadd.f32 %v3055, %v3242
    %v3244 = vpop.f32.mrb[0].mxu0
    %v3245 = vadd.f32 %v3057, %v3244
    %3246 = vmatprep.mubr.f32.mxu0 0.0
    %v3247 = vand.u32 %v99, 4294901760
    %v3248 = vsub.f32 %v99, %v3247
    %3249 = vmatmul.mubr.f32.gmra.mrb[0].mxu0 %v3248
    %v3250 = vpop.f32.mrb[0].mxu0
    %v3251 = vadd.f32 %v3062, %v3250
    %v3252 = vpop.f32.mrb[0].mxu0
    %v3253 = vadd.f32 %v3064, %v3252
    %3254 = vmatprep.mubr.f32.mxu0 0.0
    %v3255 = vand.u32 %v100, 4294901760
    %v3256 = vsub.f32 %v100, %v3255
    %3257 = vmatmul.mubr.f32.gmra.mrb[0].mxu0 %v3256
    %v3258 = vpop.f32.mrb[0].mxu0
    %v3259 = vadd.f32 %v3069, %v3258
    %v3260 = vpop.f32.mrb[0].mxu0
    %v3261 = vadd.f32 %v3071, %v3260
    %3262 = vmatprep.mubr.f32.mxu0 0.0
    %v3263 = vand.u32 %v101, 4294901760
    %v3264 = vsub.f32 %v101, %v3263
    %3265 = vmatmul.mubr.f32.gmra.mrb[0].mxu0 %v3264
    %v3266 = vpop.f32.mrb[0].mxu0
    %v3267 = vadd.f32 %v3076, %v3266
    %v3268 = vpop.f32.mrb[0].mxu0
    %v3269 = vadd.f32 %v3078, %v3268
    %3270 = vmatprep.mubr.f32.mxu0 0.0
    %v3271 = vand.u32 %v102, 4294901760
    %v3272 = vsub.f32 %v102, %v3271
    %3273 = vmatmul.mubr.f32.gmra.mrb[0].mxu0 %v3272
    %v3274 = vpop.f32.mrb[0].mxu0
    %v3275 = vadd.f32 %v3083, %v3274
    %v3276 = vpop.f32.mrb[0].mxu0
    %v3277 = vadd.f32 %v3085, %v3276
    %3278 = vmatprep.mubr.f32.mxu0 0.0
    %v3279 = vand.u32 %v103, 4294901760
    %v3280 = vsub.f32 %v103, %v3279
    %3281 = vmatmul.mubr.f32.gmra.mrb[0].mxu0 %v3280
    %v3282 = vpop.f32.mrb[0].mxu0
    %v3283 = vadd.f32 %v3090, %v3282
    %v3284 = vpop.f32.mrb[0].mxu0
    %v3285 = vadd.f32 %v3092, %v3284
    %3286 = vdwg.mxu0
    %v3287 = vand.u32 %v109, 4294901760
    %3288 = vmatprep.subr.mxu0 %v3287
    %v3289 = vand.u32 %v108, 4294901760
    %3290 = vmatpush1.msra.mxu0 %v3289
    %v3291 = vand.u32 %v117, 4294901760
    %3292 = vmatprep.subr.mxu0 %v3291
    %v3293 = vand.u32 %v116, 4294901760
    %3294 = vmatpush1.msra.mxu0 %v3293
    %v3295 = vand.u32 %v125, 4294901760
    %3296 = vmatprep.subr.mxu0 %v3295
    %v3297 = vand.u32 %v124, 4294901760
    %3298 = vmatpush1.msra.mxu0 %v3297
    %v3299 = vand.u32 %v133, 4294901760
    %3300 = vmatprep.subr.mxu0 %v3299
    %v3301 = vand.u32 %v132, 4294901760
    %3302 = vmatpush1.msra.mxu0 %v3301
    %v3303 = vand.u32 %v141, 4294901760
    %3304 = vmatprep.subr.mxu0 %v3303
    %v3305 = vand.u32 %v140, 4294901760
    %3306 = vmatpush1.msra.mxu0 %v3305
    %v3307 = vand.u32 %v149, 4294901760
    %3308 = vmatprep.subr.mxu0 %v3307
    %v3309 = vand.u32 %v148, 4294901760
    %3310 = vmatpush1.msra.mxu0 %v3309
    %v3311 = vand.u32 %v157, 4294901760
    %3312 = vmatprep.subr.mxu0 %v3311
    %v3313 = vand.u32 %v156, 4294901760
    %3314 = vmatpush1.msra.mxu0 %v3313
    %v3315 = vand.u32 %v165, 4294901760
    %3316 = vmatprep.subr.mxu0 %v3315
    %v3317 = vand.u32 %v164, 4294901760
    %3318 = vmatpush1.msra.mxu0 %v3317
    %v3319 = vand.u32 %v173, 4294901760
    %3320 = vmatprep.subr.mxu0 %v3319
    %v3321 = vand.u32 %v172, 4294901760
    %3322 = vmatpush1.msra.mxu0 %v3321
    %v3323 = vand.u32 %v181, 4294901760
    %3324 = vmatprep.subr.mxu0 %v3323
    %v3325 = vand.u32 %v180, 4294901760
    %3326 = vmatpush1.msra.mxu0 %v3325
    %v3327 = vand.u32 %v189, 4294901760
    %3328 = vmatprep.subr.mxu0 %v3327
    %v3329 = vand.u32 %v188, 4294901760
    %3330 = vmatpush1.msra.mxu0 %v3329
    %v3331 = vand.u32 %v197, 4294901760
    %3332 = vmatprep.subr.mxu0 %v3331
    %v3333 = vand.u32 %v196, 4294901760
    %3334 = vmatpush1.msra.mxu0 %v3333
    %v3335 = vand.u32 %v205, 4294901760
    %3336 = vmatprep.subr.mxu0 %v3335
    %v3337 = vand.u32 %v204, 4294901760
    %3338 = vmatpush1.msra.mxu0 %v3337
    %v3339 = vand.u32 %v213, 4294901760
    %3340 = vmatprep.subr.mxu0 %v3339
    %v3341 = vand.u32 %v212, 4294901760
    %3342 = vmatpush1.msra.mxu0 %v3341
    %v3343 = vand.u32 %v221, 4294901760
    %3344 = vmatprep.subr.mxu0 %v3343
    %v3345 = vand.u32 %v220, 4294901760
    %3346 = vmatpush1.msra.mxu0 %v3345
    %v3347 = vand.u32 %v229, 4294901760
    %3348 = vmatprep.subr.mxu0 %v3347
    %v3349 = vand.u32 %v228, 4294901760
    %3350 = vmatpush1.msra.mxu0 %v3349
    %3351 = vmatprep.subr.mxu0 0.0
    %3352 = vmatpush1.msra.mxu0 0.0
    %3353 = vmatprep.subr.mxu0 0.0
    %3354 = vmatpush1.msra.mxu0 0.0
    %3355 = vmatprep.subr.mxu0 0.0
    %3356 = vmatpush1.msra.mxu0 0.0
    %3357 = vmatprep.subr.mxu0 0.0
    %3358 = vmatpush1.msra.mxu0 0.0
    %3359 = vmatprep.subr.mxu0 0.0
    %3360 = vmatpush1.msra.mxu0 0.0
    %3361 = vmatprep.subr.mxu0 0.0
    %3362 = vmatpush1.msra.mxu0 0.0
    %3363 = vmatprep.subr.mxu0 0.0
    %3364 = vmatpush1.msra.mxu0 0.0
    %3365 = vmatprep.subr.mxu0 0.0
    %3366 = vmatpush1.msra.mxu0 0.0
    %3367 = vmatprep.subr.mxu0 0.0
    %3368 = vmatpush1.msra.mxu0 0.0
    %3369 = vmatprep.subr.mxu0 0.0
    %3370 = vmatpush1.msra.mxu0 0.0
    %3371 = vmatprep.subr.mxu0 0.0
    %3372 = vmatpush1.msra.mxu0 0.0
    %3373 = vmatprep.subr.mxu0 0.0
    %3374 = vmatpush1.msra.mxu0 0.0
    %3375 = vmatprep.subr.mxu0 0.0
    %3376 = vmatpush1.msra.mxu0 0.0
    %3377 = vmatprep.subr.mxu0 0.0
    %3378 = vmatpush1.msra.mxu0 0.0
    %3379 = vmatprep.subr.mxu0 0.0
    %3380 = vmatpush1.msra.mxu0 0.0
    %3381 = vmatprep.subr.mxu0 0.0
    %3382 = vmatpush1.msra.mxu0 0.0
    %3383 = vmatprep.mubr.f32.mxu0 0.0
    %v3384 = vand.u32 %v96, 4294901760
    %v3385 = vsub.f32 %v96, %v3384
    %v3386 = vand.u32 %v3385, 4294901760
    %3387 = vmatmul.mubr.f32.gmra.mrb[0].mxu0 %v3386
    %v3388 = vpop.f32.mrb[0].mxu0
    %v3389 = vadd.f32 %v3227, %v3388
    %v3390 = vpop.f32.mrb[0].mxu0
    %v3391 = vadd.f32 %v3229, %v3390
    %3392 = vmatprep.mubr.f32.mxu0 0.0
    %v3393 = vand.u32 %v97, 4294901760
    %v3394 = vsub.f32 %v97, %v3393
    %v3395 = vand.u32 %v3394, 4294901760
    %3396 = vmatmul.mubr.f32.gmra.mrb[0].mxu0 %v3395
    %v3397 = vpop.f32.mrb[0].mxu0
    %v3398 = vadd.f32 %v3235, %v3397
    %v3399 = vpop.f32.mrb[0].mxu0
    %v3400 = vadd.f32 %v3237, %v3399
    %3401 = vmatprep.mubr.f32.mxu0 0.0
    %v3402 = vand.u32 %v98, 4294901760
    %v3403 = vsub.f32 %v98, %v3402
    %v3404 = vand.u32 %v3403, 4294901760
    %3405 = vmatmul.mubr.f32.gmra.mrb[0].mxu0 %v3404
    %v3406 = vpop.f32.mrb[0].mxu0
    %v3407 = vadd.f32 %v3243, %v3406
    %v3408 = vpop.f32.mrb[0].mxu0
    %v3409 = vadd.f32 %v3245, %v3408
    %3410 = vmatprep.mubr.f32.mxu0 0.0
    %v3411 = vand.u32 %v99, 4294901760
    %v3412 = vsub.f32 %v99, %v3411
    %v3413 = vand.u32 %v3412, 4294901760
    %3414 = vmatmul.mubr.f32.gmra.mrb[0].mxu0 %v3413
    %v3415 = vpop.f32.mrb[0].mxu0
    %v3416 = vadd.f32 %v3251, %v3415
    %v3417 = vpop.f32.mrb[0].mxu0
    %v3418 = vadd.f32 %v3253, %v3417
    %3419 = vmatprep.mubr.f32.mxu0 0.0
    %v3420 = vand.u32 %v100, 4294901760
    %v3421 = vsub.f32 %v100, %v3420
    %v3422 = vand.u32 %v3421, 4294901760
    %3423 = vmatmul.mubr.f32.gmra.mrb[0].mxu0 %v3422
    %v3424 = vpop.f32.mrb[0].mxu0
    %v3425 = vadd.f32 %v3259, %v3424
    %v3426 = vpop.f32.mrb[0].mxu0
    %v3427 = vadd.f32 %v3261, %v3426
    %3428 = vmatprep.mubr.f32.mxu0 0.0
    %v3429 = vand.u32 %v101, 4294901760
    %v3430 = vsub.f32 %v101, %v3429
    %v3431 = vand.u32 %v3430, 4294901760
    %3432 = vmatmul.mubr.f32.gmra.mrb[0].mxu0 %v3431
    %v3433 = vpop.f32.mrb[0].mxu0
    %v3434 = vadd.f32 %v3267, %v3433
    %v3435 = vpop.f32.mrb[0].mxu0
    %v3436 = vadd.f32 %v3269, %v3435
    %3437 = vmatprep.mubr.f32.mxu0 0.0
    %v3438 = vand.u32 %v102, 4294901760
    %v3439 = vsub.f32 %v102, %v3438
    %v3440 = vand.u32 %v3439, 4294901760
    %3441 = vmatmul.mubr.f32.gmra.mrb[0].mxu0 %v3440
    %v3442 = vpop.f32.mrb[0].mxu0
    %v3443 = vadd.f32 %v3275, %v3442
    %v3444 = vpop.f32.mrb[0].mxu0
    %v3445 = vadd.f32 %v3277, %v3444
    %3446 = vmatprep.mubr.f32.mxu0 0.0
    %v3447 = vand.u32 %v103, 4294901760
    %v3448 = vsub.f32 %v103, %v3447
    %v3449 = vand.u32 %v3448, 4294901760
    %3450 = vmatmul.mubr.f32.gmra.mrb[0].mxu0 %v3449
    %v3451 = vpop.f32.mrb[0].mxu0
    %v3452 = vadd.f32 %v3283, %v3451
    %v3453 = vpop.f32.mrb[0].mxu0
    %v3454 = vadd.f32 %v3285, %v3453
    %3455 = vdwg.mxu0
    %v3456 = vand.u32 %v109, 4294901760
    %v3457 = vsub.f32 %v109, %v3456
    %v3458 = vand.u32 %v3457, 4294901760
    %3459 = vmatprep.subr.mxu0 %v3458
    %v3460 = vand.u32 %v108, 4294901760
    %v3461 = vsub.f32 %v108, %v3460
    %v3462 = vand.u32 %v3461, 4294901760
    %3463 = vmatpush1.msra.mxu0 %v3462
    %v3464 = vand.u32 %v117, 4294901760
    %v3465 = vsub.f32 %v117, %v3464
    %v3466 = vand.u32 %v3465, 4294901760
    %3467 = vmatprep.subr.mxu0 %v3466
    %v3468 = vand.u32 %v116, 4294901760
    %v3469 = vsub.f32 %v116, %v3468
    %v3470 = vand.u32 %v3469, 4294901760
    %3471 = vmatpush1.msra.mxu0 %v3470
    %v3472 = vand.u32 %v125, 4294901760
    %v3473 = vsub.f32 %v125, %v3472
    %v3474 = vand.u32 %v3473, 4294901760
    %3475 = vmatprep.subr.mxu0 %v3474
    %v3476 = vand.u32 %v124, 4294901760
    %v3477 = vsub.f32 %v124, %v3476
    %v3478 = vand.u32 %v3477, 4294901760
    %3479 = vmatpush1.msra.mxu0 %v3478
    %v3480 = vand.u32 %v133, 4294901760
    %v3481 = vsub.f32 %v133, %v3480
    %v3482 = vand.u32 %v3481, 4294901760
    %3483 = vmatprep.subr.mxu0 %v3482
    %v3484 = vand.u32 %v132, 4294901760
    %v3485 = vsub.f32 %v132, %v3484
    %v3486 = vand.u32 %v3485, 4294901760
    %3487 = vmatpush1.msra.mxu0 %v3486
    %v3488 = vand.u32 %v141, 4294901760
    %v3489 = vsub.f32 %v141, %v3488
    %v3490 = vand.u32 %v3489, 4294901760
    %3491 = vmatprep.subr.mxu0 %v3490
    %v3492 = vand.u32 %v140, 4294901760
    %v3493 = vsub.f32 %v140, %v3492
    %v3494 = vand.u32 %v3493, 4294901760
    %3495 = vmatpush1.msra.mxu0 %v3494
    %v3496 = vand.u32 %v149, 4294901760
    %v3497 = vsub.f32 %v149, %v3496
    %v3498 = vand.u32 %v3497, 4294901760
    %3499 = vmatprep.subr.mxu0 %v3498
    %v3500 = vand.u32 %v148, 4294901760
    %v3501 = vsub.f32 %v148, %v3500
    %v3502 = vand.u32 %v3501, 4294901760
    %3503 = vmatpush1.msra.mxu0 %v3502
    %v3504 = vand.u32 %v157, 4294901760
    %v3505 = vsub.f32 %v157, %v3504
    %v3506 = vand.u32 %v3505, 4294901760
    %3507 = vmatprep.subr.mxu0 %v3506
    %v3508 = vand.u32 %v156, 4294901760
    %v3509 = vsub.f32 %v156, %v3508
    %v3510 = vand.u32 %v3509, 4294901760
    %3511 = vmatpush1.msra.mxu0 %v3510
    %v3512 = vand.u32 %v165, 4294901760
    %v3513 = vsub.f32 %v165, %v3512
    %v3514 = vand.u32 %v3513, 4294901760
    %3515 = vmatprep.subr.mxu0 %v3514
    %v3516 = vand.u32 %v164, 4294901760
    %v3517 = vsub.f32 %v164, %v3516
    %v3518 = vand.u32 %v3517, 4294901760
    %3519 = vmatpush1.msra.mxu0 %v3518
    %v3520 = vand.u32 %v173, 4294901760
    %v3521 = vsub.f32 %v173, %v3520
    %v3522 = vand.u32 %v3521, 4294901760
    %3523 = vmatprep.subr.mxu0 %v3522
    %v3524 = vand.u32 %v172, 4294901760
    %v3525 = vsub.f32 %v172, %v3524
    %v3526 = vand.u32 %v3525, 4294901760
    %3527 = vmatpush1.msra.mxu0 %v3526
    %v3528 = vand.u32 %v181, 4294901760
    %v3529 = vsub.f32 %v181, %v3528
    %v3530 = vand.u32 %v3529, 4294901760
    %3531 = vmatprep.subr.mxu0 %v3530
    %v3532 = vand.u32 %v180, 4294901760
    %v3533 = vsub.f32 %v180, %v3532
    %v3534 = vand.u32 %v3533, 4294901760
    %3535 = vmatpush1.msra.mxu0 %v3534
    %v3536 = vand.u32 %v189, 4294901760
    %v3537 = vsub.f32 %v189, %v3536
    %v3538 = vand.u32 %v3537, 4294901760
    %3539 = vmatprep.subr.mxu0 %v3538
    %v3540 = vand.u32 %v188, 4294901760
    %v3541 = vsub.f32 %v188, %v3540
    %v3542 = vand.u32 %v3541, 4294901760
    %3543 = vmatpush1.msra.mxu0 %v3542
    %v3544 = vand.u32 %v197, 4294901760
    %v3545 = vsub.f32 %v197, %v3544
    %v3546 = vand.u32 %v3545, 4294901760
    %3547 = vmatprep.subr.mxu0 %v3546
    %v3548 = vand.u32 %v196, 4294901760
    %v3549 = vsub.f32 %v196, %v3548
    %v3550 = vand.u32 %v3549, 4294901760
    %3551 = vmatpush1.msra.mxu0 %v3550
    %v3552 = vand.u32 %v205, 4294901760
    %v3553 = vsub.f32 %v205, %v3552
    %v3554 = vand.u32 %v3553, 4294901760
    %3555 = vmatprep.subr.mxu0 %v3554
    %v3556 = vand.u32 %v204, 4294901760
    %v3557 = vsub.f32 %v204, %v3556
    %v3558 = vand.u32 %v3557, 4294901760
    %3559 = vmatpush1.msra.mxu0 %v3558
    %v3560 = vand.u32 %v213, 4294901760
    %v3561 = vsub.f32 %v213, %v3560
    %v3562 = vand.u32 %v3561, 4294901760
    %3563 = vmatprep.subr.mxu0 %v3562
    %v3564 = vand.u32 %v212, 4294901760
    %v3565 = vsub.f32 %v212, %v3564
    %v3566 = vand.u32 %v3565, 4294901760
    %3567 = vmatpush1.msra.mxu0 %v3566
    %v3568 = vand.u32 %v221, 4294901760
    %v3569 = vsub.f32 %v221, %v3568
    %v3570 = vand.u32 %v3569, 4294901760
    %3571 = vmatprep.subr.mxu0 %v3570
    %v3572 = vand.u32 %v220, 4294901760
    %v3573 = vsub.f32 %v220, %v3572
    %v3574 = vand.u32 %v3573, 4294901760
    %3575 = vmatpush1.msra.mxu0 %v3574
    %v3576 = vand.u32 %v229, 4294901760
    %v3577 = vsub.f32 %v229, %v3576
    %v3578 = vand.u32 %v3577, 4294901760
    %3579 = vmatprep.subr.mxu0 %v3578
    %v3580 = vand.u32 %v228, 4294901760
    %v3581 = vsub.f32 %v228, %v3580
    %v3582 = vand.u32 %v3581, 4294901760
    %3583 = vmatpush1.msra.mxu0 %v3582
    %3584 = vmatprep.subr.mxu0 0.0
    %3585 = vmatpush1.msra.mxu0 0.0
    %3586 = vmatprep.subr.mxu0 0.0
    %3587 = vmatpush1.msra.mxu0 0.0
    %3588 = vmatprep.subr.mxu0 0.0
    %3589 = vmatpush1.msra.mxu0 0.0
    %3590 = vmatprep.subr.mxu0 0.0
    %3591 = vmatpush1.msra.mxu0 0.0
    %3592 = vmatprep.subr.mxu0 0.0
    %3593 = vmatpush1.msra.mxu0 0.0
    %3594 = vmatprep.subr.mxu0 0.0
    %3595 = vmatpush1.msra.mxu0 0.0
    %3596 = vmatprep.subr.mxu0 0.0
    %3597 = vmatpush1.msra.mxu0 0.0
    %3598 = vmatprep.subr.mxu0 0.0
    %3599 = vmatpush1.msra.mxu0 0.0
    %3600 = vmatprep.subr.mxu0 0.0
    %3601 = vmatpush1.msra.mxu0 0.0
    %3602 = vmatprep.subr.mxu0 0.0
    %3603 = vmatpush1.msra.mxu0 0.0
    %3604 = vmatprep.subr.mxu0 0.0
    %3605 = vmatpush1.msra.mxu0 0.0
    %3606 = vmatprep.subr.mxu0 0.0
    %3607 = vmatpush1.msra.mxu0 0.0
    %3608 = vmatprep.subr.mxu0 0.0
    %3609 = vmatpush1.msra.mxu0 0.0
    %3610 = vmatprep.subr.mxu0 0.0
    %3611 = vmatpush1.msra.mxu0 0.0
    %3612 = vmatprep.subr.mxu0 0.0
    %3613 = vmatpush1.msra.mxu0 0.0
    %3614 = vmatprep.subr.mxu0 0.0
    %3615 = vmatpush1.msra.mxu0 0.0
    %3616 = vmatprep.mubr.f32.mxu0 0.0
    %v3617 = vand.u32 %v96, 4294901760
    %3618 = vmatmul.mubr.f32.gmra.mrb[0].mxu0 %v3617
    %v3619 = vpop.f32.mrb[0].mxu0
    %v3620 = vadd.f32 %v3389, %v3619
    %v3621 = vpop.f32.mrb[0].mxu0
    %v3622 = vadd.f32 %v3391, %v3621
    %3623 = vmatprep.mubr.f32.mxu0 0.0
    %v3624 = vand.u32 %v97, 4294901760
    %3625 = vmatmul.mubr.f32.gmra.mrb[0].mxu0 %v3624
    %v3626 = vpop.f32.mrb[0].mxu0
    %v3627 = vadd.f32 %v3398, %v3626
    %v3628 = vpop.f32.mrb[0].mxu0
    %v3629 = vadd.f32 %v3400, %v3628
    %3630 = vmatprep.mubr.f32.mxu0 0.0
    %v3631 = vand.u32 %v98, 4294901760
    %3632 = vmatmul.mubr.f32.gmra.mrb[0].mxu0 %v3631
    %v3633 = vpop.f32.mrb[0].mxu0
    %v3634 = vadd.f32 %v3407, %v3633
    %v3635 = vpop.f32.mrb[0].mxu0
    %v3636 = vadd.f32 %v3409, %v3635
    %3637 = vmatprep.mubr.f32.mxu0 0.0
    %v3638 = vand.u32 %v99, 4294901760
    %3639 = vmatmul.mubr.f32.gmra.mrb[0].mxu0 %v3638
    %v3640 = vpop.f32.mrb[0].mxu0
    %v3641 = vadd.f32 %v3416, %v3640
    %v3642 = vpop.f32.mrb[0].mxu0
    %v3643 = vadd.f32 %v3418, %v3642
    %3644 = vmatprep.mubr.f32.mxu0 0.0
    %v3645 = vand.u32 %v100, 4294901760
    %3646 = vmatmul.mubr.f32.gmra.mrb[0].mxu0 %v3645
    %v3647 = vpop.f32.mrb[0].mxu0
    %v3648 = vadd.f32 %v3425, %v3647
    %v3649 = vpop.f32.mrb[0].mxu0
    %v3650 = vadd.f32 %v3427, %v3649
    %3651 = vmatprep.mubr.f32.mxu0 0.0
    %v3652 = vand.u32 %v101, 4294901760
    %3653 = vmatmul.mubr.f32.gmra.mrb[0].mxu0 %v3652
    %v3654 = vpop.f32.mrb[0].mxu0
    %v3655 = vadd.f32 %v3434, %v3654
    %v3656 = vpop.f32.mrb[0].mxu0
    %v3657 = vadd.f32 %v3436, %v3656
    %3658 = vmatprep.mubr.f32.mxu0 0.0
    %v3659 = vand.u32 %v102, 4294901760
    %3660 = vmatmul.mubr.f32.gmra.mrb[0].mxu0 %v3659
    %v3661 = vpop.f32.mrb[0].mxu0
    %v3662 = vadd.f32 %v3443, %v3661
    %v3663 = vpop.f32.mrb[0].mxu0
    %v3664 = vadd.f32 %v3445, %v3663
    %3665 = vmatprep.mubr.f32.mxu0 0.0
    %v3666 = vand.u32 %v103, 4294901760
    %3667 = vmatmul.mubr.f32.gmra.mrb[0].mxu0 %v3666
    %v3668 = vpop.f32.mrb[0].mxu0
    %v3669 = vadd.f32 %v3452, %v3668
    %v3670 = vpop.f32.mrb[0].mxu0
    %v3671 = vadd.f32 %v3454, %v3670
    %3672 = vdwg.mxu0
    %v3673 = vand.u32 %v109, 4294901760
    %3674 = vmatprep.subr.mxu0 %v3673
    %v3675 = vand.u32 %v108, 4294901760
    %3676 = vmatpush1.msra.mxu0 %v3675
    %v3677 = vand.u32 %v117, 4294901760
    %3678 = vmatprep.subr.mxu0 %v3677
    %v3679 = vand.u32 %v116, 4294901760
    %3680 = vmatpush1.msra.mxu0 %v3679
    %v3681 = vand.u32 %v125, 4294901760
    %3682 = vmatprep.subr.mxu0 %v3681
    %v3683 = vand.u32 %v124, 4294901760
    %3684 = vmatpush1.msra.mxu0 %v3683
    %v3685 = vand.u32 %v133, 4294901760
    %3686 = vmatprep.subr.mxu0 %v3685
    %v3687 = vand.u32 %v132, 4294901760
    %3688 = vmatpush1.msra.mxu0 %v3687
    %v3689 = vand.u32 %v141, 4294901760
    %3690 = vmatprep.subr.mxu0 %v3689
    %v3691 = vand.u32 %v140, 4294901760
    %3692 = vmatpush1.msra.mxu0 %v3691
    %v3693 = vand.u32 %v149, 4294901760
    %3694 = vmatprep.subr.mxu0 %v3693
    %v3695 = vand.u32 %v148, 4294901760
    %3696 = vmatpush1.msra.mxu0 %v3695
    %v3697 = vand.u32 %v157, 4294901760
    %3698 = vmatprep.subr.mxu0 %v3697
    %v3699 = vand.u32 %v156, 4294901760
    %3700 = vmatpush1.msra.mxu0 %v3699
    %v3701 = vand.u32 %v165, 4294901760
    %3702 = vmatprep.subr.mxu0 %v3701
    %v3703 = vand.u32 %v164, 4294901760
    %3704 = vmatpush1.msra.mxu0 %v3703
    %v3705 = vand.u32 %v173, 4294901760
    %3706 = vmatprep.subr.mxu0 %v3705
    %v3707 = vand.u32 %v172, 4294901760
    %3708 = vmatpush1.msra.mxu0 %v3707
    %v3709 = vand.u32 %v181, 4294901760
    %3710 = vmatprep.subr.mxu0 %v3709
    %v3711 = vand.u32 %v180, 4294901760
    %3712 = vmatpush1.msra.mxu0 %v3711
    %v3713 = vand.u32 %v189, 4294901760
    %3714 = vmatprep.subr.mxu0 %v3713
    %v3715 = vand.u32 %v188, 4294901760
    %3716 = vmatpush1.msra.mxu0 %v3715
    %v3717 = vand.u32 %v197, 4294901760
    %3718 = vmatprep.subr.mxu0 %v3717
    %v3719 = vand.u32 %v196, 4294901760
    %3720 = vmatpush1.msra.mxu0 %v3719
    %v3721 = vand.u32 %v205, 4294901760
    %3722 = vmatprep.subr.mxu0 %v3721
    %v3723 = vand.u32 %v204, 4294901760
    %3724 = vmatpush1.msra.mxu0 %v3723
    %v3725 = vand.u32 %v213, 4294901760
    %3726 = vmatprep.subr.mxu0 %v3725
    %v3727 = vand.u32 %v212, 4294901760
    %3728 = vmatpush1.msra.mxu0 %v3727
    %v3729 = vand.u32 %v221, 4294901760
    %3730 = vmatprep.subr.mxu0 %v3729
    %v3731 = vand.u32 %v220, 4294901760
    %3732 = vmatpush1.msra.mxu0 %v3731
    %v3733 = vand.u32 %v229, 4294901760
    %3734 = vmatprep.subr.mxu0 %v3733
    %v3735 = vand.u32 %v228, 4294901760
    %3736 = vmatpush1.msra.mxu0 %v3735
    %3737 = vmatprep.subr.mxu0 0.0
    %3738 = vmatpush1.msra.mxu0 0.0
    %3739 = vmatprep.subr.mxu0 0.0
    %3740 = vmatpush1.msra.mxu0 0.0
    %3741 = vmatprep.subr.mxu0 0.0
    %3742 = vmatpush1.msra.mxu0 0.0
    %3743 = vmatprep.subr.mxu0 0.0
    %3744 = vmatpush1.msra.mxu0 0.0
    %3745 = vmatprep.subr.mxu0 0.0
    %3746 = vmatpush1.msra.mxu0 0.0
    %3747 = vmatprep.subr.mxu0 0.0
    %3748 = vmatpush1.msra.mxu0 0.0
    %3749 = vmatprep.subr.mxu0 0.0
    %3750 = vmatpush1.msra.mxu0 0.0
    %3751 = vmatprep.subr.mxu0 0.0
    %3752 = vmatpush1.msra.mxu0 0.0
    %3753 = vmatprep.subr.mxu0 0.0
    %3754 = vmatpush1.msra.mxu0 0.0
    %3755 = vmatprep.subr.mxu0 0.0
    %3756 = vmatpush1.msra.mxu0 0.0
    %3757 = vmatprep.subr.mxu0 0.0
    %3758 = vmatpush1.msra.mxu0 0.0
    %3759 = vmatprep.subr.mxu0 0.0
    %3760 = vmatpush1.msra.mxu0 0.0
    %3761 = vmatprep.subr.mxu0 0.0
    %3762 = vmatpush1.msra.mxu0 0.0
    %3763 = vmatprep.subr.mxu0 0.0
    %3764 = vmatpush1.msra.mxu0 0.0
    %3765 = vmatprep.subr.mxu0 0.0
    %3766 = vmatpush1.msra.mxu0 0.0
    %3767 = vmatprep.subr.mxu0 0.0
    %3768 = vmatpush1.msra.mxu0 0.0
    %3769 = vmatprep.mubr.f32.mxu0 0.0
    %v3770 = vand.u32 %v96, 4294901760
    %3771 = vmatmul.mubr.f32.gmra.mrb[0].mxu0 %v3770
    %v3772 = vpop.f32.mrb[0].mxu0
    %v3773 = vadd.f32 %v3620, %v3772
    %v3774 = vpop.f32.mrb[0].mxu0
    %v3775 = vadd.f32 %v3622, %v3774
    %3776 = vmatprep.mubr.f32.mxu0 0.0
    %v3777 = vand.u32 %v97, 4294901760
    %3778 = vmatmul.mubr.f32.gmra.mrb[0].mxu0 %v3777
    %v3779 = vpop.f32.mrb[0].mxu0
    %v3780 = vadd.f32 %v3627, %v3779
    %v3781 = vpop.f32.mrb[0].mxu0
    %v3782 = vadd.f32 %v3629, %v3781
    %3783 = vmatprep.mubr.f32.mxu0 0.0
    %v3784 = vand.u32 %v98, 4294901760
    %3785 = vmatmul.mubr.f32.gmra.mrb[0].mxu0 %v3784
    %v3786 = vpop.f32.mrb[0].mxu0
    %v3787 = vadd.f32 %v3634, %v3786
    %v3788 = vpop.f32.mrb[0].mxu0
    %v3789 = vadd.f32 %v3636, %v3788
    %3790 = vmatprep.mubr.f32.mxu0 0.0
    %v3791 = vand.u32 %v99, 4294901760
    %3792 = vmatmul.mubr.f32.gmra.mrb[0].mxu0 %v3791
    %v3793 = vpop.f32.mrb[0].mxu0
    %v3794 = vadd.f32 %v3641, %v3793
    %v3795 = vpop.f32.mrb[0].mxu0
    %v3796 = vadd.f32 %v3643, %v3795
    %3797 = vmatprep.mubr.f32.mxu0 0.0
    %v3798 = vand.u32 %v100, 4294901760
    %3799 = vmatmul.mubr.f32.gmra.mrb[0].mxu0 %v3798
    %v3800 = vpop.f32.mrb[0].mxu0
    %v3801 = vadd.f32 %v3648, %v3800
    %v3802 = vpop.f32.mrb[0].mxu0
    %v3803 = vadd.f32 %v3650, %v3802
    %3804 = vmatprep.mubr.f32.mxu0 0.0
    %v3805 = vand.u32 %v101, 4294901760
    %3806 = vmatmul.mubr.f32.gmra.mrb[0].mxu0 %v3805
    %v3807 = vpop.f32.mrb[0].mxu0
    %v3808 = vadd.f32 %v3655, %v3807
    %v3809 = vpop.f32.mrb[0].mxu0
    %v3810 = vadd.f32 %v3657, %v3809
    %3811 = vmatprep.mubr.f32.mxu0 0.0
    %v3812 = vand.u32 %v102, 4294901760
    %3813 = vmatmul.mubr.f32.gmra.mrb[0].mxu0 %v3812
    %v3814 = vpop.f32.mrb[0].mxu0
    %v3815 = vadd.f32 %v3662, %v3814
    %v3816 = vpop.f32.mrb[0].mxu0
    %v3817 = vadd.f32 %v3664, %v3816
    %3818 = vmatprep.mubr.f32.mxu0 0.0
    %v3819 = vand.u32 %v103, 4294901760
    %3820 = vmatmul.mubr.f32.gmra.mrb[0].mxu0 %v3819
    %v3821 = vpop.f32.mrb[0].mxu0
    %v3822 = vadd.f32 %v3669, %v3821
    %v3823 = vpop.f32.mrb[0].mxu0
    %v3824 = vadd.f32 %v3671, %v3823
    %3825 = vdwg.mxu0
    %v3826 = vand.u32 %v111, 4294901760
    %3827 = vmatprep.subr.mxu0 %v3826
    %v3828 = vand.u32 %v110, 4294901760
    %3829 = vmatpush1.msra.mxu0 %v3828
    %v3830 = vand.u32 %v119, 4294901760
    %3831 = vmatprep.subr.mxu0 %v3830
    %v3832 = vand.u32 %v118, 4294901760
    %3833 = vmatpush1.msra.mxu0 %v3832
    %v3834 = vand.u32 %v127, 4294901760
    %3835 = vmatprep.subr.mxu0 %v3834
    %v3836 = vand.u32 %v126, 4294901760
    %3837 = vmatpush1.msra.mxu0 %v3836
    %v3838 = vand.u32 %v135, 4294901760
    %3839 = vmatprep.subr.mxu0 %v3838
    %v3840 = vand.u32 %v134, 4294901760
    %3841 = vmatpush1.msra.mxu0 %v3840
    %v3842 = vand.u32 %v143, 4294901760
    %3843 = vmatprep.subr.mxu0 %v3842
    %v3844 = vand.u32 %v142, 4294901760
    %3845 = vmatpush1.msra.mxu0 %v3844
    %v3846 = vand.u32 %v151, 4294901760
    %3847 = vmatprep.subr.mxu0 %v3846
    %v3848 = vand.u32 %v150, 4294901760
    %3849 = vmatpush1.msra.mxu0 %v3848
    %v3850 = vand.u32 %v159, 4294901760
    %3851 = vmatprep.subr.mxu0 %v3850
    %v3852 = vand.u32 %v158, 4294901760
    %3853 = vmatpush1.msra.mxu0 %v3852
    %v3854 = vand.u32 %v167, 4294901760
    %3855 = vmatprep.subr.mxu0 %v3854
    %v3856 = vand.u32 %v166, 4294901760
    %3857 = vmatpush1.msra.mxu0 %v3856
    %v3858 = vand.u32 %v175, 4294901760
    %3859 = vmatprep.subr.mxu0 %v3858
    %v3860 = vand.u32 %v174, 4294901760
    %3861 = vmatpush1.msra.mxu0 %v3860
    %v3862 = vand.u32 %v183, 4294901760
    %3863 = vmatprep.subr.mxu0 %v3862
    %v3864 = vand.u32 %v182, 4294901760
    %3865 = vmatpush1.msra.mxu0 %v3864
    %v3866 = vand.u32 %v191, 4294901760
    %3867 = vmatprep.subr.mxu0 %v3866
    %v3868 = vand.u32 %v190, 4294901760
    %3869 = vmatpush1.msra.mxu0 %v3868
    %v3870 = vand.u32 %v199, 4294901760
    %3871 = vmatprep.subr.mxu0 %v3870
    %v3872 = vand.u32 %v198, 4294901760
    %3873 = vmatpush1.msra.mxu0 %v3872
    %v3874 = vand.u32 %v207, 4294901760
    %3875 = vmatprep.subr.mxu0 %v3874
    %v3876 = vand.u32 %v206, 4294901760
    %3877 = vmatpush1.msra.mxu0 %v3876
    %v3878 = vand.u32 %v215, 4294901760
    %3879 = vmatprep.subr.mxu0 %v3878
    %v3880 = vand.u32 %v214, 4294901760
    %3881 = vmatpush1.msra.mxu0 %v3880
    %v3882 = vand.u32 %v223, 4294901760
    %3883 = vmatprep.subr.mxu0 %v3882
    %v3884 = vand.u32 %v222, 4294901760
    %3885 = vmatpush1.msra.mxu0 %v3884
    %v3886 = vand.u32 %v231, 4294901760
    %3887 = vmatprep.subr.mxu0 %v3886
    %v3888 = vand.u32 %v230, 4294901760
    %3889 = vmatpush1.msra.mxu0 %v3888
    %3890 = vmatprep.subr.mxu0 0.0
    %3891 = vmatpush1.msra.mxu0 0.0
    %3892 = vmatprep.subr.mxu0 0.0
    %3893 = vmatpush1.msra.mxu0 0.0
    %3894 = vmatprep.subr.mxu0 0.0
    %3895 = vmatpush1.msra.mxu0 0.0
    %3896 = vmatprep.subr.mxu0 0.0
    %3897 = vmatpush1.msra.mxu0 0.0
    %3898 = vmatprep.subr.mxu0 0.0
    %3899 = vmatpush1.msra.mxu0 0.0
    %3900 = vmatprep.subr.mxu0 0.0
    %3901 = vmatpush1.msra.mxu0 0.0
    %3902 = vmatprep.subr.mxu0 0.0
    %3903 = vmatpush1.msra.mxu0 0.0
    %3904 = vmatprep.subr.mxu0 0.0
    %3905 = vmatpush1.msra.mxu0 0.0
    %3906 = vmatprep.subr.mxu0 0.0
    %3907 = vmatpush1.msra.mxu0 0.0
    %3908 = vmatprep.subr.mxu0 0.0
    %3909 = vmatpush1.msra.mxu0 0.0
    %3910 = vmatprep.subr.mxu0 0.0
    %3911 = vmatpush1.msra.mxu0 0.0
    %3912 = vmatprep.subr.mxu0 0.0
    %3913 = vmatpush1.msra.mxu0 0.0
    %3914 = vmatprep.subr.mxu0 0.0
    %3915 = vmatpush1.msra.mxu0 0.0
    %3916 = vmatprep.subr.mxu0 0.0
    %3917 = vmatpush1.msra.mxu0 0.0
    %3918 = vmatprep.subr.mxu0 0.0
    %3919 = vmatpush1.msra.mxu0 0.0
    %3920 = vmatprep.subr.mxu0 0.0
    %3921 = vmatpush1.msra.mxu0 0.0
    %3922 = vmatprep.mubr.f32.mxu0 0.0
    %v3923 = vand.u32 %v96, 4294901760
    %v3924 = vsub.f32 %v96, %v3923
    %v3925 = vand.u32 %v3924, 4294901760
    %v3926 = vsub.f32 %v3924, %v3925
    %v3927 = vand.u32 %v3926, 4294901760
    %3928 = vmatmul.mubr.f32.gmra.mrb[0].mxu0 %v3927
    %v3929 = vpop.f32.mrb[0].mxu0
    %v3930 = vadd.f32 0.0, %v3929
    %v3931 = vpop.f32.mrb[0].mxu0
    %v3932 = vadd.f32 0.0, %v3931
    %3933 = vmatprep.mubr.f32.mxu0 0.0
    %v3934 = vand.u32 %v97, 4294901760
    %v3935 = vsub.f32 %v97, %v3934
    %v3936 = vand.u32 %v3935, 4294901760
    %v3937 = vsub.f32 %v3935, %v3936
    %v3938 = vand.u32 %v3937, 4294901760
    %3939 = vmatmul.mubr.f32.gmra.mrb[0].mxu0 %v3938
    %v3940 = vpop.f32.mrb[0].mxu0
    %v3941 = vadd.f32 0.0, %v3940
    %v3942 = vpop.f32.mrb[0].mxu0
    %v3943 = vadd.f32 0.0, %v3942
    %3944 = vmatprep.mubr.f32.mxu0 0.0
    %v3945 = vand.u32 %v98, 4294901760
    %v3946 = vsub.f32 %v98, %v3945
    %v3947 = vand.u32 %v3946, 4294901760
    %v3948 = vsub.f32 %v3946, %v3947
    %v3949 = vand.u32 %v3948, 4294901760
    %3950 = vmatmul.mubr.f32.gmra.mrb[0].mxu0 %v3949
    %v3951 = vpop.f32.mrb[0].mxu0
    %v3952 = vadd.f32 0.0, %v3951
    %v3953 = vpop.f32.mrb[0].mxu0
    %v3954 = vadd.f32 0.0, %v3953
    %3955 = vmatprep.mubr.f32.mxu0 0.0
    %v3956 = vand.u32 %v99, 4294901760
    %v3957 = vsub.f32 %v99, %v3956
    %v3958 = vand.u32 %v3957, 4294901760
    %v3959 = vsub.f32 %v3957, %v3958
    %v3960 = vand.u32 %v3959, 4294901760
    %3961 = vmatmul.mubr.f32.gmra.mrb[0].mxu0 %v3960
    %v3962 = vpop.f32.mrb[0].mxu0
    %v3963 = vadd.f32 0.0, %v3962
    %v3964 = vpop.f32.mrb[0].mxu0
    %v3965 = vadd.f32 0.0, %v3964
    %3966 = vmatprep.mubr.f32.mxu0 0.0
    %v3967 = vand.u32 %v100, 4294901760
    %v3968 = vsub.f32 %v100, %v3967
    %v3969 = vand.u32 %v3968, 4294901760
    %v3970 = vsub.f32 %v3968, %v3969
    %v3971 = vand.u32 %v3970, 4294901760
    %3972 = vmatmul.mubr.f32.gmra.mrb[0].mxu0 %v3971
    %v3973 = vpop.f32.mrb[0].mxu0
    %v3974 = vadd.f32 0.0, %v3973
    %v3975 = vpop.f32.mrb[0].mxu0
    %v3976 = vadd.f32 0.0, %v3975
    %3977 = vmatprep.mubr.f32.mxu0 0.0
    %v3978 = vand.u32 %v101, 4294901760
    %v3979 = vsub.f32 %v101, %v3978
    %v3980 = vand.u32 %v3979, 4294901760
    %v3981 = vsub.f32 %v3979, %v3980
    %v3982 = vand.u32 %v3981, 4294901760
    %3983 = vmatmul.mubr.f32.gmra.mrb[0].mxu0 %v3982
    %v3984 = vpop.f32.mrb[0].mxu0
    %v3985 = vadd.f32 0.0, %v3984
    %v3986 = vpop.f32.mrb[0].mxu0
    %v3987 = vadd.f32 0.0, %v3986
    %3988 = vmatprep.mubr.f32.mxu0 0.0
    %v3989 = vand.u32 %v102, 4294901760
    %v3990 = vsub.f32 %v102, %v3989
    %v3991 = vand.u32 %v3990, 4294901760
    %v3992 = vsub.f32 %v3990, %v3991
    %v3993 = vand.u32 %v3992, 4294901760
    %3994 = vmatmul.mubr.f32.gmra.mrb[0].mxu0 %v3993
    %v3995 = vpop.f32.mrb[0].mxu0
    %v3996 = vadd.f32 0.0, %v3995
    %v3997 = vpop.f32.mrb[0].mxu0
    %v3998 = vadd.f32 0.0, %v3997
    %3999 = vmatprep.mubr.f32.mxu0 0.0
    %v4000 = vand.u32 %v103, 4294901760
    %v4001 = vsub.f32 %v103, %v4000
    %v4002 = vand.u32 %v4001, 4294901760
    %v4003 = vsub.f32 %v4001, %v4002
    %v4004 = vand.u32 %v4003, 4294901760
    %4005 = vmatmul.mubr.f32.gmra.mrb[0].mxu0 %v4004
    %v4006 = vpop.f32.mrb[0].mxu0
    %v4007 = vadd.f32 0.0, %v4006
    %v4008 = vpop.f32.mrb[0].mxu0
    %v4009 = vadd.f32 0.0, %v4008
    %4010 = vdwg.mxu0
    %v4011 = vand.u32 %v111, 4294901760
    %v4012 = vsub.f32 %v111, %v4011
    %v4013 = vand.u32 %v4012, 4294901760
    %v4014 = vsub.f32 %v4012, %v4013
    %v4015 = vand.u32 %v4014, 4294901760
    %4016 = vmatprep.subr.mxu0 %v4015
    %v4017 = vand.u32 %v110, 4294901760
    %v4018 = vsub.f32 %v110, %v4017
    %v4019 = vand.u32 %v4018, 4294901760
    %v4020 = vsub.f32 %v4018, %v4019
    %v4021 = vand.u32 %v4020, 4294901760
    %4022 = vmatpush1.msra.mxu0 %v4021
    %v4023 = vand.u32 %v119, 4294901760
    %v4024 = vsub.f32 %v119, %v4023
    %v4025 = vand.u32 %v4024, 4294901760
    %v4026 = vsub.f32 %v4024, %v4025
    %v4027 = vand.u32 %v4026, 4294901760
    %4028 = vmatprep.subr.mxu0 %v4027
    %v4029 = vand.u32 %v118, 4294901760
    %v4030 = vsub.f32 %v118, %v4029
    %v4031 = vand.u32 %v4030, 4294901760
    %v4032 = vsub.f32 %v4030, %v4031
    %v4033 = vand.u32 %v4032, 4294901760
    %4034 = vmatpush1.msra.mxu0 %v4033
    %v4035 = vand.u32 %v127, 4294901760
    %v4036 = vsub.f32 %v127, %v4035
    %v4037 = vand.u32 %v4036, 4294901760
    %v4038 = vsub.f32 %v4036, %v4037
    %v4039 = vand.u32 %v4038, 4294901760
    %4040 = vmatprep.subr.mxu0 %v4039
    %v4041 = vand.u32 %v126, 4294901760
    %v4042 = vsub.f32 %v126, %v4041
    %v4043 = vand.u32 %v4042, 4294901760
    %v4044 = vsub.f32 %v4042, %v4043
    %v4045 = vand.u32 %v4044, 4294901760
    %4046 = vmatpush1.msra.mxu0 %v4045
    %v4047 = vand.u32 %v135, 4294901760
    %v4048 = vsub.f32 %v135, %v4047
    %v4049 = vand.u32 %v4048, 4294901760
    %v4050 = vsub.f32 %v4048, %v4049
    %v4051 = vand.u32 %v4050, 4294901760
    %4052 = vmatprep.subr.mxu0 %v4051
    %v4053 = vand.u32 %v134, 4294901760
    %v4054 = vsub.f32 %v134, %v4053
    %v4055 = vand.u32 %v4054, 4294901760
    %v4056 = vsub.f32 %v4054, %v4055
    %v4057 = vand.u32 %v4056, 4294901760
    %4058 = vmatpush1.msra.mxu0 %v4057
    %v4059 = vand.u32 %v143, 4294901760
    %v4060 = vsub.f32 %v143, %v4059
    %v4061 = vand.u32 %v4060, 4294901760
    %v4062 = vsub.f32 %v4060, %v4061
    %v4063 = vand.u32 %v4062, 4294901760
    %4064 = vmatprep.subr.mxu0 %v4063
    %v4065 = vand.u32 %v142, 4294901760
    %v4066 = vsub.f32 %v142, %v4065
    %v4067 = vand.u32 %v4066, 4294901760
    %v4068 = vsub.f32 %v4066, %v4067
    %v4069 = vand.u32 %v4068, 4294901760
    %4070 = vmatpush1.msra.mxu0 %v4069
    %v4071 = vand.u32 %v151, 4294901760
    %v4072 = vsub.f32 %v151, %v4071
    %v4073 = vand.u32 %v4072, 4294901760
    %v4074 = vsub.f32 %v4072, %v4073
    %v4075 = vand.u32 %v4074, 4294901760
    %4076 = vmatprep.subr.mxu0 %v4075
    %v4077 = vand.u32 %v150, 4294901760
    %v4078 = vsub.f32 %v150, %v4077
    %v4079 = vand.u32 %v4078, 4294901760
    %v4080 = vsub.f32 %v4078, %v4079
    %v4081 = vand.u32 %v4080, 4294901760
    %4082 = vmatpush1.msra.mxu0 %v4081
    %v4083 = vand.u32 %v159, 4294901760
    %v4084 = vsub.f32 %v159, %v4083
    %v4085 = vand.u32 %v4084, 4294901760
    %v4086 = vsub.f32 %v4084, %v4085
    %v4087 = vand.u32 %v4086, 4294901760
    %4088 = vmatprep.subr.mxu0 %v4087
    %v4089 = vand.u32 %v158, 4294901760
    %v4090 = vsub.f32 %v158, %v4089
    %v4091 = vand.u32 %v4090, 4294901760
    %v4092 = vsub.f32 %v4090, %v4091
    %v4093 = vand.u32 %v4092, 4294901760
    %4094 = vmatpush1.msra.mxu0 %v4093
    %v4095 = vand.u32 %v167, 4294901760
    %v4096 = vsub.f32 %v167, %v4095
    %v4097 = vand.u32 %v4096, 4294901760
    %v4098 = vsub.f32 %v4096, %v4097
    %v4099 = vand.u32 %v4098, 4294901760
    %4100 = vmatprep.subr.mxu0 %v4099
    %v4101 = vand.u32 %v166, 4294901760
    %v4102 = vsub.f32 %v166, %v4101
    %v4103 = vand.u32 %v4102, 4294901760
    %v4104 = vsub.f32 %v4102, %v4103
    %v4105 = vand.u32 %v4104, 4294901760
    %4106 = vmatpush1.msra.mxu0 %v4105
    %v4107 = vand.u32 %v175, 4294901760
    %v4108 = vsub.f32 %v175, %v4107
    %v4109 = vand.u32 %v4108, 4294901760
    %v4110 = vsub.f32 %v4108, %v4109
    %v4111 = vand.u32 %v4110, 4294901760
    %4112 = vmatprep.subr.mxu0 %v4111
    %v4113 = vand.u32 %v174, 4294901760
    %v4114 = vsub.f32 %v174, %v4113
    %v4115 = vand.u32 %v4114, 4294901760
    %v4116 = vsub.f32 %v4114, %v4115
    %v4117 = vand.u32 %v4116, 4294901760
    %4118 = vmatpush1.msra.mxu0 %v4117
    %v4119 = vand.u32 %v183, 4294901760
    %v4120 = vsub.f32 %v183, %v4119
    %v4121 = vand.u32 %v4120, 4294901760
    %v4122 = vsub.f32 %v4120, %v4121
    %v4123 = vand.u32 %v4122, 4294901760
    %4124 = vmatprep.subr.mxu0 %v4123
    %v4125 = vand.u32 %v182, 4294901760
    %v4126 = vsub.f32 %v182, %v4125
    %v4127 = vand.u32 %v4126, 4294901760
    %v4128 = vsub.f32 %v4126, %v4127
    %v4129 = vand.u32 %v4128, 4294901760
    %4130 = vmatpush1.msra.mxu0 %v4129
    %v4131 = vand.u32 %v191, 4294901760
    %v4132 = vsub.f32 %v191, %v4131
    %v4133 = vand.u32 %v4132, 4294901760
    %v4134 = vsub.f32 %v4132, %v4133
    %v4135 = vand.u32 %v4134, 4294901760
    %4136 = vmatprep.subr.mxu0 %v4135
    %v4137 = vand.u32 %v190, 4294901760
    %v4138 = vsub.f32 %v190, %v4137
    %v4139 = vand.u32 %v4138, 4294901760
    %v4140 = vsub.f32 %v4138, %v4139
    %v4141 = vand.u32 %v4140, 4294901760
    %4142 = vmatpush1.msra.mxu0 %v4141
    %v4143 = vand.u32 %v199, 4294901760
    %v4144 = vsub.f32 %v199, %v4143
    %v4145 = vand.u32 %v4144, 4294901760
    %v4146 = vsub.f32 %v4144, %v4145
    %v4147 = vand.u32 %v4146, 4294901760
    %4148 = vmatprep.subr.mxu0 %v4147
    %v4149 = vand.u32 %v198, 4294901760
    %v4150 = vsub.f32 %v198, %v4149
    %v4151 = vand.u32 %v4150, 4294901760
    %v4152 = vsub.f32 %v4150, %v4151
    %v4153 = vand.u32 %v4152, 4294901760
    %4154 = vmatpush1.msra.mxu0 %v4153
    %v4155 = vand.u32 %v207, 4294901760
    %v4156 = vsub.f32 %v207, %v4155
    %v4157 = vand.u32 %v4156, 4294901760
    %v4158 = vsub.f32 %v4156, %v4157
    %v4159 = vand.u32 %v4158, 4294901760
    %4160 = vmatprep.subr.mxu0 %v4159
    %v4161 = vand.u32 %v206, 4294901760
    %v4162 = vsub.f32 %v206, %v4161
    %v4163 = vand.u32 %v4162, 4294901760
    %v4164 = vsub.f32 %v4162, %v4163
    %v4165 = vand.u32 %v4164, 4294901760
    %4166 = vmatpush1.msra.mxu0 %v4165
    %v4167 = vand.u32 %v215, 4294901760
    %v4168 = vsub.f32 %v215, %v4167
    %v4169 = vand.u32 %v4168, 4294901760
    %v4170 = vsub.f32 %v4168, %v4169
    %v4171 = vand.u32 %v4170, 4294901760
    %4172 = vmatprep.subr.mxu0 %v4171
    %v4173 = vand.u32 %v214, 4294901760
    %v4174 = vsub.f32 %v214, %v4173
    %v4175 = vand.u32 %v4174, 4294901760
    %v4176 = vsub.f32 %v4174, %v4175
    %v4177 = vand.u32 %v4176, 4294901760
    %4178 = vmatpush1.msra.mxu0 %v4177
    %v4179 = vand.u32 %v223, 4294901760
    %v4180 = vsub.f32 %v223, %v4179
    %v4181 = vand.u32 %v4180, 4294901760
    %v4182 = vsub.f32 %v4180, %v4181
    %v4183 = vand.u32 %v4182, 4294901760
    %4184 = vmatprep.subr.mxu0 %v4183
    %v4185 = vand.u32 %v222, 4294901760
    %v4186 = vsub.f32 %v222, %v4185
    %v4187 = vand.u32 %v4186, 4294901760
    %v4188 = vsub.f32 %v4186, %v4187
    %v4189 = vand.u32 %v4188, 4294901760
    %4190 = vmatpush1.msra.mxu0 %v4189
    %v4191 = vand.u32 %v231, 4294901760
    %v4192 = vsub.f32 %v231, %v4191
    %v4193 = vand.u32 %v4192, 4294901760
    %v4194 = vsub.f32 %v4192, %v4193
    %v4195 = vand.u32 %v4194, 4294901760
    %4196 = vmatprep.subr.mxu0 %v4195
    %v4197 = vand.u32 %v230, 4294901760
    %v4198 = vsub.f32 %v230, %v4197
    %v4199 = vand.u32 %v4198, 4294901760
    %v4200 = vsub.f32 %v4198, %v4199
    %v4201 = vand.u32 %v4200, 4294901760
    %4202 = vmatpush1.msra.mxu0 %v4201
    %4203 = vmatprep.subr.mxu0 0.0
    %4204 = vmatpush1.msra.mxu0 0.0
    %4205 = vmatprep.subr.mxu0 0.0
    %4206 = vmatpush1.msra.mxu0 0.0
    %4207 = vmatprep.subr.mxu0 0.0
    %4208 = vmatpush1.msra.mxu0 0.0
    %4209 = vmatprep.subr.mxu0 0.0
    %4210 = vmatpush1.msra.mxu0 0.0
    %4211 = vmatprep.subr.mxu0 0.0
    %4212 = vmatpush1.msra.mxu0 0.0
    %4213 = vmatprep.subr.mxu0 0.0
    %4214 = vmatpush1.msra.mxu0 0.0
    %4215 = vmatprep.subr.mxu0 0.0
    %4216 = vmatpush1.msra.mxu0 0.0
    %4217 = vmatprep.subr.mxu0 0.0
    %4218 = vmatpush1.msra.mxu0 0.0
    %4219 = vmatprep.subr.mxu0 0.0
    %4220 = vmatpush1.msra.mxu0 0.0
    %4221 = vmatprep.subr.mxu0 0.0
    %4222 = vmatpush1.msra.mxu0 0.0
    %4223 = vmatprep.subr.mxu0 0.0
    %4224 = vmatpush1.msra.mxu0 0.0
    %4225 = vmatprep.subr.mxu0 0.0
    %4226 = vmatpush1.msra.mxu0 0.0
    %4227 = vmatprep.subr.mxu0 0.0
    %4228 = vmatpush1.msra.mxu0 0.0
    %4229 = vmatprep.subr.mxu0 0.0
    %4230 = vmatpush1.msra.mxu0 0.0
    %4231 = vmatprep.subr.mxu0 0.0
    %4232 = vmatpush1.msra.mxu0 0.0
    %4233 = vmatprep.subr.mxu0 0.0
    %4234 = vmatpush1.msra.mxu0 0.0
    %4235 = vmatprep.mubr.f32.mxu0 0.0
    %v4236 = vand.u32 %v96, 4294901760
    %4237 = vmatmul.mubr.f32.gmra.mrb[0].mxu0 %v4236
    %v4238 = vpop.f32.mrb[0].mxu0
    %v4239 = vadd.f32 %v3930, %v4238
    %v4240 = vpop.f32.mrb[0].mxu0
    %v4241 = vadd.f32 %v3932, %v4240
    %4242 = vmatprep.mubr.f32.mxu0 0.0
    %v4243 = vand.u32 %v97, 4294901760
    %4244 = vmatmul.mubr.f32.gmra.mrb[0].mxu0 %v4243
    %v4245 = vpop.f32.mrb[0].mxu0
    %v4246 = vadd.f32 %v3941, %v4245
    %v4247 = vpop.f32.mrb[0].mxu0
    %v4248 = vadd.f32 %v3943, %v4247
    %4249 = vmatprep.mubr.f32.mxu0 0.0
    %v4250 = vand.u32 %v98, 4294901760
    %4251 = vmatmul.mubr.f32.gmra.mrb[0].mxu0 %v4250
    %v4252 = vpop.f32.mrb[0].mxu0
    %v4253 = vadd.f32 %v3952, %v4252
    %v4254 = vpop.f32.mrb[0].mxu0
    %v4255 = vadd.f32 %v3954, %v4254
    %4256 = vmatprep.mubr.f32.mxu0 0.0
    %v4257 = vand.u32 %v99, 4294901760
    %4258 = vmatmul.mubr.f32.gmra.mrb[0].mxu0 %v4257
    %v4259 = vpop.f32.mrb[0].mxu0
    %v4260 = vadd.f32 %v3963, %v4259
    %v4261 = vpop.f32.mrb[0].mxu0
    %v4262 = vadd.f32 %v3965, %v4261
    %4263 = vmatprep.mubr.f32.mxu0 0.0
    %v4264 = vand.u32 %v100, 4294901760
    %4265 = vmatmul.mubr.f32.gmra.mrb[0].mxu0 %v4264
    %v4266 = vpop.f32.mrb[0].mxu0
    %v4267 = vadd.f32 %v3974, %v4266
    %v4268 = vpop.f32.mrb[0].mxu0
    %v4269 = vadd.f32 %v3976, %v4268
    %4270 = vmatprep.mubr.f32.mxu0 0.0
    %v4271 = vand.u32 %v101, 4294901760
    %4272 = vmatmul.mubr.f32.gmra.mrb[0].mxu0 %v4271
    %v4273 = vpop.f32.mrb[0].mxu0
    %v4274 = vadd.f32 %v3985, %v4273
    %v4275 = vpop.f32.mrb[0].mxu0
    %v4276 = vadd.f32 %v3987, %v4275
    %4277 = vmatprep.mubr.f32.mxu0 0.0
    %v4278 = vand.u32 %v102, 4294901760
    %4279 = vmatmul.mubr.f32.gmra.mrb[0].mxu0 %v4278
    %v4280 = vpop.f32.mrb[0].mxu0
    %v4281 = vadd.f32 %v3996, %v4280
    %v4282 = vpop.f32.mrb[0].mxu0
    %v4283 = vadd.f32 %v3998, %v4282
    %4284 = vmatprep.mubr.f32.mxu0 0.0
    %v4285 = vand.u32 %v103, 4294901760
    %4286 = vmatmul.mubr.f32.gmra.mrb[0].mxu0 %v4285
    %v4287 = vpop.f32.mrb[0].mxu0
    %v4288 = vadd.f32 %v4007, %v4287
    %v4289 = vpop.f32.mrb[0].mxu0
    %v4290 = vadd.f32 %v4009, %v4289
    %4291 = vdwg.mxu0
    %v4292 = vand.u32 %v111, 4294901760
    %v4293 = vsub.f32 %v111, %v4292
    %4294 = vmatprep.subr.mxu0 %v4293
    %v4295 = vand.u32 %v110, 4294901760
    %v4296 = vsub.f32 %v110, %v4295
    %4297 = vmatpush1.msra.mxu0 %v4296
    %v4298 = vand.u32 %v119, 4294901760
    %v4299 = vsub.f32 %v119, %v4298
    %4300 = vmatprep.subr.mxu0 %v4299
    %v4301 = vand.u32 %v118, 4294901760
    %v4302 = vsub.f32 %v118, %v4301
    %4303 = vmatpush1.msra.mxu0 %v4302
    %v4304 = vand.u32 %v127, 4294901760
    %v4305 = vsub.f32 %v127, %v4304
    %4306 = vmatprep.subr.mxu0 %v4305
    %v4307 = vand.u32 %v126, 4294901760
    %v4308 = vsub.f32 %v126, %v4307
    %4309 = vmatpush1.msra.mxu0 %v4308
    %v4310 = vand.u32 %v135, 4294901760
    %v4311 = vsub.f32 %v135, %v4310
    %4312 = vmatprep.subr.mxu0 %v4311
    %v4313 = vand.u32 %v134, 4294901760
    %v4314 = vsub.f32 %v134, %v4313
    %4315 = vmatpush1.msra.mxu0 %v4314
    %v4316 = vand.u32 %v143, 4294901760
    %v4317 = vsub.f32 %v143, %v4316
    %4318 = vmatprep.subr.mxu0 %v4317
    %v4319 = vand.u32 %v142, 4294901760
    %v4320 = vsub.f32 %v142, %v4319
    %4321 = vmatpush1.msra.mxu0 %v4320
    %v4322 = vand.u32 %v151, 4294901760
    %v4323 = vsub.f32 %v151, %v4322
    %4324 = vmatprep.subr.mxu0 %v4323
    %v4325 = vand.u32 %v150, 4294901760
    %v4326 = vsub.f32 %v150, %v4325
    %4327 = vmatpush1.msra.mxu0 %v4326
    %v4328 = vand.u32 %v159, 4294901760
    %v4329 = vsub.f32 %v159, %v4328
    %4330 = vmatprep.subr.mxu0 %v4329
    %v4331 = vand.u32 %v158, 4294901760
    %v4332 = vsub.f32 %v158, %v4331
    %4333 = vmatpush1.msra.mxu0 %v4332
    %v4334 = vand.u32 %v167, 4294901760
    %v4335 = vsub.f32 %v167, %v4334
    %4336 = vmatprep.subr.mxu0 %v4335
    %v4337 = vand.u32 %v166, 4294901760
    %v4338 = vsub.f32 %v166, %v4337
    %4339 = vmatpush1.msra.mxu0 %v4338
    %v4340 = vand.u32 %v175, 4294901760
    %v4341 = vsub.f32 %v175, %v4340
    %4342 = vmatprep.subr.mxu0 %v4341
    %v4343 = vand.u32 %v174, 4294901760
    %v4344 = vsub.f32 %v174, %v4343
    %4345 = vmatpush1.msra.mxu0 %v4344
    %v4346 = vand.u32 %v183, 4294901760
    %v4347 = vsub.f32 %v183, %v4346
    %4348 = vmatprep.subr.mxu0 %v4347
    %v4349 = vand.u32 %v182, 4294901760
    %v4350 = vsub.f32 %v182, %v4349
    %4351 = vmatpush1.msra.mxu0 %v4350
    %v4352 = vand.u32 %v191, 4294901760
    %v4353 = vsub.f32 %v191, %v4352
    %4354 = vmatprep.subr.mxu0 %v4353
    %v4355 = vand.u32 %v190, 4294901760
    %v4356 = vsub.f32 %v190, %v4355
    %4357 = vmatpush1.msra.mxu0 %v4356
    %v4358 = vand.u32 %v199, 4294901760
    %v4359 = vsub.f32 %v199, %v4358
    %4360 = vmatprep.subr.mxu0 %v4359
    %v4361 = vand.u32 %v198, 4294901760
    %v4362 = vsub.f32 %v198, %v4361
    %4363 = vmatpush1.msra.mxu0 %v4362
    %v4364 = vand.u32 %v207, 4294901760
    %v4365 = vsub.f32 %v207, %v4364
    %4366 = vmatprep.subr.mxu0 %v4365
    %v4367 = vand.u32 %v206, 4294901760
    %v4368 = vsub.f32 %v206, %v4367
    %4369 = vmatpush1.msra.mxu0 %v4368
    %v4370 = vand.u32 %v215, 4294901760
    %v4371 = vsub.f32 %v215, %v4370
    %4372 = vmatprep.subr.mxu0 %v4371
    %v4373 = vand.u32 %v214, 4294901760
    %v4374 = vsub.f32 %v214, %v4373
    %4375 = vmatpush1.msra.mxu0 %v4374
    %v4376 = vand.u32 %v223, 4294901760
    %v4377 = vsub.f32 %v223, %v4376
    %4378 = vmatprep.subr.mxu0 %v4377
    %v4379 = vand.u32 %v222, 4294901760
    %v4380 = vsub.f32 %v222, %v4379
    %4381 = vmatpush1.msra.mxu0 %v4380
    %v4382 = vand.u32 %v231, 4294901760
    %v4383 = vsub.f32 %v231, %v4382
    %4384 = vmatprep.subr.mxu0 %v4383
    %v4385 = vand.u32 %v230, 4294901760
    %v4386 = vsub.f32 %v230, %v4385
    %4387 = vmatpush1.msra.mxu0 %v4386
    %4388 = vmatprep.subr.mxu0 0.0
    %4389 = vmatpush1.msra.mxu0 0.0
    %4390 = vmatprep.subr.mxu0 0.0
    %4391 = vmatpush1.msra.mxu0 0.0
    %4392 = vmatprep.subr.mxu0 0.0
    %4393 = vmatpush1.msra.mxu0 0.0
    %4394 = vmatprep.subr.mxu0 0.0
    %4395 = vmatpush1.msra.mxu0 0.0
    %4396 = vmatprep.subr.mxu0 0.0
    %4397 = vmatpush1.msra.mxu0 0.0
    %4398 = vmatprep.subr.mxu0 0.0
    %4399 = vmatpush1.msra.mxu0 0.0
    %4400 = vmatprep.subr.mxu0 0.0
    %4401 = vmatpush1.msra.mxu0 0.0
    %4402 = vmatprep.subr.mxu0 0.0
    %4403 = vmatpush1.msra.mxu0 0.0
    %4404 = vmatprep.subr.mxu0 0.0
    %4405 = vmatpush1.msra.mxu0 0.0
    %4406 = vmatprep.subr.mxu0 0.0
    %4407 = vmatpush1.msra.mxu0 0.0
    %4408 = vmatprep.subr.mxu0 0.0
    %4409 = vmatpush1.msra.mxu0 0.0
    %4410 = vmatprep.subr.mxu0 0.0
    %4411 = vmatpush1.msra.mxu0 0.0
    %4412 = vmatprep.subr.mxu0 0.0
    %4413 = vmatpush1.msra.mxu0 0.0
    %4414 = vmatprep.subr.mxu0 0.0
    %4415 = vmatpush1.msra.mxu0 0.0
    %4416 = vmatprep.subr.mxu0 0.0
    %4417 = vmatpush1.msra.mxu0 0.0
    %4418 = vmatprep.subr.mxu0 0.0
    %4419 = vmatpush1.msra.mxu0 0.0
    %4420 = vmatprep.mubr.f32.mxu0 0.0
    %v4421 = vand.u32 %v96, 4294901760
    %v4422 = vsub.f32 %v96, %v4421
    %4423 = vmatmul.mubr.f32.gmra.mrb[0].mxu0 %v4422
    %v4424 = vpop.f32.mrb[0].mxu0
    %v4425 = vadd.f32 %v4239, %v4424
    %v4426 = vpop.f32.mrb[0].mxu0
    %v4427 = vadd.f32 %v4241, %v4426
    %4428 = vmatprep.mubr.f32.mxu0 0.0
    %v4429 = vand.u32 %v97, 4294901760
    %v4430 = vsub.f32 %v97, %v4429
    %4431 = vmatmul.mubr.f32.gmra.mrb[0].mxu0 %v4430
    %v4432 = vpop.f32.mrb[0].mxu0
    %v4433 = vadd.f32 %v4246, %v4432
    %v4434 = vpop.f32.mrb[0].mxu0
    %v4435 = vadd.f32 %v4248, %v4434
    %4436 = vmatprep.mubr.f32.mxu0 0.0
    %v4437 = vand.u32 %v98, 4294901760
    %v4438 = vsub.f32 %v98, %v4437
    %4439 = vmatmul.mubr.f32.gmra.mrb[0].mxu0 %v4438
    %v4440 = vpop.f32.mrb[0].mxu0
    %v4441 = vadd.f32 %v4253, %v4440
    %v4442 = vpop.f32.mrb[0].mxu0
    %v4443 = vadd.f32 %v4255, %v4442
    %4444 = vmatprep.mubr.f32.mxu0 0.0
    %v4445 = vand.u32 %v99, 4294901760
    %v4446 = vsub.f32 %v99, %v4445
    %4447 = vmatmul.mubr.f32.gmra.mrb[0].mxu0 %v4446
    %v4448 = vpop.f32.mrb[0].mxu0
    %v4449 = vadd.f32 %v4260, %v4448
    %v4450 = vpop.f32.mrb[0].mxu0
    %v4451 = vadd.f32 %v4262, %v4450
    %4452 = vmatprep.mubr.f32.mxu0 0.0
    %v4453 = vand.u32 %v100, 4294901760
    %v4454 = vsub.f32 %v100, %v4453
    %4455 = vmatmul.mubr.f32.gmra.mrb[0].mxu0 %v4454
    %v4456 = vpop.f32.mrb[0].mxu0
    %v4457 = vadd.f32 %v4267, %v4456
    %v4458 = vpop.f32.mrb[0].mxu0
    %v4459 = vadd.f32 %v4269, %v4458
    %4460 = vmatprep.mubr.f32.mxu0 0.0
    %v4461 = vand.u32 %v101, 4294901760
    %v4462 = vsub.f32 %v101, %v4461
    %4463 = vmatmul.mubr.f32.gmra.mrb[0].mxu0 %v4462
    %v4464 = vpop.f32.mrb[0].mxu0
    %v4465 = vadd.f32 %v4274, %v4464
    %v4466 = vpop.f32.mrb[0].mxu0
    %v4467 = vadd.f32 %v4276, %v4466
    %4468 = vmatprep.mubr.f32.mxu0 0.0
    %v4469 = vand.u32 %v102, 4294901760
    %v4470 = vsub.f32 %v102, %v4469
    %4471 = vmatmul.mubr.f32.gmra.mrb[0].mxu0 %v4470
    %v4472 = vpop.f32.mrb[0].mxu0
    %v4473 = vadd.f32 %v4281, %v4472
    %v4474 = vpop.f32.mrb[0].mxu0
    %v4475 = vadd.f32 %v4283, %v4474
    %4476 = vmatprep.mubr.f32.mxu0 0.0
    %v4477 = vand.u32 %v103, 4294901760
    %v4478 = vsub.f32 %v103, %v4477
    %4479 = vmatmul.mubr.f32.gmra.mrb[0].mxu0 %v4478
    %v4480 = vpop.f32.mrb[0].mxu0
    %v4481 = vadd.f32 %v4288, %v4480
    %v4482 = vpop.f32.mrb[0].mxu0
    %v4483 = vadd.f32 %v4290, %v4482
    %4484 = vdwg.mxu0
    %v4485 = vand.u32 %v111, 4294901760
    %4486 = vmatprep.subr.mxu0 %v4485
    %v4487 = vand.u32 %v110, 4294901760
    %4488 = vmatpush1.msra.mxu0 %v4487
    %v4489 = vand.u32 %v119, 4294901760
    %4490 = vmatprep.subr.mxu0 %v4489
    %v4491 = vand.u32 %v118, 4294901760
    %4492 = vmatpush1.msra.mxu0 %v4491
    %v4493 = vand.u32 %v127, 4294901760
    %4494 = vmatprep.subr.mxu0 %v4493
    %v4495 = vand.u32 %v126, 4294901760
    %4496 = vmatpush1.msra.mxu0 %v4495
    %v4497 = vand.u32 %v135, 4294901760
    %4498 = vmatprep.subr.mxu0 %v4497
    %v4499 = vand.u32 %v134, 4294901760
    %4500 = vmatpush1.msra.mxu0 %v4499
    %v4501 = vand.u32 %v143, 4294901760
    %4502 = vmatprep.subr.mxu0 %v4501
    %v4503 = vand.u32 %v142, 4294901760
    %4504 = vmatpush1.msra.mxu0 %v4503
    %v4505 = vand.u32 %v151, 4294901760
    %4506 = vmatprep.subr.mxu0 %v4505
    %v4507 = vand.u32 %v150, 4294901760
    %4508 = vmatpush1.msra.mxu0 %v4507
    %v4509 = vand.u32 %v159, 4294901760
    %4510 = vmatprep.subr.mxu0 %v4509
    %v4511 = vand.u32 %v158, 4294901760
    %4512 = vmatpush1.msra.mxu0 %v4511
    %v4513 = vand.u32 %v167, 4294901760
    %4514 = vmatprep.subr.mxu0 %v4513
    %v4515 = vand.u32 %v166, 4294901760
    %4516 = vmatpush1.msra.mxu0 %v4515
    %v4517 = vand.u32 %v175, 4294901760
    %4518 = vmatprep.subr.mxu0 %v4517
    %v4519 = vand.u32 %v174, 4294901760
    %4520 = vmatpush1.msra.mxu0 %v4519
    %v4521 = vand.u32 %v183, 4294901760
    %4522 = vmatprep.subr.mxu0 %v4521
    %v4523 = vand.u32 %v182, 4294901760
    %4524 = vmatpush1.msra.mxu0 %v4523
    %v4525 = vand.u32 %v191, 4294901760
    %4526 = vmatprep.subr.mxu0 %v4525
    %v4527 = vand.u32 %v190, 4294901760
    %4528 = vmatpush1.msra.mxu0 %v4527
    %v4529 = vand.u32 %v199, 4294901760
    %4530 = vmatprep.subr.mxu0 %v4529
    %v4531 = vand.u32 %v198, 4294901760
    %4532 = vmatpush1.msra.mxu0 %v4531
    %v4533 = vand.u32 %v207, 4294901760
    %4534 = vmatprep.subr.mxu0 %v4533
    %v4535 = vand.u32 %v206, 4294901760
    %4536 = vmatpush1.msra.mxu0 %v4535
    %v4537 = vand.u32 %v215, 4294901760
    %4538 = vmatprep.subr.mxu0 %v4537
    %v4539 = vand.u32 %v214, 4294901760
    %4540 = vmatpush1.msra.mxu0 %v4539
    %v4541 = vand.u32 %v223, 4294901760
    %4542 = vmatprep.subr.mxu0 %v4541
    %v4543 = vand.u32 %v222, 4294901760
    %4544 = vmatpush1.msra.mxu0 %v4543
    %v4545 = vand.u32 %v231, 4294901760
    %4546 = vmatprep.subr.mxu0 %v4545
    %v4547 = vand.u32 %v230, 4294901760
    %4548 = vmatpush1.msra.mxu0 %v4547
    %4549 = vmatprep.subr.mxu0 0.0
    %4550 = vmatpush1.msra.mxu0 0.0
    %4551 = vmatprep.subr.mxu0 0.0
    %4552 = vmatpush1.msra.mxu0 0.0
    %4553 = vmatprep.subr.mxu0 0.0
    %4554 = vmatpush1.msra.mxu0 0.0
    %4555 = vmatprep.subr.mxu0 0.0
    %4556 = vmatpush1.msra.mxu0 0.0
    %4557 = vmatprep.subr.mxu0 0.0
    %4558 = vmatpush1.msra.mxu0 0.0
    %4559 = vmatprep.subr.mxu0 0.0
    %4560 = vmatpush1.msra.mxu0 0.0
    %4561 = vmatprep.subr.mxu0 0.0
    %4562 = vmatpush1.msra.mxu0 0.0
    %4563 = vmatprep.subr.mxu0 0.0
    %4564 = vmatpush1.msra.mxu0 0.0
    %4565 = vmatprep.subr.mxu0 0.0
    %4566 = vmatpush1.msra.mxu0 0.0
    %4567 = vmatprep.subr.mxu0 0.0
    %4568 = vmatpush1.msra.mxu0 0.0
    %4569 = vmatprep.subr.mxu0 0.0
    %4570 = vmatpush1.msra.mxu0 0.0
    %4571 = vmatprep.subr.mxu0 0.0
    %4572 = vmatpush1.msra.mxu0 0.0
    %4573 = vmatprep.subr.mxu0 0.0
    %4574 = vmatpush1.msra.mxu0 0.0
    %4575 = vmatprep.subr.mxu0 0.0
    %4576 = vmatpush1.msra.mxu0 0.0
    %4577 = vmatprep.subr.mxu0 0.0
    %4578 = vmatpush1.msra.mxu0 0.0
    %4579 = vmatprep.subr.mxu0 0.0
    %4580 = vmatpush1.msra.mxu0 0.0
    %4581 = vmatprep.mubr.f32.mxu0 0.0
    %v4582 = vand.u32 %v96, 4294901760
    %v4583 = vsub.f32 %v96, %v4582
    %v4584 = vand.u32 %v4583, 4294901760
    %4585 = vmatmul.mubr.f32.gmra.mrb[0].mxu0 %v4584
    %v4586 = vpop.f32.mrb[0].mxu0
    %v4587 = vadd.f32 %v4425, %v4586
    %v4588 = vpop.f32.mrb[0].mxu0
    %v4589 = vadd.f32 %v4427, %v4588
    %4590 = vmatprep.mubr.f32.mxu0 0.0
    %v4591 = vand.u32 %v97, 4294901760
    %v4592 = vsub.f32 %v97, %v4591
    %v4593 = vand.u32 %v4592, 4294901760
    %4594 = vmatmul.mubr.f32.gmra.mrb[0].mxu0 %v4593
    %v4595 = vpop.f32.mrb[0].mxu0
    %v4596 = vadd.f32 %v4433, %v4595
    %v4597 = vpop.f32.mrb[0].mxu0
    %v4598 = vadd.f32 %v4435, %v4597
    %4599 = vmatprep.mubr.f32.mxu0 0.0
    %v4600 = vand.u32 %v98, 4294901760
    %v4601 = vsub.f32 %v98, %v4600
    %v4602 = vand.u32 %v4601, 4294901760
    %4603 = vmatmul.mubr.f32.gmra.mrb[0].mxu0 %v4602
    %v4604 = vpop.f32.mrb[0].mxu0
    %v4605 = vadd.f32 %v4441, %v4604
    %v4606 = vpop.f32.mrb[0].mxu0
    %v4607 = vadd.f32 %v4443, %v4606
    %4608 = vmatprep.mubr.f32.mxu0 0.0
    %v4609 = vand.u32 %v99, 4294901760
    %v4610 = vsub.f32 %v99, %v4609
    %v4611 = vand.u32 %v4610, 4294901760
    %4612 = vmatmul.mubr.f32.gmra.mrb[0].mxu0 %v4611
    %v4613 = vpop.f32.mrb[0].mxu0
    %v4614 = vadd.f32 %v4449, %v4613
    %v4615 = vpop.f32.mrb[0].mxu0
    %v4616 = vadd.f32 %v4451, %v4615
    %4617 = vmatprep.mubr.f32.mxu0 0.0
    %v4618 = vand.u32 %v100, 4294901760
    %v4619 = vsub.f32 %v100, %v4618
    %v4620 = vand.u32 %v4619, 4294901760
    %4621 = vmatmul.mubr.f32.gmra.mrb[0].mxu0 %v4620
    %v4622 = vpop.f32.mrb[0].mxu0
    %v4623 = vadd.f32 %v4457, %v4622
    %v4624 = vpop.f32.mrb[0].mxu0
    %v4625 = vadd.f32 %v4459, %v4624
    %4626 = vmatprep.mubr.f32.mxu0 0.0
    %v4627 = vand.u32 %v101, 4294901760
    %v4628 = vsub.f32 %v101, %v4627
    %v4629 = vand.u32 %v4628, 4294901760
    %4630 = vmatmul.mubr.f32.gmra.mrb[0].mxu0 %v4629
    %v4631 = vpop.f32.mrb[0].mxu0
    %v4632 = vadd.f32 %v4465, %v4631
    %v4633 = vpop.f32.mrb[0].mxu0
    %v4634 = vadd.f32 %v4467, %v4633
    %4635 = vmatprep.mubr.f32.mxu0 0.0
    %v4636 = vand.u32 %v102, 4294901760
    %v4637 = vsub.f32 %v102, %v4636
    %v4638 = vand.u32 %v4637, 4294901760
    %4639 = vmatmul.mubr.f32.gmra.mrb[0].mxu0 %v4638
    %v4640 = vpop.f32.mrb[0].mxu0
    %v4641 = vadd.f32 %v4473, %v4640
    %v4642 = vpop.f32.mrb[0].mxu0
    %v4643 = vadd.f32 %v4475, %v4642
    %4644 = vmatprep.mubr.f32.mxu0 0.0
    %v4645 = vand.u32 %v103, 4294901760
    %v4646 = vsub.f32 %v103, %v4645
    %v4647 = vand.u32 %v4646, 4294901760
    %4648 = vmatmul.mubr.f32.gmra.mrb[0].mxu0 %v4647
    %v4649 = vpop.f32.mrb[0].mxu0
    %v4650 = vadd.f32 %v4481, %v4649
    %v4651 = vpop.f32.mrb[0].mxu0
    %v4652 = vadd.f32 %v4483, %v4651
    %4653 = vdwg.mxu0
    %v4654 = vand.u32 %v111, 4294901760
    %v4655 = vsub.f32 %v111, %v4654
    %v4656 = vand.u32 %v4655, 4294901760
    %4657 = vmatprep.subr.mxu0 %v4656
    %v4658 = vand.u32 %v110, 4294901760
    %v4659 = vsub.f32 %v110, %v4658
    %v4660 = vand.u32 %v4659, 4294901760
    %4661 = vmatpush1.msra.mxu0 %v4660
    %v4662 = vand.u32 %v119, 4294901760
    %v4663 = vsub.f32 %v119, %v4662
    %v4664 = vand.u32 %v4663, 4294901760
    %4665 = vmatprep.subr.mxu0 %v4664
    %v4666 = vand.u32 %v118, 4294901760
    %v4667 = vsub.f32 %v118, %v4666
    %v4668 = vand.u32 %v4667, 4294901760
    %4669 = vmatpush1.msra.mxu0 %v4668
    %v4670 = vand.u32 %v127, 4294901760
    %v4671 = vsub.f32 %v127, %v4670
    %v4672 = vand.u32 %v4671, 4294901760
    %4673 = vmatprep.subr.mxu0 %v4672
    %v4674 = vand.u32 %v126, 4294901760
    %v4675 = vsub.f32 %v126, %v4674
    %v4676 = vand.u32 %v4675, 4294901760
    %4677 = vmatpush1.msra.mxu0 %v4676
    %v4678 = vand.u32 %v135, 4294901760
    %v4679 = vsub.f32 %v135, %v4678
    %v4680 = vand.u32 %v4679, 4294901760
    %4681 = vmatprep.subr.mxu0 %v4680
    %v4682 = vand.u32 %v134, 4294901760
    %v4683 = vsub.f32 %v134, %v4682
    %v4684 = vand.u32 %v4683, 4294901760
    %4685 = vmatpush1.msra.mxu0 %v4684
    %v4686 = vand.u32 %v143, 4294901760
    %v4687 = vsub.f32 %v143, %v4686
    %v4688 = vand.u32 %v4687, 4294901760
    %4689 = vmatprep.subr.mxu0 %v4688
    %v4690 = vand.u32 %v142, 4294901760
    %v4691 = vsub.f32 %v142, %v4690
    %v4692 = vand.u32 %v4691, 4294901760
    %4693 = vmatpush1.msra.mxu0 %v4692
    %v4694 = vand.u32 %v151, 4294901760
    %v4695 = vsub.f32 %v151, %v4694
    %v4696 = vand.u32 %v4695, 4294901760
    %4697 = vmatprep.subr.mxu0 %v4696
    %v4698 = vand.u32 %v150, 4294901760
    %v4699 = vsub.f32 %v150, %v4698
    %v4700 = vand.u32 %v4699, 4294901760
    %4701 = vmatpush1.msra.mxu0 %v4700
    %v4702 = vand.u32 %v159, 4294901760
    %v4703 = vsub.f32 %v159, %v4702
    %v4704 = vand.u32 %v4703, 4294901760
    %4705 = vmatprep.subr.mxu0 %v4704
    %v4706 = vand.u32 %v158, 4294901760
    %v4707 = vsub.f32 %v158, %v4706
    %v4708 = vand.u32 %v4707, 4294901760
    %4709 = vmatpush1.msra.mxu0 %v4708
    %v4710 = vand.u32 %v167, 4294901760
    %v4711 = vsub.f32 %v167, %v4710
    %v4712 = vand.u32 %v4711, 4294901760
    %4713 = vmatprep.subr.mxu0 %v4712
    %v4714 = vand.u32 %v166, 4294901760
    %v4715 = vsub.f32 %v166, %v4714
    %v4716 = vand.u32 %v4715, 4294901760
    %4717 = vmatpush1.msra.mxu0 %v4716
    %v4718 = vand.u32 %v175, 4294901760
    %v4719 = vsub.f32 %v175, %v4718
    %v4720 = vand.u32 %v4719, 4294901760
    %4721 = vmatprep.subr.mxu0 %v4720
    %v4722 = vand.u32 %v174, 4294901760
    %v4723 = vsub.f32 %v174, %v4722
    %v4724 = vand.u32 %v4723, 4294901760
    %4725 = vmatpush1.msra.mxu0 %v4724
    %v4726 = vand.u32 %v183, 4294901760
    %v4727 = vsub.f32 %v183, %v4726
    %v4728 = vand.u32 %v4727, 4294901760
    %4729 = vmatprep.subr.mxu0 %v4728
    %v4730 = vand.u32 %v182, 4294901760
    %v4731 = vsub.f32 %v182, %v4730
    %v4732 = vand.u32 %v4731, 4294901760
    %4733 = vmatpush1.msra.mxu0 %v4732
    %v4734 = vand.u32 %v191, 4294901760
    %v4735 = vsub.f32 %v191, %v4734
    %v4736 = vand.u32 %v4735, 4294901760
    %4737 = vmatprep.subr.mxu0 %v4736
    %v4738 = vand.u32 %v190, 4294901760
    %v4739 = vsub.f32 %v190, %v4738
    %v4740 = vand.u32 %v4739, 4294901760
    %4741 = vmatpush1.msra.mxu0 %v4740
    %v4742 = vand.u32 %v199, 4294901760
    %v4743 = vsub.f32 %v199, %v4742
    %v4744 = vand.u32 %v4743, 4294901760
    %4745 = vmatprep.subr.mxu0 %v4744
    %v4746 = vand.u32 %v198, 4294901760
    %v4747 = vsub.f32 %v198, %v4746
    %v4748 = vand.u32 %v4747, 4294901760
    %4749 = vmatpush1.msra.mxu0 %v4748
    %v4750 = vand.u32 %v207, 4294901760
    %v4751 = vsub.f32 %v207, %v4750
    %v4752 = vand.u32 %v4751, 4294901760
    %4753 = vmatprep.subr.mxu0 %v4752
    %v4754 = vand.u32 %v206, 4294901760
    %v4755 = vsub.f32 %v206, %v4754
    %v4756 = vand.u32 %v4755, 4294901760
    %4757 = vmatpush1.msra.mxu0 %v4756
    %v4758 = vand.u32 %v215, 4294901760
    %v4759 = vsub.f32 %v215, %v4758
    %v4760 = vand.u32 %v4759, 4294901760
    %4761 = vmatprep.subr.mxu0 %v4760
    %v4762 = vand.u32 %v214, 4294901760
    %v4763 = vsub.f32 %v214, %v4762
    %v4764 = vand.u32 %v4763, 4294901760
    %4765 = vmatpush1.msra.mxu0 %v4764
    %v4766 = vand.u32 %v223, 4294901760
    %v4767 = vsub.f32 %v223, %v4766
    %v4768 = vand.u32 %v4767, 4294901760
    %4769 = vmatprep.subr.mxu0 %v4768
    %v4770 = vand.u32 %v222, 4294901760
    %v4771 = vsub.f32 %v222, %v4770
    %v4772 = vand.u32 %v4771, 4294901760
    %4773 = vmatpush1.msra.mxu0 %v4772
    %v4774 = vand.u32 %v231, 4294901760
    %v4775 = vsub.f32 %v231, %v4774
    %v4776 = vand.u32 %v4775, 4294901760
    %4777 = vmatprep.subr.mxu0 %v4776
    %v4778 = vand.u32 %v230, 4294901760
    %v4779 = vsub.f32 %v230, %v4778
    %v4780 = vand.u32 %v4779, 4294901760
    %4781 = vmatpush1.msra.mxu0 %v4780
    %4782 = vmatprep.subr.mxu0 0.0
    %4783 = vmatpush1.msra.mxu0 0.0
    %4784 = vmatprep.subr.mxu0 0.0
    %4785 = vmatpush1.msra.mxu0 0.0
    %4786 = vmatprep.subr.mxu0 0.0
    %4787 = vmatpush1.msra.mxu0 0.0
    %4788 = vmatprep.subr.mxu0 0.0
    %4789 = vmatpush1.msra.mxu0 0.0
    %4790 = vmatprep.subr.mxu0 0.0
    %4791 = vmatpush1.msra.mxu0 0.0
    %4792 = vmatprep.subr.mxu0 0.0
    %4793 = vmatpush1.msra.mxu0 0.0
    %4794 = vmatprep.subr.mxu0 0.0
    %4795 = vmatpush1.msra.mxu0 0.0
    %4796 = vmatprep.subr.mxu0 0.0
    %4797 = vmatpush1.msra.mxu0 0.0
    %4798 = vmatprep.subr.mxu0 0.0
    %4799 = vmatpush1.msra.mxu0 0.0
    %4800 = vmatprep.subr.mxu0 0.0
    %4801 = vmatpush1.msra.mxu0 0.0
    %4802 = vmatprep.subr.mxu0 0.0
    %4803 = vmatpush1.msra.mxu0 0.0
    %4804 = vmatprep.subr.mxu0 0.0
    %4805 = vmatpush1.msra.mxu0 0.0
    %4806 = vmatprep.subr.mxu0 0.0
    %4807 = vmatpush1.msra.mxu0 0.0
    %4808 = vmatprep.subr.mxu0 0.0
    %4809 = vmatpush1.msra.mxu0 0.0
    %4810 = vmatprep.subr.mxu0 0.0
    %4811 = vmatpush1.msra.mxu0 0.0
    %4812 = vmatprep.subr.mxu0 0.0
    %4813 = vmatpush1.msra.mxu0 0.0
    %4814 = vmatprep.mubr.f32.mxu0 0.0
    %v4815 = vand.u32 %v96, 4294901760
    %4816 = vmatmul.mubr.f32.gmra.mrb[0].mxu0 %v4815
    %v4817 = vpop.f32.mrb[0].mxu0
    %v4818 = vadd.f32 %v4587, %v4817
    %v4819 = vpop.f32.mrb[0].mxu0
    %v4820 = vadd.f32 %v4589, %v4819
    %4821 = vmatprep.mubr.f32.mxu0 0.0
    %v4822 = vand.u32 %v97, 4294901760
    %4823 = vmatmul.mubr.f32.gmra.mrb[0].mxu0 %v4822
    %v4824 = vpop.f32.mrb[0].mxu0
    %v4825 = vadd.f32 %v4596, %v4824
    %v4826 = vpop.f32.mrb[0].mxu0
    %v4827 = vadd.f32 %v4598, %v4826
    %4828 = vmatprep.mubr.f32.mxu0 0.0
    %v4829 = vand.u32 %v98, 4294901760
    %4830 = vmatmul.mubr.f32.gmra.mrb[0].mxu0 %v4829
    %v4831 = vpop.f32.mrb[0].mxu0
    %v4832 = vadd.f32 %v4605, %v4831
    %v4833 = vpop.f32.mrb[0].mxu0
    %v4834 = vadd.f32 %v4607, %v4833
    %4835 = vmatprep.mubr.f32.mxu0 0.0
    %v4836 = vand.u32 %v99, 4294901760
    %4837 = vmatmul.mubr.f32.gmra.mrb[0].mxu0 %v4836
    %v4838 = vpop.f32.mrb[0].mxu0
    %v4839 = vadd.f32 %v4614, %v4838
    %v4840 = vpop.f32.mrb[0].mxu0
    %v4841 = vadd.f32 %v4616, %v4840
    %4842 = vmatprep.mubr.f32.mxu0 0.0
    %v4843 = vand.u32 %v100, 4294901760
    %4844 = vmatmul.mubr.f32.gmra.mrb[0].mxu0 %v4843
    %v4845 = vpop.f32.mrb[0].mxu0
    %v4846 = vadd.f32 %v4623, %v4845
    %v4847 = vpop.f32.mrb[0].mxu0
    %v4848 = vadd.f32 %v4625, %v4847
    %4849 = vmatprep.mubr.f32.mxu0 0.0
    %v4850 = vand.u32 %v101, 4294901760
    %4851 = vmatmul.mubr.f32.gmra.mrb[0].mxu0 %v4850
    %v4852 = vpop.f32.mrb[0].mxu0
    %v4853 = vadd.f32 %v4632, %v4852
    %v4854 = vpop.f32.mrb[0].mxu0
    %v4855 = vadd.f32 %v4634, %v4854
    %4856 = vmatprep.mubr.f32.mxu0 0.0
    %v4857 = vand.u32 %v102, 4294901760
    %4858 = vmatmul.mubr.f32.gmra.mrb[0].mxu0 %v4857
    %v4859 = vpop.f32.mrb[0].mxu0
    %v4860 = vadd.f32 %v4641, %v4859
    %v4861 = vpop.f32.mrb[0].mxu0
    %v4862 = vadd.f32 %v4643, %v4861
    %4863 = vmatprep.mubr.f32.mxu0 0.0
    %v4864 = vand.u32 %v103, 4294901760
    %4865 = vmatmul.mubr.f32.gmra.mrb[0].mxu0 %v4864
    %v4866 = vpop.f32.mrb[0].mxu0
    %v4867 = vadd.f32 %v4650, %v4866
    %v4868 = vpop.f32.mrb[0].mxu0
    %v4869 = vadd.f32 %v4652, %v4868
    %4870 = vdwg.mxu0
    %v4871 = vand.u32 %v111, 4294901760
    %4872 = vmatprep.subr.mxu0 %v4871
    %v4873 = vand.u32 %v110, 4294901760
    %4874 = vmatpush1.msra.mxu0 %v4873
    %v4875 = vand.u32 %v119, 4294901760
    %4876 = vmatprep.subr.mxu0 %v4875
    %v4877 = vand.u32 %v118, 4294901760
    %4878 = vmatpush1.msra.mxu0 %v4877
    %v4879 = vand.u32 %v127, 4294901760
    %4880 = vmatprep.subr.mxu0 %v4879
    %v4881 = vand.u32 %v126, 4294901760
    %4882 = vmatpush1.msra.mxu0 %v4881
    %v4883 = vand.u32 %v135, 4294901760
    %4884 = vmatprep.subr.mxu0 %v4883
    %v4885 = vand.u32 %v134, 4294901760
    %4886 = vmatpush1.msra.mxu0 %v4885
    %v4887 = vand.u32 %v143, 4294901760
    %4888 = vmatprep.subr.mxu0 %v4887
    %v4889 = vand.u32 %v142, 4294901760
    %4890 = vmatpush1.msra.mxu0 %v4889
    %v4891 = vand.u32 %v151, 4294901760
    %4892 = vmatprep.subr.mxu0 %v4891
    %v4893 = vand.u32 %v150, 4294901760
    %4894 = vmatpush1.msra.mxu0 %v4893
    %v4895 = vand.u32 %v159, 4294901760
    %4896 = vmatprep.subr.mxu0 %v4895
    %v4897 = vand.u32 %v158, 4294901760
    %4898 = vmatpush1.msra.mxu0 %v4897
    %v4899 = vand.u32 %v167, 4294901760
    %4900 = vmatprep.subr.mxu0 %v4899
    %v4901 = vand.u32 %v166, 4294901760
    %4902 = vmatpush1.msra.mxu0 %v4901
    %v4903 = vand.u32 %v175, 4294901760
    %4904 = vmatprep.subr.mxu0 %v4903
    %v4905 = vand.u32 %v174, 4294901760
    %4906 = vmatpush1.msra.mxu0 %v4905
    %v4907 = vand.u32 %v183, 4294901760
    %4908 = vmatprep.subr.mxu0 %v4907
    %v4909 = vand.u32 %v182, 4294901760
    %4910 = vmatpush1.msra.mxu0 %v4909
    %v4911 = vand.u32 %v191, 4294901760
    %4912 = vmatprep.subr.mxu0 %v4911
    %v4913 = vand.u32 %v190, 4294901760
    %4914 = vmatpush1.msra.mxu0 %v4913
    %v4915 = vand.u32 %v199, 4294901760
    %4916 = vmatprep.subr.mxu0 %v4915
    %v4917 = vand.u32 %v198, 4294901760
    %4918 = vmatpush1.msra.mxu0 %v4917
    %v4919 = vand.u32 %v207, 4294901760
    %4920 = vmatprep.subr.mxu0 %v4919
    %v4921 = vand.u32 %v206, 4294901760
    %4922 = vmatpush1.msra.mxu0 %v4921
    %v4923 = vand.u32 %v215, 4294901760
    %4924 = vmatprep.subr.mxu0 %v4923
    %v4925 = vand.u32 %v214, 4294901760
    %4926 = vmatpush1.msra.mxu0 %v4925
    %v4927 = vand.u32 %v223, 4294901760
    %4928 = vmatprep.subr.mxu0 %v4927
    %v4929 = vand.u32 %v222, 4294901760
    %4930 = vmatpush1.msra.mxu0 %v4929
    %v4931 = vand.u32 %v231, 4294901760
    %4932 = vmatprep.subr.mxu0 %v4931
    %v4933 = vand.u32 %v230, 4294901760
    %4934 = vmatpush1.msra.mxu0 %v4933
    %4935 = vmatprep.subr.mxu0 0.0
    %4936 = vmatpush1.msra.mxu0 0.0
    %4937 = vmatprep.subr.mxu0 0.0
    %4938 = vmatpush1.msra.mxu0 0.0
    %4939 = vmatprep.subr.mxu0 0.0
    %4940 = vmatpush1.msra.mxu0 0.0
    %4941 = vmatprep.subr.mxu0 0.0
    %4942 = vmatpush1.msra.mxu0 0.0
    %4943 = vmatprep.subr.mxu0 0.0
    %4944 = vmatpush1.msra.mxu0 0.0
    %4945 = vmatprep.subr.mxu0 0.0
    %4946 = vmatpush1.msra.mxu0 0.0
    %4947 = vmatprep.subr.mxu0 0.0
    %4948 = vmatpush1.msra.mxu0 0.0
    %4949 = vmatprep.subr.mxu0 0.0
    %4950 = vmatpush1.msra.mxu0 0.0
    %4951 = vmatprep.subr.mxu0 0.0
    %4952 = vmatpush1.msra.mxu0 0.0
    %4953 = vmatprep.subr.mxu0 0.0
    %4954 = vmatpush1.msra.mxu0 0.0
    %4955 = vmatprep.subr.mxu0 0.0
    %4956 = vmatpush1.msra.mxu0 0.0
    %4957 = vmatprep.subr.mxu0 0.0
    %4958 = vmatpush1.msra.mxu0 0.0
    %4959 = vmatprep.subr.mxu0 0.0
    %4960 = vmatpush1.msra.mxu0 0.0
    %4961 = vmatprep.subr.mxu0 0.0
    %4962 = vmatpush1.msra.mxu0 0.0
    %4963 = vmatprep.subr.mxu0 0.0
    %4964 = vmatpush1.msra.mxu0 0.0
    %4965 = vmatprep.subr.mxu0 0.0
    %4966 = vmatpush1.msra.mxu0 0.0
    %4967 = vmatprep.mubr.f32.mxu0 0.0
    %v4968 = vand.u32 %v96, 4294901760
    %4969 = vmatmul.mubr.f32.gmra.mrb[0].mxu0 %v4968
    %v4970 = vpop.f32.mrb[0].mxu0
    %v4971 = vadd.f32 %v4818, %v4970
    %v4972 = vpop.f32.mrb[0].mxu0
    %v4973 = vadd.f32 %v4820, %v4972
    %4974 = vmatprep.mubr.f32.mxu0 0.0
    %v4975 = vand.u32 %v97, 4294901760
    %4976 = vmatmul.mubr.f32.gmra.mrb[0].mxu0 %v4975
    %v4977 = vpop.f32.mrb[0].mxu0
    %v4978 = vadd.f32 %v4825, %v4977
    %v4979 = vpop.f32.mrb[0].mxu0
    %v4980 = vadd.f32 %v4827, %v4979
    %4981 = vmatprep.mubr.f32.mxu0 0.0
    %v4982 = vand.u32 %v98, 4294901760
    %4983 = vmatmul.mubr.f32.gmra.mrb[0].mxu0 %v4982
    %v4984 = vpop.f32.mrb[0].mxu0
    %v4985 = vadd.f32 %v4832, %v4984
    %v4986 = vpop.f32.mrb[0].mxu0
    %v4987 = vadd.f32 %v4834, %v4986
    %4988 = vmatprep.mubr.f32.mxu0 0.0
    %v4989 = vand.u32 %v99, 4294901760
    %4990 = vmatmul.mubr.f32.gmra.mrb[0].mxu0 %v4989
    %v4991 = vpop.f32.mrb[0].mxu0
    %v4992 = vadd.f32 %v4839, %v4991
    %v4993 = vpop.f32.mrb[0].mxu0
    %v4994 = vadd.f32 %v4841, %v4993
    %4995 = vmatprep.mubr.f32.mxu0 0.0
    %v4996 = vand.u32 %v100, 4294901760
    %4997 = vmatmul.mubr.f32.gmra.mrb[0].mxu0 %v4996
    %v4998 = vpop.f32.mrb[0].mxu0
    %v4999 = vadd.f32 %v4846, %v4998
    %v5000 = vpop.f32.mrb[0].mxu0
    %v5001 = vadd.f32 %v4848, %v5000
    %5002 = vmatprep.mubr.f32.mxu0 0.0
    %v5003 = vand.u32 %v101, 4294901760
    %5004 = vmatmul.mubr.f32.gmra.mrb[0].mxu0 %v5003
    %v5005 = vpop.f32.mrb[0].mxu0
    %v5006 = vadd.f32 %v4853, %v5005
    %v5007 = vpop.f32.mrb[0].mxu0
    %v5008 = vadd.f32 %v4855, %v5007
    %5009 = vmatprep.mubr.f32.mxu0 0.0
    %v5010 = vand.u32 %v102, 4294901760
    %5011 = vmatmul.mubr.f32.gmra.mrb[0].mxu0 %v5010
    %v5012 = vpop.f32.mrb[0].mxu0
    %v5013 = vadd.f32 %v4860, %v5012
    %v5014 = vpop.f32.mrb[0].mxu0
    %v5015 = vadd.f32 %v4862, %v5014
    %5016 = vmatprep.mubr.f32.mxu0 0.0
    %v5017 = vand.u32 %v103, 4294901760
    %5018 = vmatmul.mubr.f32.gmra.mrb[0].mxu0 %v5017
    %v5019 = vpop.f32.mrb[0].mxu0
    %v5020 = vadd.f32 %v4867, %v5019
    %v5021 = vpop.f32.mrb[0].mxu0
    %v5022 = vadd.f32 %v4869, %v5021
    %5023 = vdwg.mxu0
    %v5024 = vld [vmem:[%s1] sm:$0xff]
    %vm5025 = vcmp.gt.s32.totalorder %v5024, 0
    %vm5026 = vcmp.gt.s32.totalorder %v5024, 1
    %vm5027 = vcmp.gt.s32.totalorder %v5024, 2
    %vm5028 = vcmp.gt.s32.totalorder %v5024, 3
    %vm5029 = vcmp.gt.s32.totalorder %v5024, 4
    %vm5030 = vcmp.gt.s32.totalorder %v5024, 5
    %vm5031 = vcmp.gt.s32.totalorder %v5024, 6
    %vm5032 = vcmp.gt.s32.totalorder %v5024, 7
    %v5033 = vld [vmem:[#allocation5] sm:$0xff]
    %v5034 = vld [vmem:[#allocation5 + $0x8] sm:$0xff]
    %v5035 = vld [vmem:[#allocation5 + $0x10] sm:$0xff]
    %v5036 = vld [vmem:[#allocation5 + $0x18] sm:$0xff]
    %v5037 = vld [vmem:[#allocation5 + $0x20] sm:$0xff]
    %v5038 = vld [vmem:[#allocation5 + $0x28] sm:$0xff]
    %v5039 = vld [vmem:[#allocation5 + $0x30] sm:$0xff]
    %v5040 = vld [vmem:[#allocation5 + $0x38] sm:$0xff]
    %v5041 = vld [vmem:[#allocation5 + $0x40] sm:$0xff]
    %v5042 = vld [vmem:[#allocation5 + $0x48] sm:$0xff]
    %v5043 = vld [vmem:[#allocation5 + $0x50] sm:$0xff]
    %v5044 = vld [vmem:[#allocation5 + $0x58] sm:$0xff]
    %v5045 = vld [vmem:[#allocation5 + $0x60] sm:$0xff]
    %v5046 = vld [vmem:[#allocation5 + $0x68] sm:$0xff]
    %v5047 = vld [vmem:[#allocation5 + $0x70] sm:$0xff]
    %v5048 = vld [vmem:[#allocation5 + $0x78] sm:$0xff]
    %v5049 = vld [vmem:[#allocation5 + $0x80] sm:$0xff]
    %v5050 = vld [vmem:[#allocation5 + $0x88] sm:$0xff]
    %v5051 = vld [vmem:[#allocation5 + $0x90] sm:$0xff]
    %v5052 = vld [vmem:[#allocation5 + $0x98] sm:$0xff]
    %v5053 = vld [vmem:[#allocation5 + $0xa0] sm:$0xff]
    %v5054 = vld [vmem:[#allocation5 + $0xa8] sm:$0xff]
    %v5055 = vld [vmem:[#allocation5 + $0xb0] sm:$0xff]
    %v5056 = vld [vmem:[#allocation5 + $0xb8] sm:$0xff]
    %v5057 = vld [vmem:[#allocation5 + $0xc0] sm:$0xff]
    %v5058 = vld [vmem:[#allocation5 + $0xc8] sm:$0xff]
    %v5059 = vld [vmem:[#allocation5 + $0xd0] sm:$0xff]
    %v5060 = vld [vmem:[#allocation5 + $0xd8] sm:$0xff]
    %v5061 = vld [vmem:[#allocation5 + $0xe0] sm:$0xff]
    %v5062 = vld [vmem:[#allocation5 + $0xe8] sm:$0xff]
    %v5063 = vld [vmem:[#allocation5 + $0xf0] sm:$0xff]
    %v5064 = vld [vmem:[#allocation5 + $0xf8] sm:$0xff]
    %v5065 = vld [vmem:[#allocation5 + $0x100] sm:$0xff]
    %v5066 = vld [vmem:[#allocation5 + $0x108] sm:$0xff]
    %v5067 = vld [vmem:[#allocation5 + $0x110] sm:$0xff]
    %v5068 = vld [vmem:[#allocation5 + $0x118] sm:$0xff]
    %v5069 = vld [vmem:[#allocation5 + $0x120] sm:$0xff]
    %v5070 = vld [vmem:[#allocation5 + $0x128] sm:$0xff]
    %v5071 = vld [vmem:[#allocation5 + $0x130] sm:$0xff]
    %v5072 = vld [vmem:[#allocation5 + $0x138] sm:$0xff]
    %v5073 = vld [vmem:[#allocation5 + $0x140] sm:$0xff]
    %v5074 = vld [vmem:[#allocation5 + $0x148] sm:$0xff]
    %v5075 = vld [vmem:[#allocation5 + $0x150] sm:$0xff]
    %v5076 = vld [vmem:[#allocation5 + $0x158] sm:$0xff]
    %v5077 = vld [vmem:[#allocation5 + $0x160] sm:$0xff]
    %v5078 = vld [vmem:[#allocation5 + $0x168] sm:$0xff]
    %v5079 = vld [vmem:[#allocation5 + $0x170] sm:$0xff]
    %v5080 = vld [vmem:[#allocation5 + $0x178] sm:$0xff]
    %v5081 = vld [vmem:[#allocation5 + $0x180] sm:$0xff]
    %v5082 = vld [vmem:[#allocation5 + $0x188] sm:$0xff]
    %v5083 = vld [vmem:[#allocation5 + $0x190] sm:$0xff]
    %v5084 = vld [vmem:[#allocation5 + $0x198] sm:$0xff]
    %v5085 = vld [vmem:[#allocation5 + $0x1a0] sm:$0xff]
    %v5086 = vld [vmem:[#allocation5 + $0x1a8] sm:$0xff]
    %v5087 = vld [vmem:[#allocation5 + $0x1b0] sm:$0xff]
    %v5088 = vld [vmem:[#allocation5 + $0x1b8] sm:$0xff]
    %v5089 = vld [vmem:[#allocation5 + $0x1c0] sm:$0xff]
    %v5090 = vld [vmem:[#allocation5 + $0x1c8] sm:$0xff]
    %v5091 = vld [vmem:[#allocation5 + $0x1d0] sm:$0xff]
    %v5092 = vld [vmem:[#allocation5 + $0x1d8] sm:$0xff]
    %v5093 = vld [vmem:[#allocation5 + $0x1e0] sm:$0xff]
    %v5094 = vld [vmem:[#allocation5 + $0x1e8] sm:$0xff]
    %v5095 = vld [vmem:[#allocation5 + $0x1f0] sm:$0xff]
    %v5096 = vld [vmem:[#allocation5 + $0x1f8] sm:$0xff]
    %v5097 = vld [vmem:[#allocation5 + $0x200] sm:$0xff]
    %v5098 = vld [vmem:[#allocation5 + $0x208] sm:$0xff]
    %v5099 = vld [vmem:[#allocation5 + $0x210] sm:$0xff]
    %v5100 = vld [vmem:[#allocation5 + $0x218] sm:$0xff]
    %v5101 = vld [vmem:[#allocation5 + $0x220] sm:$0xff]
    %v5102 = vld [vmem:[#allocation5 + $0x228] sm:$0xff]
    %v5103 = vld [vmem:[#allocation5 + $0x230] sm:$0xff]
    %v5104 = vld [vmem:[#allocation5 + $0x238] sm:$0xff]
    %v5105 = vld [vmem:[#allocation5 + $0x240] sm:$0xff]
    %v5106 = vld [vmem:[#allocation5 + $0x248] sm:$0xff]
    %v5107 = vld [vmem:[#allocation5 + $0x250] sm:$0xff]
    %v5108 = vld [vmem:[#allocation5 + $0x258] sm:$0xff]
    %v5109 = vld [vmem:[#allocation5 + $0x260] sm:$0xff]
    %v5110 = vld [vmem:[#allocation5 + $0x268] sm:$0xff]
    %v5111 = vld [vmem:[#allocation5 + $0x270] sm:$0xff]
    %v5112 = vld [vmem:[#allocation5 + $0x278] sm:$0xff]
    %v5113 = vld [vmem:[#allocation5 + $0x280] sm:$0xff]
    %v5114 = vld [vmem:[#allocation5 + $0x288] sm:$0xff]
    %v5115 = vld [vmem:[#allocation5 + $0x290] sm:$0xff]
    %v5116 = vld [vmem:[#allocation5 + $0x298] sm:$0xff]
    %v5117 = vld [vmem:[#allocation5 + $0x2a0] sm:$0xff]
    %v5118 = vld [vmem:[#allocation5 + $0x2a8] sm:$0xff]
    %v5119 = vld [vmem:[#allocation5 + $0x2b0] sm:$0xff]
    %v5120 = vld [vmem:[#allocation5 + $0x2b8] sm:$0xff]
    %v5121 = vld [vmem:[#allocation5 + $0x2c0] sm:$0xff]
    %v5122 = vld [vmem:[#allocation5 + $0x2c8] sm:$0xff]
    %v5123 = vld [vmem:[#allocation5 + $0x2d0] sm:$0xff]
    %v5124 = vld [vmem:[#allocation5 + $0x2d8] sm:$0xff]
    %v5125 = vld [vmem:[#allocation5 + $0x2e0] sm:$0xff]
    %v5126 = vld [vmem:[#allocation5 + $0x2e8] sm:$0xff]
    %v5127 = vld [vmem:[#allocation5 + $0x2f0] sm:$0xff]
    %v5128 = vld [vmem:[#allocation5 + $0x2f8] sm:$0xff]
    %v5129 = vld [vmem:[#allocation5 + $0x300] sm:$0xff]
    %v5130 = vld [vmem:[#allocation5 + $0x308] sm:$0xff]
    %v5131 = vld [vmem:[#allocation5 + $0x310] sm:$0xff]
    %v5132 = vld [vmem:[#allocation5 + $0x318] sm:$0xff]
    %v5133 = vld [vmem:[#allocation5 + $0x320] sm:$0xff]
    %v5134 = vld [vmem:[#allocation5 + $0x328] sm:$0xff]
    %v5135 = vld [vmem:[#allocation5 + $0x330] sm:$0xff]
    %v5136 = vld [vmem:[#allocation5 + $0x338] sm:$0xff]
    %v5137 = vld [vmem:[#allocation5 + $0x340] sm:$0xff]
    %v5138 = vld [vmem:[#allocation5 + $0x348] sm:$0xff]
    %v5139 = vld [vmem:[#allocation5 + $0x350] sm:$0xff]
    %v5140 = vld [vmem:[#allocation5 + $0x358] sm:$0xff]
    %v5141 = vld [vmem:[#allocation5 + $0x360] sm:$0xff]
    %v5142 = vld [vmem:[#allocation5 + $0x368] sm:$0xff]
    %v5143 = vld [vmem:[#allocation5 + $0x370] sm:$0xff]
    %v5144 = vld [vmem:[#allocation5 + $0x378] sm:$0xff]
    %v5145 = vld [vmem:[#allocation5 + $0x380] sm:$0xff]
    %v5146 = vld [vmem:[#allocation5 + $0x388] sm:$0xff]
    %v5147 = vld [vmem:[#allocation5 + $0x390] sm:$0xff]
    %v5148 = vld [vmem:[#allocation5 + $0x398] sm:$0xff]
    %v5149 = vld [vmem:[#allocation5 + $0x3a0] sm:$0xff]
    %v5150 = vld [vmem:[#allocation5 + $0x3a8] sm:$0xff]
    %v5151 = vld [vmem:[#allocation5 + $0x3b0] sm:$0xff]
    %v5152 = vld [vmem:[#allocation5 + $0x3b8] sm:$0xff]
    %v5153 = vld [vmem:[#allocation5 + $0x3c0] sm:$0xff]
    %v5154 = vld [vmem:[#allocation5 + $0x3c8] sm:$0xff]
    %v5155 = vld [vmem:[#allocation5 + $0x3d0] sm:$0xff]
    %v5156 = vld [vmem:[#allocation5 + $0x3d8] sm:$0xff]
    %v5157 = vld [vmem:[#allocation5 + $0x3e0] sm:$0xff]
    %v5158 = vld [vmem:[#allocation5 + $0x3e8] sm:$0xff]
    %v5159 = vld [vmem:[#allocation5 + $0x3f0] sm:$0xff]
    %v5160 = vld [vmem:[#allocation5 + $0x3f8] sm:$0xff]
    %v5161 = vpack.c.bf16 0.0, 0.0
    %v5290 = vunpack.c.l.b16 %v5033
    %v5291 = vunpack.c.h.b16 %v5033
    %v5292 = vunpack.c.l.b16 %v5034
    %v5293 = vunpack.c.h.b16 %v5034
    %v5294 = vunpack.c.l.b16 %v5035
    %v5295 = vunpack.c.h.b16 %v5035
    %v5296 = vunpack.c.l.b16 %v5036
    %v5297 = vunpack.c.h.b16 %v5036
    %v5298 = vunpack.c.l.b16 %v5037
    %v5299 = vunpack.c.h.b16 %v5037
    %v5300 = vunpack.c.l.b16 %v5038
    %v5301 = vunpack.c.h.b16 %v5038
    %v5302 = vunpack.c.l.b16 %v5039
    %v5303 = vunpack.c.h.b16 %v5039
    %v5304 = vunpack.c.l.b16 %v5040
    %v5305 = vunpack.c.h.b16 %v5040
    %v5306 = vunpack.c.l.b16 %v5041
    %v5307 = vunpack.c.h.b16 %v5041
    %v5308 = vunpack.c.l.b16 %v5042
    %v5309 = vunpack.c.h.b16 %v5042
    %v5310 = vunpack.c.l.b16 %v5043
    %v5311 = vunpack.c.h.b16 %v5043
    %v5312 = vunpack.c.l.b16 %v5044
    %v5313 = vunpack.c.h.b16 %v5044
    %v5314 = vunpack.c.l.b16 %v5045
    %v5315 = vunpack.c.h.b16 %v5045
    %v5316 = vunpack.c.l.b16 %v5046
    %v5317 = vunpack.c.h.b16 %v5046
    %v5318 = vunpack.c.l.b16 %v5047
    %v5319 = vunpack.c.h.b16 %v5047
    %v5320 = vunpack.c.l.b16 %v5048
    %v5321 = vunpack.c.h.b16 %v5048
    %v5322 = vunpack.c.l.b16 %v5049
    %v5323 = vunpack.c.h.b16 %v5049
    %v5324 = vunpack.c.l.b16 %v5050
    %v5325 = vunpack.c.h.b16 %v5050
    %v5326 = vunpack.c.l.b16 %v5051
    %v5327 = vunpack.c.h.b16 %v5051
    %v5328 = vunpack.c.l.b16 %v5052
    %v5329 = vunpack.c.h.b16 %v5052
    %v5330 = vunpack.c.l.b16 %v5053
    %v5331 = vunpack.c.h.b16 %v5053
    %v5332 = vunpack.c.l.b16 %v5054
    %v5333 = vunpack.c.h.b16 %v5054
    %v5334 = vunpack.c.l.b16 %v5055
    %v5335 = vunpack.c.h.b16 %v5055
    %v5336 = vunpack.c.l.b16 %v5056
    %v5337 = vunpack.c.h.b16 %v5056
    %v5338 = vunpack.c.l.b16 %v5057
    %v5339 = vunpack.c.h.b16 %v5057
    %v5340 = vunpack.c.l.b16 %v5058
    %v5341 = vunpack.c.h.b16 %v5058
    %v5342 = vunpack.c.l.b16 %v5059
    %v5343 = vunpack.c.h.b16 %v5059
    %v5344 = vunpack.c.l.b16 %v5060
    %v5345 = vunpack.c.h.b16 %v5060
    %v5346 = vunpack.c.l.b16 %v5061
    %v5347 = vunpack.c.h.b16 %v5061
    %v5348 = vunpack.c.l.b16 %v5062
    %v5349 = vunpack.c.h.b16 %v5062
    %v5350 = vunpack.c.l.b16 %v5063
    %v5351 = vunpack.c.h.b16 %v5063
    %v5352 = vunpack.c.l.b16 %v5064
    %v5353 = vunpack.c.h.b16 %v5064
    %v5354 = vunpack.c.l.b16 %v5065
    %v5355 = vunpack.c.h.b16 %v5065
    %v5356 = vunpack.c.l.b16 %v5066
    %v5357 = vunpack.c.h.b16 %v5066
    %v5358 = vunpack.c.l.b16 %v5067
    %v5359 = vunpack.c.h.b16 %v5067
    %v5360 = vunpack.c.l.b16 %v5068
    %v5361 = vunpack.c.h.b16 %v5068
    %v5362 = vunpack.c.l.b16 %v5069
    %v5363 = vunpack.c.h.b16 %v5069
    %v5364 = vunpack.c.l.b16 %v5070
    %v5365 = vunpack.c.h.b16 %v5070
    %v5366 = vunpack.c.l.b16 %v5071
    %v5367 = vunpack.c.h.b16 %v5071
    %v5368 = vunpack.c.l.b16 %v5072
    %v5369 = vunpack.c.h.b16 %v5072
    %v5370 = vunpack.c.l.b16 %v5073
    %v5371 = vunpack.c.h.b16 %v5073
    %v5372 = vunpack.c.l.b16 %v5074
    %v5373 = vunpack.c.h.b16 %v5074
    %v5374 = vunpack.c.l.b16 %v5075
    %v5375 = vunpack.c.h.b16 %v5075
    %v5376 = vunpack.c.l.b16 %v5076
    %v5377 = vunpack.c.h.b16 %v5076
    %v5378 = vunpack.c.l.b16 %v5077
    %v5379 = vunpack.c.h.b16 %v5077
    %v5380 = vunpack.c.l.b16 %v5078
    %v5381 = vunpack.c.h.b16 %v5078
    %v5382 = vunpack.c.l.b16 %v5079
    %v5383 = vunpack.c.h.b16 %v5079
    %v5384 = vunpack.c.l.b16 %v5080
    %v5385 = vunpack.c.h.b16 %v5080
    %v5386 = vunpack.c.l.b16 %v5081
    %v5387 = vunpack.c.h.b16 %v5081
    %v5388 = vunpack.c.l.b16 %v5082
    %v5389 = vunpack.c.h.b16 %v5082
    %v5390 = vunpack.c.l.b16 %v5083
    %v5391 = vunpack.c.h.b16 %v5083
    %v5392 = vunpack.c.l.b16 %v5084
    %v5393 = vunpack.c.h.b16 %v5084
    %v5394 = vunpack.c.l.b16 %v5085
    %v5395 = vunpack.c.h.b16 %v5085
    %v5396 = vunpack.c.l.b16 %v5086
    %v5397 = vunpack.c.h.b16 %v5086
    %v5398 = vunpack.c.l.b16 %v5087
    %v5399 = vunpack.c.h.b16 %v5087
    %v5400 = vunpack.c.l.b16 %v5088
    %v5401 = vunpack.c.h.b16 %v5088
    %v5402 = vunpack.c.l.b16 %v5089
    %v5403 = vunpack.c.h.b16 %v5089
    %v5404 = vunpack.c.l.b16 %v5090
    %v5405 = vunpack.c.h.b16 %v5090
    %v5406 = vunpack.c.l.b16 %v5091
    %v5407 = vunpack.c.h.b16 %v5091
    %v5408 = vunpack.c.l.b16 %v5092
    %v5409 = vunpack.c.h.b16 %v5092
    %v5410 = vunpack.c.l.b16 %v5093
    %v5411 = vunpack.c.h.b16 %v5093
    %v5412 = vunpack.c.l.b16 %v5094
    %v5413 = vunpack.c.h.b16 %v5094
    %v5414 = vunpack.c.l.b16 %v5095
    %v5415 = vunpack.c.h.b16 %v5095
    %v5416 = vunpack.c.l.b16 %v5096
    %v5417 = vunpack.c.h.b16 %v5096
    %v5418 = vunpack.c.l.b16 %v5097
    %v5419 = vunpack.c.h.b16 %v5097
    %v5420 = vunpack.c.l.b16 %v5098
    %v5421 = vunpack.c.h.b16 %v5098
    %v5422 = vunpack.c.l.b16 %v5099
    %v5423 = vunpack.c.h.b16 %v5099
    %v5424 = vunpack.c.l.b16 %v5100
    %v5425 = vunpack.c.h.b16 %v5100
    %v5426 = vunpack.c.l.b16 %v5101
    %v5427 = vunpack.c.h.b16 %v5101
    %v5428 = vunpack.c.l.b16 %v5102
    %v5429 = vunpack.c.h.b16 %v5102
    %v5430 = vunpack.c.l.b16 %v5103
    %v5431 = vunpack.c.h.b16 %v5103
    %v5432 = vunpack.c.l.b16 %v5104
    %v5433 = vunpack.c.h.b16 %v5104
    %v5434 = vunpack.c.l.b16 %v5105
    %v5435 = vunpack.c.h.b16 %v5105
    %v5436 = vunpack.c.l.b16 %v5106
    %v5437 = vunpack.c.h.b16 %v5106
    %v5438 = vunpack.c.l.b16 %v5107
    %v5439 = vunpack.c.h.b16 %v5107
    %v5440 = vunpack.c.l.b16 %v5108
    %v5441 = vunpack.c.h.b16 %v5108
    %v5442 = vunpack.c.l.b16 %v5109
    %v5443 = vunpack.c.h.b16 %v5109
    %v5444 = vunpack.c.l.b16 %v5110
    %v5445 = vunpack.c.h.b16 %v5110
    %v5446 = vunpack.c.l.b16 %v5111
    %v5447 = vunpack.c.h.b16 %v5111
    %v5448 = vunpack.c.l.b16 %v5112
    %v5449 = vunpack.c.h.b16 %v5112
    %v5450 = vunpack.c.l.b16 %v5113
    %v5451 = vunpack.c.h.b16 %v5113
    %v5452 = vunpack.c.l.b16 %v5114
    %v5453 = vunpack.c.h.b16 %v5114
    %v5454 = vunpack.c.l.b16 %v5115
    %v5455 = vunpack.c.h.b16 %v5115
    %v5456 = vunpack.c.l.b16 %v5116
    %v5457 = vunpack.c.h.b16 %v5116
    %v5458 = vunpack.c.l.b16 %v5117
    %v5459 = vunpack.c.h.b16 %v5117
    %v5460 = vunpack.c.l.b16 %v5118
    %v5461 = vunpack.c.h.b16 %v5118
    %v5462 = vunpack.c.l.b16 %v5119
    %v5463 = vunpack.c.h.b16 %v5119
    %v5464 = vunpack.c.l.b16 %v5120
    %v5465 = vunpack.c.h.b16 %v5120
    %v5466 = vunpack.c.l.b16 %v5121
    %v5467 = vunpack.c.h.b16 %v5121
    %v5468 = vunpack.c.l.b16 %v5122
    %v5469 = vunpack.c.h.b16 %v5122
    %v5470 = vunpack.c.l.b16 %v5123
    %v5471 = vunpack.c.h.b16 %v5123
    %v5472 = vunpack.c.l.b16 %v5124
    %v5473 = vunpack.c.h.b16 %v5124
    %v5474 = vunpack.c.l.b16 %v5125
    %v5475 = vunpack.c.h.b16 %v5125
    %v5476 = vunpack.c.l.b16 %v5126
    %v5477 = vunpack.c.h.b16 %v5126
    %v5478 = vunpack.c.l.b16 %v5127
    %v5479 = vunpack.c.h.b16 %v5127
    %v5480 = vunpack.c.l.b16 %v5128
    %v5481 = vunpack.c.h.b16 %v5128
    %v5482 = vunpack.c.l.b16 %v5129
    %v5483 = vunpack.c.h.b16 %v5129
    %v5484 = vunpack.c.l.b16 %v5130
    %v5485 = vunpack.c.h.b16 %v5130
    %v5486 = vunpack.c.l.b16 %v5131
    %v5487 = vunpack.c.h.b16 %v5131
    %v5488 = vunpack.c.l.b16 %v5132
    %v5489 = vunpack.c.h.b16 %v5132
    %v5490 = vunpack.c.l.b16 %v5133
    %v5491 = vunpack.c.h.b16 %v5133
    %v5492 = vunpack.c.l.b16 %v5134
    %v5493 = vunpack.c.h.b16 %v5134
    %v5494 = vunpack.c.l.b16 %v5135
    %v5495 = vunpack.c.h.b16 %v5135
    %v5496 = vunpack.c.l.b16 %v5136
    %v5497 = vunpack.c.h.b16 %v5136
    %v5498 = vunpack.c.l.b16 %v5137
    %v5499 = vunpack.c.h.b16 %v5137
    %v5500 = vunpack.c.l.b16 %v5138
    %v5501 = vunpack.c.h.b16 %v5138
    %v5502 = vunpack.c.l.b16 %v5139
    %v5503 = vunpack.c.h.b16 %v5139
    %v5504 = vunpack.c.l.b16 %v5140
    %v5505 = vunpack.c.h.b16 %v5140
    %v5506 = vunpack.c.l.b16 %v5141
    %v5507 = vunpack.c.h.b16 %v5141
    %v5508 = vunpack.c.l.b16 %v5142
    %v5509 = vunpack.c.h.b16 %v5142
    %v5510 = vunpack.c.l.b16 %v5143
    %v5511 = vunpack.c.h.b16 %v5143
    %v5512 = vunpack.c.l.b16 %v5144
    %v5513 = vunpack.c.h.b16 %v5144
    %v5514 = vunpack.c.l.b16 %v5145
    %v5515 = vunpack.c.h.b16 %v5145
    %v5516 = vunpack.c.l.b16 %v5146
    %v5517 = vunpack.c.h.b16 %v5146
    %v5518 = vunpack.c.l.b16 %v5147
    %v5519 = vunpack.c.h.b16 %v5147
    %v5520 = vunpack.c.l.b16 %v5148
    %v5521 = vunpack.c.h.b16 %v5148
    %v5522 = vunpack.c.l.b16 %v5149
    %v5523 = vunpack.c.h.b16 %v5149
    %v5524 = vunpack.c.l.b16 %v5150
    %v5525 = vunpack.c.h.b16 %v5150
    %v5526 = vunpack.c.l.b16 %v5151
    %v5527 = vunpack.c.h.b16 %v5151
    %v5528 = vunpack.c.l.b16 %v5152
    %v5529 = vunpack.c.h.b16 %v5152
    %v5530 = vunpack.c.l.b16 %v5153
    %v5531 = vunpack.c.h.b16 %v5153
    %v5532 = vunpack.c.l.b16 %v5154
    %v5533 = vunpack.c.h.b16 %v5154
    %v5534 = vunpack.c.l.b16 %v5155
    %v5535 = vunpack.c.h.b16 %v5155
    %v5536 = vunpack.c.l.b16 %v5156
    %v5537 = vunpack.c.h.b16 %v5156
    %v5538 = vunpack.c.l.b16 %v5157
    %v5539 = vunpack.c.h.b16 %v5157
    %v5540 = vunpack.c.l.b16 %v5158
    %v5541 = vunpack.c.h.b16 %v5158
    %v5542 = vunpack.c.l.b16 %v5159
    %v5543 = vunpack.c.h.b16 %v5159
    %v5544 = vunpack.c.l.b16 %v5160
    %v5545 = vunpack.c.h.b16 %v5160
    %v5546 = vpack.c.b16 %v5298, %v5290
    %v5547 = vpack.c.b16 %v5299, %v5291
    %v5548 = vpack.c.b16 %v5300, %v5292
    %v5549 = vpack.c.b16 %v5301, %v5293
    %v5550 = vpack.c.b16 %v5302, %v5294
    %v5551 = vpack.c.b16 %v5303, %v5295
    %v5552 = vpack.c.b16 %v5304, %v5296
    %v5553 = vpack.c.b16 %v5305, %v5297
    %v5554 = vpack.c.b16 %v5314, %v5306
    %v5555 = vpack.c.b16 %v5315, %v5307
    %v5556 = vpack.c.b16 %v5316, %v5308
    %v5557 = vpack.c.b16 %v5317, %v5309
    %v5558 = vpack.c.b16 %v5318, %v5310
    %v5559 = vpack.c.b16 %v5319, %v5311
    %v5560 = vpack.c.b16 %v5320, %v5312
    %v5561 = vpack.c.b16 %v5321, %v5313
    %v5562 = vpack.c.b16 %v5330, %v5322
    %v5563 = vpack.c.b16 %v5331, %v5323
    %v5564 = vpack.c.b16 %v5332, %v5324
    %v5565 = vpack.c.b16 %v5333, %v5325
    %v5566 = vpack.c.b16 %v5334, %v5326
    %v5567 = vpack.c.b16 %v5335, %v5327
    %v5568 = vpack.c.b16 %v5336, %v5328
    %v5569 = vpack.c.b16 %v5337, %v5329
    %v5570 = vpack.c.b16 %v5346, %v5338
    %v5571 = vpack.c.b16 %v5347, %v5339
    %v5572 = vpack.c.b16 %v5348, %v5340
    %v5573 = vpack.c.b16 %v5349, %v5341
    %v5574 = vpack.c.b16 %v5350, %v5342
    %v5575 = vpack.c.b16 %v5351, %v5343
    %v5576 = vpack.c.b16 %v5352, %v5344
    %v5577 = vpack.c.b16 %v5353, %v5345
    %v5578 = vpack.c.b16 %v5362, %v5354
    %v5579 = vpack.c.b16 %v5363, %v5355
    %v5580 = vpack.c.b16 %v5364, %v5356
    %v5581 = vpack.c.b16 %v5365, %v5357
    %v5582 = vpack.c.b16 %v5366, %v5358
    %v5583 = vpack.c.b16 %v5367, %v5359
    %v5584 = vpack.c.b16 %v5368, %v5360
    %v5585 = vpack.c.b16 %v5369, %v5361
    %v5586 = vpack.c.b16 %v5378, %v5370
    %v5587 = vpack.c.b16 %v5379, %v5371
    %v5588 = vpack.c.b16 %v5380, %v5372
    %v5589 = vpack.c.b16 %v5381, %v5373
    %v5590 = vpack.c.b16 %v5382, %v5374
    %v5591 = vpack.c.b16 %v5383, %v5375
    %v5592 = vpack.c.b16 %v5384, %v5376
    %v5593 = vpack.c.b16 %v5385, %v5377
    %v5594 = vpack.c.b16 %v5394, %v5386
    %v5595 = vpack.c.b16 %v5395, %v5387
    %v5596 = vpack.c.b16 %v5396, %v5388
    %v5597 = vpack.c.b16 %v5397, %v5389
    %v5598 = vpack.c.b16 %v5398, %v5390
    %v5599 = vpack.c.b16 %v5399, %v5391
    %v5600 = vpack.c.b16 %v5400, %v5392
    %v5601 = vpack.c.b16 %v5401, %v5393
    %v5602 = vpack.c.b16 %v5410, %v5402
    %v5603 = vpack.c.b16 %v5411, %v5403
    %v5604 = vpack.c.b16 %v5412, %v5404
    %v5605 = vpack.c.b16 %v5413, %v5405
    %v5606 = vpack.c.b16 %v5414, %v5406
    %v5607 = vpack.c.b16 %v5415, %v5407
    %v5608 = vpack.c.b16 %v5416, %v5408
    %v5609 = vpack.c.b16 %v5417, %v5409
    %v5610 = vpack.c.b16 %v5426, %v5418
    %v5611 = vpack.c.b16 %v5427, %v5419
    %v5612 = vpack.c.b16 %v5428, %v5420
    %v5613 = vpack.c.b16 %v5429, %v5421
    %v5614 = vpack.c.b16 %v5430, %v5422
    %v5615 = vpack.c.b16 %v5431, %v5423
    %v5616 = vpack.c.b16 %v5432, %v5424
    %v5617 = vpack.c.b16 %v5433, %v5425
    %v5618 = vpack.c.b16 %v5442, %v5434
    %v5619 = vpack.c.b16 %v5443, %v5435
    %v5620 = vpack.c.b16 %v5444, %v5436
    %v5621 = vpack.c.b16 %v5445, %v5437
    %v5622 = vpack.c.b16 %v5446, %v5438
    %v5623 = vpack.c.b16 %v5447, %v5439
    %v5624 = vpack.c.b16 %v5448, %v5440
    %v5625 = vpack.c.b16 %v5449, %v5441
    %v5626 = vpack.c.b16 %v5458, %v5450
    %v5627 = vpack.c.b16 %v5459, %v5451
    %v5628 = vpack.c.b16 %v5460, %v5452
    %v5629 = vpack.c.b16 %v5461, %v5453
    %v5630 = vpack.c.b16 %v5462, %v5454
    %v5631 = vpack.c.b16 %v5463, %v5455
    %v5632 = vpack.c.b16 %v5464, %v5456
    %v5633 = vpack.c.b16 %v5465, %v5457
    %v5634 = vpack.c.b16 %v5474, %v5466
    %v5635 = vpack.c.b16 %v5475, %v5467
    %v5636 = vpack.c.b16 %v5476, %v5468
    %v5637 = vpack.c.b16 %v5477, %v5469
    %v5638 = vpack.c.b16 %v5478, %v5470
    %v5639 = vpack.c.b16 %v5479, %v5471
    %v5640 = vpack.c.b16 %v5480, %v5472
    %v5641 = vpack.c.b16 %v5481, %v5473
    %v5642 = vpack.c.b16 %v5490, %v5482
    %v5643 = vpack.c.b16 %v5491, %v5483
    %v5644 = vpack.c.b16 %v5492, %v5484
    %v5645 = vpack.c.b16 %v5493, %v5485
    %v5646 = vpack.c.b16 %v5494, %v5486
    %v5647 = vpack.c.b16 %v5495, %v5487
    %v5648 = vpack.c.b16 %v5496, %v5488
    %v5649 = vpack.c.b16 %v5497, %v5489
    %v5650 = vpack.c.b16 %v5506, %v5498
    %v5651 = vpack.c.b16 %v5507, %v5499
    %v5652 = vpack.c.b16 %v5508, %v5500
    %v5653 = vpack.c.b16 %v5509, %v5501
    %v5654 = vpack.c.b16 %v5510, %v5502
    %v5655 = vpack.c.b16 %v5511, %v5503
    %v5656 = vpack.c.b16 %v5512, %v5504
    %v5657 = vpack.c.b16 %v5513, %v5505
    %v5658 = vpack.c.b16 %v5522, %v5514
    %v5659 = vpack.c.b16 %v5523, %v5515
    %v5660 = vpack.c.b16 %v5524, %v5516
    %v5661 = vpack.c.b16 %v5525, %v5517
    %v5662 = vpack.c.b16 %v5526, %v5518
    %v5663 = vpack.c.b16 %v5527, %v5519
    %v5664 = vpack.c.b16 %v5528, %v5520
    %v5665 = vpack.c.b16 %v5529, %v5521
    %v5666 = vpack.c.b16 %v5538, %v5530
    %v5667 = vpack.c.b16 %v5539, %v5531
    %v5668 = vpack.c.b16 %v5540, %v5532
    %v5669 = vpack.c.b16 %v5541, %v5533
    %v5670 = vpack.c.b16 %v5542, %v5534
    %v5671 = vpack.c.b16 %v5543, %v5535
    %v5672 = vpack.c.b16 %v5544, %v5536
    %v5673 = vpack.c.b16 %v5545, %v5537
    %5802 = vmatprep.subr.bf16.mxu0 %v5547
    %5803 = vmatpush1.bf16.msra.mxu0 %v5546
    %5804 = vmatprep.subr.bf16.mxu0 %v5555
    %5805 = vmatpush1.bf16.msra.mxu0 %v5554
    %5806 = vmatprep.subr.bf16.mxu0 %v5563
    %5807 = vmatpush1.bf16.msra.mxu0 %v5562
    %5808 = vmatprep.subr.bf16.mxu0 %v5571
    %5809 = vmatpush1.bf16.msra.mxu0 %v5570
    %5810 = vmatprep.subr.bf16.mxu0 %v5579
    %5811 = vmatpush1.bf16.msra.mxu0 %v5578
    %5812 = vmatprep.subr.bf16.mxu0 %v5587
    %5813 = vmatpush1.bf16.msra.mxu0 %v5586
    %5814 = vmatprep.subr.bf16.mxu0 %v5595
    %5815 = vmatpush1.bf16.msra.mxu0 %v5594
    %5816 = vmatprep.subr.bf16.mxu0 %v5603
    %5817 = vmatpush1.bf16.msra.mxu0 %v5602
    %5818 = vmatprep.subr.bf16.mxu0 %v5611
    %5819 = vmatpush1.bf16.msra.mxu0 %v5610
    %5820 = vmatprep.subr.bf16.mxu0 %v5619
    %5821 = vmatpush1.bf16.msra.mxu0 %v5618
    %5822 = vmatprep.subr.bf16.mxu0 %v5627
    %5823 = vmatpush1.bf16.msra.mxu0 %v5626
    %5824 = vmatprep.subr.bf16.mxu0 %v5635
    %5825 = vmatpush1.bf16.msra.mxu0 %v5634
    %5826 = vmatprep.subr.bf16.mxu0 %v5643
    %5827 = vmatpush1.bf16.msra.mxu0 %v5642
    %5828 = vmatprep.subr.bf16.mxu0 %v5651
    %5829 = vmatpush1.bf16.msra.mxu0 %v5650
    %5830 = vmatprep.subr.bf16.mxu0 %v5659
    %5831 = vmatpush1.bf16.msra.mxu0 %v5658
    %5832 = vmatprep.subr.bf16.mxu0 %v5667
    %5833 = vmatpush1.bf16.msra.mxu0 %v5666
    %5834 = vmatprep.mubr.bf16.mxu0 %v5161
    %5835 = vmatmul.mubr.bf16.gmra.mrb[0].mxu0 %v5161
    %v5836 = vpop.f32.mrb[0].mxu0
    %v5837 = vadd.f32 0.0, %v5836
    %v5838 = vpop.f32.mrb[0].mxu0
    %v5839 = vadd.f32 0.0, %v5838
    %v5840 = vpop.f32.mrb[0].mxu0
    %v5841 = vpop.f32.mrb[0].mxu0
    %5842 = vdwg.mxu0
    %5843 = vmatprep.subr.bf16.mxu0 %v5549
    %5844 = vmatpush1.bf16.msra.mxu0 %v5548
    %5845 = vmatprep.subr.bf16.mxu0 %v5557
    %5846 = vmatpush1.bf16.msra.mxu0 %v5556
    %5847 = vmatprep.subr.bf16.mxu0 %v5565
    %5848 = vmatpush1.bf16.msra.mxu0 %v5564
    %5849 = vmatprep.subr.bf16.mxu0 %v5573
    %5850 = vmatpush1.bf16.msra.mxu0 %v5572
    %5851 = vmatprep.subr.bf16.mxu0 %v5581
    %5852 = vmatpush1.bf16.msra.mxu0 %v5580
    %5853 = vmatprep.subr.bf16.mxu0 %v5589
    %5854 = vmatpush1.bf16.msra.mxu0 %v5588
    %5855 = vmatprep.subr.bf16.mxu0 %v5597
    %5856 = vmatpush1.bf16.msra.mxu0 %v5596
    %5857 = vmatprep.subr.bf16.mxu0 %v5605
    %5858 = vmatpush1.bf16.msra.mxu0 %v5604
    %5859 = vmatprep.subr.bf16.mxu0 %v5613
    %5860 = vmatpush1.bf16.msra.mxu0 %v5612
    %5861 = vmatprep.subr.bf16.mxu0 %v5621
    %5862 = vmatpush1.bf16.msra.mxu0 %v5620
    %5863 = vmatprep.subr.bf16.mxu0 %v5629
    %5864 = vmatpush1.bf16.msra.mxu0 %v5628
    %5865 = vmatprep.subr.bf16.mxu0 %v5637
    %5866 = vmatpush1.bf16.msra.mxu0 %v5636
    %5867 = vmatprep.subr.bf16.mxu0 %v5645
    %5868 = vmatpush1.bf16.msra.mxu0 %v5644
    %5869 = vmatprep.subr.bf16.mxu0 %v5653
    %5870 = vmatpush1.bf16.msra.mxu0 %v5652
    %5871 = vmatprep.subr.bf16.mxu0 %v5661
    %5872 = vmatpush1.bf16.msra.mxu0 %v5660
    %5873 = vmatprep.subr.bf16.mxu0 %v5669
    %5874 = vmatpush1.bf16.msra.mxu0 %v5668
    %5875 = vmatprep.mubr.bf16.mxu0 %v5161
    %5876 = vmatmul.mubr.bf16.gmra.mrb[0].mxu0 %v5161
    %v5877 = vpop.f32.mrb[0].mxu0
    %v5878 = vadd.f32 0.0, %v5877
    %v5879 = vpop.f32.mrb[0].mxu0
    %v5880 = vadd.f32 0.0, %v5879
    %v5881 = vpop.f32.mrb[0].mxu0
    %v5882 = vpop.f32.mrb[0].mxu0
    %5883 = vdwg.mxu0
    %5884 = vmatprep.subr.bf16.mxu0 %v5551
    %5885 = vmatpush1.bf16.msra.mxu0 %v5550
    %5886 = vmatprep.subr.bf16.mxu0 %v5559
    %5887 = vmatpush1.bf16.msra.mxu0 %v5558
    %5888 = vmatprep.subr.bf16.mxu0 %v5567
    %5889 = vmatpush1.bf16.msra.mxu0 %v5566
    %5890 = vmatprep.subr.bf16.mxu0 %v5575
    %5891 = vmatpush1.bf16.msra.mxu0 %v5574
    %5892 = vmatprep.subr.bf16.mxu0 %v5583
    %5893 = vmatpush1.bf16.msra.mxu0 %v5582
    %5894 = vmatprep.subr.bf16.mxu0 %v5591
    %5895 = vmatpush1.bf16.msra.mxu0 %v5590
    %5896 = vmatprep.subr.bf16.mxu0 %v5599
    %5897 = vmatpush1.bf16.msra.mxu0 %v5598
    %5898 = vmatprep.subr.bf16.mxu0 %v5607
    %5899 = vmatpush1.bf16.msra.mxu0 %v5606
    %5900 = vmatprep.subr.bf16.mxu0 %v5615
    %5901 = vmatpush1.bf16.msra.mxu0 %v5614
    %5902 = vmatprep.subr.bf16.mxu0 %v5623
    %5903 = vmatpush1.bf16.msra.mxu0 %v5622
    %5904 = vmatprep.subr.bf16.mxu0 %v5631
    %5905 = vmatpush1.bf16.msra.mxu0 %v5630
    %5906 = vmatprep.subr.bf16.mxu0 %v5639
    %5907 = vmatpush1.bf16.msra.mxu0 %v5638
    %5908 = vmatprep.subr.bf16.mxu0 %v5647
    %5909 = vmatpush1.bf16.msra.mxu0 %v5646
    %5910 = vmatprep.subr.bf16.mxu0 %v5655
    %5911 = vmatpush1.bf16.msra.mxu0 %v5654
    %5912 = vmatprep.subr.bf16.mxu0 %v5663
    %5913 = vmatpush1.bf16.msra.mxu0 %v5662
    %5914 = vmatprep.subr.bf16.mxu0 %v5671
    %5915 = vmatpush1.bf16.msra.mxu0 %v5670
    %5916 = vmatprep.mubr.bf16.mxu0 %v5161
    %5917 = vmatmul.mubr.bf16.gmra.mrb[0].mxu0 %v5161
    %v5918 = vpop.f32.mrb[0].mxu0
    %v5919 = vadd.f32 0.0, %v5918
    %v5920 = vpop.f32.mrb[0].mxu0
    %v5921 = vadd.f32 0.0, %v5920
    %v5922 = vpop.f32.mrb[0].mxu0
    %v5923 = vpop.f32.mrb[0].mxu0
    %5924 = vdwg.mxu0
    %5925 = vmatprep.subr.bf16.mxu0 %v5553
    %5926 = vmatpush1.bf16.msra.mxu0 %v5552
    %5927 = vmatprep.subr.bf16.mxu0 %v5561
    %5928 = vmatpush1.bf16.msra.mxu0 %v5560
    %5929 = vmatprep.subr.bf16.mxu0 %v5569
    %5930 = vmatpush1.bf16.msra.mxu0 %v5568
    %5931 = vmatprep.subr.bf16.mxu0 %v5577
    %5932 = vmatpush1.bf16.msra.mxu0 %v5576
    %5933 = vmatprep.subr.bf16.mxu0 %v5585
    %5934 = vmatpush1.bf16.msra.mxu0 %v5584
    %5935 = vmatprep.subr.bf16.mxu0 %v5593
    %5936 = vmatpush1.bf16.msra.mxu0 %v5592
    %5937 = vmatprep.subr.bf16.mxu0 %v5601
    %5938 = vmatpush1.bf16.msra.mxu0 %v5600
    %5939 = vmatprep.subr.bf16.mxu0 %v5609
    %5940 = vmatpush1.bf16.msra.mxu0 %v5608
    %5941 = vmatprep.subr.bf16.mxu0 %v5617
    %5942 = vmatpush1.bf16.msra.mxu0 %v5616
    %5943 = vmatprep.subr.bf16.mxu0 %v5625
    %5944 = vmatpush1.bf16.msra.mxu0 %v5624
    %5945 = vmatprep.subr.bf16.mxu0 %v5633
    %5946 = vmatpush1.bf16.msra.mxu0 %v5632
    %5947 = vmatprep.subr.bf16.mxu0 %v5641
    %5948 = vmatpush1.bf16.msra.mxu0 %v5640
    %5949 = vmatprep.subr.bf16.mxu0 %v5649
    %5950 = vmatpush1.bf16.msra.mxu0 %v5648
    %5951 = vmatprep.subr.bf16.mxu0 %v5657
    %5952 = vmatpush1.bf16.msra.mxu0 %v5656
    %5953 = vmatprep.subr.bf16.mxu0 %v5665
    %5954 = vmatpush1.bf16.msra.mxu0 %v5664
    %5955 = vmatprep.subr.bf16.mxu0 %v5673
    %5956 = vmatpush1.bf16.msra.mxu0 %v5672
    %5957 = vmatprep.mubr.bf16.mxu0 %v5161
    %5958 = vmatmul.mubr.bf16.gmra.mrb[0].mxu0 %v5161
    %v5959 = vpop.f32.mrb[0].mxu0
    %v5960 = vadd.f32 0.0, %v5959
    %v5961 = vpop.f32.mrb[0].mxu0
    %v5962 = vadd.f32 0.0, %v5961
    %v5963 = vpop.f32.mrb[0].mxu0
    %v5964 = vpop.f32.mrb[0].mxu0
    %5965 = vdwg.mxu0
    %v5966 = vadd.f32 %v1377, %v5837
    %v5967 = vadd.f32 %v1379, %v5839
    %v5968 = vadd.f32 %v2575, %v5878
    %v5969 = vadd.f32 %v2577, %v5880
    %v5970 = vadd.f32 %v3822, %v5919
    %v5971 = vadd.f32 %v3824, %v5921
    %v5972 = vadd.f32 %v5020, %v5960
    %v5973 = vadd.f32 %v5022, %v5962
    %v5974 = vxor.u32 %v5966, 2147483648
    %v5975 = vmul.f32 %v5974, 1.442695
    %v5976 = vpow.pop %v5975
    %v5977 = vadd.f32 %v5976, 1.0
    %v5978 = vrcp.pop %v5977
    %v5979 = vmul.f32 1.0, %v5978
    %v5980 = vxor.u32 %v5967, 2147483648
    %v5981 = vmul.f32 %v5980, 1.442695
    %v5982 = vpow.pop %v5981
    %v5983 = vadd.f32 %v5982, 1.0
    %v5984 = vrcp.pop %v5983
    %v5985 = vmul.f32 1.0, %v5984
    %v5986 = vtanh.pop %v5968
    %v5987 = vxor.u32 %v5969, 2147483648
    %v5988 = vmul.f32 %v5987, 1.442695
    %v5989 = vpow.pop %v5988
    %v5990 = vadd.f32 %v5989, 1.0
    %v5991 = vrcp.pop %v5990
    %v5992 = vmul.f32 1.0, %v5991
    %v5993 = vmul.f32 %v5985, 0.0
    %v5994 = vmul.f32 %v5979, %v5986
    %v5995 = vadd.f32 %v5993, %v5994
    %v5996 = vtanh.pop %v5995
    %v5997 = vmul.f32 %v5992, %v5996
    %v5998 = vxor.u32 %v5970, 2147483648
    %v5999 = vmul.f32 %v5998, 1.442695
    %v6000 = vpow.pop %v5999
    %v6001 = vadd.f32 %v6000, 1.0
    %v6002 = vrcp.pop %v6001
    %v6003 = vmul.f32 1.0, %v6002
    %v6004 = vxor.u32 %v5971, 2147483648
    %v6005 = vmul.f32 %v6004, 1.442695
    %v6006 = vpow.pop %v6005
    %v6007 = vadd.f32 %v6006, 1.0
    %v6008 = vrcp.pop %v6007
    %v6009 = vmul.f32 1.0, %v6008
    %v6010 = vtanh.pop %v5972
    %v6011 = vxor.u32 %v5973, 2147483648
    %v6012 = vmul.f32 %v6011, 1.442695
    %v6013 = vpow.pop %v6012
    %v6014 = vadd.f32 %v6013, 1.0
    %v6015 = vrcp.pop %v6014
    %v6016 = vmul.f32 1.0, %v6015
    %v6017 = vmul.f32 %v6009, 0.0
    %v6018 = vmul.f32 %v6003, %v6010
    %v6019 = vadd.f32 %v6017, %v6018
    %v6020 = vtanh.pop %v6019
    %v6021 = vmul.f32 %v6016, %v6020
    %v6022 = vsel %vm5025, 1, 0
    %6023 = vset.pattern.permute.xlu0 0
    %6024 = vperm.xlu0 %6023, %v6022
    %v6025 = vpop.permute.xlu0 %6024
    %vm6026 = vcmp.eq.s32.totalorder %v6025, 1
    %v6027 = vsel %vm6026, %v5997, 0.0
    %v6028 = vsel %vm6026, %v5995, 0.0
    %v6029 = vsel %vm5032, 1, 0
    %6030 = vset.pattern.permute.xlu0 0
    %6031 = vperm.xlu0 %6030, %v6029
    %v6032 = vpop.permute.xlu0 %6031
    %vm6033 = vcmp.eq.s32.totalorder %v6032, 1
    %v6034 = vsel %vm6033, %v6021, 0.0
    %v6035 = vsel %vm6033, %v6019, 0.0
    %v6036 = vpack.c.bf16 %v6027, %v6027
    %v6037 = vpack.c.bf16 %v6034, %v6034
    %6038 = vmatprep.subr.bf16.mxu0 %v5547
    %6039 = vmatpush1.bf16.msra.mxu0 %v5546
    %6040 = vmatprep.subr.bf16.mxu0 %v5555
    %6041 = vmatpush1.bf16.msra.mxu0 %v5554
    %6042 = vmatprep.subr.bf16.mxu0 %v5563
    %6043 = vmatpush1.bf16.msra.mxu0 %v5562
    %6044 = vmatprep.subr.bf16.mxu0 %v5571
    %6045 = vmatpush1.bf16.msra.mxu0 %v5570
    %6046 = vmatprep.subr.bf16.mxu0 %v5579
    %6047 = vmatpush1.bf16.msra.mxu0 %v5578
    %6048 = vmatprep.subr.bf16.mxu0 %v5587
    %6049 = vmatpush1.bf16.msra.mxu0 %v5586
    %6050 = vmatprep.subr.bf16.mxu0 %v5595
    %6051 = vmatpush1.bf16.msra.mxu0 %v5594
    %6052 = vmatprep.subr.bf16.mxu0 %v5603
    %6053 = vmatpush1.bf16.msra.mxu0 %v5602
    %6054 = vmatprep.subr.bf16.mxu0 %v5611
    %6055 = vmatpush1.bf16.msra.mxu0 %v5610
    %6056 = vmatprep.subr.bf16.mxu0 %v5619
    %6057 = vmatpush1.bf16.msra.mxu0 %v5618
    %6058 = vmatprep.subr.bf16.mxu0 %v5627
    %6059 = vmatpush1.bf16.msra.mxu0 %v5626
    %6060 = vmatprep.subr.bf16.mxu0 %v5635
    %6061 = vmatpush1.bf16.msra.mxu0 %v5634
    %6062 = vmatprep.subr.bf16.mxu0 %v5643
    %6063 = vmatpush1.bf16.msra.mxu0 %v5642
    %6064 = vmatprep.subr.bf16.mxu0 %v5651
    %6065 = vmatpush1.bf16.msra.mxu0 %v5650
    %6066 = vmatprep.subr.bf16.mxu0 %v5659
    %6067 = vmatpush1.bf16.msra.mxu0 %v5658
    %6068 = vmatprep.subr.bf16.mxu0 %v5667
    %6069 = vmatpush1.bf16.msra.mxu0 %v5666
    %6070 = vmatprep.mubr.bf16.mxu0 %v6037
    %6071 = vmatmul.mubr.bf16.gmra.mrb[0].mxu0 %v6036
    %v6072 = vpop.f32.mrb[0].mxu0
    %v6073 = vadd.f32 0.0, %v6072
    %v6074 = vpop.f32.mrb[0].mxu0
    %v6075 = vadd.f32 0.0, %v6074
    %v6076 = vpop.f32.mrb[0].mxu0
    %v6077 = vpop.f32.mrb[0].mxu0
    %6078 = vdwg.mxu0
    %6079 = vmatprep.subr.bf16.mxu0 %v5549
    %6080 = vmatpush1.bf16.msra.mxu0 %v5548
    %6081 = vmatprep.subr.bf16.mxu0 %v5557
    %6082 = vmatpush1.bf16.msra.mxu0 %v5556
    %6083 = vmatprep.subr.bf16.mxu0 %v5565
    %6084 = vmatpush1.bf16.msra.mxu0 %v5564
    %6085 = vmatprep.subr.bf16.mxu0 %v5573
    %6086 = vmatpush1.bf16.msra.mxu0 %v5572
    %6087 = vmatprep.subr.bf16.mxu0 %v5581
    %6088 = vmatpush1.bf16.msra.mxu0 %v5580
    %6089 = vmatprep.subr.bf16.mxu0 %v5589
    %6090 = vmatpush1.bf16.msra.mxu0 %v5588
    %6091 = vmatprep.subr.bf16.mxu0 %v5597
    %6092 = vmatpush1.bf16.msra.mxu0 %v5596
    %6093 = vmatprep.subr.bf16.mxu0 %v5605
    %6094 = vmatpush1.bf16.msra.mxu0 %v5604
    %6095 = vmatprep.subr.bf16.mxu0 %v5613
    %6096 = vmatpush1.bf16.msra.mxu0 %v5612
    %6097 = vmatprep.subr.bf16.mxu0 %v5621
    %6098 = vmatpush1.bf16.msra.mxu0 %v5620
    %6099 = vmatprep.subr.bf16.mxu0 %v5629
    %6100 = vmatpush1.bf16.msra.mxu0 %v5628
    %6101 = vmatprep.subr.bf16.mxu0 %v5637
    %6102 = vmatpush1.bf16.msra.mxu0 %v5636
    %6103 = vmatprep.subr.bf16.mxu0 %v5645
    %6104 = vmatpush1.bf16.msra.mxu0 %v5644
    %6105 = vmatprep.subr.bf16.mxu0 %v5653
    %6106 = vmatpush1.bf16.msra.mxu0 %v5652
    %6107 = vmatprep.subr.bf16.mxu0 %v5661
    %6108 = vmatpush1.bf16.msra.mxu0 %v5660
    %6109 = vmatprep.subr.bf16.mxu0 %v5669
    %6110 = vmatpush1.bf16.msra.mxu0 %v5668
    %6111 = vmatprep.mubr.bf16.mxu0 %v6037
    %6112 = vmatmul.mubr.bf16.gmra.mrb[0].mxu0 %v6036
    %v6113 = vpop.f32.mrb[0].mxu0
    %v6114 = vadd.f32 0.0, %v6113
    %v6115 = vpop.f32.mrb[0].mxu0
    %v6116 = vadd.f32 0.0, %v6115
    %v6117 = vpop.f32.mrb[0].mxu0
    %v6118 = vpop.f32.mrb[0].mxu0
    %6119 = vdwg.mxu0
    %6120 = vmatprep.subr.bf16.mxu0 %v5551
    %6121 = vmatpush1.bf16.msra.mxu0 %v5550
    %6122 = vmatprep.subr.bf16.mxu0 %v5559
    %6123 = vmatpush1.bf16.msra.mxu0 %v5558
    %6124 = vmatprep.subr.bf16.mxu0 %v5567
    %6125 = vmatpush1.bf16.msra.mxu0 %v5566
    %6126 = vmatprep.subr.bf16.mxu0 %v5575
    %6127 = vmatpush1.bf16.msra.mxu0 %v5574
    %6128 = vmatprep.subr.bf16.mxu0 %v5583
    %6129 = vmatpush1.bf16.msra.mxu0 %v5582
    %6130 = vmatprep.subr.bf16.mxu0 %v5591
    %6131 = vmatpush1.bf16.msra.mxu0 %v5590
    %6132 = vmatprep.subr.bf16.mxu0 %v5599
    %6133 = vmatpush1.bf16.msra.mxu0 %v5598
    %6134 = vmatprep.subr.bf16.mxu0 %v5607
    %6135 = vmatpush1.bf16.msra.mxu0 %v5606
    %6136 = vmatprep.subr.bf16.mxu0 %v5615
    %6137 = vmatpush1.bf16.msra.mxu0 %v5614
    %6138 = vmatprep.subr.bf16.mxu0 %v5623
    %6139 = vmatpush1.bf16.msra.mxu0 %v5622
    %6140 = vmatprep.subr.bf16.mxu0 %v5631
    %6141 = vmatpush1.bf16.msra.mxu0 %v5630
    %6142 = vmatprep.subr.bf16.mxu0 %v5639
    %6143 = vmatpush1.bf16.msra.mxu0 %v5638
    %6144 = vmatprep.subr.bf16.mxu0 %v5647
    %6145 = vmatpush1.bf16.msra.mxu0 %v5646
    %6146 = vmatprep.subr.bf16.mxu0 %v5655
    %6147 = vmatpush1.bf16.msra.mxu0 %v5654
    %6148 = vmatprep.subr.bf16.mxu0 %v5663
    %6149 = vmatpush1.bf16.msra.mxu0 %v5662
    %6150 = vmatprep.subr.bf16.mxu0 %v5671
    %6151 = vmatpush1.bf16.msra.mxu0 %v5670
    %6152 = vmatprep.mubr.bf16.mxu0 %v6037
    %6153 = vmatmul.mubr.bf16.gmra.mrb[0].mxu0 %v6036
    %v6154 = vpop.f32.mrb[0].mxu0
    %v6155 = vadd.f32 0.0, %v6154
    %v6156 = vpop.f32.mrb[0].mxu0
    %v6157 = vadd.f32 0.0, %v6156
    %v6158 = vpop.f32.mrb[0].mxu0
    %v6159 = vpop.f32.mrb[0].mxu0
    %6160 = vdwg.mxu0
    %6161 = vmatprep.subr.bf16.mxu0 %v5553
    %6162 = vmatpush1.bf16.msra.mxu0 %v5552
    %6163 = vmatprep.subr.bf16.mxu0 %v5561
    %6164 = vmatpush1.bf16.msra.mxu0 %v5560
    %6165 = vmatprep.subr.bf16.mxu0 %v5569
    %6166 = vmatpush1.bf16.msra.mxu0 %v5568
    %6167 = vmatprep.subr.bf16.mxu0 %v5577
    %6168 = vmatpush1.bf16.msra.mxu0 %v5576
    %6169 = vmatprep.subr.bf16.mxu0 %v5585
    %6170 = vmatpush1.bf16.msra.mxu0 %v5584
    %6171 = vmatprep.subr.bf16.mxu0 %v5593
    %6172 = vmatpush1.bf16.msra.mxu0 %v5592
    %6173 = vmatprep.subr.bf16.mxu0 %v5601
    %6174 = vmatpush1.bf16.msra.mxu0 %v5600
    %6175 = vmatprep.subr.bf16.mxu0 %v5609
    %6176 = vmatpush1.bf16.msra.mxu0 %v5608
    %6177 = vmatprep.subr.bf16.mxu0 %v5617
    %6178 = vmatpush1.bf16.msra.mxu0 %v5616
    %6179 = vmatprep.subr.bf16.mxu0 %v5625
    %6180 = vmatpush1.bf16.msra.mxu0 %v5624
    %6181 = vmatprep.subr.bf16.mxu0 %v5633
    %6182 = vmatpush1.bf16.msra.mxu0 %v5632
    %6183 = vmatprep.subr.bf16.mxu0 %v5641
    %6184 = vmatpush1.bf16.msra.mxu0 %v5640
    %6185 = vmatprep.subr.bf16.mxu0 %v5649
    %6186 = vmatpush1.bf16.msra.mxu0 %v5648
    %6187 = vmatprep.subr.bf16.mxu0 %v5657
    %6188 = vmatpush1.bf16.msra.mxu0 %v5656
    %6189 = vmatprep.subr.bf16.mxu0 %v5665
    %6190 = vmatpush1.bf16.msra.mxu0 %v5664
    %6191 = vmatprep.subr.bf16.mxu0 %v5673
    %6192 = vmatpush1.bf16.msra.mxu0 %v5672
    %6193 = vmatprep.mubr.bf16.mxu0 %v6037
    %6194 = vmatmul.mubr.bf16.gmra.mrb[0].mxu0 %v6036
    %v6195 = vpop.f32.mrb[0].mxu0
    %v6196 = vadd.f32 0.0, %v6195
    %v6197 = vpop.f32.mrb[0].mxu0
    %v6198 = vadd.f32 0.0, %v6197
    %v6199 = vpop.f32.mrb[0].mxu0
    %v6200 = vpop.f32.mrb[0].mxu0
    %6201 = vdwg.mxu0
    %v6202 = vadd.f32 %v1384, %v6073
    %v6203 = vadd.f32 %v1386, %v6075
    %v6204 = vadd.f32 %v2582, %v6114
    %v6205 = vadd.f32 %v2584, %v6116
    %v6206 = vadd.f32 %v3815, %v6155
    %v6207 = vadd.f32 %v3817, %v6157
    %v6208 = vadd.f32 %v5013, %v6196
    %v6209 = vadd.f32 %v5015, %v6198
    %v6210 = vxor.u32 %v6202, 2147483648
    %v6211 = vmul.f32 %v6210, 1.442695
    %v6212 = vpow.pop %v6211
    %v6213 = vadd.f32 %v6212, 1.0
    %v6214 = vrcp.pop %v6213
    %v6215 = vmul.f32 1.0, %v6214
    %v6216 = vxor.u32 %v6203, 2147483648
    %v6217 = vmul.f32 %v6216, 1.442695
    %v6218 = vpow.pop %v6217
    %v6219 = vadd.f32 %v6218, 1.0
    %v6220 = vrcp.pop %v6219
    %v6221 = vmul.f32 1.0, %v6220
    %v6222 = vtanh.pop %v6204
    %v6223 = vxor.u32 %v6205, 2147483648
    %v6224 = vmul.f32 %v6223, 1.442695
    %v6225 = vpow.pop %v6224
    %v6226 = vadd.f32 %v6225, 1.0
    %v6227 = vrcp.pop %v6226
    %v6228 = vmul.f32 1.0, %v6227
    %v6229 = vmul.f32 %v6221, %v6028
    %v6230 = vmul.f32 %v6215, %v6222
    %v6231 = vadd.f32 %v6229, %v6230
    %v6232 = vtanh.pop %v6231
    %v6233 = vmul.f32 %v6228, %v6232
    %v6234 = vxor.u32 %v6206, 2147483648
    %v6235 = vmul.f32 %v6234, 1.442695
    %v6236 = vpow.pop %v6235
    %v6237 = vadd.f32 %v6236, 1.0
    %v6238 = vrcp.pop %v6237
    %v6239 = vmul.f32 1.0, %v6238
    %v6240 = vxor.u32 %v6207, 2147483648
    %v6241 = vmul.f32 %v6240, 1.442695
    %v6242 = vpow.pop %v6241
    %v6243 = vadd.f32 %v6242, 1.0
    %v6244 = vrcp.pop %v6243
    %v6245 = vmul.f32 1.0, %v6244
    %v6246 = vtanh.pop %v6208
    %v6247 = vxor.u32 %v6209, 2147483648
    %v6248 = vmul.f32 %v6247, 1.442695
    %v6249 = vpow.pop %v6248
    %v6250 = vadd.f32 %v6249, 1.0
    %v6251 = vrcp.pop %v6250
    %v6252 = vmul.f32 1.0, %v6251
    %v6253 = vmul.f32 %v6245, %v6035
    %v6254 = vmul.f32 %v6239, %v6246
    %v6255 = vadd.f32 %v6253, %v6254
    %v6256 = vtanh.pop %v6255
    %v6257 = vmul.f32 %v6252, %v6256
    %v6258 = vsel %vm5026, 1, 0
    %6259 = vset.pattern.permute.xlu0 0
    %6260 = vperm.xlu0 %6259, %v6258
    %v6261 = vpop.permute.xlu0 %6260
    %vm6262 = vcmp.eq.s32.totalorder %v6261, 1
    %v6263 = vsel %vm6262, %v6233, %v6027
    %v6264 = vsel %vm6262, %v6231, %v6028
    %v6265 = vsel %vm5031, 1, 0
    %6266 = vset.pattern.permute.xlu0 0
    %6267 = vperm.xlu0 %6266, %v6265
    %v6268 = vpop.permute.xlu0 %6267
    %vm6269 = vcmp.eq.s32.totalorder %v6268, 1
    %v6270 = vsel %vm6269, %v6257, %v6034
    %v6271 = vsel %vm6269, %v6255, %v6035
    %v6272 = vpack.c.bf16 %v6263, %v6263
    %v6273 = vpack.c.bf16 %v6270, %v6270
    %6274 = vmatprep.subr.bf16.mxu0 %v5547
    %6275 = vmatpush1.bf16.msra.mxu0 %v5546
    %6276 = vmatprep.subr.bf16.mxu0 %v5555
    %6277 = vmatpush1.bf16.msra.mxu0 %v5554
    %6278 = vmatprep.subr.bf16.mxu0 %v5563
    %6279 = vmatpush1.bf16.msra.mxu0 %v5562
    %6280 = vmatprep.subr.bf16.mxu0 %v5571
    %6281 = vmatpush1.bf16.msra.mxu0 %v5570
    %6282 = vmatprep.subr.bf16.mxu0 %v5579
    %6283 = vmatpush1.bf16.msra.mxu0 %v5578
    %6284 = vmatprep.subr.bf16.mxu0 %v5587
    %6285 = vmatpush1.bf16.msra.mxu0 %v5586
    %6286 = vmatprep.subr.bf16.mxu0 %v5595
    %6287 = vmatpush1.bf16.msra.mxu0 %v5594
    %6288 = vmatprep.subr.bf16.mxu0 %v5603
    %6289 = vmatpush1.bf16.msra.mxu0 %v5602
    %6290 = vmatprep.subr.bf16.mxu0 %v5611
    %6291 = vmatpush1.bf16.msra.mxu0 %v5610
    %6292 = vmatprep.subr.bf16.mxu0 %v5619
    %6293 = vmatpush1.bf16.msra.mxu0 %v5618
    %6294 = vmatprep.subr.bf16.mxu0 %v5627
    %6295 = vmatpush1.bf16.msra.mxu0 %v5626
    %6296 = vmatprep.subr.bf16.mxu0 %v5635
    %6297 = vmatpush1.bf16.msra.mxu0 %v5634
    %6298 = vmatprep.subr.bf16.mxu0 %v5643
    %6299 = vmatpush1.bf16.msra.mxu0 %v5642
    %6300 = vmatprep.subr.bf16.mxu0 %v5651
    %6301 = vmatpush1.bf16.msra.mxu0 %v5650
    %6302 = vmatprep.subr.bf16.mxu0 %v5659
    %6303 = vmatpush1.bf16.msra.mxu0 %v5658
    %6304 = vmatprep.subr.bf16.mxu0 %v5667
    %6305 = vmatpush1.bf16.msra.mxu0 %v5666
    %6306 = vmatprep.mubr.bf16.mxu0 %v6273
    %6307 = vmatmul.mubr.bf16.gmra.mrb[0].mxu0 %v6272
    %v6308 = vpop.f32.mrb[0].mxu0
    %v6309 = vadd.f32 0.0, %v6308
    %v6310 = vpop.f32.mrb[0].mxu0
    %v6311 = vadd.f32 0.0, %v6310
    %v6312 = vpop.f32.mrb[0].mxu0
    %v6313 = vpop.f32.mrb[0].mxu0
    %6314 = vdwg.mxu0
    %6315 = vmatprep.subr.bf16.mxu0 %v5549
    %6316 = vmatpush1.bf16.msra.mxu0 %v5548
    %6317 = vmatprep.subr.bf16.mxu0 %v5557
    %6318 = vmatpush1.bf16.msra.mxu0 %v5556
    %6319 = vmatprep.subr.bf16.mxu0 %v5565
    %6320 = vmatpush1.bf16.msra.mxu0 %v5564
    %6321 = vmatprep.subr.bf16.mxu0 %v5573
    %6322 = vmatpush1.bf16.msra.mxu0 %v5572
    %6323 = vmatprep.subr.bf16.mxu0 %v5581
    %6324 = vmatpush1.bf16.msra.mxu0 %v5580
    %6325 = vmatprep.subr.bf16.mxu0 %v5589
    %6326 = vmatpush1.bf16.msra.mxu0 %v5588
    %6327 = vmatprep.subr.bf16.mxu0 %v5597
    %6328 = vmatpush1.bf16.msra.mxu0 %v5596
    %6329 = vmatprep.subr.bf16.mxu0 %v5605
    %6330 = vmatpush1.bf16.msra.mxu0 %v5604
    %6331 = vmatprep.subr.bf16.mxu0 %v5613
    %6332 = vmatpush1.bf16.msra.mxu0 %v5612
    %6333 = vmatprep.subr.bf16.mxu0 %v5621
    %6334 = vmatpush1.bf16.msra.mxu0 %v5620
    %6335 = vmatprep.subr.bf16.mxu0 %v5629
    %6336 = vmatpush1.bf16.msra.mxu0 %v5628
    %6337 = vmatprep.subr.bf16.mxu0 %v5637
    %6338 = vmatpush1.bf16.msra.mxu0 %v5636
    %6339 = vmatprep.subr.bf16.mxu0 %v5645
    %6340 = vmatpush1.bf16.msra.mxu0 %v5644
    %6341 = vmatprep.subr.bf16.mxu0 %v5653
    %6342 = vmatpush1.bf16.msra.mxu0 %v5652
    %6343 = vmatprep.subr.bf16.mxu0 %v5661
    %6344 = vmatpush1.bf16.msra.mxu0 %v5660
    %6345 = vmatprep.subr.bf16.mxu0 %v5669
    %6346 = vmatpush1.bf16.msra.mxu0 %v5668
    %6347 = vmatprep.mubr.bf16.mxu0 %v6273
    %6348 = vmatmul.mubr.bf16.gmra.mrb[0].mxu0 %v6272
    %v6349 = vpop.f32.mrb[0].mxu0
    %v6350 = vadd.f32 0.0, %v6349
    %v6351 = vpop.f32.mrb[0].mxu0
    %v6352 = vadd.f32 0.0, %v6351
    %v6353 = vpop.f32.mrb[0].mxu0
    %v6354 = vpop.f32.mrb[0].mxu0
    %6355 = vdwg.mxu0
    %6356 = vmatprep.subr.bf16.mxu0 %v5551
    %6357 = vmatpush1.bf16.msra.mxu0 %v5550
    %6358 = vmatprep.subr.bf16.mxu0 %v5559
    %6359 = vmatpush1.bf16.msra.mxu0 %v5558
    %6360 = vmatprep.subr.bf16.mxu0 %v5567
    %6361 = vmatpush1.bf16.msra.mxu0 %v5566
    %6362 = vmatprep.subr.bf16.mxu0 %v5575
    %6363 = vmatpush1.bf16.msra.mxu0 %v5574
    %6364 = vmatprep.subr.bf16.mxu0 %v5583
    %6365 = vmatpush1.bf16.msra.mxu0 %v5582
    %6366 = vmatprep.subr.bf16.mxu0 %v5591
    %6367 = vmatpush1.bf16.msra.mxu0 %v5590
    %6368 = vmatprep.subr.bf16.mxu0 %v5599
    %6369 = vmatpush1.bf16.msra.mxu0 %v5598
    %6370 = vmatprep.subr.bf16.mxu0 %v5607
    %6371 = vmatpush1.bf16.msra.mxu0 %v5606
    %6372 = vmatprep.subr.bf16.mxu0 %v5615
    %6373 = vmatpush1.bf16.msra.mxu0 %v5614
    %6374 = vmatprep.subr.bf16.mxu0 %v5623
    %6375 = vmatpush1.bf16.msra.mxu0 %v5622
    %6376 = vmatprep.subr.bf16.mxu0 %v5631
    %6377 = vmatpush1.bf16.msra.mxu0 %v5630
    %6378 = vmatprep.subr.bf16.mxu0 %v5639
    %6379 = vmatpush1.bf16.msra.mxu0 %v5638
    %6380 = vmatprep.subr.bf16.mxu0 %v5647
    %6381 = vmatpush1.bf16.msra.mxu0 %v5646
    %6382 = vmatprep.subr.bf16.mxu0 %v5655
    %6383 = vmatpush1.bf16.msra.mxu0 %v5654
    %6384 = vmatprep.subr.bf16.mxu0 %v5663
    %6385 = vmatpush1.bf16.msra.mxu0 %v5662
    %6386 = vmatprep.subr.bf16.mxu0 %v5671
    %6387 = vmatpush1.bf16.msra.mxu0 %v5670
    %6388 = vmatprep.mubr.bf16.mxu0 %v6273
    %6389 = vmatmul.mubr.bf16.gmra.mrb[0].mxu0 %v6272
    %v6390 = vpop.f32.mrb[0].mxu0
    %v6391 = vadd.f32 0.0, %v6390
    %v6392 = vpop.f32.mrb[0].mxu0
    %v6393 = vadd.f32 0.0, %v6392
    %v6394 = vpop.f32.mrb[0].mxu0
    %v6395 = vpop.f32.mrb[0].mxu0
    %6396 = vdwg.mxu0
    %6397 = vmatprep.subr.bf16.mxu0 %v5553
    %6398 = vmatpush1.bf16.msra.mxu0 %v5552
    %6399 = vmatprep.subr.bf16.mxu0 %v5561
    %6400 = vmatpush1.bf16.msra.mxu0 %v5560
    %6401 = vmatprep.subr.bf16.mxu0 %v5569
    %6402 = vmatpush1.bf16.msra.mxu0 %v5568
    %6403 = vmatprep.subr.bf16.mxu0 %v5577
    %6404 = vmatpush1.bf16.msra.mxu0 %v5576
    %6405 = vmatprep.subr.bf16.mxu0 %v5585
    %6406 = vmatpush1.bf16.msra.mxu0 %v5584
    %6407 = vmatprep.subr.bf16.mxu0 %v5593
    %6408 = vmatpush1.bf16.msra.mxu0 %v5592
    %6409 = vmatprep.subr.bf16.mxu0 %v5601
    %6410 = vmatpush1.bf16.msra.mxu0 %v5600
    %6411 = vmatprep.subr.bf16.mxu0 %v5609
    %6412 = vmatpush1.bf16.msra.mxu0 %v5608
    %6413 = vmatprep.subr.bf16.mxu0 %v5617
    %6414 = vmatpush1.bf16.msra.mxu0 %v5616
    %6415 = vmatprep.subr.bf16.mxu0 %v5625
    %6416 = vmatpush1.bf16.msra.mxu0 %v5624
    %6417 = vmatprep.subr.bf16.mxu0 %v5633
    %6418 = vmatpush1.bf16.msra.mxu0 %v5632
    %6419 = vmatprep.subr.bf16.mxu0 %v5641
    %6420 = vmatpush1.bf16.msra.mxu0 %v5640
    %6421 = vmatprep.subr.bf16.mxu0 %v5649
    %6422 = vmatpush1.bf16.msra.mxu0 %v5648
    %6423 = vmatprep.subr.bf16.mxu0 %v5657
    %6424 = vmatpush1.bf16.msra.mxu0 %v5656
    %6425 = vmatprep.subr.bf16.mxu0 %v5665
    %6426 = vmatpush1.bf16.msra.mxu0 %v5664
    %6427 = vmatprep.subr.bf16.mxu0 %v5673
    %6428 = vmatpush1.bf16.msra.mxu0 %v5672
    %6429 = vmatprep.mubr.bf16.mxu0 %v6273
    %6430 = vmatmul.mubr.bf16.gmra.mrb[0].mxu0 %v6272
    %v6431 = vpop.f32.mrb[0].mxu0
    %v6432 = vadd.f32 0.0, %v6431
    %v6433 = vpop.f32.mrb[0].mxu0
    %v6434 = vadd.f32 0.0, %v6433
    %v6435 = vpop.f32.mrb[0].mxu0
    %v6436 = vpop.f32.mrb[0].mxu0
    %6437 = vdwg.mxu0
    %v6438 = vadd.f32 %v1391, %v6309
    %v6439 = vadd.f32 %v1393, %v6311
    %v6440 = vadd.f32 %v2589, %v6350
    %v6441 = vadd.f32 %v2591, %v6352
    %v6442 = vadd.f32 %v3808, %v6391
    %v6443 = vadd.f32 %v3810, %v6393
    %v6444 = vadd.f32 %v5006, %v6432
    %v6445 = vadd.f32 %v5008, %v6434
    %v6446 = vxor.u32 %v6438, 2147483648
    %v6447 = vmul.f32 %v6446, 1.442695
    %v6448 = vpow.pop %v6447
    %v6449 = vadd.f32 %v6448, 1.0
    %v6450 = vrcp.pop %v6449
    %v6451 = vmul.f32 1.0, %v6450
    %v6452 = vxor.u32 %v6439, 2147483648
    %v6453 = vmul.f32 %v6452, 1.442695
    %v6454 = vpow.pop %v6453
    %v6455 = vadd.f32 %v6454, 1.0
    %v6456 = vrcp.pop %v6455
    %v6457 = vmul.f32 1.0, %v6456
    %v6458 = vtanh.pop %v6440
    %v6459 = vxor.u32 %v6441, 2147483648
    %v6460 = vmul.f32 %v6459, 1.442695
    %v6461 = vpow.pop %v6460
    %v6462 = vadd.f32 %v6461, 1.0
    %v6463 = vrcp.pop %v6462
    %v6464 = vmul.f32 1.0, %v6463
    %v6465 = vmul.f32 %v6457, %v6264
    %v6466 = vmul.f32 %v6451, %v6458
    %v6467 = vadd.f32 %v6465, %v6466
    %v6468 = vtanh.pop %v6467
    %v6469 = vmul.f32 %v6464, %v6468
    %v6470 = vxor.u32 %v6442, 2147483648
    %v6471 = vmul.f32 %v6470, 1.442695
    %v6472 = vpow.pop %v6471
    %v6473 = vadd.f32 %v6472, 1.0
    %v6474 = vrcp.pop %v6473
    %v6475 = vmul.f32 1.0, %v6474
    %v6476 = vxor.u32 %v6443, 2147483648
    %v6477 = vmul.f32 %v6476, 1.442695
    %v6478 = vpow.pop %v6477
    %v6479 = vadd.f32 %v6478, 1.0
    %v6480 = vrcp.pop %v6479
    %v6481 = vmul.f32 1.0, %v6480
    %v6482 = vtanh.pop %v6444
    %v6483 = vxor.u32 %v6445, 2147483648
    %v6484 = vmul.f32 %v6483, 1.442695
    %v6485 = vpow.pop %v6484
    %v6486 = vadd.f32 %v6485, 1.0
    %v6487 = vrcp.pop %v6486
    %v6488 = vmul.f32 1.0, %v6487
    %v6489 = vmul.f32 %v6481, %v6271
    %v6490 = vmul.f32 %v6475, %v6482
    %v6491 = vadd.f32 %v6489, %v6490
    %v6492 = vtanh.pop %v6491
    %v6493 = vmul.f32 %v6488, %v6492
    %v6494 = vsel %vm5027, 1, 0
    %6495 = vset.pattern.permute.xlu0 0
    %6496 = vperm.xlu0 %6495, %v6494
    %v6497 = vpop.permute.xlu0 %6496
    %vm6498 = vcmp.eq.s32.totalorder %v6497, 1
    %v6499 = vsel %vm6498, %v6469, %v6263
    %v6500 = vsel %vm6498, %v6467, %v6264
    %v6501 = vsel %vm5030, 1, 0
    %6502 = vset.pattern.permute.xlu0 0
    %6503 = vperm.xlu0 %6502, %v6501
    %v6504 = vpop.permute.xlu0 %6503
    %vm6505 = vcmp.eq.s32.totalorder %v6504, 1
    %v6506 = vsel %vm6505, %v6493, %v6270
    %v6507 = vsel %vm6505, %v6491, %v6271
    %v6508 = vpack.c.bf16 %v6499, %v6499
    %v6509 = vpack.c.bf16 %v6506, %v6506
    %6510 = vmatprep.subr.bf16.mxu0 %v5547
    %6511 = vmatpush1.bf16.msra.mxu0 %v5546
    %6512 = vmatprep.subr.bf16.mxu0 %v5555
    %6513 = vmatpush1.bf16.msra.mxu0 %v5554
    %6514 = vmatprep.subr.bf16.mxu0 %v5563
    %6515 = vmatpush1.bf16.msra.mxu0 %v5562
    %6516 = vmatprep.subr.bf16.mxu0 %v5571
    %6517 = vmatpush1.bf16.msra.mxu0 %v5570
    %6518 = vmatprep.subr.bf16.mxu0 %v5579
    %6519 = vmatpush1.bf16.msra.mxu0 %v5578
    %6520 = vmatprep.subr.bf16.mxu0 %v5587
    %6521 = vmatpush1.bf16.msra.mxu0 %v5586
    %6522 = vmatprep.subr.bf16.mxu0 %v5595
    %6523 = vmatpush1.bf16.msra.mxu0 %v5594
    %6524 = vmatprep.subr.bf16.mxu0 %v5603
    %6525 = vmatpush1.bf16.msra.mxu0 %v5602
    %6526 = vmatprep.subr.bf16.mxu0 %v5611
    %6527 = vmatpush1.bf16.msra.mxu0 %v5610
    %6528 = vmatprep.subr.bf16.mxu0 %v5619
    %6529 = vmatpush1.bf16.msra.mxu0 %v5618
    %6530 = vmatprep.subr.bf16.mxu0 %v5627
    %6531 = vmatpush1.bf16.msra.mxu0 %v5626
    %6532 = vmatprep.subr.bf16.mxu0 %v5635
    %6533 = vmatpush1.bf16.msra.mxu0 %v5634
    %6534 = vmatprep.subr.bf16.mxu0 %v5643
    %6535 = vmatpush1.bf16.msra.mxu0 %v5642
    %6536 = vmatprep.subr.bf16.mxu0 %v5651
    %6537 = vmatpush1.bf16.msra.mxu0 %v5650
    %6538 = vmatprep.subr.bf16.mxu0 %v5659
    %6539 = vmatpush1.bf16.msra.mxu0 %v5658
    %6540 = vmatprep.subr.bf16.mxu0 %v5667
    %6541 = vmatpush1.bf16.msra.mxu0 %v5666
    %6542 = vmatprep.mubr.bf16.mxu0 %v6509
    %6543 = vmatmul.mubr.bf16.gmra.mrb[0].mxu0 %v6508
    %v6544 = vpop.f32.mrb[0].mxu0
    %v6545 = vadd.f32 0.0, %v6544
    %v6546 = vpop.f32.mrb[0].mxu0
    %v6547 = vadd.f32 0.0, %v6546
    %v6548 = vpop.f32.mrb[0].mxu0
    %v6549 = vpop.f32.mrb[0].mxu0
    %6550 = vdwg.mxu0
    %6551 = vmatprep.subr.bf16.mxu0 %v5549
    %6552 = vmatpush1.bf16.msra.mxu0 %v5548
    %6553 = vmatprep.subr.bf16.mxu0 %v5557
    %6554 = vmatpush1.bf16.msra.mxu0 %v5556
    %6555 = vmatprep.subr.bf16.mxu0 %v5565
    %6556 = vmatpush1.bf16.msra.mxu0 %v5564
    %6557 = vmatprep.subr.bf16.mxu0 %v5573
    %6558 = vmatpush1.bf16.msra.mxu0 %v5572
    %6559 = vmatprep.subr.bf16.mxu0 %v5581
    %6560 = vmatpush1.bf16.msra.mxu0 %v5580
    %6561 = vmatprep.subr.bf16.mxu0 %v5589
    %6562 = vmatpush1.bf16.msra.mxu0 %v5588
    %6563 = vmatprep.subr.bf16.mxu0 %v5597
    %6564 = vmatpush1.bf16.msra.mxu0 %v5596
    %6565 = vmatprep.subr.bf16.mxu0 %v5605
    %6566 = vmatpush1.bf16.msra.mxu0 %v5604
    %6567 = vmatprep.subr.bf16.mxu0 %v5613
    %6568 = vmatpush1.bf16.msra.mxu0 %v5612
    %6569 = vmatprep.subr.bf16.mxu0 %v5621
    %6570 = vmatpush1.bf16.msra.mxu0 %v5620
    %6571 = vmatprep.subr.bf16.mxu0 %v5629
    %6572 = vmatpush1.bf16.msra.mxu0 %v5628
    %6573 = vmatprep.subr.bf16.mxu0 %v5637
    %6574 = vmatpush1.bf16.msra.mxu0 %v5636
    %6575 = vmatprep.subr.bf16.mxu0 %v5645
    %6576 = vmatpush1.bf16.msra.mxu0 %v5644
    %6577 = vmatprep.subr.bf16.mxu0 %v5653
    %6578 = vmatpush1.bf16.msra.mxu0 %v5652
    %6579 = vmatprep.subr.bf16.mxu0 %v5661
    %6580 = vmatpush1.bf16.msra.mxu0 %v5660
    %6581 = vmatprep.subr.bf16.mxu0 %v5669
    %6582 = vmatpush1.bf16.msra.mxu0 %v5668
    %6583 = vmatprep.mubr.bf16.mxu0 %v6509
    %6584 = vmatmul.mubr.bf16.gmra.mrb[0].mxu0 %v6508
    %v6585 = vpop.f32.mrb[0].mxu0
    %v6586 = vadd.f32 0.0, %v6585
    %v6587 = vpop.f32.mrb[0].mxu0
    %v6588 = vadd.f32 0.0, %v6587
    %v6589 = vpop.f32.mrb[0].mxu0
    %v6590 = vpop.f32.mrb[0].mxu0
    %6591 = vdwg.mxu0
    %6592 = vmatprep.subr.bf16.mxu0 %v5551
    %6593 = vmatpush1.bf16.msra.mxu0 %v5550
    %6594 = vmatprep.subr.bf16.mxu0 %v5559
    %6595 = vmatpush1.bf16.msra.mxu0 %v5558
    %6596 = vmatprep.subr.bf16.mxu0 %v5567
    %6597 = vmatpush1.bf16.msra.mxu0 %v5566
    %6598 = vmatprep.subr.bf16.mxu0 %v5575
    %6599 = vmatpush1.bf16.msra.mxu0 %v5574
    %6600 = vmatprep.subr.bf16.mxu0 %v5583
    %6601 = vmatpush1.bf16.msra.mxu0 %v5582
    %6602 = vmatprep.subr.bf16.mxu0 %v5591
    %6603 = vmatpush1.bf16.msra.mxu0 %v5590
    %6604 = vmatprep.subr.bf16.mxu0 %v5599
    %6605 = vmatpush1.bf16.msra.mxu0 %v5598
    %6606 = vmatprep.subr.bf16.mxu0 %v5607
    %6607 = vmatpush1.bf16.msra.mxu0 %v5606
    %6608 = vmatprep.subr.bf16.mxu0 %v5615
    %6609 = vmatpush1.bf16.msra.mxu0 %v5614
    %6610 = vmatprep.subr.bf16.mxu0 %v5623
    %6611 = vmatpush1.bf16.msra.mxu0 %v5622
    %6612 = vmatprep.subr.bf16.mxu0 %v5631
    %6613 = vmatpush1.bf16.msra.mxu0 %v5630
    %6614 = vmatprep.subr.bf16.mxu0 %v5639
    %6615 = vmatpush1.bf16.msra.mxu0 %v5638
    %6616 = vmatprep.subr.bf16.mxu0 %v5647
    %6617 = vmatpush1.bf16.msra.mxu0 %v5646
    %6618 = vmatprep.subr.bf16.mxu0 %v5655
    %6619 = vmatpush1.bf16.msra.mxu0 %v5654
    %6620 = vmatprep.subr.bf16.mxu0 %v5663
    %6621 = vmatpush1.bf16.msra.mxu0 %v5662
    %6622 = vmatprep.subr.bf16.mxu0 %v5671
    %6623 = vmatpush1.bf16.msra.mxu0 %v5670
    %6624 = vmatprep.mubr.bf16.mxu0 %v6509
    %6625 = vmatmul.mubr.bf16.gmra.mrb[0].mxu0 %v6508
    %v6626 = vpop.f32.mrb[0].mxu0
    %v6627 = vadd.f32 0.0, %v6626
    %v6628 = vpop.f32.mrb[0].mxu0
    %v6629 = vadd.f32 0.0, %v6628
    %v6630 = vpop.f32.mrb[0].mxu0
    %v6631 = vpop.f32.mrb[0].mxu0
    %6632 = vdwg.mxu0
    %6633 = vmatprep.subr.bf16.mxu0 %v5553
    %6634 = vmatpush1.bf16.msra.mxu0 %v5552
    %6635 = vmatprep.subr.bf16.mxu0 %v5561
    %6636 = vmatpush1.bf16.msra.mxu0 %v5560
    %6637 = vmatprep.subr.bf16.mxu0 %v5569
    %6638 = vmatpush1.bf16.msra.mxu0 %v5568
    %6639 = vmatprep.subr.bf16.mxu0 %v5577
    %6640 = vmatpush1.bf16.msra.mxu0 %v5576
    %6641 = vmatprep.subr.bf16.mxu0 %v5585
    %6642 = vmatpush1.bf16.msra.mxu0 %v5584
    %6643 = vmatprep.subr.bf16.mxu0 %v5593
    %6644 = vmatpush1.bf16.msra.mxu0 %v5592
    %6645 = vmatprep.subr.bf16.mxu0 %v5601
    %6646 = vmatpush1.bf16.msra.mxu0 %v5600
    %6647 = vmatprep.subr.bf16.mxu0 %v5609
    %6648 = vmatpush1.bf16.msra.mxu0 %v5608
    %6649 = vmatprep.subr.bf16.mxu0 %v5617
    %6650 = vmatpush1.bf16.msra.mxu0 %v5616
    %6651 = vmatprep.subr.bf16.mxu0 %v5625
    %6652 = vmatpush1.bf16.msra.mxu0 %v5624
    %6653 = vmatprep.subr.bf16.mxu0 %v5633
    %6654 = vmatpush1.bf16.msra.mxu0 %v5632
    %6655 = vmatprep.subr.bf16.mxu0 %v5641
    %6656 = vmatpush1.bf16.msra.mxu0 %v5640
    %6657 = vmatprep.subr.bf16.mxu0 %v5649
    %6658 = vmatpush1.bf16.msra.mxu0 %v5648
    %6659 = vmatprep.subr.bf16.mxu0 %v5657
    %6660 = vmatpush1.bf16.msra.mxu0 %v5656
    %6661 = vmatprep.subr.bf16.mxu0 %v5665
    %6662 = vmatpush1.bf16.msra.mxu0 %v5664
    %6663 = vmatprep.subr.bf16.mxu0 %v5673
    %6664 = vmatpush1.bf16.msra.mxu0 %v5672
    %6665 = vmatprep.mubr.bf16.mxu0 %v6509
    %6666 = vmatmul.mubr.bf16.gmra.mrb[0].mxu0 %v6508
    %v6667 = vpop.f32.mrb[0].mxu0
    %v6668 = vadd.f32 0.0, %v6667
    %v6669 = vpop.f32.mrb[0].mxu0
    %v6670 = vadd.f32 0.0, %v6669
    %v6671 = vpop.f32.mrb[0].mxu0
    %v6672 = vpop.f32.mrb[0].mxu0
    %6673 = vdwg.mxu0
    %v6674 = vadd.f32 %v1398, %v6545
    %v6675 = vadd.f32 %v1400, %v6547
    %v6676 = vadd.f32 %v2596, %v6586
    %v6677 = vadd.f32 %v2598, %v6588
    %v6678 = vadd.f32 %v3801, %v6627
    %v6679 = vadd.f32 %v3803, %v6629
    %v6680 = vadd.f32 %v4999, %v6668
    %v6681 = vadd.f32 %v5001, %v6670
    %v6682 = vxor.u32 %v6674, 2147483648
    %v6683 = vmul.f32 %v6682, 1.442695
    %v6684 = vpow.pop %v6683
    %v6685 = vadd.f32 %v6684, 1.0
    %v6686 = vrcp.pop %v6685
    %v6687 = vmul.f32 1.0, %v6686
    %v6688 = vxor.u32 %v6675, 2147483648
    %v6689 = vmul.f32 %v6688, 1.442695
    %v6690 = vpow.pop %v6689
    %v6691 = vadd.f32 %v6690, 1.0
    %v6692 = vrcp.pop %v6691
    %v6693 = vmul.f32 1.0, %v6692
    %v6694 = vtanh.pop %v6676
    %v6695 = vxor.u32 %v6677, 2147483648
    %v6696 = vmul.f32 %v6695, 1.442695
    %v6697 = vpow.pop %v6696
    %v6698 = vadd.f32 %v6697, 1.0
    %v6699 = vrcp.pop %v6698
    %v6700 = vmul.f32 1.0, %v6699
    %v6701 = vmul.f32 %v6693, %v6500
    %v6702 = vmul.f32 %v6687, %v6694
    %v6703 = vadd.f32 %v6701, %v6702
    %v6704 = vtanh.pop %v6703
    %v6705 = vmul.f32 %v6700, %v6704
    %v6706 = vxor.u32 %v6678, 2147483648
    %v6707 = vmul.f32 %v6706, 1.442695
    %v6708 = vpow.pop %v6707
    %v6709 = vadd.f32 %v6708, 1.0
    %v6710 = vrcp.pop %v6709
    %v6711 = vmul.f32 1.0, %v6710
    %v6712 = vxor.u32 %v6679, 2147483648
    %v6713 = vmul.f32 %v6712, 1.442695
    %v6714 = vpow.pop %v6713
    %v6715 = vadd.f32 %v6714, 1.0
    %v6716 = vrcp.pop %v6715
    %v6717 = vmul.f32 1.0, %v6716
    %v6718 = vtanh.pop %v6680
    %v6719 = vxor.u32 %v6681, 2147483648
    %v6720 = vmul.f32 %v6719, 1.442695
    %v6721 = vpow.pop %v6720
    %v6722 = vadd.f32 %v6721, 1.0
    %v6723 = vrcp.pop %v6722
    %v6724 = vmul.f32 1.0, %v6723
    %v6725 = vmul.f32 %v6717, %v6507
    %v6726 = vmul.f32 %v6711, %v6718
    %v6727 = vadd.f32 %v6725, %v6726
    %v6728 = vtanh.pop %v6727
    %v6729 = vmul.f32 %v6724, %v6728
    %v6730 = vsel %vm5028, 1, 0
    %6731 = vset.pattern.permute.xlu0 0
    %6732 = vperm.xlu0 %6731, %v6730
    %v6733 = vpop.permute.xlu0 %6732
    %vm6734 = vcmp.eq.s32.totalorder %v6733, 1
    %v6735 = vsel %vm6734, %v6705, %v6499
    %v6736 = vsel %vm6734, %v6703, %v6500
    %v6737 = vsel %vm5029, 1, 0
    %6738 = vset.pattern.permute.xlu0 0
    %6739 = vperm.xlu0 %6738, %v6737
    %v6740 = vpop.permute.xlu0 %6739
    %vm6741 = vcmp.eq.s32.totalorder %v6740, 1
    %v6742 = vsel %vm6741, %v6729, %v6506
    %v6743 = vsel %vm6741, %v6727, %v6507
    %v6744 = vpack.c.bf16 %v6735, %v6735
    %v6745 = vpack.c.bf16 %v6742, %v6742
    %6746 = vmatprep.subr.bf16.mxu0 %v5547
    %6747 = vmatpush1.bf16.msra.mxu0 %v5546
    %6748 = vmatprep.subr.bf16.mxu0 %v5555
    %6749 = vmatpush1.bf16.msra.mxu0 %v5554
    %6750 = vmatprep.subr.bf16.mxu0 %v5563
    %6751 = vmatpush1.bf16.msra.mxu0 %v5562
    %6752 = vmatprep.subr.bf16.mxu0 %v5571
    %6753 = vmatpush1.bf16.msra.mxu0 %v5570
    %6754 = vmatprep.subr.bf16.mxu0 %v5579
    %6755 = vmatpush1.bf16.msra.mxu0 %v5578
    %6756 = vmatprep.subr.bf16.mxu0 %v5587
    %6757 = vmatpush1.bf16.msra.mxu0 %v5586
    %6758 = vmatprep.subr.bf16.mxu0 %v5595
    %6759 = vmatpush1.bf16.msra.mxu0 %v5594
    %6760 = vmatprep.subr.bf16.mxu0 %v5603
    %6761 = vmatpush1.bf16.msra.mxu0 %v5602
    %6762 = vmatprep.subr.bf16.mxu0 %v5611
    %6763 = vmatpush1.bf16.msra.mxu0 %v5610
    %6764 = vmatprep.subr.bf16.mxu0 %v5619
    %6765 = vmatpush1.bf16.msra.mxu0 %v5618
    %6766 = vmatprep.subr.bf16.mxu0 %v5627
    %6767 = vmatpush1.bf16.msra.mxu0 %v5626
    %6768 = vmatprep.subr.bf16.mxu0 %v5635
    %6769 = vmatpush1.bf16.msra.mxu0 %v5634
    %6770 = vmatprep.subr.bf16.mxu0 %v5643
    %6771 = vmatpush1.bf16.msra.mxu0 %v5642
    %6772 = vmatprep.subr.bf16.mxu0 %v5651
    %6773 = vmatpush1.bf16.msra.mxu0 %v5650
    %6774 = vmatprep.subr.bf16.mxu0 %v5659
    %6775 = vmatpush1.bf16.msra.mxu0 %v5658
    %6776 = vmatprep.subr.bf16.mxu0 %v5667
    %6777 = vmatpush1.bf16.msra.mxu0 %v5666
    %6778 = vmatprep.mubr.bf16.mxu0 %v6745
    %6779 = vmatmul.mubr.bf16.gmra.mrb[0].mxu0 %v6744
    %v6780 = vpop.f32.mrb[0].mxu0
    %v6781 = vadd.f32 0.0, %v6780
    %v6782 = vpop.f32.mrb[0].mxu0
    %v6783 = vadd.f32 0.0, %v6782
    %v6784 = vpop.f32.mrb[0].mxu0
    %v6785 = vpop.f32.mrb[0].mxu0
    %6786 = vdwg.mxu0
    %6787 = vmatprep.subr.bf16.mxu0 %v5549
    %6788 = vmatpush1.bf16.msra.mxu0 %v5548
    %6789 = vmatprep.subr.bf16.mxu0 %v5557
    %6790 = vmatpush1.bf16.msra.mxu0 %v5556
    %6791 = vmatprep.subr.bf16.mxu0 %v5565
    %6792 = vmatpush1.bf16.msra.mxu0 %v5564
    %6793 = vmatprep.subr.bf16.mxu0 %v5573
    %6794 = vmatpush1.bf16.msra.mxu0 %v5572
    %6795 = vmatprep.subr.bf16.mxu0 %v5581
    %6796 = vmatpush1.bf16.msra.mxu0 %v5580
    %6797 = vmatprep.subr.bf16.mxu0 %v5589
    %6798 = vmatpush1.bf16.msra.mxu0 %v5588
    %6799 = vmatprep.subr.bf16.mxu0 %v5597
    %6800 = vmatpush1.bf16.msra.mxu0 %v5596
    %6801 = vmatprep.subr.bf16.mxu0 %v5605
    %6802 = vmatpush1.bf16.msra.mxu0 %v5604
    %6803 = vmatprep.subr.bf16.mxu0 %v5613
    %6804 = vmatpush1.bf16.msra.mxu0 %v5612
    %6805 = vmatprep.subr.bf16.mxu0 %v5621
    %6806 = vmatpush1.bf16.msra.mxu0 %v5620
    %6807 = vmatprep.subr.bf16.mxu0 %v5629
    %6808 = vmatpush1.bf16.msra.mxu0 %v5628
    %6809 = vmatprep.subr.bf16.mxu0 %v5637
    %6810 = vmatpush1.bf16.msra.mxu0 %v5636
    %6811 = vmatprep.subr.bf16.mxu0 %v5645
    %6812 = vmatpush1.bf16.msra.mxu0 %v5644
    %6813 = vmatprep.subr.bf16.mxu0 %v5653
    %6814 = vmatpush1.bf16.msra.mxu0 %v5652
    %6815 = vmatprep.subr.bf16.mxu0 %v5661
    %6816 = vmatpush1.bf16.msra.mxu0 %v5660
    %6817 = vmatprep.subr.bf16.mxu0 %v5669
    %6818 = vmatpush1.bf16.msra.mxu0 %v5668
    %6819 = vmatprep.mubr.bf16.mxu0 %v6745
    %6820 = vmatmul.mubr.bf16.gmra.mrb[0].mxu0 %v6744
    %v6821 = vpop.f32.mrb[0].mxu0
    %v6822 = vadd.f32 0.0, %v6821
    %v6823 = vpop.f32.mrb[0].mxu0
    %v6824 = vadd.f32 0.0, %v6823
    %v6825 = vpop.f32.mrb[0].mxu0
    %v6826 = vpop.f32.mrb[0].mxu0
    %6827 = vdwg.mxu0
    %6828 = vmatprep.subr.bf16.mxu0 %v5551
    %6829 = vmatpush1.bf16.msra.mxu0 %v5550
    %6830 = vmatprep.subr.bf16.mxu0 %v5559
    %6831 = vmatpush1.bf16.msra.mxu0 %v5558
    %6832 = vmatprep.subr.bf16.mxu0 %v5567
    %6833 = vmatpush1.bf16.msra.mxu0 %v5566
    %6834 = vmatprep.subr.bf16.mxu0 %v5575
    %6835 = vmatpush1.bf16.msra.mxu0 %v5574
    %6836 = vmatprep.subr.bf16.mxu0 %v5583
    %6837 = vmatpush1.bf16.msra.mxu0 %v5582
    %6838 = vmatprep.subr.bf16.mxu0 %v5591
    %6839 = vmatpush1.bf16.msra.mxu0 %v5590
    %6840 = vmatprep.subr.bf16.mxu0 %v5599
    %6841 = vmatpush1.bf16.msra.mxu0 %v5598
    %6842 = vmatprep.subr.bf16.mxu0 %v5607
    %6843 = vmatpush1.bf16.msra.mxu0 %v5606
    %6844 = vmatprep.subr.bf16.mxu0 %v5615
    %6845 = vmatpush1.bf16.msra.mxu0 %v5614
    %6846 = vmatprep.subr.bf16.mxu0 %v5623
    %6847 = vmatpush1.bf16.msra.mxu0 %v5622
    %6848 = vmatprep.subr.bf16.mxu0 %v5631
    %6849 = vmatpush1.bf16.msra.mxu0 %v5630
    %6850 = vmatprep.subr.bf16.mxu0 %v5639
    %6851 = vmatpush1.bf16.msra.mxu0 %v5638
    %6852 = vmatprep.subr.bf16.mxu0 %v5647
    %6853 = vmatpush1.bf16.msra.mxu0 %v5646
    %6854 = vmatprep.subr.bf16.mxu0 %v5655
    %6855 = vmatpush1.bf16.msra.mxu0 %v5654
    %6856 = vmatprep.subr.bf16.mxu0 %v5663
    %6857 = vmatpush1.bf16.msra.mxu0 %v5662
    %6858 = vmatprep.subr.bf16.mxu0 %v5671
    %6859 = vmatpush1.bf16.msra.mxu0 %v5670
    %6860 = vmatprep.mubr.bf16.mxu0 %v6745
    %6861 = vmatmul.mubr.bf16.gmra.mrb[0].mxu0 %v6744
    %v6862 = vpop.f32.mrb[0].mxu0
    %v6863 = vadd.f32 0.0, %v6862
    %v6864 = vpop.f32.mrb[0].mxu0
    %v6865 = vadd.f32 0.0, %v6864
    %v6866 = vpop.f32.mrb[0].mxu0
    %v6867 = vpop.f32.mrb[0].mxu0
    %6868 = vdwg.mxu0
    %6869 = vmatprep.subr.bf16.mxu0 %v5553
    %6870 = vmatpush1.bf16.msra.mxu0 %v5552
    %6871 = vmatprep.subr.bf16.mxu0 %v5561
    %6872 = vmatpush1.bf16.msra.mxu0 %v5560
    %6873 = vmatprep.subr.bf16.mxu0 %v5569
    %6874 = vmatpush1.bf16.msra.mxu0 %v5568
    %6875 = vmatprep.subr.bf16.mxu0 %v5577
    %6876 = vmatpush1.bf16.msra.mxu0 %v5576
    %6877 = vmatprep.subr.bf16.mxu0 %v5585
    %6878 = vmatpush1.bf16.msra.mxu0 %v5584
    %6879 = vmatprep.subr.bf16.mxu0 %v5593
    %6880 = vmatpush1.bf16.msra.mxu0 %v5592
    %6881 = vmatprep.subr.bf16.mxu0 %v5601
    %6882 = vmatpush1.bf16.msra.mxu0 %v5600
    %6883 = vmatprep.subr.bf16.mxu0 %v5609
    %6884 = vmatpush1.bf16.msra.mxu0 %v5608
    %6885 = vmatprep.subr.bf16.mxu0 %v5617
    %6886 = vmatpush1.bf16.msra.mxu0 %v5616
    %6887 = vmatprep.subr.bf16.mxu0 %v5625
    %6888 = vmatpush1.bf16.msra.mxu0 %v5624
    %6889 = vmatprep.subr.bf16.mxu0 %v5633
    %6890 = vmatpush1.bf16.msra.mxu0 %v5632
    %6891 = vmatprep.subr.bf16.mxu0 %v5641
    %6892 = vmatpush1.bf16.msra.mxu0 %v5640
    %6893 = vmatprep.subr.bf16.mxu0 %v5649
    %6894 = vmatpush1.bf16.msra.mxu0 %v5648
    %6895 = vmatprep.subr.bf16.mxu0 %v5657
    %6896 = vmatpush1.bf16.msra.mxu0 %v5656
    %6897 = vmatprep.subr.bf16.mxu0 %v5665
    %6898 = vmatpush1.bf16.msra.mxu0 %v5664
    %6899 = vmatprep.subr.bf16.mxu0 %v5673
    %6900 = vmatpush1.bf16.msra.mxu0 %v5672
    %6901 = vmatprep.mubr.bf16.mxu0 %v6745
    %6902 = vmatmul.mubr.bf16.gmra.mrb[0].mxu0 %v6744
    %v6903 = vpop.f32.mrb[0].mxu0
    %v6904 = vadd.f32 0.0, %v6903
    %v6905 = vpop.f32.mrb[0].mxu0
    %v6906 = vadd.f32 0.0, %v6905
    %v6907 = vpop.f32.mrb[0].mxu0
    %v6908 = vpop.f32.mrb[0].mxu0
    %6909 = vdwg.mxu0
    %v6910 = vadd.f32 %v1405, %v6781
    %v6911 = vadd.f32 %v1407, %v6783
    %v6912 = vadd.f32 %v2603, %v6822
    %v6913 = vadd.f32 %v2605, %v6824
    %v6914 = vadd.f32 %v3794, %v6863
    %v6915 = vadd.f32 %v3796, %v6865
    %v6916 = vadd.f32 %v4992, %v6904
    %v6917 = vadd.f32 %v4994, %v6906
    %v6918 = vxor.u32 %v6910, 2147483648
    %v6919 = vmul.f32 %v6918, 1.442695
    %v6920 = vpow.pop %v6919
    %v6921 = vadd.f32 %v6920, 1.0
    %v6922 = vrcp.pop %v6921
    %v6923 = vmul.f32 1.0, %v6922
    %v6924 = vxor.u32 %v6911, 2147483648
    %v6925 = vmul.f32 %v6924, 1.442695
    %v6926 = vpow.pop %v6925
    %v6927 = vadd.f32 %v6926, 1.0
    %v6928 = vrcp.pop %v6927
    %v6929 = vmul.f32 1.0, %v6928
    %v6930 = vtanh.pop %v6912
    %v6931 = vxor.u32 %v6913, 2147483648
    %v6932 = vmul.f32 %v6931, 1.442695
    %v6933 = vpow.pop %v6932
    %v6934 = vadd.f32 %v6933, 1.0
    %v6935 = vrcp.pop %v6934
    %v6936 = vmul.f32 1.0, %v6935
    %v6937 = vmul.f32 %v6929, %v6736
    %v6938 = vmul.f32 %v6923, %v6930
    %v6939 = vadd.f32 %v6937, %v6938
    %v6940 = vtanh.pop %v6939
    %v6941 = vmul.f32 %v6936, %v6940
    %v6942 = vxor.u32 %v6914, 2147483648
    %v6943 = vmul.f32 %v6942, 1.442695
    %v6944 = vpow.pop %v6943
    %v6945 = vadd.f32 %v6944, 1.0
    %v6946 = vrcp.pop %v6945
    %v6947 = vmul.f32 1.0, %v6946
    %v6948 = vxor.u32 %v6915, 2147483648
    %v6949 = vmul.f32 %v6948, 1.442695
    %v6950 = vpow.pop %v6949
    %v6951 = vadd.f32 %v6950, 1.0
    %v6952 = vrcp.pop %v6951
    %v6953 = vmul.f32 1.0, %v6952
    %v6954 = vtanh.pop %v6916
    %v6955 = vxor.u32 %v6917, 2147483648
    %v6956 = vmul.f32 %v6955, 1.442695
    %v6957 = vpow.pop %v6956
    %v6958 = vadd.f32 %v6957, 1.0
    %v6959 = vrcp.pop %v6958
    %v6960 = vmul.f32 1.0, %v6959
    %v6961 = vmul.f32 %v6953, %v6743
    %v6962 = vmul.f32 %v6947, %v6954
    %v6963 = vadd.f32 %v6961, %v6962
    %v6964 = vtanh.pop %v6963
    %v6965 = vmul.f32 %v6960, %v6964
    %v6966 = vsel %vm6741, %v6941, %v6735
    %v6967 = vsel %vm6741, %v6939, %v6736
    %v6968 = vsel %vm6734, %v6965, %v6742
    %v6969 = vsel %vm6734, %v6963, %v6743
    %v6970 = vpack.c.bf16 %v6966, %v6966
    %v6971 = vpack.c.bf16 %v6968, %v6968
    %6972 = vmatprep.subr.bf16.mxu0 %v5547
    %6973 = vmatpush1.bf16.msra.mxu0 %v5546
    %6974 = vmatprep.subr.bf16.mxu0 %v5555
    %6975 = vmatpush1.bf16.msra.mxu0 %v5554
    %6976 = vmatprep.subr.bf16.mxu0 %v5563
    %6977 = vmatpush1.bf16.msra.mxu0 %v5562
    %6978 = vmatprep.subr.bf16.mxu0 %v5571
    %6979 = vmatpush1.bf16.msra.mxu0 %v5570
    %6980 = vmatprep.subr.bf16.mxu0 %v5579
    %6981 = vmatpush1.bf16.msra.mxu0 %v5578
    %6982 = vmatprep.subr.bf16.mxu0 %v5587
    %6983 = vmatpush1.bf16.msra.mxu0 %v5586
    %6984 = vmatprep.subr.bf16.mxu0 %v5595
    %6985 = vmatpush1.bf16.msra.mxu0 %v5594
    %6986 = vmatprep.subr.bf16.mxu0 %v5603
    %6987 = vmatpush1.bf16.msra.mxu0 %v5602
    %6988 = vmatprep.subr.bf16.mxu0 %v5611
    %6989 = vmatpush1.bf16.msra.mxu0 %v5610
    %6990 = vmatprep.subr.bf16.mxu0 %v5619
    %6991 = vmatpush1.bf16.msra.mxu0 %v5618
    %6992 = vmatprep.subr.bf16.mxu0 %v5627
    %6993 = vmatpush1.bf16.msra.mxu0 %v5626
    %6994 = vmatprep.subr.bf16.mxu0 %v5635
    %6995 = vmatpush1.bf16.msra.mxu0 %v5634
    %6996 = vmatprep.subr.bf16.mxu0 %v5643
    %6997 = vmatpush1.bf16.msra.mxu0 %v5642
    %6998 = vmatprep.subr.bf16.mxu0 %v5651
    %6999 = vmatpush1.bf16.msra.mxu0 %v5650
    %7000 = vmatprep.subr.bf16.mxu0 %v5659
    %7001 = vmatpush1.bf16.msra.mxu0 %v5658
    %7002 = vmatprep.subr.bf16.mxu0 %v5667
    %7003 = vmatpush1.bf16.msra.mxu0 %v5666
    %7004 = vmatprep.mubr.bf16.mxu0 %v6971
    %7005 = vmatmul.mubr.bf16.gmra.mrb[0].mxu0 %v6970
    %v7006 = vpop.f32.mrb[0].mxu0
    %v7007 = vadd.f32 0.0, %v7006
    %v7008 = vpop.f32.mrb[0].mxu0
    %v7009 = vadd.f32 0.0, %v7008
    %v7010 = vpop.f32.mrb[0].mxu0
    %v7011 = vpop.f32.mrb[0].mxu0
    %7012 = vdwg.mxu0
    %7013 = vmatprep.subr.bf16.mxu0 %v5549
    %7014 = vmatpush1.bf16.msra.mxu0 %v5548
    %7015 = vmatprep.subr.bf16.mxu0 %v5557
    %7016 = vmatpush1.bf16.msra.mxu0 %v5556
    %7017 = vmatprep.subr.bf16.mxu0 %v5565
    %7018 = vmatpush1.bf16.msra.mxu0 %v5564
    %7019 = vmatprep.subr.bf16.mxu0 %v5573
    %7020 = vmatpush1.bf16.msra.mxu0 %v5572
    %7021 = vmatprep.subr.bf16.mxu0 %v5581
    %7022 = vmatpush1.bf16.msra.mxu0 %v5580
    %7023 = vmatprep.subr.bf16.mxu0 %v5589
    %7024 = vmatpush1.bf16.msra.mxu0 %v5588
    %7025 = vmatprep.subr.bf16.mxu0 %v5597
    %7026 = vmatpush1.bf16.msra.mxu0 %v5596
    %7027 = vmatprep.subr.bf16.mxu0 %v5605
    %7028 = vmatpush1.bf16.msra.mxu0 %v5604
    %7029 = vmatprep.subr.bf16.mxu0 %v5613
    %7030 = vmatpush1.bf16.msra.mxu0 %v5612
    %7031 = vmatprep.subr.bf16.mxu0 %v5621
    %7032 = vmatpush1.bf16.msra.mxu0 %v5620
    %7033 = vmatprep.subr.bf16.mxu0 %v5629
    %7034 = vmatpush1.bf16.msra.mxu0 %v5628
    %7035 = vmatprep.subr.bf16.mxu0 %v5637
    %7036 = vmatpush1.bf16.msra.mxu0 %v5636
    %7037 = vmatprep.subr.bf16.mxu0 %v5645
    %7038 = vmatpush1.bf16.msra.mxu0 %v5644
    %7039 = vmatprep.subr.bf16.mxu0 %v5653
    %7040 = vmatpush1.bf16.msra.mxu0 %v5652
    %7041 = vmatprep.subr.bf16.mxu0 %v5661
    %7042 = vmatpush1.bf16.msra.mxu0 %v5660
    %7043 = vmatprep.subr.bf16.mxu0 %v5669
    %7044 = vmatpush1.bf16.msra.mxu0 %v5668
    %7045 = vmatprep.mubr.bf16.mxu0 %v6971
    %7046 = vmatmul.mubr.bf16.gmra.mrb[0].mxu0 %v6970
    %v7047 = vpop.f32.mrb[0].mxu0
    %v7048 = vadd.f32 0.0, %v7047
    %v7049 = vpop.f32.mrb[0].mxu0
    %v7050 = vadd.f32 0.0, %v7049
    %v7051 = vpop.f32.mrb[0].mxu0
    %v7052 = vpop.f32.mrb[0].mxu0
    %7053 = vdwg.mxu0
    %7054 = vmatprep.subr.bf16.mxu0 %v5551
    %7055 = vmatpush1.bf16.msra.mxu0 %v5550
    %7056 = vmatprep.subr.bf16.mxu0 %v5559
    %7057 = vmatpush1.bf16.msra.mxu0 %v5558
    %7058 = vmatprep.subr.bf16.mxu0 %v5567
    %7059 = vmatpush1.bf16.msra.mxu0 %v5566
    %7060 = vmatprep.subr.bf16.mxu0 %v5575
    %7061 = vmatpush1.bf16.msra.mxu0 %v5574
    %7062 = vmatprep.subr.bf16.mxu0 %v5583
    %7063 = vmatpush1.bf16.msra.mxu0 %v5582
    %7064 = vmatprep.subr.bf16.mxu0 %v5591
    %7065 = vmatpush1.bf16.msra.mxu0 %v5590
    %7066 = vmatprep.subr.bf16.mxu0 %v5599
    %7067 = vmatpush1.bf16.msra.mxu0 %v5598
    %7068 = vmatprep.subr.bf16.mxu0 %v5607
    %7069 = vmatpush1.bf16.msra.mxu0 %v5606
    %7070 = vmatprep.subr.bf16.mxu0 %v5615
    %7071 = vmatpush1.bf16.msra.mxu0 %v5614
    %7072 = vmatprep.subr.bf16.mxu0 %v5623
    %7073 = vmatpush1.bf16.msra.mxu0 %v5622
    %7074 = vmatprep.subr.bf16.mxu0 %v5631
    %7075 = vmatpush1.bf16.msra.mxu0 %v5630
    %7076 = vmatprep.subr.bf16.mxu0 %v5639
    %7077 = vmatpush1.bf16.msra.mxu0 %v5638
    %7078 = vmatprep.subr.bf16.mxu0 %v5647
    %7079 = vmatpush1.bf16.msra.mxu0 %v5646
    %7080 = vmatprep.subr.bf16.mxu0 %v5655
    %7081 = vmatpush1.bf16.msra.mxu0 %v5654
    %7082 = vmatprep.subr.bf16.mxu0 %v5663
    %7083 = vmatpush1.bf16.msra.mxu0 %v5662
    %7084 = vmatprep.subr.bf16.mxu0 %v5671
    %7085 = vmatpush1.bf16.msra.mxu0 %v5670
    %7086 = vmatprep.mubr.bf16.mxu0 %v6971
    %7087 = vmatmul.mubr.bf16.gmra.mrb[0].mxu0 %v6970
    %v7088 = vpop.f32.mrb[0].mxu0
    %v7089 = vadd.f32 0.0, %v7088
    %v7090 = vpop.f32.mrb[0].mxu0
    %v7091 = vadd.f32 0.0, %v7090
    %v7092 = vpop.f32.mrb[0].mxu0
    %v7093 = vpop.f32.mrb[0].mxu0
    %7094 = vdwg.mxu0
    %7095 = vmatprep.subr.bf16.mxu0 %v5553
    %7096 = vmatpush1.bf16.msra.mxu0 %v5552
    %7097 = vmatprep.subr.bf16.mxu0 %v5561
    %7098 = vmatpush1.bf16.msra.mxu0 %v5560
    %7099 = vmatprep.subr.bf16.mxu0 %v5569
    %7100 = vmatpush1.bf16.msra.mxu0 %v5568
    %7101 = vmatprep.subr.bf16.mxu0 %v5577
    %7102 = vmatpush1.bf16.msra.mxu0 %v5576
    %7103 = vmatprep.subr.bf16.mxu0 %v5585
    %7104 = vmatpush1.bf16.msra.mxu0 %v5584
    %7105 = vmatprep.subr.bf16.mxu0 %v5593
    %7106 = vmatpush1.bf16.msra.mxu0 %v5592
    %7107 = vmatprep.subr.bf16.mxu0 %v5601
    %7108 = vmatpush1.bf16.msra.mxu0 %v5600
    %7109 = vmatprep.subr.bf16.mxu0 %v5609
    %7110 = vmatpush1.bf16.msra.mxu0 %v5608
    %7111 = vmatprep.subr.bf16.mxu0 %v5617
    %7112 = vmatpush1.bf16.msra.mxu0 %v5616
    %7113 = vmatprep.subr.bf16.mxu0 %v5625
    %7114 = vmatpush1.bf16.msra.mxu0 %v5624
    %7115 = vmatprep.subr.bf16.mxu0 %v5633
    %7116 = vmatpush1.bf16.msra.mxu0 %v5632
    %7117 = vmatprep.subr.bf16.mxu0 %v5641
    %7118 = vmatpush1.bf16.msra.mxu0 %v5640
    %7119 = vmatprep.subr.bf16.mxu0 %v5649
    %7120 = vmatpush1.bf16.msra.mxu0 %v5648
    %7121 = vmatprep.subr.bf16.mxu0 %v5657
    %7122 = vmatpush1.bf16.msra.mxu0 %v5656
    %7123 = vmatprep.subr.bf16.mxu0 %v5665
    %7124 = vmatpush1.bf16.msra.mxu0 %v5664
    %7125 = vmatprep.subr.bf16.mxu0 %v5673
    %7126 = vmatpush1.bf16.msra.mxu0 %v5672
    %7127 = vmatprep.mubr.bf16.mxu0 %v6971
    %7128 = vmatmul.mubr.bf16.gmra.mrb[0].mxu0 %v6970
    %v7129 = vpop.f32.mrb[0].mxu0
    %v7130 = vadd.f32 0.0, %v7129
    %v7131 = vpop.f32.mrb[0].mxu0
    %v7132 = vadd.f32 0.0, %v7131
    %v7133 = vpop.f32.mrb[0].mxu0
    %v7134 = vpop.f32.mrb[0].mxu0
    %7135 = vdwg.mxu0
    %v7136 = vadd.f32 %v1412, %v7007
    %v7137 = vadd.f32 %v1414, %v7009
    %v7138 = vadd.f32 %v2610, %v7048
    %v7139 = vadd.f32 %v2612, %v7050
    %v7140 = vadd.f32 %v3787, %v7089
    %v7141 = vadd.f32 %v3789, %v7091
    %v7142 = vadd.f32 %v4985, %v7130
    %v7143 = vadd.f32 %v4987, %v7132
    %v7144 = vxor.u32 %v7136, 2147483648
    %v7145 = vmul.f32 %v7144, 1.442695
    %v7146 = vpow.pop %v7145
    %v7147 = vadd.f32 %v7146, 1.0
    %v7148 = vrcp.pop %v7147
    %v7149 = vmul.f32 1.0, %v7148
    %v7150 = vxor.u32 %v7137, 2147483648
    %v7151 = vmul.f32 %v7150, 1.442695
    %v7152 = vpow.pop %v7151
    %v7153 = vadd.f32 %v7152, 1.0
    %v7154 = vrcp.pop %v7153
    %v7155 = vmul.f32 1.0, %v7154
    %v7156 = vtanh.pop %v7138
    %v7157 = vxor.u32 %v7139, 2147483648
    %v7158 = vmul.f32 %v7157, 1.442695
    %v7159 = vpow.pop %v7158
    %v7160 = vadd.f32 %v7159, 1.0
    %v7161 = vrcp.pop %v7160
    %v7162 = vmul.f32 1.0, %v7161
    %v7163 = vmul.f32 %v7155, %v6967
    %v7164 = vmul.f32 %v7149, %v7156
    %v7165 = vadd.f32 %v7163, %v7164
    %v7166 = vtanh.pop %v7165
    %v7167 = vmul.f32 %v7162, %v7166
    %v7168 = vxor.u32 %v7140, 2147483648
    %v7169 = vmul.f32 %v7168, 1.442695
    %v7170 = vpow.pop %v7169
    %v7171 = vadd.f32 %v7170, 1.0
    %v7172 = vrcp.pop %v7171
    %v7173 = vmul.f32 1.0, %v7172
    %v7174 = vxor.u32 %v7141, 2147483648
    %v7175 = vmul.f32 %v7174, 1.442695
    %v7176 = vpow.pop %v7175
    %v7177 = vadd.f32 %v7176, 1.0
    %v7178 = vrcp.pop %v7177
    %v7179 = vmul.f32 1.0, %v7178
    %v7180 = vtanh.pop %v7142
    %v7181 = vxor.u32 %v7143, 2147483648
    %v7182 = vmul.f32 %v7181, 1.442695
    %v7183 = vpow.pop %v7182
    %v7184 = vadd.f32 %v7183, 1.0
    %v7185 = vrcp.pop %v7184
    %v7186 = vmul.f32 1.0, %v7185
    %v7187 = vmul.f32 %v7179, %v6969
    %v7188 = vmul.f32 %v7173, %v7180
    %v7189 = vadd.f32 %v7187, %v7188
    %v7190 = vtanh.pop %v7189
    %v7191 = vmul.f32 %v7186, %v7190
    %v7192 = vsel %vm6505, %v7167, %v6966
    %v7193 = vsel %vm6505, %v7165, %v6967
    %v7194 = vsel %vm6498, %v7191, %v6968
    %v7195 = vsel %vm6498, %v7189, %v6969
    %v7196 = vpack.c.bf16 %v7192, %v7192
    %v7197 = vpack.c.bf16 %v7194, %v7194
    %7198 = vmatprep.subr.bf16.mxu0 %v5547
    %7199 = vmatpush1.bf16.msra.mxu0 %v5546
    %7200 = vmatprep.subr.bf16.mxu0 %v5555
    %7201 = vmatpush1.bf16.msra.mxu0 %v5554
    %7202 = vmatprep.subr.bf16.mxu0 %v5563
    %7203 = vmatpush1.bf16.msra.mxu0 %v5562
    %7204 = vmatprep.subr.bf16.mxu0 %v5571
    %7205 = vmatpush1.bf16.msra.mxu0 %v5570
    %7206 = vmatprep.subr.bf16.mxu0 %v5579
    %7207 = vmatpush1.bf16.msra.mxu0 %v5578
    %7208 = vmatprep.subr.bf16.mxu0 %v5587
    %7209 = vmatpush1.bf16.msra.mxu0 %v5586
    %7210 = vmatprep.subr.bf16.mxu0 %v5595
    %7211 = vmatpush1.bf16.msra.mxu0 %v5594
    %7212 = vmatprep.subr.bf16.mxu0 %v5603
    %7213 = vmatpush1.bf16.msra.mxu0 %v5602
    %7214 = vmatprep.subr.bf16.mxu0 %v5611
    %7215 = vmatpush1.bf16.msra.mxu0 %v5610
    %7216 = vmatprep.subr.bf16.mxu0 %v5619
    %7217 = vmatpush1.bf16.msra.mxu0 %v5618
    %7218 = vmatprep.subr.bf16.mxu0 %v5627
    %7219 = vmatpush1.bf16.msra.mxu0 %v5626
    %7220 = vmatprep.subr.bf16.mxu0 %v5635
    %7221 = vmatpush1.bf16.msra.mxu0 %v5634
    %7222 = vmatprep.subr.bf16.mxu0 %v5643
    %7223 = vmatpush1.bf16.msra.mxu0 %v5642
    %7224 = vmatprep.subr.bf16.mxu0 %v5651
    %7225 = vmatpush1.bf16.msra.mxu0 %v5650
    %7226 = vmatprep.subr.bf16.mxu0 %v5659
    %7227 = vmatpush1.bf16.msra.mxu0 %v5658
    %7228 = vmatprep.subr.bf16.mxu0 %v5667
    %7229 = vmatpush1.bf16.msra.mxu0 %v5666
    %7230 = vmatprep.mubr.bf16.mxu0 %v7197
    %7231 = vmatmul.mubr.bf16.gmra.mrb[0].mxu0 %v7196
    %v7232 = vpop.f32.mrb[0].mxu0
    %v7233 = vadd.f32 0.0, %v7232
    %v7234 = vpop.f32.mrb[0].mxu0
    %v7235 = vadd.f32 0.0, %v7234
    %v7236 = vpop.f32.mrb[0].mxu0
    %v7237 = vpop.f32.mrb[0].mxu0
    %7238 = vdwg.mxu0
    %7239 = vmatprep.subr.bf16.mxu0 %v5549
    %7240 = vmatpush1.bf16.msra.mxu0 %v5548
    %7241 = vmatprep.subr.bf16.mxu0 %v5557
    %7242 = vmatpush1.bf16.msra.mxu0 %v5556
    %7243 = vmatprep.subr.bf16.mxu0 %v5565
    %7244 = vmatpush1.bf16.msra.mxu0 %v5564
    %7245 = vmatprep.subr.bf16.mxu0 %v5573
    %7246 = vmatpush1.bf16.msra.mxu0 %v5572
    %7247 = vmatprep.subr.bf16.mxu0 %v5581
    %7248 = vmatpush1.bf16.msra.mxu0 %v5580
    %7249 = vmatprep.subr.bf16.mxu0 %v5589
    %7250 = vmatpush1.bf16.msra.mxu0 %v5588
    %7251 = vmatprep.subr.bf16.mxu0 %v5597
    %7252 = vmatpush1.bf16.msra.mxu0 %v5596
    %7253 = vmatprep.subr.bf16.mxu0 %v5605
    %7254 = vmatpush1.bf16.msra.mxu0 %v5604
    %7255 = vmatprep.subr.bf16.mxu0 %v5613
    %7256 = vmatpush1.bf16.msra.mxu0 %v5612
    %7257 = vmatprep.subr.bf16.mxu0 %v5621
    %7258 = vmatpush1.bf16.msra.mxu0 %v5620
    %7259 = vmatprep.subr.bf16.mxu0 %v5629
    %7260 = vmatpush1.bf16.msra.mxu0 %v5628
    %7261 = vmatprep.subr.bf16.mxu0 %v5637
    %7262 = vmatpush1.bf16.msra.mxu0 %v5636
    %7263 = vmatprep.subr.bf16.mxu0 %v5645
    %7264 = vmatpush1.bf16.msra.mxu0 %v5644
    %7265 = vmatprep.subr.bf16.mxu0 %v5653
    %7266 = vmatpush1.bf16.msra.mxu0 %v5652
    %7267 = vmatprep.subr.bf16.mxu0 %v5661
    %7268 = vmatpush1.bf16.msra.mxu0 %v5660
    %7269 = vmatprep.subr.bf16.mxu0 %v5669
    %7270 = vmatpush1.bf16.msra.mxu0 %v5668
    %7271 = vmatprep.mubr.bf16.mxu0 %v7197
    %7272 = vmatmul.mubr.bf16.gmra.mrb[0].mxu0 %v7196
    %v7273 = vpop.f32.mrb[0].mxu0
    %v7274 = vadd.f32 0.0, %v7273
    %v7275 = vpop.f32.mrb[0].mxu0
    %v7276 = vadd.f32 0.0, %v7275
    %v7277 = vpop.f32.mrb[0].mxu0
    %v7278 = vpop.f32.mrb[0].mxu0
    %7279 = vdwg.mxu0
    %7280 = vmatprep.subr.bf16.mxu0 %v5551
    %7281 = vmatpush1.bf16.msra.mxu0 %v5550
    %7282 = vmatprep.subr.bf16.mxu0 %v5559
    %7283 = vmatpush1.bf16.msra.mxu0 %v5558
    %7284 = vmatprep.subr.bf16.mxu0 %v5567
    %7285 = vmatpush1.bf16.msra.mxu0 %v5566
    %7286 = vmatprep.subr.bf16.mxu0 %v5575
    %7287 = vmatpush1.bf16.msra.mxu0 %v5574
    %7288 = vmatprep.subr.bf16.mxu0 %v5583
    %7289 = vmatpush1.bf16.msra.mxu0 %v5582
    %7290 = vmatprep.subr.bf16.mxu0 %v5591
    %7291 = vmatpush1.bf16.msra.mxu0 %v5590
    %7292 = vmatprep.subr.bf16.mxu0 %v5599
    %7293 = vmatpush1.bf16.msra.mxu0 %v5598
    %7294 = vmatprep.subr.bf16.mxu0 %v5607
    %7295 = vmatpush1.bf16.msra.mxu0 %v5606
    %7296 = vmatprep.subr.bf16.mxu0 %v5615
    %7297 = vmatpush1.bf16.msra.mxu0 %v5614
    %7298 = vmatprep.subr.bf16.mxu0 %v5623
    %7299 = vmatpush1.bf16.msra.mxu0 %v5622
    %7300 = vmatprep.subr.bf16.mxu0 %v5631
    %7301 = vmatpush1.bf16.msra.mxu0 %v5630
    %7302 = vmatprep.subr.bf16.mxu0 %v5639
    %7303 = vmatpush1.bf16.msra.mxu0 %v5638
    %7304 = vmatprep.subr.bf16.mxu0 %v5647
    %7305 = vmatpush1.bf16.msra.mxu0 %v5646
    %7306 = vmatprep.subr.bf16.mxu0 %v5655
    %7307 = vmatpush1.bf16.msra.mxu0 %v5654
    %7308 = vmatprep.subr.bf16.mxu0 %v5663
    %7309 = vmatpush1.bf16.msra.mxu0 %v5662
    %7310 = vmatprep.subr.bf16.mxu0 %v5671
    %7311 = vmatpush1.bf16.msra.mxu0 %v5670
    %7312 = vmatprep.mubr.bf16.mxu0 %v7197
    %7313 = vmatmul.mubr.bf16.gmra.mrb[0].mxu0 %v7196
    %v7314 = vpop.f32.mrb[0].mxu0
    %v7315 = vadd.f32 0.0, %v7314
    %v7316 = vpop.f32.mrb[0].mxu0
    %v7317 = vadd.f32 0.0, %v7316
    %v7318 = vpop.f32.mrb[0].mxu0
    %v7319 = vpop.f32.mrb[0].mxu0
    %7320 = vdwg.mxu0
    %7321 = vmatprep.subr.bf16.mxu0 %v5553
    %7322 = vmatpush1.bf16.msra.mxu0 %v5552
    %7323 = vmatprep.subr.bf16.mxu0 %v5561
    %7324 = vmatpush1.bf16.msra.mxu0 %v5560
    %7325 = vmatprep.subr.bf16.mxu0 %v5569
    %7326 = vmatpush1.bf16.msra.mxu0 %v5568
    %7327 = vmatprep.subr.bf16.mxu0 %v5577
    %7328 = vmatpush1.bf16.msra.mxu0 %v5576
    %7329 = vmatprep.subr.bf16.mxu0 %v5585
    %7330 = vmatpush1.bf16.msra.mxu0 %v5584
    %7331 = vmatprep.subr.bf16.mxu0 %v5593
    %7332 = vmatpush1.bf16.msra.mxu0 %v5592
    %7333 = vmatprep.subr.bf16.mxu0 %v5601
    %7334 = vmatpush1.bf16.msra.mxu0 %v5600
    %7335 = vmatprep.subr.bf16.mxu0 %v5609
    %7336 = vmatpush1.bf16.msra.mxu0 %v5608
    %7337 = vmatprep.subr.bf16.mxu0 %v5617
    %7338 = vmatpush1.bf16.msra.mxu0 %v5616
    %7339 = vmatprep.subr.bf16.mxu0 %v5625
    %7340 = vmatpush1.bf16.msra.mxu0 %v5624
    %7341 = vmatprep.subr.bf16.mxu0 %v5633
    %7342 = vmatpush1.bf16.msra.mxu0 %v5632
    %7343 = vmatprep.subr.bf16.mxu0 %v5641
    %7344 = vmatpush1.bf16.msra.mxu0 %v5640
    %7345 = vmatprep.subr.bf16.mxu0 %v5649
    %7346 = vmatpush1.bf16.msra.mxu0 %v5648
    %7347 = vmatprep.subr.bf16.mxu0 %v5657
    %7348 = vmatpush1.bf16.msra.mxu0 %v5656
    %7349 = vmatprep.subr.bf16.mxu0 %v5665
    %7350 = vmatpush1.bf16.msra.mxu0 %v5664
    %7351 = vmatprep.subr.bf16.mxu0 %v5673
    %7352 = vmatpush1.bf16.msra.mxu0 %v5672
    %7353 = vmatprep.mubr.bf16.mxu0 %v7197
    %7354 = vmatmul.mubr.bf16.gmra.mrb[0].mxu0 %v7196
    %v7355 = vpop.f32.mrb[0].mxu0
    %v7356 = vadd.f32 0.0, %v7355
    %v7357 = vpop.f32.mrb[0].mxu0
    %v7358 = vadd.f32 0.0, %v7357
    %v7359 = vpop.f32.mrb[0].mxu0
    %v7360 = vpop.f32.mrb[0].mxu0
    %7361 = vdwg.mxu0
    %v7362 = vadd.f32 %v1419, %v7233
    %v7363 = vadd.f32 %v1421, %v7235
    %v7364 = vadd.f32 %v2617, %v7274
    %v7365 = vadd.f32 %v2619, %v7276
    %v7366 = vadd.f32 %v3780, %v7315
    %v7367 = vadd.f32 %v3782, %v7317
    %v7368 = vadd.f32 %v4978, %v7356
    %v7369 = vadd.f32 %v4980, %v7358
    %v7370 = vxor.u32 %v7362, 2147483648
    %v7371 = vmul.f32 %v7370, 1.442695
    %v7372 = vpow.pop %v7371
    %v7373 = vadd.f32 %v7372, 1.0
    %v7374 = vrcp.pop %v7373
    %v7375 = vmul.f32 1.0, %v7374
    %v7376 = vxor.u32 %v7363, 2147483648
    %v7377 = vmul.f32 %v7376, 1.442695
    %v7378 = vpow.pop %v7377
    %v7379 = vadd.f32 %v7378, 1.0
    %v7380 = vrcp.pop %v7379
    %v7381 = vmul.f32 1.0, %v7380
    %v7382 = vtanh.pop %v7364
    %v7383 = vxor.u32 %v7365, 2147483648
    %v7384 = vmul.f32 %v7383, 1.442695
    %v7385 = vpow.pop %v7384
    %v7386 = vadd.f32 %v7385, 1.0
    %v7387 = vrcp.pop %v7386
    %v7388 = vmul.f32 1.0, %v7387
    %v7389 = vmul.f32 %v7381, %v7193
    %v7390 = vmul.f32 %v7375, %v7382
    %v7391 = vadd.f32 %v7389, %v7390
    %v7392 = vtanh.pop %v7391
    %v7393 = vmul.f32 %v7388, %v7392
    %v7394 = vxor.u32 %v7366, 2147483648
    %v7395 = vmul.f32 %v7394, 1.442695
    %v7396 = vpow.pop %v7395
    %v7397 = vadd.f32 %v7396, 1.0
    %v7398 = vrcp.pop %v7397
    %v7399 = vmul.f32 1.0, %v7398
    %v7400 = vxor.u32 %v7367, 2147483648
    %v7401 = vmul.f32 %v7400, 1.442695
    %v7402 = vpow.pop %v7401
    %v7403 = vadd.f32 %v7402, 1.0
    %v7404 = vrcp.pop %v7403
    %v7405 = vmul.f32 1.0, %v7404
    %v7406 = vtanh.pop %v7368
    %v7407 = vxor.u32 %v7369, 2147483648
    %v7408 = vmul.f32 %v7407, 1.442695
    %v7409 = vpow.pop %v7408
    %v7410 = vadd.f32 %v7409, 1.0
    %v7411 = vrcp.pop %v7410
    %v7412 = vmul.f32 1.0, %v7411
    %v7413 = vmul.f32 %v7405, %v7195
    %v7414 = vmul.f32 %v7399, %v7406
    %v7415 = vadd.f32 %v7413, %v7414
    %v7416 = vtanh.pop %v7415
    %v7417 = vmul.f32 %v7412, %v7416
    %v7418 = vsel %vm6269, %v7393, %v7192
    %v7419 = vsel %vm6269, %v7391, %v7193
    %v7420 = vsel %vm6262, %v7417, %v7194
    %v7421 = vsel %vm6262, %v7415, %v7195
    %v7422 = vpack.c.bf16 %v7418, %v7418
    %v7423 = vpack.c.bf16 %v7420, %v7420
    %7424 = vmatprep.subr.bf16.mxu0 %v5547
    %7425 = vmatpush1.bf16.msra.mxu0 %v5546
    %7426 = vmatprep.subr.bf16.mxu0 %v5555
    %7427 = vmatpush1.bf16.msra.mxu0 %v5554
    %7428 = vmatprep.subr.bf16.mxu0 %v5563
    %7429 = vmatpush1.bf16.msra.mxu0 %v5562
    %7430 = vmatprep.subr.bf16.mxu0 %v5571
    %7431 = vmatpush1.bf16.msra.mxu0 %v5570
    %7432 = vmatprep.subr.bf16.mxu0 %v5579
    %7433 = vmatpush1.bf16.msra.mxu0 %v5578
    %7434 = vmatprep.subr.bf16.mxu0 %v5587
    %7435 = vmatpush1.bf16.msra.mxu0 %v5586
    %7436 = vmatprep.subr.bf16.mxu0 %v5595
    %7437 = vmatpush1.bf16.msra.mxu0 %v5594
    %7438 = vmatprep.subr.bf16.mxu0 %v5603
    %7439 = vmatpush1.bf16.msra.mxu0 %v5602
    %7440 = vmatprep.subr.bf16.mxu0 %v5611
    %7441 = vmatpush1.bf16.msra.mxu0 %v5610
    %7442 = vmatprep.subr.bf16.mxu0 %v5619
    %7443 = vmatpush1.bf16.msra.mxu0 %v5618
    %7444 = vmatprep.subr.bf16.mxu0 %v5627
    %7445 = vmatpush1.bf16.msra.mxu0 %v5626
    %7446 = vmatprep.subr.bf16.mxu0 %v5635
    %7447 = vmatpush1.bf16.msra.mxu0 %v5634
    %7448 = vmatprep.subr.bf16.mxu0 %v5643
    %7449 = vmatpush1.bf16.msra.mxu0 %v5642
    %7450 = vmatprep.subr.bf16.mxu0 %v5651
    %7451 = vmatpush1.bf16.msra.mxu0 %v5650
    %7452 = vmatprep.subr.bf16.mxu0 %v5659
    %7453 = vmatpush1.bf16.msra.mxu0 %v5658
    %7454 = vmatprep.subr.bf16.mxu0 %v5667
    %7455 = vmatpush1.bf16.msra.mxu0 %v5666
    %7456 = vmatprep.mubr.bf16.mxu0 %v7423
    %7457 = vmatmul.mubr.bf16.gmra.mrb[0].mxu0 %v7422
    %v7458 = vpop.f32.mrb[0].mxu0
    %v7459 = vadd.f32 0.0, %v7458
    %v7460 = vpop.f32.mrb[0].mxu0
    %v7461 = vadd.f32 0.0, %v7460
    %v7462 = vpop.f32.mrb[0].mxu0
    %v7463 = vpop.f32.mrb[0].mxu0
    %7464 = vdwg.mxu0
    %7465 = vmatprep.subr.bf16.mxu0 %v5549
    %7466 = vmatpush1.bf16.msra.mxu0 %v5548
    %7467 = vmatprep.subr.bf16.mxu0 %v5557
    %7468 = vmatpush1.bf16.msra.mxu0 %v5556
    %7469 = vmatprep.subr.bf16.mxu0 %v5565
    %7470 = vmatpush1.bf16.msra.mxu0 %v5564
    %7471 = vmatprep.subr.bf16.mxu0 %v5573
    %7472 = vmatpush1.bf16.msra.mxu0 %v5572
    %7473 = vmatprep.subr.bf16.mxu0 %v5581
    %7474 = vmatpush1.bf16.msra.mxu0 %v5580
    %7475 = vmatprep.subr.bf16.mxu0 %v5589
    %7476 = vmatpush1.bf16.msra.mxu0 %v5588
    %7477 = vmatprep.subr.bf16.mxu0 %v5597
    %7478 = vmatpush1.bf16.msra.mxu0 %v5596
    %7479 = vmatprep.subr.bf16.mxu0 %v5605
    %7480 = vmatpush1.bf16.msra.mxu0 %v5604
    %7481 = vmatprep.subr.bf16.mxu0 %v5613
    %7482 = vmatpush1.bf16.msra.mxu0 %v5612
    %7483 = vmatprep.subr.bf16.mxu0 %v5621
    %7484 = vmatpush1.bf16.msra.mxu0 %v5620
    %7485 = vmatprep.subr.bf16.mxu0 %v5629
    %7486 = vmatpush1.bf16.msra.mxu0 %v5628
    %7487 = vmatprep.subr.bf16.mxu0 %v5637
    %7488 = vmatpush1.bf16.msra.mxu0 %v5636
    %7489 = vmatprep.subr.bf16.mxu0 %v5645
    %7490 = vmatpush1.bf16.msra.mxu0 %v5644
    %7491 = vmatprep.subr.bf16.mxu0 %v5653
    %7492 = vmatpush1.bf16.msra.mxu0 %v5652
    %7493 = vmatprep.subr.bf16.mxu0 %v5661
    %7494 = vmatpush1.bf16.msra.mxu0 %v5660
    %7495 = vmatprep.subr.bf16.mxu0 %v5669
    %7496 = vmatpush1.bf16.msra.mxu0 %v5668
    %7497 = vmatprep.mubr.bf16.mxu0 %v7423
    %7498 = vmatmul.mubr.bf16.gmra.mrb[0].mxu0 %v7422
    %v7499 = vpop.f32.mrb[0].mxu0
    %v7500 = vadd.f32 0.0, %v7499
    %v7501 = vpop.f32.mrb[0].mxu0
    %v7502 = vadd.f32 0.0, %v7501
    %v7503 = vpop.f32.mrb[0].mxu0
    %v7504 = vpop.f32.mrb[0].mxu0
    %7505 = vdwg.mxu0
    %7506 = vmatprep.subr.bf16.mxu0 %v5551
    %7507 = vmatpush1.bf16.msra.mxu0 %v5550
    %7508 = vmatprep.subr.bf16.mxu0 %v5559
    %7509 = vmatpush1.bf16.msra.mxu0 %v5558
    %7510 = vmatprep.subr.bf16.mxu0 %v5567
    %7511 = vmatpush1.bf16.msra.mxu0 %v5566
    %7512 = vmatprep.subr.bf16.mxu0 %v5575
    %7513 = vmatpush1.bf16.msra.mxu0 %v5574
    %7514 = vmatprep.subr.bf16.mxu0 %v5583
    %7515 = vmatpush1.bf16.msra.mxu0 %v5582
    %7516 = vmatprep.subr.bf16.mxu0 %v5591
    %7517 = vmatpush1.bf16.msra.mxu0 %v5590
    %7518 = vmatprep.subr.bf16.mxu0 %v5599
    %7519 = vmatpush1.bf16.msra.mxu0 %v5598
    %7520 = vmatprep.subr.bf16.mxu0 %v5607
    %7521 = vmatpush1.bf16.msra.mxu0 %v5606
    %7522 = vmatprep.subr.bf16.mxu0 %v5615
    %7523 = vmatpush1.bf16.msra.mxu0 %v5614
    %7524 = vmatprep.subr.bf16.mxu0 %v5623
    %7525 = vmatpush1.bf16.msra.mxu0 %v5622
    %7526 = vmatprep.subr.bf16.mxu0 %v5631
    %7527 = vmatpush1.bf16.msra.mxu0 %v5630
    %7528 = vmatprep.subr.bf16.mxu0 %v5639
    %7529 = vmatpush1.bf16.msra.mxu0 %v5638
    %7530 = vmatprep.subr.bf16.mxu0 %v5647
    %7531 = vmatpush1.bf16.msra.mxu0 %v5646
    %7532 = vmatprep.subr.bf16.mxu0 %v5655
    %7533 = vmatpush1.bf16.msra.mxu0 %v5654
    %7534 = vmatprep.subr.bf16.mxu0 %v5663
    %7535 = vmatpush1.bf16.msra.mxu0 %v5662
    %7536 = vmatprep.subr.bf16.mxu0 %v5671
    %7537 = vmatpush1.bf16.msra.mxu0 %v5670
    %7538 = vmatprep.mubr.bf16.mxu0 %v7423
    %7539 = vmatmul.mubr.bf16.gmra.mrb[0].mxu0 %v7422
    %v7540 = vpop.f32.mrb[0].mxu0
    %v7541 = vadd.f32 0.0, %v7540
    %v7542 = vpop.f32.mrb[0].mxu0
    %v7543 = vadd.f32 0.0, %v7542
    %v7544 = vpop.f32.mrb[0].mxu0
    %v7545 = vpop.f32.mrb[0].mxu0
    %7546 = vdwg.mxu0
    %7547 = vmatprep.subr.bf16.mxu0 %v5553
    %7548 = vmatpush1.bf16.msra.mxu0 %v5552
    %7549 = vmatprep.subr.bf16.mxu0 %v5561
    %7550 = vmatpush1.bf16.msra.mxu0 %v5560
    %7551 = vmatprep.subr.bf16.mxu0 %v5569
    %7552 = vmatpush1.bf16.msra.mxu0 %v5568
    %7553 = vmatprep.subr.bf16.mxu0 %v5577
    %7554 = vmatpush1.bf16.msra.mxu0 %v5576
    %7555 = vmatprep.subr.bf16.mxu0 %v5585
    %7556 = vmatpush1.bf16.msra.mxu0 %v5584
    %7557 = vmatprep.subr.bf16.mxu0 %v5593
    %7558 = vmatpush1.bf16.msra.mxu0 %v5592
    %7559 = vmatprep.subr.bf16.mxu0 %v5601
    %7560 = vmatpush1.bf16.msra.mxu0 %v5600
    %7561 = vmatprep.subr.bf16.mxu0 %v5609
    %7562 = vmatpush1.bf16.msra.mxu0 %v5608
    %7563 = vmatprep.subr.bf16.mxu0 %v5617
    %7564 = vmatpush1.bf16.msra.mxu0 %v5616
    %7565 = vmatprep.subr.bf16.mxu0 %v5625
    %7566 = vmatpush1.bf16.msra.mxu0 %v5624
    %7567 = vmatprep.subr.bf16.mxu0 %v5633
    %7568 = vmatpush1.bf16.msra.mxu0 %v5632
    %7569 = vmatprep.subr.bf16.mxu0 %v5641
    %7570 = vmatpush1.bf16.msra.mxu0 %v5640
    %7571 = vmatprep.subr.bf16.mxu0 %v5649
    %7572 = vmatpush1.bf16.msra.mxu0 %v5648
    %7573 = vmatprep.subr.bf16.mxu0 %v5657
    %7574 = vmatpush1.bf16.msra.mxu0 %v5656
    %7575 = vmatprep.subr.bf16.mxu0 %v5665
    %7576 = vmatpush1.bf16.msra.mxu0 %v5664
    %7577 = vmatprep.subr.bf16.mxu0 %v5673
    %7578 = vmatpush1.bf16.msra.mxu0 %v5672
    %7579 = vmatprep.mubr.bf16.mxu0 %v7423
    %7580 = vmatmul.mubr.bf16.gmra.mrb[0].mxu0 %v7422
    %v7581 = vpop.f32.mrb[0].mxu0
    %v7582 = vadd.f32 0.0, %v7581
    %v7583 = vpop.f32.mrb[0].mxu0
    %v7584 = vadd.f32 0.0, %v7583
    %v7585 = vpop.f32.mrb[0].mxu0
    %v7586 = vpop.f32.mrb[0].mxu0
    %7587 = vdwg.mxu0
    %v7588 = vadd.f32 %v1426, %v7459
    %v7589 = vadd.f32 %v1428, %v7461
    %v7590 = vadd.f32 %v2624, %v7500
    %v7591 = vadd.f32 %v2626, %v7502
    %v7592 = vadd.f32 %v3773, %v7541
    %v7593 = vadd.f32 %v3775, %v7543
    %v7594 = vadd.f32 %v4971, %v7582
    %v7595 = vadd.f32 %v4973, %v7584
    %v7596 = vxor.u32 %v7588, 2147483648
    %v7597 = vmul.f32 %v7596, 1.442695
    %v7598 = vpow.pop %v7597
    %v7599 = vadd.f32 %v7598, 1.0
    %v7600 = vrcp.pop %v7599
    %v7601 = vmul.f32 1.0, %v7600
    %v7602 = vxor.u32 %v7589, 2147483648
    %v7603 = vmul.f32 %v7602, 1.442695
    %v7604 = vpow.pop %v7603
    %v7605 = vadd.f32 %v7604, 1.0
    %v7606 = vrcp.pop %v7605
    %v7607 = vmul.f32 1.0, %v7606
    %v7608 = vtanh.pop %v7590
    %v7609 = vxor.u32 %v7591, 2147483648
    %v7610 = vmul.f32 %v7609, 1.442695
    %v7611 = vpow.pop %v7610
    %v7612 = vadd.f32 %v7611, 1.0
    %v7613 = vrcp.pop %v7612
    %v7614 = vmul.f32 1.0, %v7613
    %v7615 = vmul.f32 %v7607, %v7419
    %v7616 = vmul.f32 %v7601, %v7608
    %v7617 = vadd.f32 %v7615, %v7616
    %v7618 = vtanh.pop %v7617
    %v7619 = vmul.f32 %v7614, %v7618
    %v7620 = vxor.u32 %v7592, 2147483648
    %v7621 = vmul.f32 %v7620, 1.442695
    %v7622 = vpow.pop %v7621
    %v7623 = vadd.f32 %v7622, 1.0
    %v7624 = vrcp.pop %v7623
    %v7625 = vmul.f32 1.0, %v7624
    %v7626 = vxor.u32 %v7593, 2147483648
    %v7627 = vmul.f32 %v7626, 1.442695
    %v7628 = vpow.pop %v7627
    %v7629 = vadd.f32 %v7628, 1.0
    %v7630 = vrcp.pop %v7629
    %v7631 = vmul.f32 1.0, %v7630
    %v7632 = vtanh.pop %v7594
    %v7633 = vxor.u32 %v7595, 2147483648
    %v7634 = vmul.f32 %v7633, 1.442695
    %v7635 = vpow.pop %v7634
    %v7636 = vadd.f32 %v7635, 1.0
    %v7637 = vrcp.pop %v7636
    %v7638 = vmul.f32 1.0, %v7637
    %v7639 = vmul.f32 %v7631, %v7421
    %v7640 = vmul.f32 %v7625, %v7632
    %v7641 = vadd.f32 %v7639, %v7640
    %v7642 = vtanh.pop %v7641
    %v7643 = vmul.f32 %v7638, %v7642
    %v7644 = vsel %vm6033, %v7619, %v7418
    %v7645 = vsel %vm6026, %v7643, %v7420
    %7646 = vst [vmem:[#allocation7] sm:$0xff] %v7644
    %7647 = vst [vmem:[#allocation7 + $0x8] sm:$0xff] %v7645
    // Predicated region
    $region26: #{tpu_custom_call.1} parent=1 // pred_check
      _
    $region27: #{tpu_custom_call.1} parent=1 // pred_check_branch
      %7649 = sbr.rel (0) target = $region29
    $region28: #{tpu_custom_call.1} parent=1 // pred_region
      %s7651 = ssub.s32 256, 256
      %7652 = vsyncadd [#allocation4], %s7651
      %s7654 = sshll.u32 [#allocation7], 4
      %s7655 = int_to_ptr.vmem [resolvable:$true] %s7654
      %7657 = dma.vmem_to_hbm [thread:$0]  %s7655, 256, %s4, [#allocation4]
    $region29: #{tpu_custom_call.1} parent=1 // pred_fallthru
      _
    // Predicated region
    $region30: #{tpu_custom_call.1} parent=1 // pred_check
      _
    $region31: #{tpu_custom_call.1} parent=1 // pred_check_branch
      %7659 = sbr.rel (0) target = $region33
    $region32: #{tpu_custom_call.1} parent=1 // pred_region
      %7660 = dma.done [#allocation4], 256
    $region33: #{tpu_custom_call.1} parent=1 // pred_fallthru
      _
    %7661 = vsyncpa [#allocation3], 1
    %7662 = vsyncpa [#allocation6], 1
    %7663 = vsyncpa [#allocation4], 1

</llo_original>
